<compile_context>
chip_gen: v6e
topology: v6e:2x2x1
jax: 0.10.0
libtpu: 0.0.40
codegen_flags: <defaults>
</compile_context>

<pallas_src>
import numpy as np
import jax
import jax.numpy as jnp
from jax.experimental import pallas as pl
from jax.experimental.pallas import tpu as pltpu

IN_CH = 4     # input channels
HID = 32      # hidden / output channels of every conv block
IMG = 16      # input spatial size (16 -> 8 -> 4 -> 2 -> 1)
NUM_BLOCKS = 4


def _pool_select_mats(ho, wo):
    """4 one-hot (Ho*Wo, H*W) matrices selecting the 4 members of each 2x2 window."""
    h, w = 2 * ho, 2 * wo
    s = np.zeros((4, ho * wo, h * w), np.float32)
    for dy in range(2):
        for dx in range(2):
            k = dy * 2 + dx
            for i in range(ho):
                for j in range(wo):
                    s[k, i * wo + j, (2 * i + dy) * w + (2 * j + dx)] = 1.0
    return jnp.asarray(s)


def _encoder_kernel(x_ref,
                    w1, b1, s1, w2, b2, s2, w3, b3, s3, w4, b4, s4,
                    o_ref,
                    pb1, pb2, pb3, pb4):
    # Zero the padded activation buffers: establishes the conv zero-pad border.
    pb1[...] = jnp.zeros_like(pb1)
    pb2[...] = jnp.zeros_like(pb2)
    pb3[...] = jnp.zeros_like(pb3)
    pb4[...] = jnp.zeros_like(pb4)
    # Put this grid step's image into the interior of the first padded buffer.
    pb1[1:IMG + 1, 1:IMG + 1, :] = x_ref[0]

    def block(pin, w_ref, b_ref, s_ref, h, w, cin, pout):
        ho, wo = h // 2, w // 2
        # conv3x3(pad=1) as 9 shifted-window (Cin x Cout) dots, bf16 MXU, f32 acc.
        acc = jnp.zeros((h * w, HID), jnp.float32)
        for kh in range(3):
            for kw in range(3):
                win = pin[kh:kh + h, kw:kw + w, :]                    # (h, w, cin)
                x2d = win.reshape(h * w, cin).astype(jnp.bfloat16)
                acc = acc + jnp.dot(x2d, w_ref[kh * 3 + kw],
                                    preferred_element_type=jnp.float32)
        # 2x2 max-pool: elementwise max over 4 exact 0/1 selection matmuls.
        pooled = None
        for k in range(4):
            v = jnp.dot(s_ref[k], acc, preferred_element_type=jnp.float32)
            pooled = v if pooled is None else jnp.maximum(pooled, v)
        # Bias + ReLU once, after pooling (equivalent, 4x cheaper).  BN folded.
        pooled = jnp.maximum(pooled + b_ref[...], 0.0)                # (ho*wo, HID) f32
        if pout is None:
            return pooled
        pout[1:ho + 1, 1:wo + 1, :] = pooled.reshape(ho, wo, HID)
        return None

    block(pb1, w1, b1, s1, 16, 16, IN_CH, pb2)
    block(pb2, w2, b2, s2, 8, 8, HID, pb3)
    block(pb3, w3, b3, s3, 4, 4, HID, pb4)
    emb = block(pb4, w4, b4, s4, 2, 2, HID, None)                     # (1, HID)
    o_ref[0] = emb.astype(o_ref.dtype)


def init_params(key, in_channels=IN_CH, hidden=HID, num_blocks=NUM_BLOCKS):
    """Deterministic synthetic weights for the 4-block ProtoNet encoder + threshold."""
    params = {"conv": []}
    cin = in_channels
    for _ in range(num_blocks):
        key, kw, kb = jax.random.split(key, 3)
        fan_in = 9 * cin
        w = jax.random.normal(kw, (3, 3, cin, hidden), jnp.float32) / jnp.sqrt(fan_in)
        b = 0.01 * jax.random.normal(kb, (hidden,), jnp.float32)
        params["conv"].append((w, b))
        cin = hidden
    key, kt = jax.random.split(key)
    params["threshold"] = jax.random.normal(kt, (1,), jnp.float32)  # torch.randn(1)
    return params


def protonet_forward(params, images_nchw):
    """ProtoNetNetwork.forward: returns (embed_forward(images), ood_forward())."""
    # NCHW (PyTorch convention) -> NHWC for the TPU kernel (channels on lanes).
    x = jnp.transpose(images_nchw, (0, 2, 3, 1)).astype(jnp.float32)
    n = x.shape[0]

    flat, in_specs = [], []
    spatial = IMG
    for (w, b) in params["conv"]:
        cin = w.shape[2]
        wk = jnp.asarray(w, jnp.float32).reshape(9, cin, HID).astype(jnp.bfloat16)
        flat.append(wk)
        in_specs.append(pl.BlockSpec((9, cin, HID), lambda i: (0, 0, 0)))
        flat.append(jnp.asarray(b, jnp.float32).reshape(1, HID))
        in_specs.append(pl.BlockSpec((1, HID), lambda i: (0, 0)))
        s = _pool_select_mats(spatial // 2, spatial // 2)             # conv out == block in size
        flat.append(s)
        in_specs.append(pl.BlockSpec(s.shape, lambda i: (0, 0, 0)))
        spatial //= 2

    out = pl.pallas_call(
        _encoder_kernel,
        out_shape=jax.ShapeDtypeStruct((n, 1, HID), jnp.float32),
        grid=(n,),
        in_specs=[pl.BlockSpec((1, IMG, IMG, IN_CH), lambda i: (i, 0, 0, 0))] + in_specs,
        out_specs=pl.BlockSpec((1, 1, HID), lambda i: (i, 0, 0)),
        scratch_shapes=[
            pltpu.VMEM((IMG + 2, IMG + 2, IN_CH), jnp.float32),        # padded act, block 1 in
            pltpu.VMEM((IMG // 2 + 2, IMG // 2 + 2, HID), jnp.float32),
            pltpu.VMEM((IMG // 4 + 2, IMG // 4 + 2, HID), jnp.float32),
            pltpu.VMEM((IMG // 8 + 2, IMG // 8 + 2, HID), jnp.float32),
        ],
        compiler_params=pltpu.CompilerParams(dimension_semantics=("parallel",)),
    )(x, *flat)

    emb = out.reshape(n, HID)           # final spatial is 1x1, so NHWC==NCHW flatten order
    return emb, params["threshold"]     # (embeddings, threshold)


if __name__ == "__main__":
    key = jax.random.PRNGKey(0)
    kp, kx = jax.random.split(key)
    params = init_params(kp, in_channels=IN_CH, hidden=HID, num_blocks=NUM_BLOCKS)
    # (num_images, channels, height, width): 16 -> 8 -> 4 -> 2 -> 1 spatial
    x = jax.random.normal(kx, (2, IN_CH, IMG, IMG), jnp.float32)

    emb, thr = jax.jit(protonet_forward)(params, x)
    jax.block_until_ready((emb, thr))

    assert emb.shape == (2, HID), emb.shape
    assert thr.shape == (1,), thr.shape
    print("KERNEL_OK")
</pallas_src>

<mosaic_0001>
module attributes {stable_mosaic.version = 11 : i64} {
  func.func @_encoder_kernel(%arg0: i32, %arg1: memref<1x16x16x4xf32, #tpu.memory_space<vmem>>, %arg2: memref<9x4x32xbf16, #tpu.memory_space<vmem>>, %arg3: memref<1x32xf32, #tpu.memory_space<vmem>>, %arg4: memref<4x64x256xf32, #tpu.memory_space<vmem>>, %arg5: memref<9x32x32xbf16, #tpu.memory_space<vmem>>, %arg6: memref<1x32xf32, #tpu.memory_space<vmem>>, %arg7: memref<4x16x64xf32, #tpu.memory_space<vmem>>, %arg8: memref<9x32x32xbf16, #tpu.memory_space<vmem>>, %arg9: memref<1x32xf32, #tpu.memory_space<vmem>>, %arg10: memref<4x4x16xf32, #tpu.memory_space<vmem>>, %arg11: memref<9x32x32xbf16, #tpu.memory_space<vmem>>, %arg12: memref<1x32xf32, #tpu.memory_space<vmem>>, %arg13: memref<4x1x4xf32, #tpu.memory_space<vmem>>, %arg14: memref<1x1x32xf32, #tpu.memory_space<vmem>>, %arg15: memref<18x18x4xf32, #tpu.memory_space<vmem>>, %arg16: memref<10x10x32xf32, #tpu.memory_space<vmem>>, %arg17: memref<6x6x32xf32, #tpu.memory_space<vmem>>, %arg18: memref<4x4x32xf32, #tpu.memory_space<vmem>>) attributes {dimension_semantics = [#tpu.dimension_semantics<parallel>], iteration_bounds = array<i64: 2>, scalar_prefetch = 0 : i64, scratch_operands = 4 : i64, tpu.core_type = #tpu.core_type<tc>, window_params = [{transform_indices = @transform_0, window_bounds = array<i64: 1, 16, 16, 4>}, {pipeline_mode = #tpu.pipeline_mode<synchronous>, transform_indices = @transform_1, window_bounds = array<i64: 9, 4, 32>}, {pipeline_mode = #tpu.pipeline_mode<synchronous>, transform_indices = @transform_2, window_bounds = array<i64: 1, 32>}, {pipeline_mode = #tpu.pipeline_mode<synchronous>, transform_indices = @transform_3, window_bounds = array<i64: 4, 64, 256>}, {pipeline_mode = #tpu.pipeline_mode<synchronous>, transform_indices = @transform_4, window_bounds = array<i64: 9, 32, 32>}, {pipeline_mode = #tpu.pipeline_mode<synchronous>, transform_indices = @transform_5, window_bounds = array<i64: 1, 32>}, {pipeline_mode = #tpu.pipeline_mode<synchronous>, transform_indices = @transform_6, window_bounds = array<i64: 4, 16, 64>}, {pipeline_mode = #tpu.pipeline_mode<synchronous>, transform_indices = @transform_7, window_bounds = array<i64: 9, 32, 32>}, {pipeline_mode = #tpu.pipeline_mode<synchronous>, transform_indices = @transform_8, window_bounds = array<i64: 1, 32>}, {pipeline_mode = #tpu.pipeline_mode<synchronous>, transform_indices = @transform_9, window_bounds = array<i64: 4, 4, 16>}, {pipeline_mode = #tpu.pipeline_mode<synchronous>, transform_indices = @transform_10, window_bounds = array<i64: 9, 32, 32>}, {pipeline_mode = #tpu.pipeline_mode<synchronous>, transform_indices = @transform_11, window_bounds = array<i64: 1, 32>}, {pipeline_mode = #tpu.pipeline_mode<synchronous>, transform_indices = @transform_12, window_bounds = array<i64: 4, 1, 4>}, {transform_indices = @transform_13, window_bounds = array<i64: 1, 1, 32>}]} {
    %cst = arith.constant 0.000000e+00 : f32
    %0 = vector.broadcast %cst : f32 to vector<18x18x4xf32>
    %c0 = arith.constant 0 : index
    %c0_0 = arith.constant 0 : index
    %c0_1 = arith.constant 0 : index
    %1 = vector.load %arg15[%c0, %c0_0, %c0_1] : memref<18x18x4xf32, #tpu.memory_space<vmem>>, vector<18x18x4xf32>
    tpu.vector_store %arg15[%c0, %c0_0, %c0_1], %0 {strides = array<i32>} : memref<18x18x4xf32, #tpu.memory_space<vmem>>, vector<18x18x4xf32>,
    %cst_2 = arith.constant 0.000000e+00 : f32
    %2 = vector.broadcast %cst_2 : f32 to vector<10x10x32xf32>
    %c0_3 = arith.constant 0 : index
    %c0_4 = arith.constant 0 : index
    %c0_5 = arith.constant 0 : index
    %3 = vector.load %arg16[%c0_3, %c0_4, %c0_5] : memref<10x10x32xf32, #tpu.memory_space<vmem>>, vector<10x10x32xf32>
    tpu.vector_store %arg16[%c0_3, %c0_4, %c0_5], %2 {strides = array<i32>} : memref<10x10x32xf32, #tpu.memory_space<vmem>>, vector<10x10x32xf32>,
    %cst_6 = arith.constant 0.000000e+00 : f32
    %4 = vector.broadcast %cst_6 : f32 to vector<6x6x32xf32>
    %c0_7 = arith.constant 0 : index
    %c0_8 = arith.constant 0 : index
    %c0_9 = arith.constant 0 : index
    %5 = vector.load %arg17[%c0_7, %c0_8, %c0_9] : memref<6x6x32xf32, #tpu.memory_space<vmem>>, vector<6x6x32xf32>
    tpu.vector_store %arg17[%c0_7, %c0_8, %c0_9], %4 {strides = array<i32>} : memref<6x6x32xf32, #tpu.memory_space<vmem>>, vector<6x6x32xf32>,
    %cst_10 = arith.constant 0.000000e+00 : f32
    %6 = vector.broadcast %cst_10 : f32 to vector<4x4x32xf32>
    %c0_11 = arith.constant 0 : index
    %c0_12 = arith.constant 0 : index
    %c0_13 = arith.constant 0 : index
    %7 = vector.load %arg18[%c0_11, %c0_12, %c0_13] : memref<4x4x32xf32, #tpu.memory_space<vmem>>, vector<4x4x32xf32>
    tpu.vector_store %arg18[%c0_11, %c0_12, %c0_13], %6 {strides = array<i32>} : memref<4x4x32xf32, #tpu.memory_space<vmem>>, vector<4x4x32xf32>,
    %c0_14 = arith.constant 0 : index
    %c0_15 = arith.constant 0 : index
    %c0_16 = arith.constant 0 : index
    %c0_17 = arith.constant 0 : index
    %8 = vector.load %arg1[%c0_14, %c0_15, %c0_16, %c0_17] : memref<1x16x16x4xf32, #tpu.memory_space<vmem>>, vector<1x16x16x4xf32>
    %9 = vector.shape_cast %8 : vector<1x16x16x4xf32> to vector<16x16x4xf32>
    %c1 = arith.constant 1 : index
    %c1_18 = arith.constant 1 : index
    %c0_19 = arith.constant 0 : index
    %10 = vector.load %arg15[%c1, %c1_18, %c0_19] : memref<18x18x4xf32, #tpu.memory_space<vmem>>, vector<16x16x4xf32>
    tpu.vector_store %arg15[%c1, %c1_18, %c0_19], %9 {strides = array<i32>} : memref<18x18x4xf32, #tpu.memory_space<vmem>>, vector<16x16x4xf32>,
    %cst_20 = arith.constant 0.000000e+00 : f32
    %11 = vector.broadcast %cst_20 : f32 to vector<256x32xf32>
    %c0_21 = arith.constant 0 : index
    %c0_22 = arith.constant 0 : index
    %c0_23 = arith.constant 0 : index
    %12 = vector.load %arg15[%c0_21, %c0_22, %c0_23] : memref<18x18x4xf32, #tpu.memory_space<vmem>>, vector<16x16x4xf32>
    %13 = vector.shape_cast %12 : vector<16x16x4xf32> to vector<256x4xf32>
    %14 = arith.truncf %13 : vector<256x4xf32> to vector<256x4xbf16>
    %c0_24 = arith.constant 0 : index
    %c0_25 = arith.constant 0 : index
    %c0_26 = arith.constant 0 : index
    %15 = vector.load %arg2[%c0_24, %c0_25, %c0_26] : memref<9x4x32xbf16, #tpu.memory_space<vmem>>, vector<1x4x32xbf16>
    %16 = vector.shape_cast %15 : vector<1x4x32xbf16> to vector<4x32xbf16>
    %cst_27 = arith.constant dense<0.000000e+00> : vector<256x32xf32>
    %17 = tpu.matmul %14, %16, %cst_27 {dimension_numbers = #tpu.dot_dimension_numbers<[1], [0], [0], [1], [0, 0, 1, 1], [], []>} : vector<256x4xbf16>, vector<4x32xbf16>, vector<256x32xf32> -> vector<256x32xf32>
    %18 = arith.addf %11, %17 : vector<256x32xf32>
    %c0_28 = arith.constant 0 : index
    %c1_29 = arith.constant 1 : index
    %c0_30 = arith.constant 0 : index
    %19 = vector.load %arg15[%c0_28, %c1_29, %c0_30] : memref<18x18x4xf32, #tpu.memory_space<vmem>>, vector<16x16x4xf32>
    %20 = vector.shape_cast %19 : vector<16x16x4xf32> to vector<256x4xf32>
    %21 = arith.truncf %20 : vector<256x4xf32> to vector<256x4xbf16>
    %c1_31 = arith.constant 1 : index
    %c0_32 = arith.constant 0 : index
    %c0_33 = arith.constant 0 : index
    %22 = vector.load %arg2[%c1_31, %c0_32, %c0_33] : memref<9x4x32xbf16, #tpu.memory_space<vmem>>, vector<1x4x32xbf16>
    %23 = vector.shape_cast %22 : vector<1x4x32xbf16> to vector<4x32xbf16>
    %cst_34 = arith.constant dense<0.000000e+00> : vector<256x32xf32>
    %24 = tpu.matmul %21, %23, %cst_34 {dimension_numbers = #tpu.dot_dimension_numbers<[1], [0], [0], [1], [0, 0, 1, 1], [], []>} : vector<256x4xbf16>, vector<4x32xbf16>, vector<256x32xf32> -> vector<256x32xf32>
    %25 = arith.addf %18, %24 : vector<256x32xf32>
    %c0_35 = arith.constant 0 : index
    %c2 = arith.constant 2 : index
    %c0_36 = arith.constant 0 : index
    %26 = vector.load %arg15[%c0_35, %c2, %c0_36] : memref<18x18x4xf32, #tpu.memory_space<vmem>>, vector<16x16x4xf32>
    %27 = vector.shape_cast %26 : vector<16x16x4xf32> to vector<256x4xf32>
    %28 = arith.truncf %27 : vector<256x4xf32> to vector<256x4xbf16>
    %c2_37 = arith.constant 2 : index
    %c0_38 = arith.constant 0 : index
    %c0_39 = arith.constant 0 : index
    %29 = vector.load %arg2[%c2_37, %c0_38, %c0_39] : memref<9x4x32xbf16, #tpu.memory_space<vmem>>, vector<1x4x32xbf16>
    %30 = vector.shape_cast %29 : vector<1x4x32xbf16> to vector<4x32xbf16>
    %cst_40 = arith.constant dense<0.000000e+00> : vector<256x32xf32>
    %31 = tpu.matmul %28, %30, %cst_40 {dimension_numbers = #tpu.dot_dimension_numbers<[1], [0], [0], [1], [0, 0, 1, 1], [], []>} : vector<256x4xbf16>, vector<4x32xbf16>, vector<256x32xf32> -> vector<256x32xf32>
    %32 = arith.addf %25, %31 : vector<256x32xf32>
    %c1_41 = arith.constant 1 : index
    %c0_42 = arith.constant 0 : index
    %c0_43 = arith.constant 0 : index
    %33 = vector.load %arg15[%c1_41, %c0_42, %c0_43] : memref<18x18x4xf32, #tpu.memory_space<vmem>>, vector<16x16x4xf32>
    %34 = vector.shape_cast %33 : vector<16x16x4xf32> to vector<256x4xf32>
    %35 = arith.truncf %34 : vector<256x4xf32> to vector<256x4xbf16>
    %c3 = arith.constant 3 : index
    %c0_44 = arith.constant 0 : index
    %c0_45 = arith.constant 0 : index
    %36 = vector.load %arg2[%c3, %c0_44, %c0_45] : memref<9x4x32xbf16, #tpu.memory_space<vmem>>, vector<1x4x32xbf16>
    %37 = vector.shape_cast %36 : vector<1x4x32xbf16> to vector<4x32xbf16>
    %cst_46 = arith.constant dense<0.000000e+00> : vector<256x32xf32>
    %38 = tpu.matmul %35, %37, %cst_46 {dimension_numbers = #tpu.dot_dimension_numbers<[1], [0], [0], [1], [0, 0, 1, 1], [], []>} : vector<256x4xbf16>, vector<4x32xbf16>, vector<256x32xf32> -> vector<256x32xf32>
    %39 = arith.addf %32, %38 : vector<256x32xf32>
    %c1_47 = arith.constant 1 : index
    %c1_48 = arith.constant 1 : index
    %c0_49 = arith.constant 0 : index
    %40 = vector.load %arg15[%c1_47, %c1_48, %c0_49] : memref<18x18x4xf32, #tpu.memory_space<vmem>>, vector<16x16x4xf32>
    %41 = vector.shape_cast %40 : vector<16x16x4xf32> to vector<256x4xf32>
    %42 = arith.truncf %41 : vector<256x4xf32> to vector<256x4xbf16>
    %c4 = arith.constant 4 : index
    %c0_50 = arith.constant 0 : index
    %c0_51 = arith.constant 0 : index
    %43 = vector.load %arg2[%c4, %c0_50, %c0_51] : memref<9x4x32xbf16, #tpu.memory_space<vmem>>, vector<1x4x32xbf16>
    %44 = vector.shape_cast %43 : vector<1x4x32xbf16> to vector<4x32xbf16>
    %cst_52 = arith.constant dense<0.000000e+00> : vector<256x32xf32>
    %45 = tpu.matmul %42, %44, %cst_52 {dimension_numbers = #tpu.dot_dimension_numbers<[1], [0], [0], [1], [0, 0, 1, 1], [], []>} : vector<256x4xbf16>, vector<4x32xbf16>, vector<256x32xf32> -> vector<256x32xf32>
    %46 = arith.addf %39, %45 : vector<256x32xf32>
    %c1_53 = arith.constant 1 : index
    %c2_54 = arith.constant 2 : index
    %c0_55 = arith.constant 0 : index
    %47 = vector.load %arg15[%c1_53, %c2_54, %c0_55] : memref<18x18x4xf32, #tpu.memory_space<vmem>>, vector<16x16x4xf32>
    %48 = vector.shape_cast %47 : vector<16x16x4xf32> to vector<256x4xf32>
    %49 = arith.truncf %48 : vector<256x4xf32> to vector<256x4xbf16>
    %c5 = arith.constant 5 : index
    %c0_56 = arith.constant 0 : index
    %c0_57 = arith.constant 0 : index
    %50 = vector.load %arg2[%c5, %c0_56, %c0_57] : memref<9x4x32xbf16, #tpu.memory_space<vmem>>, vector<1x4x32xbf16>
    %51 = vector.shape_cast %50 : vector<1x4x32xbf16> to vector<4x32xbf16>
    %cst_58 = arith.constant dense<0.000000e+00> : vector<256x32xf32>
    %52 = tpu.matmul %49, %51, %cst_58 {dimension_numbers = #tpu.dot_dimension_numbers<[1], [0], [0], [1], [0, 0, 1, 1], [], []>} : vector<256x4xbf16>, vector<4x32xbf16>, vector<256x32xf32> -> vector<256x32xf32>
    %53 = arith.addf %46, %52 : vector<256x32xf32>
    %c2_59 = arith.constant 2 : index
    %c0_60 = arith.constant 0 : index
    %c0_61 = arith.constant 0 : index
    %54 = vector.load %arg15[%c2_59, %c0_60, %c0_61] : memref<18x18x4xf32, #tpu.memory_space<vmem>>, vector<16x16x4xf32>
    %55 = vector.shape_cast %54 : vector<16x16x4xf32> to vector<256x4xf32>
    %56 = arith.truncf %55 : vector<256x4xf32> to vector<256x4xbf16>
    %c6 = arith.constant 6 : index
    %c0_62 = arith.constant 0 : index
    %c0_63 = arith.constant 0 : index
    %57 = vector.load %arg2[%c6, %c0_62, %c0_63] : memref<9x4x32xbf16, #tpu.memory_space<vmem>>, vector<1x4x32xbf16>
    %58 = vector.shape_cast %57 : vector<1x4x32xbf16> to vector<4x32xbf16>
    %cst_64 = arith.constant dense<0.000000e+00> : vector<256x32xf32>
    %59 = tpu.matmul %56, %58, %cst_64 {dimension_numbers = #tpu.dot_dimension_numbers<[1], [0], [0], [1], [0, 0, 1, 1], [], []>} : vector<256x4xbf16>, vector<4x32xbf16>, vector<256x32xf32> -> vector<256x32xf32>
    %60 = arith.addf %53, %59 : vector<256x32xf32>
    %c2_65 = arith.constant 2 : index
    %c1_66 = arith.constant 1 : index
    %c0_67 = arith.constant 0 : index
    %61 = vector.load %arg15[%c2_65, %c1_66, %c0_67] : memref<18x18x4xf32, #tpu.memory_space<vmem>>, vector<16x16x4xf32>
    %62 = vector.shape_cast %61 : vector<16x16x4xf32> to vector<256x4xf32>
    %63 = arith.truncf %62 : vector<256x4xf32> to vector<256x4xbf16>
    %c7 = arith.constant 7 : index
    %c0_68 = arith.constant 0 : index
    %c0_69 = arith.constant 0 : index
    %64 = vector.load %arg2[%c7, %c0_68, %c0_69] : memref<9x4x32xbf16, #tpu.memory_space<vmem>>, vector<1x4x32xbf16>
    %65 = vector.shape_cast %64 : vector<1x4x32xbf16> to vector<4x32xbf16>
    %cst_70 = arith.constant dense<0.000000e+00> : vector<256x32xf32>
    %66 = tpu.matmul %63, %65, %cst_70 {dimension_numbers = #tpu.dot_dimension_numbers<[1], [0], [0], [1], [0, 0, 1, 1], [], []>} : vector<256x4xbf16>, vector<4x32xbf16>, vector<256x32xf32> -> vector<256x32xf32>
    %67 = arith.addf %60, %66 : vector<256x32xf32>
    %c2_71 = arith.constant 2 : index
    %c2_72 = arith.constant 2 : index
    %c0_73 = arith.constant 0 : index
    %68 = vector.load %arg15[%c2_71, %c2_72, %c0_73] : memref<18x18x4xf32, #tpu.memory_space<vmem>>, vector<16x16x4xf32>
    %69 = vector.shape_cast %68 : vector<16x16x4xf32> to vector<256x4xf32>
    %70 = arith.truncf %69 : vector<256x4xf32> to vector<256x4xbf16>
    %c8 = arith.constant 8 : index
    %c0_74 = arith.constant 0 : index
    %c0_75 = arith.constant 0 : index
    %71 = vector.load %arg2[%c8, %c0_74, %c0_75] : memref<9x4x32xbf16, #tpu.memory_space<vmem>>, vector<1x4x32xbf16>
    %72 = vector.shape_cast %71 : vector<1x4x32xbf16> to vector<4x32xbf16>
    %cst_76 = arith.constant dense<0.000000e+00> : vector<256x32xf32>
    %73 = tpu.matmul %70, %72, %cst_76 {dimension_numbers = #tpu.dot_dimension_numbers<[1], [0], [0], [1], [0, 0, 1, 1], [], []>} : vector<256x4xbf16>, vector<4x32xbf16>, vector<256x32xf32> -> vector<256x32xf32>
    %74 = arith.addf %67, %73 : vector<256x32xf32>
    %c0_77 = arith.constant 0 : index
    %c0_78 = arith.constant 0 : index
    %c0_79 = arith.constant 0 : index
    %75 = vector.load %arg4[%c0_77, %c0_78, %c0_79] : memref<4x64x256xf32, #tpu.memory_space<vmem>>, vector<1x64x256xf32>
    %76 = vector.shape_cast %75 : vector<1x64x256xf32> to vector<64x256xf32>
    %cst_80 = arith.constant dense<0.000000e+00> : vector<64x32xf32>
    %77 = tpu.matmul %76, %74, %cst_80 {dimension_numbers = #tpu.dot_dimension_numbers<[1], [0], [0], [1], [0, 0, 1, 1], [], []>} : vector<64x256xf32>, vector<256x32xf32>, vector<64x32xf32> -> vector<64x32xf32>
    %c1_81 = arith.constant 1 : index
    %c0_82 = arith.constant 0 : index
    %c0_83 = arith.constant 0 : index
    %78 = vector.load %arg4[%c1_81, %c0_82, %c0_83] : memref<4x64x256xf32, #tpu.memory_space<vmem>>, vector<1x64x256xf32>
    %79 = vector.shape_cast %78 : vector<1x64x256xf32> to vector<64x256xf32>
    %cst_84 = arith.constant dense<0.000000e+00> : vector<64x32xf32>
    %80 = tpu.matmul %79, %74, %cst_84 {dimension_numbers = #tpu.dot_dimension_numbers<[1], [0], [0], [1], [0, 0, 1, 1], [], []>} : vector<64x256xf32>, vector<256x32xf32>, vector<64x32xf32> -> vector<64x32xf32>
    %81 = arith.maximumf %77, %80 : vector<64x32xf32>
    %c2_85 = arith.constant 2 : index
    %c0_86 = arith.constant 0 : index
    %c0_87 = arith.constant 0 : index
    %82 = vector.load %arg4[%c2_85, %c0_86, %c0_87] : memref<4x64x256xf32, #tpu.memory_space<vmem>>, vector<1x64x256xf32>
    %83 = vector.shape_cast %82 : vector<1x64x256xf32> to vector<64x256xf32>
    %cst_88 = arith.constant dense<0.000000e+00> : vector<64x32xf32>
    %84 = tpu.matmul %83, %74, %cst_88 {dimension_numbers = #tpu.dot_dimension_numbers<[1], [0], [0], [1], [0, 0, 1, 1], [], []>} : vector<64x256xf32>, vector<256x32xf32>, vector<64x32xf32> -> vector<64x32xf32>
    %85 = arith.maximumf %81, %84 : vector<64x32xf32>
    %c3_89 = arith.constant 3 : index
    %c0_90 = arith.constant 0 : index
    %c0_91 = arith.constant 0 : index
    %86 = vector.load %arg4[%c3_89, %c0_90, %c0_91] : memref<4x64x256xf32, #tpu.memory_space<vmem>>, vector<1x64x256xf32>
    %87 = vector.shape_cast %86 : vector<1x64x256xf32> to vector<64x256xf32>
    %cst_92 = arith.constant dense<0.000000e+00> : vector<64x32xf32>
    %88 = tpu.matmul %87, %74, %cst_92 {dimension_numbers = #tpu.dot_dimension_numbers<[1], [0], [0], [1], [0, 0, 1, 1], [], []>} : vector<64x256xf32>, vector<256x32xf32>, vector<64x32xf32> -> vector<64x32xf32>
    %89 = arith.maximumf %85, %88 : vector<64x32xf32>
    %c0_93 = arith.constant 0 : index
    %c0_94 = arith.constant 0 : index
    %90 = vector.load %arg3[%c0_93, %c0_94] : memref<1x32xf32, #tpu.memory_space<vmem>>, vector<1x32xf32>
    %91 = vector.broadcast %90 : vector<1x32xf32> to vector<64x32xf32>
    %92 = arith.addf %89, %91 : vector<64x32xf32>
    %cst_95 = arith.constant 0.000000e+00 : f32
    %93 = vector.broadcast %cst_95 : f32 to vector<64x32xf32>
    %94 = arith.maximumf %92, %93 : vector<64x32xf32>
    %95 = vector.shape_cast %94 : vector<64x32xf32> to vector<8x8x32xf32>
    %c1_96 = arith.constant 1 : index
    %c1_97 = arith.constant 1 : index
    %c0_98 = arith.constant 0 : index
    %96 = vector.load %arg16[%c1_96, %c1_97, %c0_98] : memref<10x10x32xf32, #tpu.memory_space<vmem>>, vector<8x8x32xf32>
    tpu.vector_store %arg16[%c1_96, %c1_97, %c0_98], %95 {strides = array<i32>} : memref<10x10x32xf32, #tpu.memory_space<vmem>>, vector<8x8x32xf32>,
    %cst_99 = arith.constant 0.000000e+00 : f32
    %97 = vector.broadcast %cst_99 : f32 to vector<64x32xf32>
    %c0_100 = arith.constant 0 : index
    %c0_101 = arith.constant 0 : index
    %c0_102 = arith.constant 0 : index
    %98 = vector.load %arg16[%c0_100, %c0_101, %c0_102] : memref<10x10x32xf32, #tpu.memory_space<vmem>>, vector<8x8x32xf32>
    %99 = vector.shape_cast %98 : vector<8x8x32xf32> to vector<64x32xf32>
    %100 = arith.truncf %99 : vector<64x32xf32> to vector<64x32xbf16>
    %c0_103 = arith.constant 0 : index
    %c0_104 = arith.constant 0 : index
    %c0_105 = arith.constant 0 : index
    %101 = vector.load %arg5[%c0_103, %c0_104, %c0_105] : memref<9x32x32xbf16, #tpu.memory_space<vmem>>, vector<1x32x32xbf16>
    %102 = vector.shape_cast %101 : vector<1x32x32xbf16> to vector<32x32xbf16>
    %cst_106 = arith.constant dense<0.000000e+00> : vector<64x32xf32>
    %103 = tpu.matmul %100, %102, %cst_106 {dimension_numbers = #tpu.dot_dimension_numbers<[1], [0], [0], [1], [0, 0, 1, 1], [], []>} : vector<64x32xbf16>, vector<32x32xbf16>, vector<64x32xf32> -> vector<64x32xf32>
    %104 = arith.addf %97, %103 : vector<64x32xf32>
    %c0_107 = arith.constant 0 : index
    %c1_108 = arith.constant 1 : index
    %c0_109 = arith.constant 0 : index
    %105 = vector.load %arg16[%c0_107, %c1_108, %c0_109] : memref<10x10x32xf32, #tpu.memory_space<vmem>>, vector<8x8x32xf32>
    %106 = vector.shape_cast %105 : vector<8x8x32xf32> to vector<64x32xf32>
    %107 = arith.truncf %106 : vector<64x32xf32> to vector<64x32xbf16>
    %c1_110 = arith.constant 1 : index
    %c0_111 = arith.constant 0 : index
    %c0_112 = arith.constant 0 : index
    %108 = vector.load %arg5[%c1_110, %c0_111, %c0_112] : memref<9x32x32xbf16, #tpu.memory_space<vmem>>, vector<1x32x32xbf16>
    %109 = vector.shape_cast %108 : vector<1x32x32xbf16> to vector<32x32xbf16>
    %cst_113 = arith.constant dense<0.000000e+00> : vector<64x32xf32>
    %110 = tpu.matmul %107, %109, %cst_113 {dimension_numbers = #tpu.dot_dimension_numbers<[1], [0], [0], [1], [0, 0, 1, 1], [], []>} : vector<64x32xbf16>, vector<32x32xbf16>, vector<64x32xf32> -> vector<64x32xf32>
    %111 = arith.addf %104, %110 : vector<64x32xf32>
    %c0_114 = arith.constant 0 : index
    %c2_115 = arith.constant 2 : index
    %c0_116 = arith.constant 0 : index
    %112 = vector.load %arg16[%c0_114, %c2_115, %c0_116] : memref<10x10x32xf32, #tpu.memory_space<vmem>>, vector<8x8x32xf32>
    %113 = vector.shape_cast %112 : vector<8x8x32xf32> to vector<64x32xf32>
    %114 = arith.truncf %113 : vector<64x32xf32> to vector<64x32xbf16>
    %c2_117 = arith.constant 2 : index
    %c0_118 = arith.constant 0 : index
    %c0_119 = arith.constant 0 : index
    %115 = vector.load %arg5[%c2_117, %c0_118, %c0_119] : memref<9x32x32xbf16, #tpu.memory_space<vmem>>, vector<1x32x32xbf16>
    %116 = vector.shape_cast %115 : vector<1x32x32xbf16> to vector<32x32xbf16>
    %cst_120 = arith.constant dense<0.000000e+00> : vector<64x32xf32>
    %117 = tpu.matmul %114, %116, %cst_120 {dimension_numbers = #tpu.dot_dimension_numbers<[1], [0], [0], [1], [0, 0, 1, 1], [], []>} : vector<64x32xbf16>, vector<32x32xbf16>, vector<64x32xf32> -> vector<64x32xf32>
    %118 = arith.addf %111, %117 : vector<64x32xf32>
    %c1_121 = arith.constant 1 : index
    %c0_122 = arith.constant 0 : index
    %c0_123 = arith.constant 0 : index
    %119 = vector.load %arg16[%c1_121, %c0_122, %c0_123] : memref<10x10x32xf32, #tpu.memory_space<vmem>>, vector<8x8x32xf32>
    %120 = vector.shape_cast %119 : vector<8x8x32xf32> to vector<64x32xf32>
    %121 = arith.truncf %120 : vector<64x32xf32> to vector<64x32xbf16>
    %c3_124 = arith.constant 3 : index
    %c0_125 = arith.constant 0 : index
    %c0_126 = arith.constant 0 : index
    %122 = vector.load %arg5[%c3_124, %c0_125, %c0_126] : memref<9x32x32xbf16, #tpu.memory_space<vmem>>, vector<1x32x32xbf16>
    %123 = vector.shape_cast %122 : vector<1x32x32xbf16> to vector<32x32xbf16>
    %cst_127 = arith.constant dense<0.000000e+00> : vector<64x32xf32>
    %124 = tpu.matmul %121, %123, %cst_127 {dimension_numbers = #tpu.dot_dimension_numbers<[1], [0], [0], [1], [0, 0, 1, 1], [], []>} : vector<64x32xbf16>, vector<32x32xbf16>, vector<64x32xf32> -> vector<64x32xf32>
    %125 = arith.addf %118, %124 : vector<64x32xf32>
    %c1_128 = arith.constant 1 : index
    %c1_129 = arith.constant 1 : index
    %c0_130 = arith.constant 0 : index
    %126 = vector.load %arg16[%c1_128, %c1_129, %c0_130] : memref<10x10x32xf32, #tpu.memory_space<vmem>>, vector<8x8x32xf32>
    %127 = vector.shape_cast %126 : vector<8x8x32xf32> to vector<64x32xf32>
    %128 = arith.truncf %127 : vector<64x32xf32> to vector<64x32xbf16>
    %c4_131 = arith.constant 4 : index
    %c0_132 = arith.constant 0 : index
    %c0_133 = arith.constant 0 : index
    %129 = vector.load %arg5[%c4_131, %c0_132, %c0_133] : memref<9x32x32xbf16, #tpu.memory_space<vmem>>, vector<1x32x32xbf16>
    %130 = vector.shape_cast %129 : vector<1x32x32xbf16> to vector<32x32xbf16>
    %cst_134 = arith.constant dense<0.000000e+00> : vector<64x32xf32>
    %131 = tpu.matmul %128, %130, %cst_134 {dimension_numbers = #tpu.dot_dimension_numbers<[1], [0], [0], [1], [0, 0, 1, 1], [], []>} : vector<64x32xbf16>, vector<32x32xbf16>, vector<64x32xf32> -> vector<64x32xf32>
    %132 = arith.addf %125, %131 : vector<64x32xf32>
    %c1_135 = arith.constant 1 : index
    %c2_136 = arith.constant 2 : index
    %c0_137 = arith.constant 0 : index
    %133 = vector.load %arg16[%c1_135, %c2_136, %c0_137] : memref<10x10x32xf32, #tpu.memory_space<vmem>>, vector<8x8x32xf32>
    %134 = vector.shape_cast %133 : vector<8x8x32xf32> to vector<64x32xf32>
    %135 = arith.truncf %134 : vector<64x32xf32> to vector<64x32xbf16>
    %c5_138 = arith.constant 5 : index
    %c0_139 = arith.constant 0 : index
    %c0_140 = arith.constant 0 : index
    %136 = vector.load %arg5[%c5_138, %c0_139, %c0_140] : memref<9x32x32xbf16, #tpu.memory_space<vmem>>, vector<1x32x32xbf16>
    %137 = vector.shape_cast %136 : vector<1x32x32xbf16> to vector<32x32xbf16>
    %cst_141 = arith.constant dense<0.000000e+00> : vector<64x32xf32>
    %138 = tpu.matmul %135, %137, %cst_141 {dimension_numbers = #tpu.dot_dimension_numbers<[1], [0], [0], [1], [0, 0, 1, 1], [], []>} : vector<64x32xbf16>, vector<32x32xbf16>, vector<64x32xf32> -> vector<64x32xf32>
    %139 = arith.addf %132, %138 : vector<64x32xf32>
    %c2_142 = arith.constant 2 : index
    %c0_143 = arith.constant 0 : index
    %c0_144 = arith.constant 0 : index
    %140 = vector.load %arg16[%c2_142, %c0_143, %c0_144] : memref<10x10x32xf32, #tpu.memory_space<vmem>>, vector<8x8x32xf32>
    %141 = vector.shape_cast %140 : vector<8x8x32xf32> to vector<64x32xf32>
    %142 = arith.truncf %141 : vector<64x32xf32> to vector<64x32xbf16>
    %c6_145 = arith.constant 6 : index
    %c0_146 = arith.constant 0 : index
    %c0_147 = arith.constant 0 : index
    %143 = vector.load %arg5[%c6_145, %c0_146, %c0_147] : memref<9x32x32xbf16, #tpu.memory_space<vmem>>, vector<1x32x32xbf16>
    %144 = vector.shape_cast %143 : vector<1x32x32xbf16> to vector<32x32xbf16>
    %cst_148 = arith.constant dense<0.000000e+00> : vector<64x32xf32>
    %145 = tpu.matmul %142, %144, %cst_148 {dimension_numbers = #tpu.dot_dimension_numbers<[1], [0], [0], [1], [0, 0, 1, 1], [], []>} : vector<64x32xbf16>, vector<32x32xbf16>, vector<64x32xf32> -> vector<64x32xf32>
    %146 = arith.addf %139, %145 : vector<64x32xf32>
    %c2_149 = arith.constant 2 : index
    %c1_150 = arith.constant 1 : index
    %c0_151 = arith.constant 0 : index
    %147 = vector.load %arg16[%c2_149, %c1_150, %c0_151] : memref<10x10x32xf32, #tpu.memory_space<vmem>>, vector<8x8x32xf32>
    %148 = vector.shape_cast %147 : vector<8x8x32xf32> to vector<64x32xf32>
    %149 = arith.truncf %148 : vector<64x32xf32> to vector<64x32xbf16>
    %c7_152 = arith.constant 7 : index
    %c0_153 = arith.constant 0 : index
    %c0_154 = arith.constant 0 : index
    %150 = vector.load %arg5[%c7_152, %c0_153, %c0_154] : memref<9x32x32xbf16, #tpu.memory_space<vmem>>, vector<1x32x32xbf16>
    %151 = vector.shape_cast %150 : vector<1x32x32xbf16> to vector<32x32xbf16>
    %cst_155 = arith.constant dense<0.000000e+00> : vector<64x32xf32>
    %152 = tpu.matmul %149, %151, %cst_155 {dimension_numbers = #tpu.dot_dimension_numbers<[1], [0], [0], [1], [0, 0, 1, 1], [], []>} : vector<64x32xbf16>, vector<32x32xbf16>, vector<64x32xf32> -> vector<64x32xf32>
    %153 = arith.addf %146, %152 : vector<64x32xf32>
    %c2_156 = arith.constant 2 : index
    %c2_157 = arith.constant 2 : index
    %c0_158 = arith.constant 0 : index
    %154 = vector.load %arg16[%c2_156, %c2_157, %c0_158] : memref<10x10x32xf32, #tpu.memory_space<vmem>>, vector<8x8x32xf32>
    %155 = vector.shape_cast %154 : vector<8x8x32xf32> to vector<64x32xf32>
    %156 = arith.truncf %155 : vector<64x32xf32> to vector<64x32xbf16>
    %c8_159 = arith.constant 8 : index
    %c0_160 = arith.constant 0 : index
    %c0_161 = arith.constant 0 : index
    %157 = vector.load %arg5[%c8_159, %c0_160, %c0_161] : memref<9x32x32xbf16, #tpu.memory_space<vmem>>, vector<1x32x32xbf16>
    %158 = vector.shape_cast %157 : vector<1x32x32xbf16> to vector<32x32xbf16>
    %cst_162 = arith.constant dense<0.000000e+00> : vector<64x32xf32>
    %159 = tpu.matmul %156, %158, %cst_162 {dimension_numbers = #tpu.dot_dimension_numbers<[1], [0], [0], [1], [0, 0, 1, 1], [], []>} : vector<64x32xbf16>, vector<32x32xbf16>, vector<64x32xf32> -> vector<64x32xf32>
    %160 = arith.addf %153, %159 : vector<64x32xf32>
    %c0_163 = arith.constant 0 : index
    %c0_164 = arith.constant 0 : index
    %c0_165 = arith.constant 0 : index
    %161 = vector.load %arg7[%c0_163, %c0_164, %c0_165] : memref<4x16x64xf32, #tpu.memory_space<vmem>>, vector<1x16x64xf32>
    %162 = vector.shape_cast %161 : vector<1x16x64xf32> to vector<16x64xf32>
    %cst_166 = arith.constant dense<0.000000e+00> : vector<16x32xf32>
    %163 = tpu.matmul %162, %160, %cst_166 {dimension_numbers = #tpu.dot_dimension_numbers<[1], [0], [0], [1], [0, 0, 1, 1], [], []>} : vector<16x64xf32>, vector<64x32xf32>, vector<16x32xf32> -> vector<16x32xf32>
    %c1_167 = arith.constant 1 : index
    %c0_168 = arith.constant 0 : index
    %c0_169 = arith.constant 0 : index
    %164 = vector.load %arg7[%c1_167, %c0_168, %c0_169] : memref<4x16x64xf32, #tpu.memory_space<vmem>>, vector<1x16x64xf32>
    %165 = vector.shape_cast %164 : vector<1x16x64xf32> to vector<16x64xf32>
    %cst_170 = arith.constant dense<0.000000e+00> : vector<16x32xf32>
    %166 = tpu.matmul %165, %160, %cst_170 {dimension_numbers = #tpu.dot_dimension_numbers<[1], [0], [0], [1], [0, 0, 1, 1], [], []>} : vector<16x64xf32>, vector<64x32xf32>, vector<16x32xf32> -> vector<16x32xf32>
    %167 = arith.maximumf %163, %166 : vector<16x32xf32>
    %c2_171 = arith.constant 2 : index
    %c0_172 = arith.constant 0 : index
    %c0_173 = arith.constant 0 : index
    %168 = vector.load %arg7[%c2_171, %c0_172, %c0_173] : memref<4x16x64xf32, #tpu.memory_space<vmem>>, vector<1x16x64xf32>
    %169 = vector.shape_cast %168 : vector<1x16x64xf32> to vector<16x64xf32>
    %cst_174 = arith.constant dense<0.000000e+00> : vector<16x32xf32>
    %170 = tpu.matmul %169, %160, %cst_174 {dimension_numbers = #tpu.dot_dimension_numbers<[1], [0], [0], [1], [0, 0, 1, 1], [], []>} : vector<16x64xf32>, vector<64x32xf32>, vector<16x32xf32> -> vector<16x32xf32>
    %171 = arith.maximumf %167, %170 : vector<16x32xf32>
    %c3_175 = arith.constant 3 : index
    %c0_176 = arith.constant 0 : index
    %c0_177 = arith.constant 0 : index
    %172 = vector.load %arg7[%c3_175, %c0_176, %c0_177] : memref<4x16x64xf32, #tpu.memory_space<vmem>>, vector<1x16x64xf32>
    %173 = vector.shape_cast %172 : vector<1x16x64xf32> to vector<16x64xf32>
    %cst_178 = arith.constant dense<0.000000e+00> : vector<16x32xf32>
    %174 = tpu.matmul %173, %160, %cst_178 {dimension_numbers = #tpu.dot_dimension_numbers<[1], [0], [0], [1], [0, 0, 1, 1], [], []>} : vector<16x64xf32>, vector<64x32xf32>, vector<16x32xf32> -> vector<16x32xf32>
    %175 = arith.maximumf %171, %174 : vector<16x32xf32>
    %c0_179 = arith.constant 0 : index
    %c0_180 = arith.constant 0 : index
    %176 = vector.load %arg6[%c0_179, %c0_180] : memref<1x32xf32, #tpu.memory_space<vmem>>, vector<1x32xf32>
    %177 = vector.broadcast %176 : vector<1x32xf32> to vector<16x32xf32>
    %178 = arith.addf %175, %177 : vector<16x32xf32>
    %cst_181 = arith.constant 0.000000e+00 : f32
    %179 = vector.broadcast %cst_181 : f32 to vector<16x32xf32>
    %180 = arith.maximumf %178, %179 : vector<16x32xf32>
    %181 = vector.shape_cast %180 : vector<16x32xf32> to vector<4x4x32xf32>
    %c1_182 = arith.constant 1 : index
    %c1_183 = arith.constant 1 : index
    %c0_184 = arith.constant 0 : index
    %182 = vector.load %arg17[%c1_182, %c1_183, %c0_184] : memref<6x6x32xf32, #tpu.memory_space<vmem>>, vector<4x4x32xf32>
    tpu.vector_store %arg17[%c1_182, %c1_183, %c0_184], %181 {strides = array<i32>} : memref<6x6x32xf32, #tpu.memory_space<vmem>>, vector<4x4x32xf32>,
    %cst_185 = arith.constant 0.000000e+00 : f32
    %183 = vector.broadcast %cst_185 : f32 to vector<16x32xf32>
    %c0_186 = arith.constant 0 : index
    %c0_187 = arith.constant 0 : index
    %c0_188 = arith.constant 0 : index
    %184 = vector.load %arg17[%c0_186, %c0_187, %c0_188] : memref<6x6x32xf32, #tpu.memory_space<vmem>>, vector<4x4x32xf32>
    %185 = vector.shape_cast %184 : vector<4x4x32xf32> to vector<16x32xf32>
    %186 = arith.truncf %185 : vector<16x32xf32> to vector<16x32xbf16>
    %c0_189 = arith.constant 0 : index
    %c0_190 = arith.constant 0 : index
    %c0_191 = arith.constant 0 : index
    %187 = vector.load %arg8[%c0_189, %c0_190, %c0_191] : memref<9x32x32xbf16, #tpu.memory_space<vmem>>, vector<1x32x32xbf16>
    %188 = vector.shape_cast %187 : vector<1x32x32xbf16> to vector<32x32xbf16>
    %cst_192 = arith.constant dense<0.000000e+00> : vector<16x32xf32>
    %189 = tpu.matmul %186, %188, %cst_192 {dimension_numbers = #tpu.dot_dimension_numbers<[1], [0], [0], [1], [0, 0, 1, 1], [], []>} : vector<16x32xbf16>, vector<32x32xbf16>, vector<16x32xf32> -> vector<16x32xf32>
    %190 = arith.addf %183, %189 : vector<16x32xf32>
    %c0_193 = arith.constant 0 : index
    %c1_194 = arith.constant 1 : index
    %c0_195 = arith.constant 0 : index
    %191 = vector.load %arg17[%c0_193, %c1_194, %c0_195] : memref<6x6x32xf32, #tpu.memory_space<vmem>>, vector<4x4x32xf32>
    %192 = vector.shape_cast %191 : vector<4x4x32xf32> to vector<16x32xf32>
    %193 = arith.truncf %192 : vector<16x32xf32> to vector<16x32xbf16>
    %c1_196 = arith.constant 1 : index
    %c0_197 = arith.constant 0 : index
    %c0_198 = arith.constant 0 : index
    %194 = vector.load %arg8[%c1_196, %c0_197, %c0_198] : memref<9x32x32xbf16, #tpu.memory_space<vmem>>, vector<1x32x32xbf16>
    %195 = vector.shape_cast %194 : vector<1x32x32xbf16> to vector<32x32xbf16>
    %cst_199 = arith.constant dense<0.000000e+00> : vector<16x32xf32>
    %196 = tpu.matmul %193, %195, %cst_199 {dimension_numbers = #tpu.dot_dimension_numbers<[1], [0], [0], [1], [0, 0, 1, 1], [], []>} : vector<16x32xbf16>, vector<32x32xbf16>, vector<16x32xf32> -> vector<16x32xf32>
    %197 = arith.addf %190, %196 : vector<16x32xf32>
    %c0_200 = arith.constant 0 : index
    %c2_201 = arith.constant 2 : index
    %c0_202 = arith.constant 0 : index
    %198 = vector.load %arg17[%c0_200, %c2_201, %c0_202] : memref<6x6x32xf32, #tpu.memory_space<vmem>>, vector<4x4x32xf32>
    %199 = vector.shape_cast %198 : vector<4x4x32xf32> to vector<16x32xf32>
    %200 = arith.truncf %199 : vector<16x32xf32> to vector<16x32xbf16>
    %c2_203 = arith.constant 2 : index
    %c0_204 = arith.constant 0 : index
    %c0_205 = arith.constant 0 : index
    %201 = vector.load %arg8[%c2_203, %c0_204, %c0_205] : memref<9x32x32xbf16, #tpu.memory_space<vmem>>, vector<1x32x32xbf16>
    %202 = vector.shape_cast %201 : vector<1x32x32xbf16> to vector<32x32xbf16>
    %cst_206 = arith.constant dense<0.000000e+00> : vector<16x32xf32>
    %203 = tpu.matmul %200, %202, %cst_206 {dimension_numbers = #tpu.dot_dimension_numbers<[1], [0], [0], [1], [0, 0, 1, 1], [], []>} : vector<16x32xbf16>, vector<32x32xbf16>, vector<16x32xf32> -> vector<16x32xf32>
    %204 = arith.addf %197, %203 : vector<16x32xf32>
    %c1_207 = arith.constant 1 : index
    %c0_208 = arith.constant 0 : index
    %c0_209 = arith.constant 0 : index
    %205 = vector.load %arg17[%c1_207, %c0_208, %c0_209] : memref<6x6x32xf32, #tpu.memory_space<vmem>>, vector<4x4x32xf32>
    %206 = vector.shape_cast %205 : vector<4x4x32xf32> to vector<16x32xf32>
    %207 = arith.truncf %206 : vector<16x32xf32> to vector<16x32xbf16>
    %c3_210 = arith.constant 3 : index
    %c0_211 = arith.constant 0 : index
    %c0_212 = arith.constant 0 : index
    %208 = vector.load %arg8[%c3_210, %c0_211, %c0_212] : memref<9x32x32xbf16, #tpu.memory_space<vmem>>, vector<1x32x32xbf16>
    %209 = vector.shape_cast %208 : vector<1x32x32xbf16> to vector<32x32xbf16>
    %cst_213 = arith.constant dense<0.000000e+00> : vector<16x32xf32>
    %210 = tpu.matmul %207, %209, %cst_213 {dimension_numbers = #tpu.dot_dimension_numbers<[1], [0], [0], [1], [0, 0, 1, 1], [], []>} : vector<16x32xbf16>, vector<32x32xbf16>, vector<16x32xf32> -> vector<16x32xf32>
    %211 = arith.addf %204, %210 : vector<16x32xf32>
    %c1_214 = arith.constant 1 : index
    %c1_215 = arith.constant 1 : index
    %c0_216 = arith.constant 0 : index
    %212 = vector.load %arg17[%c1_214, %c1_215, %c0_216] : memref<6x6x32xf32, #tpu.memory_space<vmem>>, vector<4x4x32xf32>
    %213 = vector.shape_cast %212 : vector<4x4x32xf32> to vector<16x32xf32>
    %214 = arith.truncf %213 : vector<16x32xf32> to vector<16x32xbf16>
    %c4_217 = arith.constant 4 : index
    %c0_218 = arith.constant 0 : index
    %c0_219 = arith.constant 0 : index
    %215 = vector.load %arg8[%c4_217, %c0_218, %c0_219] : memref<9x32x32xbf16, #tpu.memory_space<vmem>>, vector<1x32x32xbf16>
    %216 = vector.shape_cast %215 : vector<1x32x32xbf16> to vector<32x32xbf16>
    %cst_220 = arith.constant dense<0.000000e+00> : vector<16x32xf32>
    %217 = tpu.matmul %214, %216, %cst_220 {dimension_numbers = #tpu.dot_dimension_numbers<[1], [0], [0], [1], [0, 0, 1, 1], [], []>} : vector<16x32xbf16>, vector<32x32xbf16>, vector<16x32xf32> -> vector<16x32xf32>
    %218 = arith.addf %211, %217 : vector<16x32xf32>
    %c1_221 = arith.constant 1 : index
    %c2_222 = arith.constant 2 : index
    %c0_223 = arith.constant 0 : index
    %219 = vector.load %arg17[%c1_221, %c2_222, %c0_223] : memref<6x6x32xf32, #tpu.memory_space<vmem>>, vector<4x4x32xf32>
    %220 = vector.shape_cast %219 : vector<4x4x32xf32> to vector<16x32xf32>
    %221 = arith.truncf %220 : vector<16x32xf32> to vector<16x32xbf16>
    %c5_224 = arith.constant 5 : index
    %c0_225 = arith.constant 0 : index
    %c0_226 = arith.constant 0 : index
    %222 = vector.load %arg8[%c5_224, %c0_225, %c0_226] : memref<9x32x32xbf16, #tpu.memory_space<vmem>>, vector<1x32x32xbf16>
    %223 = vector.shape_cast %222 : vector<1x32x32xbf16> to vector<32x32xbf16>
    %cst_227 = arith.constant dense<0.000000e+00> : vector<16x32xf32>
    %224 = tpu.matmul %221, %223, %cst_227 {dimension_numbers = #tpu.dot_dimension_numbers<[1], [0], [0], [1], [0, 0, 1, 1], [], []>} : vector<16x32xbf16>, vector<32x32xbf16>, vector<16x32xf32> -> vector<16x32xf32>
    %225 = arith.addf %218, %224 : vector<16x32xf32>
    %c2_228 = arith.constant 2 : index
    %c0_229 = arith.constant 0 : index
    %c0_230 = arith.constant 0 : index
    %226 = vector.load %arg17[%c2_228, %c0_229, %c0_230] : memref<6x6x32xf32, #tpu.memory_space<vmem>>, vector<4x4x32xf32>
    %227 = vector.shape_cast %226 : vector<4x4x32xf32> to vector<16x32xf32>
    %228 = arith.truncf %227 : vector<16x32xf32> to vector<16x32xbf16>
    %c6_231 = arith.constant 6 : index
    %c0_232 = arith.constant 0 : index
    %c0_233 = arith.constant 0 : index
    %229 = vector.load %arg8[%c6_231, %c0_232, %c0_233] : memref<9x32x32xbf16, #tpu.memory_space<vmem>>, vector<1x32x32xbf16>
    %230 = vector.shape_cast %229 : vector<1x32x32xbf16> to vector<32x32xbf16>
    %cst_234 = arith.constant dense<0.000000e+00> : vector<16x32xf32>
    %231 = tpu.matmul %228, %230, %cst_234 {dimension_numbers = #tpu.dot_dimension_numbers<[1], [0], [0], [1], [0, 0, 1, 1], [], []>} : vector<16x32xbf16>, vector<32x32xbf16>, vector<16x32xf32> -> vector<16x32xf32>
    %232 = arith.addf %225, %231 : vector<16x32xf32>
    %c2_235 = arith.constant 2 : index
    %c1_236 = arith.constant 1 : index
    %c0_237 = arith.constant 0 : index
    %233 = vector.load %arg17[%c2_235, %c1_236, %c0_237] : memref<6x6x32xf32, #tpu.memory_space<vmem>>, vector<4x4x32xf32>
    %234 = vector.shape_cast %233 : vector<4x4x32xf32> to vector<16x32xf32>
    %235 = arith.truncf %234 : vector<16x32xf32> to vector<16x32xbf16>
    %c7_238 = arith.constant 7 : index
    %c0_239 = arith.constant 0 : index
    %c0_240 = arith.constant 0 : index
    %236 = vector.load %arg8[%c7_238, %c0_239, %c0_240] : memref<9x32x32xbf16, #tpu.memory_space<vmem>>, vector<1x32x32xbf16>
    %237 = vector.shape_cast %236 : vector<1x32x32xbf16> to vector<32x32xbf16>
    %cst_241 = arith.constant dense<0.000000e+00> : vector<16x32xf32>
    %238 = tpu.matmul %235, %237, %cst_241 {dimension_numbers = #tpu.dot_dimension_numbers<[1], [0], [0], [1], [0, 0, 1, 1], [], []>} : vector<16x32xbf16>, vector<32x32xbf16>, vector<16x32xf32> -> vector<16x32xf32>
    %239 = arith.addf %232, %238 : vector<16x32xf32>
    %c2_242 = arith.constant 2 : index
    %c2_243 = arith.constant 2 : index
    %c0_244 = arith.constant 0 : index
    %240 = vector.load %arg17[%c2_242, %c2_243, %c0_244] : memref<6x6x32xf32, #tpu.memory_space<vmem>>, vector<4x4x32xf32>
    %241 = vector.shape_cast %240 : vector<4x4x32xf32> to vector<16x32xf32>
    %242 = arith.truncf %241 : vector<16x32xf32> to vector<16x32xbf16>
    %c8_245 = arith.constant 8 : index
    %c0_246 = arith.constant 0 : index
    %c0_247 = arith.constant 0 : index
    %243 = vector.load %arg8[%c8_245, %c0_246, %c0_247] : memref<9x32x32xbf16, #tpu.memory_space<vmem>>, vector<1x32x32xbf16>
    %244 = vector.shape_cast %243 : vector<1x32x32xbf16> to vector<32x32xbf16>
    %cst_248 = arith.constant dense<0.000000e+00> : vector<16x32xf32>
    %245 = tpu.matmul %242, %244, %cst_248 {dimension_numbers = #tpu.dot_dimension_numbers<[1], [0], [0], [1], [0, 0, 1, 1], [], []>} : vector<16x32xbf16>, vector<32x32xbf16>, vector<16x32xf32> -> vector<16x32xf32>
    %246 = arith.addf %239, %245 : vector<16x32xf32>
    %c0_249 = arith.constant 0 : index
    %c0_250 = arith.constant 0 : index
    %c0_251 = arith.constant 0 : index
    %247 = vector.load %arg10[%c0_249, %c0_250, %c0_251] : memref<4x4x16xf32, #tpu.memory_space<vmem>>, vector<1x4x16xf32>
    %248 = vector.shape_cast %247 : vector<1x4x16xf32> to vector<4x16xf32>
    %cst_252 = arith.constant dense<0.000000e+00> : vector<4x32xf32>
    %249 = tpu.matmul %248, %246, %cst_252 {dimension_numbers = #tpu.dot_dimension_numbers<[1], [0], [0], [1], [0, 0, 1, 1], [], []>} : vector<4x16xf32>, vector<16x32xf32>, vector<4x32xf32> -> vector<4x32xf32>
    %c1_253 = arith.constant 1 : index
    %c0_254 = arith.constant 0 : index
    %c0_255 = arith.constant 0 : index
    %250 = vector.load %arg10[%c1_253, %c0_254, %c0_255] : memref<4x4x16xf32, #tpu.memory_space<vmem>>, vector<1x4x16xf32>
    %251 = vector.shape_cast %250 : vector<1x4x16xf32> to vector<4x16xf32>
    %cst_256 = arith.constant dense<0.000000e+00> : vector<4x32xf32>
    %252 = tpu.matmul %251, %246, %cst_256 {dimension_numbers = #tpu.dot_dimension_numbers<[1], [0], [0], [1], [0, 0, 1, 1], [], []>} : vector<4x16xf32>, vector<16x32xf32>, vector<4x32xf32> -> vector<4x32xf32>
    %253 = arith.maximumf %249, %252 : vector<4x32xf32>
    %c2_257 = arith.constant 2 : index
    %c0_258 = arith.constant 0 : index
    %c0_259 = arith.constant 0 : index
    %254 = vector.load %arg10[%c2_257, %c0_258, %c0_259] : memref<4x4x16xf32, #tpu.memory_space<vmem>>, vector<1x4x16xf32>
    %255 = vector.shape_cast %254 : vector<1x4x16xf32> to vector<4x16xf32>
    %cst_260 = arith.constant dense<0.000000e+00> : vector<4x32xf32>
    %256 = tpu.matmul %255, %246, %cst_260 {dimension_numbers = #tpu.dot_dimension_numbers<[1], [0], [0], [1], [0, 0, 1, 1], [], []>} : vector<4x16xf32>, vector<16x32xf32>, vector<4x32xf32> -> vector<4x32xf32>
    %257 = arith.maximumf %253, %256 : vector<4x32xf32>
    %c3_261 = arith.constant 3 : index
    %c0_262 = arith.constant 0 : index
    %c0_263 = arith.constant 0 : index
    %258 = vector.load %arg10[%c3_261, %c0_262, %c0_263] : memref<4x4x16xf32, #tpu.memory_space<vmem>>, vector<1x4x16xf32>
    %259 = vector.shape_cast %258 : vector<1x4x16xf32> to vector<4x16xf32>
    %cst_264 = arith.constant dense<0.000000e+00> : vector<4x32xf32>
    %260 = tpu.matmul %259, %246, %cst_264 {dimension_numbers = #tpu.dot_dimension_numbers<[1], [0], [0], [1], [0, 0, 1, 1], [], []>} : vector<4x16xf32>, vector<16x32xf32>, vector<4x32xf32> -> vector<4x32xf32>
    %261 = arith.maximumf %257, %260 : vector<4x32xf32>
    %c0_265 = arith.constant 0 : index
    %c0_266 = arith.constant 0 : index
    %262 = vector.load %arg9[%c0_265, %c0_266] : memref<1x32xf32, #tpu.memory_space<vmem>>, vector<1x32xf32>
    %263 = vector.broadcast %262 : vector<1x32xf32> to vector<4x32xf32>
    %264 = arith.addf %261, %263 : vector<4x32xf32>
    %cst_267 = arith.constant 0.000000e+00 : f32
    %265 = vector.broadcast %cst_267 : f32 to vector<4x32xf32>
    %266 = arith.maximumf %264, %265 : vector<4x32xf32>
    %267 = vector.shape_cast %266 : vector<4x32xf32> to vector<2x2x32xf32>
    %c1_268 = arith.constant 1 : index
    %c1_269 = arith.constant 1 : index
    %c0_270 = arith.constant 0 : index
    %268 = vector.load %arg18[%c1_268, %c1_269, %c0_270] : memref<4x4x32xf32, #tpu.memory_space<vmem>>, vector<2x2x32xf32>
    tpu.vector_store %arg18[%c1_268, %c1_269, %c0_270], %267 {strides = array<i32>} : memref<4x4x32xf32, #tpu.memory_space<vmem>>, vector<2x2x32xf32>,
    %cst_271 = arith.constant 0.000000e+00 : f32
    %269 = vector.broadcast %cst_271 : f32 to vector<4x32xf32>
    %c0_272 = arith.constant 0 : index
    %c0_273 = arith.constant 0 : index
    %c0_274 = arith.constant 0 : index
    %270 = vector.load %arg18[%c0_272, %c0_273, %c0_274] : memref<4x4x32xf32, #tpu.memory_space<vmem>>, vector<2x2x32xf32>
    %271 = vector.shape_cast %270 : vector<2x2x32xf32> to vector<4x32xf32>
    %272 = arith.truncf %271 : vector<4x32xf32> to vector<4x32xbf16>
    %c0_275 = arith.constant 0 : index
    %c0_276 = arith.constant 0 : index
    %c0_277 = arith.constant 0 : index
    %273 = vector.load %arg11[%c0_275, %c0_276, %c0_277] : memref<9x32x32xbf16, #tpu.memory_space<vmem>>, vector<1x32x32xbf16>
    %274 = vector.shape_cast %273 : vector<1x32x32xbf16> to vector<32x32xbf16>
    %cst_278 = arith.constant dense<0.000000e+00> : vector<4x32xf32>
    %275 = tpu.matmul %272, %274, %cst_278 {dimension_numbers = #tpu.dot_dimension_numbers<[1], [0], [0], [1], [0, 0, 1, 1], [], []>} : vector<4x32xbf16>, vector<32x32xbf16>, vector<4x32xf32> -> vector<4x32xf32>
    %276 = arith.addf %269, %275 : vector<4x32xf32>
    %c0_279 = arith.constant 0 : index
    %c1_280 = arith.constant 1 : index
    %c0_281 = arith.constant 0 : index
    %277 = vector.load %arg18[%c0_279, %c1_280, %c0_281] : memref<4x4x32xf32, #tpu.memory_space<vmem>>, vector<2x2x32xf32>
    %278 = vector.shape_cast %277 : vector<2x2x32xf32> to vector<4x32xf32>
    %279 = arith.truncf %278 : vector<4x32xf32> to vector<4x32xbf16>
    %c1_282 = arith.constant 1 : index
    %c0_283 = arith.constant 0 : index
    %c0_284 = arith.constant 0 : index
    %280 = vector.load %arg11[%c1_282, %c0_283, %c0_284] : memref<9x32x32xbf16, #tpu.memory_space<vmem>>, vector<1x32x32xbf16>
    %281 = vector.shape_cast %280 : vector<1x32x32xbf16> to vector<32x32xbf16>
    %cst_285 = arith.constant dense<0.000000e+00> : vector<4x32xf32>
    %282 = tpu.matmul %279, %281, %cst_285 {dimension_numbers = #tpu.dot_dimension_numbers<[1], [0], [0], [1], [0, 0, 1, 1], [], []>} : vector<4x32xbf16>, vector<32x32xbf16>, vector<4x32xf32> -> vector<4x32xf32>
    %283 = arith.addf %276, %282 : vector<4x32xf32>
    %c0_286 = arith.constant 0 : index
    %c2_287 = arith.constant 2 : index
    %c0_288 = arith.constant 0 : index
    %284 = vector.load %arg18[%c0_286, %c2_287, %c0_288] : memref<4x4x32xf32, #tpu.memory_space<vmem>>, vector<2x2x32xf32>
    %285 = vector.shape_cast %284 : vector<2x2x32xf32> to vector<4x32xf32>
    %286 = arith.truncf %285 : vector<4x32xf32> to vector<4x32xbf16>
    %c2_289 = arith.constant 2 : index
    %c0_290 = arith.constant 0 : index
    %c0_291 = arith.constant 0 : index
    %287 = vector.load %arg11[%c2_289, %c0_290, %c0_291] : memref<9x32x32xbf16, #tpu.memory_space<vmem>>, vector<1x32x32xbf16>
    %288 = vector.shape_cast %287 : vector<1x32x32xbf16> to vector<32x32xbf16>
    %cst_292 = arith.constant dense<0.000000e+00> : vector<4x32xf32>
    %289 = tpu.matmul %286, %288, %cst_292 {dimension_numbers = #tpu.dot_dimension_numbers<[1], [0], [0], [1], [0, 0, 1, 1], [], []>} : vector<4x32xbf16>, vector<32x32xbf16>, vector<4x32xf32> -> vector<4x32xf32>
    %290 = arith.addf %283, %289 : vector<4x32xf32>
    %c1_293 = arith.constant 1 : index
    %c0_294 = arith.constant 0 : index
    %c0_295 = arith.constant 0 : index
    %291 = vector.load %arg18[%c1_293, %c0_294, %c0_295] : memref<4x4x32xf32, #tpu.memory_space<vmem>>, vector<2x2x32xf32>
    %292 = vector.shape_cast %291 : vector<2x2x32xf32> to vector<4x32xf32>
    %293 = arith.truncf %292 : vector<4x32xf32> to vector<4x32xbf16>
    %c3_296 = arith.constant 3 : index
    %c0_297 = arith.constant 0 : index
    %c0_298 = arith.constant 0 : index
    %294 = vector.load %arg11[%c3_296, %c0_297, %c0_298] : memref<9x32x32xbf16, #tpu.memory_space<vmem>>, vector<1x32x32xbf16>
    %295 = vector.shape_cast %294 : vector<1x32x32xbf16> to vector<32x32xbf16>
    %cst_299 = arith.constant dense<0.000000e+00> : vector<4x32xf32>
    %296 = tpu.matmul %293, %295, %cst_299 {dimension_numbers = #tpu.dot_dimension_numbers<[1], [0], [0], [1], [0, 0, 1, 1], [], []>} : vector<4x32xbf16>, vector<32x32xbf16>, vector<4x32xf32> -> vector<4x32xf32>
    %297 = arith.addf %290, %296 : vector<4x32xf32>
    %c1_300 = arith.constant 1 : index
    %c1_301 = arith.constant 1 : index
    %c0_302 = arith.constant 0 : index
    %298 = vector.load %arg18[%c1_300, %c1_301, %c0_302] : memref<4x4x32xf32, #tpu.memory_space<vmem>>, vector<2x2x32xf32>
    %299 = vector.shape_cast %298 : vector<2x2x32xf32> to vector<4x32xf32>
    %300 = arith.truncf %299 : vector<4x32xf32> to vector<4x32xbf16>
    %c4_303 = arith.constant 4 : index
    %c0_304 = arith.constant 0 : index
    %c0_305 = arith.constant 0 : index
    %301 = vector.load %arg11[%c4_303, %c0_304, %c0_305] : memref<9x32x32xbf16, #tpu.memory_space<vmem>>, vector<1x32x32xbf16>
    %302 = vector.shape_cast %301 : vector<1x32x32xbf16> to vector<32x32xbf16>
    %cst_306 = arith.constant dense<0.000000e+00> : vector<4x32xf32>
    %303 = tpu.matmul %300, %302, %cst_306 {dimension_numbers = #tpu.dot_dimension_numbers<[1], [0], [0], [1], [0, 0, 1, 1], [], []>} : vector<4x32xbf16>, vector<32x32xbf16>, vector<4x32xf32> -> vector<4x32xf32>
    %304 = arith.addf %297, %303 : vector<4x32xf32>
    %c1_307 = arith.constant 1 : index
    %c2_308 = arith.constant 2 : index
    %c0_309 = arith.constant 0 : index
    %305 = vector.load %arg18[%c1_307, %c2_308, %c0_309] : memref<4x4x32xf32, #tpu.memory_space<vmem>>, vector<2x2x32xf32>
    %306 = vector.shape_cast %305 : vector<2x2x32xf32> to vector<4x32xf32>
    %307 = arith.truncf %306 : vector<4x32xf32> to vector<4x32xbf16>
    %c5_310 = arith.constant 5 : index
    %c0_311 = arith.constant 0 : index
    %c0_312 = arith.constant 0 : index
    %308 = vector.load %arg11[%c5_310, %c0_311, %c0_312] : memref<9x32x32xbf16, #tpu.memory_space<vmem>>, vector<1x32x32xbf16>
    %309 = vector.shape_cast %308 : vector<1x32x32xbf16> to vector<32x32xbf16>
    %cst_313 = arith.constant dense<0.000000e+00> : vector<4x32xf32>
    %310 = tpu.matmul %307, %309, %cst_313 {dimension_numbers = #tpu.dot_dimension_numbers<[1], [0], [0], [1], [0, 0, 1, 1], [], []>} : vector<4x32xbf16>, vector<32x32xbf16>, vector<4x32xf32> -> vector<4x32xf32>
    %311 = arith.addf %304, %310 : vector<4x32xf32>
    %c2_314 = arith.constant 2 : index
    %c0_315 = arith.constant 0 : index
    %c0_316 = arith.constant 0 : index
    %312 = vector.load %arg18[%c2_314, %c0_315, %c0_316] : memref<4x4x32xf32, #tpu.memory_space<vmem>>, vector<2x2x32xf32>
    %313 = vector.shape_cast %312 : vector<2x2x32xf32> to vector<4x32xf32>
    %314 = arith.truncf %313 : vector<4x32xf32> to vector<4x32xbf16>
    %c6_317 = arith.constant 6 : index
    %c0_318 = arith.constant 0 : index
    %c0_319 = arith.constant 0 : index
    %315 = vector.load %arg11[%c6_317, %c0_318, %c0_319] : memref<9x32x32xbf16, #tpu.memory_space<vmem>>, vector<1x32x32xbf16>
    %316 = vector.shape_cast %315 : vector<1x32x32xbf16> to vector<32x32xbf16>
    %cst_320 = arith.constant dense<0.000000e+00> : vector<4x32xf32>
    %317 = tpu.matmul %314, %316, %cst_320 {dimension_numbers = #tpu.dot_dimension_numbers<[1], [0], [0], [1], [0, 0, 1, 1], [], []>} : vector<4x32xbf16>, vector<32x32xbf16>, vector<4x32xf32> -> vector<4x32xf32>
    %318 = arith.addf %311, %317 : vector<4x32xf32>
    %c2_321 = arith.constant 2 : index
    %c1_322 = arith.constant 1 : index
    %c0_323 = arith.constant 0 : index
    %319 = vector.load %arg18[%c2_321, %c1_322, %c0_323] : memref<4x4x32xf32, #tpu.memory_space<vmem>>, vector<2x2x32xf32>
    %320 = vector.shape_cast %319 : vector<2x2x32xf32> to vector<4x32xf32>
    %321 = arith.truncf %320 : vector<4x32xf32> to vector<4x32xbf16>
    %c7_324 = arith.constant 7 : index
    %c0_325 = arith.constant 0 : index
    %c0_326 = arith.constant 0 : index
    %322 = vector.load %arg11[%c7_324, %c0_325, %c0_326] : memref<9x32x32xbf16, #tpu.memory_space<vmem>>, vector<1x32x32xbf16>
    %323 = vector.shape_cast %322 : vector<1x32x32xbf16> to vector<32x32xbf16>
    %cst_327 = arith.constant dense<0.000000e+00> : vector<4x32xf32>
    %324 = tpu.matmul %321, %323, %cst_327 {dimension_numbers = #tpu.dot_dimension_numbers<[1], [0], [0], [1], [0, 0, 1, 1], [], []>} : vector<4x32xbf16>, vector<32x32xbf16>, vector<4x32xf32> -> vector<4x32xf32>
    %325 = arith.addf %318, %324 : vector<4x32xf32>
    %c2_328 = arith.constant 2 : index
    %c2_329 = arith.constant 2 : index
    %c0_330 = arith.constant 0 : index
    %326 = vector.load %arg18[%c2_328, %c2_329, %c0_330] : memref<4x4x32xf32, #tpu.memory_space<vmem>>, vector<2x2x32xf32>
    %327 = vector.shape_cast %326 : vector<2x2x32xf32> to vector<4x32xf32>
    %328 = arith.truncf %327 : vector<4x32xf32> to vector<4x32xbf16>
    %c8_331 = arith.constant 8 : index
    %c0_332 = arith.constant 0 : index
    %c0_333 = arith.constant 0 : index
    %329 = vector.load %arg11[%c8_331, %c0_332, %c0_333] : memref<9x32x32xbf16, #tpu.memory_space<vmem>>, vector<1x32x32xbf16>
    %330 = vector.shape_cast %329 : vector<1x32x32xbf16> to vector<32x32xbf16>
    %cst_334 = arith.constant dense<0.000000e+00> : vector<4x32xf32>
    %331 = tpu.matmul %328, %330, %cst_334 {dimension_numbers = #tpu.dot_dimension_numbers<[1], [0], [0], [1], [0, 0, 1, 1], [], []>} : vector<4x32xbf16>, vector<32x32xbf16>, vector<4x32xf32> -> vector<4x32xf32>
    %332 = arith.addf %325, %331 : vector<4x32xf32>
    %c0_335 = arith.constant 0 : index
    %c0_336 = arith.constant 0 : index
    %c0_337 = arith.constant 0 : index
    %333 = vector.load %arg13[%c0_335, %c0_336, %c0_337] : memref<4x1x4xf32, #tpu.memory_space<vmem>>, vector<1x1x4xf32>
    %334 = vector.shape_cast %333 : vector<1x1x4xf32> to vector<1x4xf32>
    %cst_338 = arith.constant dense<0.000000e+00> : vector<1x32xf32>
    %335 = tpu.matmul %334, %332, %cst_338 {dimension_numbers = #tpu.dot_dimension_numbers<[1], [0], [0], [1], [0, 0, 1, 1], [], []>} : vector<1x4xf32>, vector<4x32xf32>, vector<1x32xf32> -> vector<1x32xf32>
    %c1_339 = arith.constant 1 : index
    %c0_340 = arith.constant 0 : index
    %c0_341 = arith.constant 0 : index
    %336 = vector.load %arg13[%c1_339, %c0_340, %c0_341] : memref<4x1x4xf32, #tpu.memory_space<vmem>>, vector<1x1x4xf32>
    %337 = vector.shape_cast %336 : vector<1x1x4xf32> to vector<1x4xf32>
    %cst_342 = arith.constant dense<0.000000e+00> : vector<1x32xf32>
    %338 = tpu.matmul %337, %332, %cst_342 {dimension_numbers = #tpu.dot_dimension_numbers<[1], [0], [0], [1], [0, 0, 1, 1], [], []>} : vector<1x4xf32>, vector<4x32xf32>, vector<1x32xf32> -> vector<1x32xf32>
    %339 = arith.maximumf %335, %338 : vector<1x32xf32>
    %c2_343 = arith.constant 2 : index
    %c0_344 = arith.constant 0 : index
    %c0_345 = arith.constant 0 : index
    %340 = vector.load %arg13[%c2_343, %c0_344, %c0_345] : memref<4x1x4xf32, #tpu.memory_space<vmem>>, vector<1x1x4xf32>
    %341 = vector.shape_cast %340 : vector<1x1x4xf32> to vector<1x4xf32>
    %cst_346 = arith.constant dense<0.000000e+00> : vector<1x32xf32>
    %342 = tpu.matmul %341, %332, %cst_346 {dimension_numbers = #tpu.dot_dimension_numbers<[1], [0], [0], [1], [0, 0, 1, 1], [], []>} : vector<1x4xf32>, vector<4x32xf32>, vector<1x32xf32> -> vector<1x32xf32>
    %343 = arith.maximumf %339, %342 : vector<1x32xf32>
    %c3_347 = arith.constant 3 : index
    %c0_348 = arith.constant 0 : index
    %c0_349 = arith.constant 0 : index
    %344 = vector.load %arg13[%c3_347, %c0_348, %c0_349] : memref<4x1x4xf32, #tpu.memory_space<vmem>>, vector<1x1x4xf32>
    %345 = vector.shape_cast %344 : vector<1x1x4xf32> to vector<1x4xf32>
    %cst_350 = arith.constant dense<0.000000e+00> : vector<1x32xf32>
    %346 = tpu.matmul %345, %332, %cst_350 {dimension_numbers = #tpu.dot_dimension_numbers<[1], [0], [0], [1], [0, 0, 1, 1], [], []>} : vector<1x4xf32>, vector<4x32xf32>, vector<1x32xf32> -> vector<1x32xf32>
    %347 = arith.maximumf %343, %346 : vector<1x32xf32>
    %c0_351 = arith.constant 0 : index
    %c0_352 = arith.constant 0 : index
    %348 = vector.load %arg12[%c0_351, %c0_352] : memref<1x32xf32, #tpu.memory_space<vmem>>, vector<1x32xf32>
    %349 = arith.addf %347, %348 : vector<1x32xf32>
    %cst_353 = arith.constant 0.000000e+00 : f32
    %350 = vector.broadcast %cst_353 : f32 to vector<1x32xf32>
    %351 = arith.maximumf %349, %350 : vector<1x32xf32>
    %c0_354 = arith.constant 0 : index
    %c0_355 = arith.constant 0 : index
    %c0_356 = arith.constant 0 : index
    %352 = vector.load %arg14[%c0_354, %c0_355, %c0_356] : memref<1x1x32xf32, #tpu.memory_space<vmem>>, vector<1x1x32xf32>
    %353 = vector.shape_cast %352 : vector<1x1x32xf32> to vector<1x32xf32>
    %354 = vector.shape_cast %351 : vector<1x32xf32> to vector<1x1x32xf32>
    tpu.vector_store %arg14[%c0_354, %c0_355, %c0_356], %354 {strides = array<i32>} : memref<1x1x32xf32, #tpu.memory_space<vmem>>, vector<1x1x32xf32>,
    return
  }
  func.func @transform_0(%arg0: i32) -> (i32, i32, i32, i32) {
    %c0_i32 = arith.constant 0 : i32
    %c0_i32_0 = arith.constant 0 : i32
    %c0_i32_1 = arith.constant 0 : i32
    %c0_i32_2 = arith.constant 0 : i32
    return %arg0, %c0_i32, %c0_i32_0, %c0_i32_1 : i32, i32, i32, i32
  }
  func.func @transform_1(%arg0: i32) -> (i32, i32, i32) {
    %c0_i32 = arith.constant 0 : i32
    %c0_i32_0 = arith.constant 0 : i32
    %c0_i32_1 = arith.constant 0 : i32
    %c0_i32_2 = arith.constant 0 : i32
    return %c0_i32, %c0_i32_0, %c0_i32_1 : i32, i32, i32
  }
  func.func @transform_2(%arg0: i32) -> (i32, i32) {
    %c0_i32 = arith.constant 0 : i32
    %c0_i32_0 = arith.constant 0 : i32
    %c0_i32_1 = arith.constant 0 : i32
    return %c0_i32, %c0_i32_0 : i32, i32
  }
  func.func @transform_3(%arg0: i32) -> (i32, i32, i32) {
    %c0_i32 = arith.constant 0 : i32
    %c0_i32_0 = arith.constant 0 : i32
    %c0_i32_1 = arith.constant 0 : i32
    %c0_i32_2 = arith.constant 0 : i32
    return %c0_i32, %c0_i32_0, %c0_i32_1 : i32, i32, i32
  }
  func.func @transform_4(%arg0: i32) -> (i32, i32, i32) {
    %c0_i32 = arith.constant 0 : i32
    %c0_i32_0 = arith.constant 0 : i32
    %c0_i32_1 = arith.constant 0 : i32
    %c0_i32_2 = arith.constant 0 : i32
    return %c0_i32, %c0_i32_0, %c0_i32_1 : i32, i32, i32
  }
  func.func @transform_5(%arg0: i32) -> (i32, i32) {
    %c0_i32 = arith.constant 0 : i32
    %c0_i32_0 = arith.constant 0 : i32
    %c0_i32_1 = arith.constant 0 : i32
    return %c0_i32, %c0_i32_0 : i32, i32
  }
  func.func @transform_6(%arg0: i32) -> (i32, i32, i32) {
    %c0_i32 = arith.constant 0 : i32
    %c0_i32_0 = arith.constant 0 : i32
    %c0_i32_1 = arith.constant 0 : i32
    %c0_i32_2 = arith.constant 0 : i32
    return %c0_i32, %c0_i32_0, %c0_i32_1 : i32, i32, i32
  }
  func.func @transform_7(%arg0: i32) -> (i32, i32, i32) {
    %c0_i32 = arith.constant 0 : i32
    %c0_i32_0 = arith.constant 0 : i32
    %c0_i32_1 = arith.constant 0 : i32
    %c0_i32_2 = arith.constant 0 : i32
    return %c0_i32, %c0_i32_0, %c0_i32_1 : i32, i32, i32
  }
  func.func @transform_8(%arg0: i32) -> (i32, i32) {
    %c0_i32 = arith.constant 0 : i32
    %c0_i32_0 = arith.constant 0 : i32
    %c0_i32_1 = arith.constant 0 : i32
    return %c0_i32, %c0_i32_0 : i32, i32
  }
  func.func @transform_9(%arg0: i32) -> (i32, i32, i32) {
    %c0_i32 = arith.constant 0 : i32
    %c0_i32_0 = arith.constant 0 : i32
    %c0_i32_1 = arith.constant 0 : i32
    %c0_i32_2 = arith.constant 0 : i32
    return %c0_i32, %c0_i32_0, %c0_i32_1 : i32, i32, i32
  }
  func.func @transform_10(%arg0: i32) -> (i32, i32, i32) {
    %c0_i32 = arith.constant 0 : i32
    %c0_i32_0 = arith.constant 0 : i32
    %c0_i32_1 = arith.constant 0 : i32
    %c0_i32_2 = arith.constant 0 : i32
    return %c0_i32, %c0_i32_0, %c0_i32_1 : i32, i32, i32
  }
  func.func @transform_11(%arg0: i32) -> (i32, i32) {
    %c0_i32 = arith.constant 0 : i32
    %c0_i32_0 = arith.constant 0 : i32
    %c0_i32_1 = arith.constant 0 : i32
    return %c0_i32, %c0_i32_0 : i32, i32
  }
  func.func @transform_12(%arg0: i32) -> (i32, i32, i32) {
    %c0_i32 = arith.constant 0 : i32
    %c0_i32_0 = arith.constant 0 : i32
    %c0_i32_1 = arith.constant 0 : i32
    %c0_i32_2 = arith.constant 0 : i32
    return %c0_i32, %c0_i32_0, %c0_i32_1 : i32, i32, i32
  }
  func.func @transform_13(%arg0: i32) -> (i32, i32, i32) {
    %c0_i32 = arith.constant 0 : i32
    %c0_i32_0 = arith.constant 0 : i32
    %c0_i32_1 = arith.constant 0 : i32
    return %arg0, %c0_i32, %c0_i32_0 : i32, i32, i32
  }
}

</mosaic_0001>

<llo_original>
// kernel: protonet_forward.1
$region0: #{protonet_forward.1}
  #allocation0 [shape = 'u32[]', space=smem, size = 0x4, offset = 0x4, fixed_abs, tag = 'smem constant byte address 0x4 - core index']
  #allocation1 [shape = 'u32[144,128]{1,0:T(1,128)}', space=vmem, size = 0x12000, scoped, tag = 'internal scratch']
  #allocation2 [shape = 'f32[18,18,4]{2,1,0:T(8,128)}', space=vmem, size = 0x36000, scoped, tag = 'scratch operand']
  #allocation3 [shape = 'f32[10,10,32]{2,1,0:T(8,128)}', space=vmem, size = 0x14000, scoped, tag = 'scratch operand']
  #allocation4 [shape = 'f32[6,6,32]{2,1,0:T(8,128)}', space=vmem, size = 0x6000, scoped, tag = 'scratch operand']
  #allocation5 [shape = 'f32[4,4,32]{2,1,0:T(4,128)}', space=vmem, size = 0x2000, scoped, tag = 'scratch operand']
  %s0 = inlined_call_operand.vmem [shape: f32[2,16,16,4], index: 0, kind: input, shape index: {}]
  %s1 = inlined_call_operand.vmem [shape: bf16[9,4,32], index: 1, kind: input, shape index: {}]
  %s2 = inlined_call_operand.vmem [shape: f32[1,32], index: 2, kind: input, shape index: {}]
  %s3 = inlined_call_operand.vmem [shape: f32[4,64,256], index: 3, kind: input, shape index: {}]
  %s4 = inlined_call_operand.vmem [shape: bf16[9,32,32], index: 4, kind: input, shape index: {}]
  %s5 = inlined_call_operand.vmem [shape: f32[1,32], index: 5, kind: input, shape index: {}]
  %s6 = inlined_call_operand.vmem [shape: f32[4,16,64], index: 6, kind: input, shape index: {}]
  %s7 = inlined_call_operand.vmem [shape: bf16[9,32,32], index: 7, kind: input, shape index: {}]
  %s8 = inlined_call_operand.vmem [shape: f32[1,32], index: 8, kind: input, shape index: {}]
  %s9 = inlined_call_operand.vmem [shape: f32[4,4,16], index: 9, kind: input, shape index: {}]
  %s10 = inlined_call_operand.vmem [shape: bf16[9,32,32], index: 10, kind: input, shape index: {}]
  %s11 = inlined_call_operand.vmem [shape: f32[1,32], index: 11, kind: input, shape index: {}]
  %s12 = inlined_call_operand.vmem [shape: f32[4,1,4], index: 12, kind: input, shape index: {}]
  %s13 = inlined_call_operand.hbm [shape: f32[2,1,32], index: 13, kind: output, shape index: {}]
  %s14 = sld [smem:[#allocation0]]
  $region85: #{protonet_forward.1} parent=0
    _
  %s16 = ssub.s32 1, %s14
  %s17 = scalar_select 0, %s16, %s14
  $region1: #{protonet_forward.1} parent=0
    #allocation6 [shape = 'u8[1024]{0}', space=vmem, size = 0x400, scoped, tag = 'output window, operand 0']
    #allocation7 [shape = 's32[2]{0}', space=sflag, size = 0x8, scoped, tag = 'scoped memory for protonet_forward.1']
    %18 = vsyncpa [#allocation7], 0
    %s19 = scalar_lea.sflag [#allocation7], 1
    %20 = vsyncpa %s19, 0
    loop: start=0, step=1, limit=4
    $region2: #{protonet_forward.1} parent=1 // loop_pre_header
      _
    $region3: #{protonet_forward.1} parent=1 // loop_header
      %s22 = sphi 0, %s26
      %p23 = scmp.ge.s32.totalorder %s22, 4
      %s32 = sphi 0, %s34
      %s35 = sphi 0, %s32
      %s36 = sphi 0, %s35
      %s52 = sphi 0, %s36
      %s56 = sphi 0, %s56
      %s58 = sphi 0, %s56
      %s59 = sphi 0, %s58
      %s73 = sphi 0, %s59
      %s77 = sphi 0, %s77
      %s79 = sphi 0, %s77
      %s80 = sphi 0, %s79
      %s94 = sphi 0, %s80
      %s98 = sphi 0, %s98
      %s100 = sphi 0, %s98
      %s101 = sphi 0, %s100
      %s115 = sphi 0, %s101
      %s119 = sphi 0, %s119
      %s121 = sphi 0, %s119
      %s122 = sphi 0, %s121
      %s136 = sphi 0, %s122
      %s140 = sphi 0, %s140
      %s142 = sphi 0, %s140
      %s143 = sphi 0, %s142
      %s157 = sphi 0, %s143
      %s161 = sphi 0, %s161
      %s163 = sphi 0, %s161
      %s164 = sphi 0, %s163
      %s178 = sphi 0, %s164
      %s182 = sphi 0, %s182
      %s184 = sphi 0, %s182
      %s185 = sphi 0, %s184
      %s199 = sphi 0, %s185
      %s203 = sphi 0, %s203
      %s205 = sphi 0, %s203
      %s206 = sphi 0, %s205
      %s220 = sphi 0, %s206
      %s224 = sphi 0, %s224
      %s226 = sphi 0, %s224
      %s227 = sphi 0, %s226
      %s241 = sphi 0, %s227
      %s245 = sphi 0, %s245
      %s247 = sphi 0, %s245
      %s248 = sphi 0, %s247
      %s262 = sphi 0, %s248
      %s266 = sphi 0, %s266
      %s268 = sphi 0, %s266
      %s269 = sphi 0, %s268
      %s283 = sphi 0, %s269
      %s287 = sphi 0, %s287
      %s289 = sphi 0, %s287
      %s290 = sphi 0, %s289
      %s304 = sphi 0, %s290
      %s310 = sphi 0, %s312
      %s313 = sphi 0, %s310
      %s314 = sphi 0, %s313
      %s330 = sphi 0, %s314
    $region4: #{protonet_forward.1} parent=1 // loop_header_branch
      %25 = sbr.rel (%p23) target = $region8
    $region5: #{protonet_forward.1} parent=1 // loop_body
      %s27 = ssub.s32 %s22, 1
      %s28 = ssub.s32 %s22, 2
      %s29 = sadd.s32 %s22, 1
      %s30 = ssub.s32 %s22, %s29
      %p31 = scmp.eq.s32.totalorder %s30, 0
      %s33 = sadd.s32 %s32, 1
      %s34 = scalar_select %p31, %s32, %s33
      %p37 = pneg %p31
      %p38 = scmp.eq.s32.totalorder %s22, 1
      %p39 = por %p37, %p38
      %p40 = scmp.ne.s32.totalorder %s32, %s35
      %p41 = scmp.eq.s32.totalorder %s22, 0
      %p42 = por %p40, %p41
      %p43 = scmp.ne.s32.totalorder %s32, %s35
      %p44 = scmp.eq.s32.totalorder %s27, 1
      %p45 = por %p43, %p44
      %p46 = scmp.ne.s32.totalorder %s35, %s36
      %p47 = scmp.eq.s32.totalorder %s27, 0
      %p48 = por %p46, %p47
      %p49 = scmp.ne.s32.totalorder %s35, %s36
      %p50 = scmp.eq.s32.totalorder %s28, 1
      %p51 = por %p49, %p50
      %p53 = scmp.ne.s32.totalorder %s36, %s52
      %p54 = scmp.eq.s32.totalorder %s28, 0
      %p55 = por %p53, %p54
      %s57 = sadd.s32 %s56, 1
      %p60 = scmp.eq.s32.totalorder %s22, 1
      %p61 = scmp.ne.s32.totalorder %s56, %s58
      %p62 = scmp.eq.s32.totalorder %s22, 0
      %p63 = por %p61, %p62
      %p64 = scmp.ne.s32.totalorder %s56, %s58
      %p65 = scmp.eq.s32.totalorder %s27, 1
      %p66 = por %p64, %p65
      %p67 = scmp.ne.s32.totalorder %s58, %s59
      %p68 = scmp.eq.s32.totalorder %s27, 0
      %p69 = por %p67, %p68
      %p70 = scmp.ne.s32.totalorder %s58, %s59
      %p71 = scmp.eq.s32.totalorder %s28, 1
      %p72 = por %p70, %p71
      %p74 = scmp.ne.s32.totalorder %s59, %s73
      %p75 = scmp.eq.s32.totalorder %s28, 0
      %p76 = por %p74, %p75
      %s78 = sadd.s32 %s77, 1
      %p81 = scmp.eq.s32.totalorder %s22, 1
      %p82 = scmp.ne.s32.totalorder %s77, %s79
      %p83 = scmp.eq.s32.totalorder %s22, 0
      %p84 = por %p82, %p83
      %p85 = scmp.ne.s32.totalorder %s77, %s79
      %p86 = scmp.eq.s32.totalorder %s27, 1
      %p87 = por %p85, %p86
      %p88 = scmp.ne.s32.totalorder %s79, %s80
      %p89 = scmp.eq.s32.totalorder %s27, 0
      %p90 = por %p88, %p89
      %p91 = scmp.ne.s32.totalorder %s79, %s80
      %p92 = scmp.eq.s32.totalorder %s28, 1
      %p93 = por %p91, %p92
      %p95 = scmp.ne.s32.totalorder %s80, %s94
      %p96 = scmp.eq.s32.totalorder %s28, 0
      %p97 = por %p95, %p96
      %s99 = sadd.s32 %s98, 1
      %p102 = scmp.eq.s32.totalorder %s22, 1
      %p103 = scmp.ne.s32.totalorder %s98, %s100
      %p104 = scmp.eq.s32.totalorder %s22, 0
      %p105 = por %p103, %p104
      %p106 = scmp.ne.s32.totalorder %s98, %s100
      %p107 = scmp.eq.s32.totalorder %s27, 1
      %p108 = por %p106, %p107
      %p109 = scmp.ne.s32.totalorder %s100, %s101
      %p110 = scmp.eq.s32.totalorder %s27, 0
      %p111 = por %p109, %p110
      %p112 = scmp.ne.s32.totalorder %s100, %s101
      %p113 = scmp.eq.s32.totalorder %s28, 1
      %p114 = por %p112, %p113
      %p116 = scmp.ne.s32.totalorder %s101, %s115
      %p117 = scmp.eq.s32.totalorder %s28, 0
      %p118 = por %p116, %p117
      %s120 = sadd.s32 %s119, 1
      %p123 = scmp.eq.s32.totalorder %s22, 1
      %p124 = scmp.ne.s32.totalorder %s119, %s121
      %p125 = scmp.eq.s32.totalorder %s22, 0
      %p126 = por %p124, %p125
      %p127 = scmp.ne.s32.totalorder %s119, %s121
      %p128 = scmp.eq.s32.totalorder %s27, 1
      %p129 = por %p127, %p128
      %p130 = scmp.ne.s32.totalorder %s121, %s122
      %p131 = scmp.eq.s32.totalorder %s27, 0
      %p132 = por %p130, %p131
      %p133 = scmp.ne.s32.totalorder %s121, %s122
      %p134 = scmp.eq.s32.totalorder %s28, 1
      %p135 = por %p133, %p134
      %p137 = scmp.ne.s32.totalorder %s122, %s136
      %p138 = scmp.eq.s32.totalorder %s28, 0
      %p139 = por %p137, %p138
      %s141 = sadd.s32 %s140, 1
      %p144 = scmp.eq.s32.totalorder %s22, 1
      %p145 = scmp.ne.s32.totalorder %s140, %s142
      %p146 = scmp.eq.s32.totalorder %s22, 0
      %p147 = por %p145, %p146
      %p148 = scmp.ne.s32.totalorder %s140, %s142
      %p149 = scmp.eq.s32.totalorder %s27, 1
      %p150 = por %p148, %p149
      %p151 = scmp.ne.s32.totalorder %s142, %s143
      %p152 = scmp.eq.s32.totalorder %s27, 0
      %p153 = por %p151, %p152
      %p154 = scmp.ne.s32.totalorder %s142, %s143
      %p155 = scmp.eq.s32.totalorder %s28, 1
      %p156 = por %p154, %p155
      %p158 = scmp.ne.s32.totalorder %s143, %s157
      %p159 = scmp.eq.s32.totalorder %s28, 0
      %p160 = por %p158, %p159
      %s162 = sadd.s32 %s161, 1
      %p165 = scmp.eq.s32.totalorder %s22, 1
      %p166 = scmp.ne.s32.totalorder %s161, %s163
      %p167 = scmp.eq.s32.totalorder %s22, 0
      %p168 = por %p166, %p167
      %p169 = scmp.ne.s32.totalorder %s161, %s163
      %p170 = scmp.eq.s32.totalorder %s27, 1
      %p171 = por %p169, %p170
      %p172 = scmp.ne.s32.totalorder %s163, %s164
      %p173 = scmp.eq.s32.totalorder %s27, 0
      %p174 = por %p172, %p173
      %p175 = scmp.ne.s32.totalorder %s163, %s164
      %p176 = scmp.eq.s32.totalorder %s28, 1
      %p177 = por %p175, %p176
      %p179 = scmp.ne.s32.totalorder %s164, %s178
      %p180 = scmp.eq.s32.totalorder %s28, 0
      %p181 = por %p179, %p180
      %s183 = sadd.s32 %s182, 1
      %p186 = scmp.eq.s32.totalorder %s22, 1
      %p187 = scmp.ne.s32.totalorder %s182, %s184
      %p188 = scmp.eq.s32.totalorder %s22, 0
      %p189 = por %p187, %p188
      %p190 = scmp.ne.s32.totalorder %s182, %s184
      %p191 = scmp.eq.s32.totalorder %s27, 1
      %p192 = por %p190, %p191
      %p193 = scmp.ne.s32.totalorder %s184, %s185
      %p194 = scmp.eq.s32.totalorder %s27, 0
      %p195 = por %p193, %p194
      %p196 = scmp.ne.s32.totalorder %s184, %s185
      %p197 = scmp.eq.s32.totalorder %s28, 1
      %p198 = por %p196, %p197
      %p200 = scmp.ne.s32.totalorder %s185, %s199
      %p201 = scmp.eq.s32.totalorder %s28, 0
      %p202 = por %p200, %p201
      %s204 = sadd.s32 %s203, 1
      %p207 = scmp.eq.s32.totalorder %s22, 1
      %p208 = scmp.ne.s32.totalorder %s203, %s205
      %p209 = scmp.eq.s32.totalorder %s22, 0
      %p210 = por %p208, %p209
      %p211 = scmp.ne.s32.totalorder %s203, %s205
      %p212 = scmp.eq.s32.totalorder %s27, 1
      %p213 = por %p211, %p212
      %p214 = scmp.ne.s32.totalorder %s205, %s206
      %p215 = scmp.eq.s32.totalorder %s27, 0
      %p216 = por %p214, %p215
      %p217 = scmp.ne.s32.totalorder %s205, %s206
      %p218 = scmp.eq.s32.totalorder %s28, 1
      %p219 = por %p217, %p218
      %p221 = scmp.ne.s32.totalorder %s206, %s220
      %p222 = scmp.eq.s32.totalorder %s28, 0
      %p223 = por %p221, %p222
      %s225 = sadd.s32 %s224, 1
      %p228 = scmp.eq.s32.totalorder %s22, 1
      %p229 = scmp.ne.s32.totalorder %s224, %s226
      %p230 = scmp.eq.s32.totalorder %s22, 0
      %p231 = por %p229, %p230
      %p232 = scmp.ne.s32.totalorder %s224, %s226
      %p233 = scmp.eq.s32.totalorder %s27, 1
      %p234 = por %p232, %p233
      %p235 = scmp.ne.s32.totalorder %s226, %s227
      %p236 = scmp.eq.s32.totalorder %s27, 0
      %p237 = por %p235, %p236
      %p238 = scmp.ne.s32.totalorder %s226, %s227
      %p239 = scmp.eq.s32.totalorder %s28, 1
      %p240 = por %p238, %p239
      %p242 = scmp.ne.s32.totalorder %s227, %s241
      %p243 = scmp.eq.s32.totalorder %s28, 0
      %p244 = por %p242, %p243
      %s246 = sadd.s32 %s245, 1
      %p249 = scmp.eq.s32.totalorder %s22, 1
      %p250 = scmp.ne.s32.totalorder %s245, %s247
      %p251 = scmp.eq.s32.totalorder %s22, 0
      %p252 = por %p250, %p251
      %p253 = scmp.ne.s32.totalorder %s245, %s247
      %p254 = scmp.eq.s32.totalorder %s27, 1
      %p255 = por %p253, %p254
      %p256 = scmp.ne.s32.totalorder %s247, %s248
      %p257 = scmp.eq.s32.totalorder %s27, 0
      %p258 = por %p256, %p257
      %p259 = scmp.ne.s32.totalorder %s247, %s248
      %p260 = scmp.eq.s32.totalorder %s28, 1
      %p261 = por %p259, %p260
      %p263 = scmp.ne.s32.totalorder %s248, %s262
      %p264 = scmp.eq.s32.totalorder %s28, 0
      %p265 = por %p263, %p264
      %s267 = sadd.s32 %s266, 1
      %p270 = scmp.eq.s32.totalorder %s22, 1
      %p271 = scmp.ne.s32.totalorder %s266, %s268
      %p272 = scmp.eq.s32.totalorder %s22, 0
      %p273 = por %p271, %p272
      %p274 = scmp.ne.s32.totalorder %s266, %s268
      %p275 = scmp.eq.s32.totalorder %s27, 1
      %p276 = por %p274, %p275
      %p277 = scmp.ne.s32.totalorder %s268, %s269
      %p278 = scmp.eq.s32.totalorder %s27, 0
      %p279 = por %p277, %p278
      %p280 = scmp.ne.s32.totalorder %s268, %s269
      %p281 = scmp.eq.s32.totalorder %s28, 1
      %p282 = por %p280, %p281
      %p284 = scmp.ne.s32.totalorder %s269, %s283
      %p285 = scmp.eq.s32.totalorder %s28, 0
      %p286 = por %p284, %p285
      %s288 = sadd.s32 %s287, 1
      %p291 = scmp.eq.s32.totalorder %s22, 1
      %p292 = scmp.ne.s32.totalorder %s287, %s289
      %p293 = scmp.eq.s32.totalorder %s22, 0
      %p294 = por %p292, %p293
      %p295 = scmp.ne.s32.totalorder %s287, %s289
      %p296 = scmp.eq.s32.totalorder %s27, 1
      %p297 = por %p295, %p296
      %p298 = scmp.ne.s32.totalorder %s289, %s290
      %p299 = scmp.eq.s32.totalorder %s27, 0
      %p300 = por %p298, %p299
      %p301 = scmp.ne.s32.totalorder %s289, %s290
      %p302 = scmp.eq.s32.totalorder %s28, 1
      %p303 = por %p301, %p302
      %p305 = scmp.ne.s32.totalorder %s290, %s304
      %p306 = scmp.eq.s32.totalorder %s28, 0
      %p307 = por %p305, %p306
      %s308 = ssub.s32 %s22, %s29
      %p309 = scmp.eq.s32.totalorder %s308, 0
      %s311 = sadd.s32 %s310, 1
      %s312 = scalar_select %p309, %s310, %s311
      %p315 = pneg %p309
      %p316 = scmp.eq.s32.totalorder %s22, 1
      %p317 = por %p315, %p316
      %p318 = scmp.ne.s32.totalorder %s310, %s313
      %p319 = scmp.eq.s32.totalorder %s22, 0
      %p320 = por %p318, %p319
      %p321 = scmp.ne.s32.totalorder %s310, %s313
      %p322 = scmp.eq.s32.totalorder %s27, 1
      %p323 = por %p321, %p322
      %p324 = scmp.ne.s32.totalorder %s313, %s314
      %p325 = scmp.eq.s32.totalorder %s27, 0
      %p326 = por %p324, %p325
      %p327 = scmp.ne.s32.totalorder %s313, %s314
      %p328 = scmp.eq.s32.totalorder %s28, 1
      %p329 = por %p327, %p328
      %p331 = scmp.ne.s32.totalorder %s314, %s330
      %p332 = scmp.eq.s32.totalorder %s28, 0
      %p333 = por %p331, %p332
      %p334 = scmp.le.s32.totalorder 1, %s22
      %p335 = scmp.lt.s32.totalorder %s22, 3
      %p336 = pnand %p334, %p335
      %p337 = pneg %p336
      // Predicated region
      $region9: #{protonet_forward.1} parent=5 // pred_check
        _
      $region10: #{protonet_forward.1} parent=5 // pred_check_branch
        %339 = sbr.rel (%p336) target = $region12
      $region11: #{protonet_forward.1} parent=5 // pred_region
        %s340 = ssub.s32 %s22, 1
        // Predicated region
        $region13: #{protonet_forward.1} parent=11 // pred_check
          %p341 = pneg %p69
        $region14: #{protonet_forward.1} parent=11 // pred_check_branch
          %343 = sbr.rel (%p341) target = $region16
        $region15: #{protonet_forward.1} parent=11 // pred_region
          _
        $region16: #{protonet_forward.1} parent=11 // pred_fallthru
          _
        // Predicated region
        $region17: #{protonet_forward.1} parent=11 // pred_check
          %p344 = pneg %p90
        $region18: #{protonet_forward.1} parent=11 // pred_check_branch
          %346 = sbr.rel (%p344) target = $region20
        $region19: #{protonet_forward.1} parent=11 // pred_region
          _
        $region20: #{protonet_forward.1} parent=11 // pred_fallthru
          _
        // Predicated region
        $region21: #{protonet_forward.1} parent=11 // pred_check
          %p347 = pneg %p111
        $region22: #{protonet_forward.1} parent=11 // pred_check_branch
          %349 = sbr.rel (%p347) target = $region24
        $region23: #{protonet_forward.1} parent=11 // pred_region
          _
        $region24: #{protonet_forward.1} parent=11 // pred_fallthru
          _
        // Predicated region
        $region25: #{protonet_forward.1} parent=11 // pred_check
          %p350 = pneg %p132
        $region26: #{protonet_forward.1} parent=11 // pred_check_branch
          %352 = sbr.rel (%p350) target = $region28
        $region27: #{protonet_forward.1} parent=11 // pred_region
          _
        $region28: #{protonet_forward.1} parent=11 // pred_fallthru
          _
        // Predicated region
        $region29: #{protonet_forward.1} parent=11 // pred_check
          %p353 = pneg %p153
        $region30: #{protonet_forward.1} parent=11 // pred_check_branch
          %355 = sbr.rel (%p353) target = $region32
        $region31: #{protonet_forward.1} parent=11 // pred_region
          _
        $region32: #{protonet_forward.1} parent=11 // pred_fallthru
          _
        // Predicated region
        $region33: #{protonet_forward.1} parent=11 // pred_check
          %p356 = pneg %p174
        $region34: #{protonet_forward.1} parent=11 // pred_check_branch
          %358 = sbr.rel (%p356) target = $region36
        $region35: #{protonet_forward.1} parent=11 // pred_region
          _
        $region36: #{protonet_forward.1} parent=11 // pred_fallthru
          _
        // Predicated region
        $region37: #{protonet_forward.1} parent=11 // pred_check
          %p359 = pneg %p195
        $region38: #{protonet_forward.1} parent=11 // pred_check_branch
          %361 = sbr.rel (%p359) target = $region40
        $region39: #{protonet_forward.1} parent=11 // pred_region
          _
        $region40: #{protonet_forward.1} parent=11 // pred_fallthru
          _
        // Predicated region
        $region41: #{protonet_forward.1} parent=11 // pred_check
          %p362 = pneg %p216
        $region42: #{protonet_forward.1} parent=11 // pred_check_branch
          %364 = sbr.rel (%p362) target = $region44
        $region43: #{protonet_forward.1} parent=11 // pred_region
          _
        $region44: #{protonet_forward.1} parent=11 // pred_fallthru
          _
        // Predicated region
        $region45: #{protonet_forward.1} parent=11 // pred_check
          %p365 = pneg %p237
        $region46: #{protonet_forward.1} parent=11 // pred_check_branch
          %367 = sbr.rel (%p365) target = $region48
        $region47: #{protonet_forward.1} parent=11 // pred_region
          _
        $region48: #{protonet_forward.1} parent=11 // pred_fallthru
          _
        // Predicated region
        $region49: #{protonet_forward.1} parent=11 // pred_check
          %p368 = pneg %p258
        $region50: #{protonet_forward.1} parent=11 // pred_check_branch
          %370 = sbr.rel (%p368) target = $region52
        $region51: #{protonet_forward.1} parent=11 // pred_region
          _
        $region52: #{protonet_forward.1} parent=11 // pred_fallthru
          _
        // Predicated region
        $region53: #{protonet_forward.1} parent=11 // pred_check
          %p371 = pneg %p279
        $region54: #{protonet_forward.1} parent=11 // pred_check_branch
          %373 = sbr.rel (%p371) target = $region56
        $region55: #{protonet_forward.1} parent=11 // pred_region
          _
        $region56: #{protonet_forward.1} parent=11 // pred_fallthru
          _
        // Predicated region
        $region57: #{protonet_forward.1} parent=11 // pred_check
          %p374 = pneg %p300
        $region58: #{protonet_forward.1} parent=11 // pred_check_branch
          %376 = sbr.rel (%p374) target = $region60
        $region59: #{protonet_forward.1} parent=11 // pred_region
          _
        $region60: #{protonet_forward.1} parent=11 // pred_fallthru
          _
      $region12: #{protonet_forward.1} parent=5 // pred_fallthru
        _
      %p377 = scmp.lt.s32.totalorder %s22, 2
      // Predicated region
      $region61: #{protonet_forward.1} parent=5 // pred_check
        %p378 = pneg %p377
      $region62: #{protonet_forward.1} parent=5 // pred_check_branch
        %380 = sbr.rel (%p378) target = $region64
      $region63: #{protonet_forward.1} parent=5 // pred_region
        // Predicated region
        $region65: #{protonet_forward.1} parent=63 // pred_check
          %p381 = pneg %p42
        $region66: #{protonet_forward.1} parent=63 // pred_check_branch
          %383 = sbr.rel (%p381) target = $region68
        $region67: #{protonet_forward.1} parent=63 // pred_region
          %p384 = scmp.lt.s32.totalorder %s22, 1
          %s385 = scalar_select %p384, %s22, 1
          %s386 = smul.addr %s385, 32
          %s387 = smul.addr %s386, 8
          %s388 = scalar_lea.vmem %s0, %s387
        $region68: #{protonet_forward.1} parent=63 // pred_fallthru
          _
      $region64: #{protonet_forward.1} parent=5 // pred_fallthru
        _
      %p389 = scmp.le.s32.totalorder 1, %s22
      %p390 = scmp.lt.s32.totalorder %s22, 3
      %p391 = pnand %p389, %p390
      %p392 = pneg %p391
      // Predicated region
      $region69: #{protonet_forward.1} parent=5 // pred_check
        _
      $region70: #{protonet_forward.1} parent=5 // pred_check_branch
        %394 = sbr.rel (%p391) target = $region72
      $region71: #{protonet_forward.1} parent=5 // pred_region
        %s395 = ssub.s32 %s22, 1
        %p396 = scmp.lt.s32.totalorder %s27, 1
        %s397 = scalar_select %p396, %s27, 1
        %s398 = smul.addr %s397, 32
        %s399 = smul.addr %s398, 8
        %s400 = scalar_lea.vmem %s0, %s399
        %p401 = pneg %p48
        %p402 = pneg %p45
        %p403 = pneg %p69
        %p404 = pneg %p66
        %p405 = pneg %p90
        %p406 = pneg %p87
        %p407 = pneg %p111
        %p408 = pneg %p108
        %p409 = pneg %p132
        %p410 = pneg %p129
        %p411 = pneg %p153
        %p412 = pneg %p150
        %p413 = pneg %p174
        %p414 = pneg %p171
        %p415 = pneg %p195
        %p416 = pneg %p192
        %p417 = pneg %p216
        %p418 = pneg %p213
        %p419 = pneg %p237
        %p420 = pneg %p234
        %p421 = pneg %p258
        %p422 = pneg %p255
        %p423 = pneg %p279
        %p424 = pneg %p276
        %p425 = pneg %p300
        %p426 = pneg %p297
        %p427 = pneg %p326
        %p428 = pneg %p323
        %s429 = sand.u32 %s313, 1
        %s430 = scalar_lea.sflag [#allocation7], %s429
        %s431 = sand.u32 %s313, 1
        %s432 = scalar_lea.vmem [#allocation6], %s431
        %p433 = scmp.lt.s32.totalorder %s27, 1
        %s434 = scalar_select %p433, %s27, 1
        %s435 = smul.addr %s434, 32
        %s436 = smul.addr %s435, 8
        %s437 = scalar_lea.vmem %s0, %s436
        %vm439 = vcmask 31744
        %440 = vst.msk [vmem:[#allocation2] sm:$0xff] %vm439, 0.0
        %441 = vst.msk [vmem:[#allocation2 + $0x8] sm:$0xff] %vm439, 0.0
        %vm442 = vcmask 25600
        %443 = vst.msk [vmem:[#allocation2 + $0x10] sm:$0x3] %vm442, 0.0
        %444 = vst.msk [vmem:[#allocation2 + $0x18] sm:$0xff] %vm439, 0.0
        %445 = vst.msk [vmem:[#allocation2 + $0x20] sm:$0xff] %vm439, 0.0
        %446 = vst.msk [vmem:[#allocation2 + $0x28] sm:$0x3] %vm442, 0.0
        %447 = vst.msk [vmem:[#allocation2 + $0x30] sm:$0xff] %vm439, 0.0
        %448 = vst.msk [vmem:[#allocation2 + $0x38] sm:$0xff] %vm439, 0.0
        %449 = vst.msk [vmem:[#allocation2 + $0x40] sm:$0x3] %vm442, 0.0
        %450 = vst.msk [vmem:[#allocation2 + $0x48] sm:$0xff] %vm439, 0.0
        %451 = vst.msk [vmem:[#allocation2 + $0x50] sm:$0xff] %vm439, 0.0
        %452 = vst.msk [vmem:[#allocation2 + $0x58] sm:$0x3] %vm442, 0.0
        %453 = vst.msk [vmem:[#allocation2 + $0x60] sm:$0xff] %vm439, 0.0
        %454 = vst.msk [vmem:[#allocation2 + $0x68] sm:$0xff] %vm439, 0.0
        %455 = vst.msk [vmem:[#allocation2 + $0x70] sm:$0x3] %vm442, 0.0
        %456 = vst.msk [vmem:[#allocation2 + $0x78] sm:$0xff] %vm439, 0.0
        %457 = vst.msk [vmem:[#allocation2 + $0x80] sm:$0xff] %vm439, 0.0
        %458 = vst.msk [vmem:[#allocation2 + $0x88] sm:$0x3] %vm442, 0.0
        %459 = vst.msk [vmem:[#allocation2 + $0x90] sm:$0xff] %vm439, 0.0
        %460 = vst.msk [vmem:[#allocation2 + $0x98] sm:$0xff] %vm439, 0.0
        %461 = vst.msk [vmem:[#allocation2 + $0xa0] sm:$0x3] %vm442, 0.0
        %462 = vst.msk [vmem:[#allocation2 + $0xa8] sm:$0xff] %vm439, 0.0
        %463 = vst.msk [vmem:[#allocation2 + $0xb0] sm:$0xff] %vm439, 0.0
        %464 = vst.msk [vmem:[#allocation2 + $0xb8] sm:$0x3] %vm442, 0.0
        %465 = vst.msk [vmem:[#allocation2 + $0xc0] sm:$0xff] %vm439, 0.0
        %466 = vst.msk [vmem:[#allocation2 + $0xc8] sm:$0xff] %vm439, 0.0
        %467 = vst.msk [vmem:[#allocation2 + $0xd0] sm:$0x3] %vm442, 0.0
        %468 = vst.msk [vmem:[#allocation2 + $0xd8] sm:$0xff] %vm439, 0.0
        %469 = vst.msk [vmem:[#allocation2 + $0xe0] sm:$0xff] %vm439, 0.0
        %470 = vst.msk [vmem:[#allocation2 + $0xe8] sm:$0x3] %vm442, 0.0
        %471 = vst.msk [vmem:[#allocation2 + $0xf0] sm:$0xff] %vm439, 0.0
        %472 = vst.msk [vmem:[#allocation2 + $0xf8] sm:$0xff] %vm439, 0.0
        %473 = vst.msk [vmem:[#allocation2 + $0x100] sm:$0x3] %vm442, 0.0
        %474 = vst.msk [vmem:[#allocation2 + $0x108] sm:$0xff] %vm439, 0.0
        %475 = vst.msk [vmem:[#allocation2 + $0x110] sm:$0xff] %vm439, 0.0
        %476 = vst.msk [vmem:[#allocation2 + $0x118] sm:$0x3] %vm442, 0.0
        %477 = vst.msk [vmem:[#allocation2 + $0x120] sm:$0xff] %vm439, 0.0
        %478 = vst.msk [vmem:[#allocation2 + $0x128] sm:$0xff] %vm439, 0.0
        %479 = vst.msk [vmem:[#allocation2 + $0x130] sm:$0x3] %vm442, 0.0
        %480 = vst.msk [vmem:[#allocation2 + $0x138] sm:$0xff] %vm439, 0.0
        %481 = vst.msk [vmem:[#allocation2 + $0x140] sm:$0xff] %vm439, 0.0
        %482 = vst.msk [vmem:[#allocation2 + $0x148] sm:$0x3] %vm442, 0.0
        %483 = vst.msk [vmem:[#allocation2 + $0x150] sm:$0xff] %vm439, 0.0
        %484 = vst.msk [vmem:[#allocation2 + $0x158] sm:$0xff] %vm439, 0.0
        %485 = vst.msk [vmem:[#allocation2 + $0x160] sm:$0x3] %vm442, 0.0
        %486 = vst.msk [vmem:[#allocation2 + $0x168] sm:$0xff] %vm439, 0.0
        %487 = vst.msk [vmem:[#allocation2 + $0x170] sm:$0xff] %vm439, 0.0
        %488 = vst.msk [vmem:[#allocation2 + $0x178] sm:$0x3] %vm442, 0.0
        %489 = vst.msk [vmem:[#allocation2 + $0x180] sm:$0xff] %vm439, 0.0
        %490 = vst.msk [vmem:[#allocation2 + $0x188] sm:$0xff] %vm439, 0.0
        %491 = vst.msk [vmem:[#allocation2 + $0x190] sm:$0x3] %vm442, 0.0
        %492 = vst.msk [vmem:[#allocation2 + $0x198] sm:$0xff] %vm439, 0.0
        %493 = vst.msk [vmem:[#allocation2 + $0x1a0] sm:$0xff] %vm439, 0.0
        %494 = vst.msk [vmem:[#allocation2 + $0x1a8] sm:$0x3] %vm442, 0.0
        %vm495 = vcmask 261120
        %496 = vst.msk [vmem:[#allocation3] sm:$0xff] %vm495, 0.0
        %vm497 = vcmask 254976
        %498 = vst.msk [vmem:[#allocation3 + $0x8] sm:$0x3] %vm497, 0.0
        %499 = vst.msk [vmem:[#allocation3 + $0x10] sm:$0xff] %vm495, 0.0
        %500 = vst.msk [vmem:[#allocation3 + $0x18] sm:$0x3] %vm497, 0.0
        %501 = vst.msk [vmem:[#allocation3 + $0x20] sm:$0xff] %vm495, 0.0
        %502 = vst.msk [vmem:[#allocation3 + $0x28] sm:$0x3] %vm497, 0.0
        %503 = vst.msk [vmem:[#allocation3 + $0x30] sm:$0xff] %vm495, 0.0
        %504 = vst.msk [vmem:[#allocation3 + $0x38] sm:$0x3] %vm497, 0.0
        %505 = vst.msk [vmem:[#allocation3 + $0x40] sm:$0xff] %vm495, 0.0
        %506 = vst.msk [vmem:[#allocation3 + $0x48] sm:$0x3] %vm497, 0.0
        %507 = vst.msk [vmem:[#allocation3 + $0x50] sm:$0xff] %vm495, 0.0
        %508 = vst.msk [vmem:[#allocation3 + $0x58] sm:$0x3] %vm497, 0.0
        %509 = vst.msk [vmem:[#allocation3 + $0x60] sm:$0xff] %vm495, 0.0
        %510 = vst.msk [vmem:[#allocation3 + $0x68] sm:$0x3] %vm497, 0.0
        %511 = vst.msk [vmem:[#allocation3 + $0x70] sm:$0xff] %vm495, 0.0
        %512 = vst.msk [vmem:[#allocation3 + $0x78] sm:$0x3] %vm497, 0.0
        %513 = vst.msk [vmem:[#allocation3 + $0x80] sm:$0xff] %vm495, 0.0
        %514 = vst.msk [vmem:[#allocation3 + $0x88] sm:$0x3] %vm497, 0.0
        %515 = vst.msk [vmem:[#allocation3 + $0x90] sm:$0xff] %vm495, 0.0
        %516 = vst.msk [vmem:[#allocation3 + $0x98] sm:$0x3] %vm497, 0.0
        %vm517 = vcmask 259072
        %518 = vst.msk [vmem:[#allocation4] sm:$0x3f] %vm517, 0.0
        %519 = vst.msk [vmem:[#allocation4 + $0x8] sm:$0x3f] %vm517, 0.0
        %520 = vst.msk [vmem:[#allocation4 + $0x10] sm:$0x3f] %vm517, 0.0
        %521 = vst.msk [vmem:[#allocation4 + $0x18] sm:$0x3f] %vm517, 0.0
        %522 = vst.msk [vmem:[#allocation4 + $0x20] sm:$0x3f] %vm517, 0.0
        %523 = vst.msk [vmem:[#allocation4 + $0x28] sm:$0x3f] %vm517, 0.0
        %vm524 = vcmask 257024
        %525 = vst.msk [vmem:[#allocation5] sm:$0xf] %vm524, 0.0
        %526 = vst.msk [vmem:[#allocation5 + $0x4] sm:$0xf] %vm524, 0.0
        %527 = vst.msk [vmem:[#allocation5 + $0x8] sm:$0xf] %vm524, 0.0
        %528 = vst.msk [vmem:[#allocation5 + $0xc] sm:$0xf] %vm524, 0.0
        %v529 = vld [vmem:[%s437] sm:$0xff]
        %v530 = vld [vmem:[%s437 + $0x8] sm:$0xff]
        %v531 = vld [vmem:[%s437 + $0x10] sm:$0xff]
        %v532 = vld [vmem:[%s437 + $0x18] sm:$0xff]
        %v533 = vld [vmem:[%s437 + $0x20] sm:$0xff]
        %v534 = vld [vmem:[%s437 + $0x28] sm:$0xff]
        %v535 = vld [vmem:[%s437 + $0x30] sm:$0xff]
        %v536 = vld [vmem:[%s437 + $0x38] sm:$0xff]
        %v537 = vld [vmem:[%s437 + $0x40] sm:$0xff]
        %v538 = vld [vmem:[%s437 + $0x48] sm:$0xff]
        %v539 = vld [vmem:[%s437 + $0x50] sm:$0xff]
        %v540 = vld [vmem:[%s437 + $0x58] sm:$0xff]
        %v541 = vld [vmem:[%s437 + $0x60] sm:$0xff]
        %v542 = vld [vmem:[%s437 + $0x68] sm:$0xff]
        %v543 = vld [vmem:[%s437 + $0x70] sm:$0xff]
        %v544 = vld [vmem:[%s437 + $0x78] sm:$0xff]
        %v545 = vld [vmem:[%s437 + $0x80] sm:$0xff]
        %v546 = vld [vmem:[%s437 + $0x88] sm:$0xff]
        %v547 = vld [vmem:[%s437 + $0x90] sm:$0xff]
        %v548 = vld [vmem:[%s437 + $0x98] sm:$0xff]
        %v549 = vld [vmem:[%s437 + $0xa0] sm:$0xff]
        %v550 = vld [vmem:[%s437 + $0xa8] sm:$0xff]
        %v551 = vld [vmem:[%s437 + $0xb0] sm:$0xff]
        %v552 = vld [vmem:[%s437 + $0xb8] sm:$0xff]
        %v553 = vld [vmem:[%s437 + $0xc0] sm:$0xff]
        %v554 = vld [vmem:[%s437 + $0xc8] sm:$0xff]
        %v555 = vld [vmem:[%s437 + $0xd0] sm:$0xff]
        %v556 = vld [vmem:[%s437 + $0xd8] sm:$0xff]
        %v557 = vld [vmem:[%s437 + $0xe0] sm:$0xff]
        %v558 = vld [vmem:[%s437 + $0xe8] sm:$0xff]
        %v559 = vld [vmem:[%s437 + $0xf0] sm:$0xff]
        %v560 = vld [vmem:[%s437 + $0xf8] sm:$0xff]
        %s561 = scalar_lea.vmem [#allocation2], 24
        %562 = vst.msk [vmem:[%s561 + $0x1] sm:$0xff] %vm439, %v529
        %563 = vst.msk [vmem:[%s561 + $0x9] sm:$0xff] %vm439, %v530
        %564 = vst.msk [vmem:[%s561 + $0x19] sm:$0xff] %vm439, %v531
        %565 = vst.msk [vmem:[%s561 + $0x21] sm:$0xff] %vm439, %v532
        %566 = vst.msk [vmem:[%s561 + $0x31] sm:$0xff] %vm439, %v533
        %567 = vst.msk [vmem:[%s561 + $0x39] sm:$0xff] %vm439, %v534
        %568 = vst.msk [vmem:[%s561 + $0x49] sm:$0xff] %vm439, %v535
        %569 = vst.msk [vmem:[%s561 + $0x51] sm:$0xff] %vm439, %v536
        %570 = vst.msk [vmem:[%s561 + $0x61] sm:$0xff] %vm439, %v537
        %571 = vst.msk [vmem:[%s561 + $0x69] sm:$0xff] %vm439, %v538
        %572 = vst.msk [vmem:[%s561 + $0x79] sm:$0xff] %vm439, %v539
        %573 = vst.msk [vmem:[%s561 + $0x81] sm:$0xff] %vm439, %v540
        %574 = vst.msk [vmem:[%s561 + $0x91] sm:$0xff] %vm439, %v541
        %575 = vst.msk [vmem:[%s561 + $0x99] sm:$0xff] %vm439, %v542
        %576 = vst.msk [vmem:[%s561 + $0xa9] sm:$0xff] %vm439, %v543
        %577 = vst.msk [vmem:[%s561 + $0xb1] sm:$0xff] %vm439, %v544
        %578 = vst.msk [vmem:[%s561 + $0xc1] sm:$0xff] %vm439, %v545
        %579 = vst.msk [vmem:[%s561 + $0xc9] sm:$0xff] %vm439, %v546
        %580 = vst.msk [vmem:[%s561 + $0xd9] sm:$0xff] %vm439, %v547
        %581 = vst.msk [vmem:[%s561 + $0xe1] sm:$0xff] %vm439, %v548
        %582 = vst.msk [vmem:[%s561 + $0xf1] sm:$0xff] %vm439, %v549
        %583 = vst.msk [vmem:[%s561 + $0xf9] sm:$0xff] %vm439, %v550
        %584 = vst.msk [vmem:[%s561 + $0x109] sm:$0xff] %vm439, %v551
        %585 = vst.msk [vmem:[%s561 + $0x111] sm:$0xff] %vm439, %v552
        %586 = vst.msk [vmem:[%s561 + $0x121] sm:$0xff] %vm439, %v553
        %587 = vst.msk [vmem:[%s561 + $0x129] sm:$0xff] %vm439, %v554
        %588 = vst.msk [vmem:[%s561 + $0x139] sm:$0xff] %vm439, %v555
        %589 = vst.msk [vmem:[%s561 + $0x141] sm:$0xff] %vm439, %v556
        %590 = vst.msk [vmem:[%s561 + $0x151] sm:$0xff] %vm439, %v557
        %591 = vst.msk [vmem:[%s561 + $0x159] sm:$0xff] %vm439, %v558
        %592 = vst.msk [vmem:[%s561 + $0x169] sm:$0xff] %vm439, %v559
        %593 = vst.msk [vmem:[%s561 + $0x171] sm:$0xff] %vm439, %v560
        %v594 = vld [vmem:[#allocation2] sm:$0xff]
        %v595 = vld [vmem:[#allocation2 + $0x8] sm:$0xff]
        %v596 = vld [vmem:[#allocation2 + $0x18] sm:$0xff]
        %v597 = vld [vmem:[#allocation2 + $0x20] sm:$0xff]
        %v598 = vld [vmem:[#allocation2 + $0x30] sm:$0xff]
        %v599 = vld [vmem:[#allocation2 + $0x38] sm:$0xff]
        %v600 = vld [vmem:[#allocation2 + $0x48] sm:$0xff]
        %v601 = vld [vmem:[#allocation2 + $0x50] sm:$0xff]
        %v602 = vld [vmem:[#allocation2 + $0x60] sm:$0xff]
        %v603 = vld [vmem:[#allocation2 + $0x68] sm:$0xff]
        %v604 = vld [vmem:[#allocation2 + $0x78] sm:$0xff]
        %v605 = vld [vmem:[#allocation2 + $0x80] sm:$0xff]
        %v606 = vld [vmem:[#allocation2 + $0x90] sm:$0xff]
        %v607 = vld [vmem:[#allocation2 + $0x98] sm:$0xff]
        %v608 = vld [vmem:[#allocation2 + $0xa8] sm:$0xff]
        %v609 = vld [vmem:[#allocation2 + $0xb0] sm:$0xff]
        %v610 = vld [vmem:[#allocation2 + $0xc0] sm:$0xff]
        %v611 = vld [vmem:[#allocation2 + $0xc8] sm:$0xff]
        %v612 = vld [vmem:[#allocation2 + $0xd8] sm:$0xff]
        %v613 = vld [vmem:[#allocation2 + $0xe0] sm:$0xff]
        %v614 = vld [vmem:[#allocation2 + $0xf0] sm:$0xff]
        %v615 = vld [vmem:[#allocation2 + $0xf8] sm:$0xff]
        %v616 = vld [vmem:[#allocation2 + $0x108] sm:$0xff]
        %v617 = vld [vmem:[#allocation2 + $0x110] sm:$0xff]
        %v618 = vld [vmem:[#allocation2 + $0x120] sm:$0xff]
        %v619 = vld [vmem:[#allocation2 + $0x128] sm:$0xff]
        %v620 = vld [vmem:[#allocation2 + $0x138] sm:$0xff]
        %v621 = vld [vmem:[#allocation2 + $0x140] sm:$0xff]
        %v622 = vld [vmem:[#allocation2 + $0x150] sm:$0xff]
        %v623 = vld [vmem:[#allocation2 + $0x158] sm:$0xff]
        %v624 = vld [vmem:[#allocation2 + $0x168] sm:$0xff]
        %v625 = vld [vmem:[#allocation2 + $0x170] sm:$0xff]
        %v626 = vpack.c.bf16 %v595, %v594
        %v627 = vpack.c.bf16 %v597, %v596
        %v628 = vpack.c.bf16 %v599, %v598
        %v629 = vpack.c.bf16 %v601, %v600
        %v630 = vpack.c.bf16 %v603, %v602
        %v631 = vpack.c.bf16 %v605, %v604
        %v632 = vpack.c.bf16 %v607, %v606
        %v633 = vpack.c.bf16 %v609, %v608
        %v634 = vpack.c.bf16 %v611, %v610
        %v635 = vpack.c.bf16 %v613, %v612
        %v636 = vpack.c.bf16 %v615, %v614
        %v637 = vpack.c.bf16 %v617, %v616
        %v638 = vpack.c.bf16 %v619, %v618
        %v639 = vpack.c.bf16 %v621, %v620
        %v640 = vpack.c.bf16 %v623, %v622
        %v641 = vpack.c.bf16 %v625, %v624
        %v642 = vld [vmem:[%s1] sm:$0x3]
        %v643 = vld [vmem:[#allocation2 + $0x1] sm:$0xff]
        %v644 = vld [vmem:[#allocation2 + $0x9] sm:$0xff]
        %v645 = vld [vmem:[#allocation2 + $0x19] sm:$0xff]
        %v646 = vld [vmem:[#allocation2 + $0x21] sm:$0xff]
        %v647 = vld [vmem:[#allocation2 + $0x31] sm:$0xff]
        %v648 = vld [vmem:[#allocation2 + $0x39] sm:$0xff]
        %v649 = vld [vmem:[#allocation2 + $0x49] sm:$0xff]
        %v650 = vld [vmem:[#allocation2 + $0x51] sm:$0xff]
        %v651 = vld [vmem:[#allocation2 + $0x61] sm:$0xff]
        %v652 = vld [vmem:[#allocation2 + $0x69] sm:$0xff]
        %v653 = vld [vmem:[#allocation2 + $0x79] sm:$0xff]
        %v654 = vld [vmem:[#allocation2 + $0x81] sm:$0xff]
        %v655 = vld [vmem:[#allocation2 + $0x91] sm:$0xff]
        %v656 = vld [vmem:[#allocation2 + $0x99] sm:$0xff]
        %v657 = vld [vmem:[#allocation2 + $0xa9] sm:$0xff]
        %v658 = vld [vmem:[#allocation2 + $0xb1] sm:$0xff]
        %v659 = vld [vmem:[#allocation2 + $0xc1] sm:$0xff]
        %v660 = vld [vmem:[#allocation2 + $0xc9] sm:$0xff]
        %v661 = vld [vmem:[#allocation2 + $0xd9] sm:$0xff]
        %v662 = vld [vmem:[#allocation2 + $0xe1] sm:$0xff]
        %v663 = vld [vmem:[#allocation2 + $0xf1] sm:$0xff]
        %v664 = vld [vmem:[#allocation2 + $0xf9] sm:$0xff]
        %v665 = vld [vmem:[#allocation2 + $0x109] sm:$0xff]
        %v666 = vld [vmem:[#allocation2 + $0x111] sm:$0xff]
        %v667 = vld [vmem:[#allocation2 + $0x121] sm:$0xff]
        %v668 = vld [vmem:[#allocation2 + $0x129] sm:$0xff]
        %v669 = vld [vmem:[#allocation2 + $0x139] sm:$0xff]
        %v670 = vld [vmem:[#allocation2 + $0x141] sm:$0xff]
        %v671 = vld [vmem:[#allocation2 + $0x151] sm:$0xff]
        %v672 = vld [vmem:[#allocation2 + $0x159] sm:$0xff]
        %v673 = vld [vmem:[#allocation2 + $0x169] sm:$0xff]
        %v674 = vld [vmem:[#allocation2 + $0x171] sm:$0xff]
        %v675 = vpack.c.bf16 %v644, %v643
        %v676 = vpack.c.bf16 %v646, %v645
        %v677 = vpack.c.bf16 %v648, %v647
        %v678 = vpack.c.bf16 %v650, %v649
        %v679 = vpack.c.bf16 %v652, %v651
        %v680 = vpack.c.bf16 %v654, %v653
        %v681 = vpack.c.bf16 %v656, %v655
        %v682 = vpack.c.bf16 %v658, %v657
        %v683 = vpack.c.bf16 %v660, %v659
        %v684 = vpack.c.bf16 %v662, %v661
        %v685 = vpack.c.bf16 %v664, %v663
        %v686 = vpack.c.bf16 %v666, %v665
        %v687 = vpack.c.bf16 %v668, %v667
        %v688 = vpack.c.bf16 %v670, %v669
        %v689 = vpack.c.bf16 %v672, %v671
        %v690 = vpack.c.bf16 %v674, %v673
        %s691 = scalar_lea.vmem %s1, 2
        %v692 = vld [vmem:[%s691] sm:$0x3]
        %v694 = vsel %vm439, %v675, 0
        %v697 = vsel %vm439, %v676, 0
        %v700 = vsel %vm439, %v677, 0
        %v703 = vsel %vm439, %v678, 0
        %v706 = vsel %vm439, %v679, 0
        %v709 = vsel %vm439, %v680, 0
        %v712 = vsel %vm439, %v681, 0
        %v715 = vsel %vm439, %v682, 0
        %v718 = vsel %vm439, %v683, 0
        %v721 = vsel %vm439, %v684, 0
        %v724 = vsel %vm439, %v685, 0
        %v727 = vsel %vm439, %v686, 0
        %v730 = vsel %vm439, %v687, 0
        %v733 = vsel %vm439, %v688, 0
        %v736 = vsel %vm439, %v689, 0
        %v739 = vsel %vm439, %v690, 0
        %vm741 = vcmask 1041408
        %v743 = vsel %vm741, %v692, 0
        %745 = vmatprep.subr.bf16.mxu0 0
        %746 = vmatpush1.bf16.msra.mxu0 0
        %747 = vmatprep.subr.bf16.mxu0 0
        %748 = vmatpush1.bf16.msra.mxu0 0
        %749 = vmatprep.subr.bf16.mxu0 0
        %750 = vmatpush1.bf16.msra.mxu0 0
        %751 = vmatprep.subr.bf16.mxu0 0
        %752 = vmatpush1.bf16.msra.mxu0 0
        %753 = vmatprep.subr.bf16.mxu0 0
        %754 = vmatpush1.bf16.msra.mxu0 0
        %755 = vmatprep.subr.bf16.mxu0 0
        %756 = vmatpush1.bf16.msra.mxu0 0
        %757 = vmatprep.subr.bf16.mxu0 0
        %758 = vmatpush1.bf16.msra.mxu0 0
        %759 = vmatprep.subr.bf16.mxu0 0
        %760 = vmatpush1.bf16.msra.mxu0 %v743
        %761 = vmatprep.subr.bf16.mxu0 0
        %762 = vmatpush2.bf16.msra.mxu0 0
        %763 = vmatprep.subr.bf16.mxu0 0
        %764 = vmatpush2.bf16.msra.mxu0 0
        %765 = vmatprep.subr.bf16.mxu0 0
        %766 = vmatpush2.bf16.msra.mxu0 0
        %767 = vmatprep.subr.bf16.mxu0 0
        %768 = vmatpush2.bf16.msra.mxu0 0
        %769 = vmatprep.subr.bf16.mxu0 0
        %770 = vmatpush2.bf16.msra.mxu0 0
        %771 = vmatprep.subr.bf16.mxu0 0
        %772 = vmatpush2.bf16.msra.mxu0 0
        %773 = vmatprep.subr.bf16.mxu0 0
        %774 = vmatpush2.bf16.msra.mxu0 0
        %775 = vmatprep.subr.bf16.mxu0 0
        %776 = vmatpush2.bf16.msra.mxu0 0
        %777 = vmatprep.mubr.bf16.mxu0 0
        %778 = vmatmul.mubr.bf16.gmra.mxu0 %v694
        %v779 = vpop.f32.mrf.mxu0
        %v780 = vadd.f32 0.0, %v779
        %v781 = vpop.f32.mrf.mxu0
        %v782 = vpop.f32.mrf.mxu0
        %v783 = vadd.f32 0.0, %v782
        %v784 = vpop.f32.mrf.mxu0
        %785 = vmatprep.mubr.bf16.mxu0 0
        %786 = vmatmul.mubr.bf16.gmra.mxu0 %v697
        %v787 = vpop.f32.mrf.mxu0
        %v788 = vadd.f32 0.0, %v787
        %v789 = vpop.f32.mrf.mxu0
        %v790 = vpop.f32.mrf.mxu0
        %v791 = vadd.f32 0.0, %v790
        %v792 = vpop.f32.mrf.mxu0
        %793 = vmatprep.mubr.bf16.mxu0 0
        %794 = vmatmul.mubr.bf16.gmra.mxu0 %v700
        %v795 = vpop.f32.mrf.mxu0
        %v796 = vadd.f32 0.0, %v795
        %v797 = vpop.f32.mrf.mxu0
        %v798 = vpop.f32.mrf.mxu0
        %v799 = vadd.f32 0.0, %v798
        %v800 = vpop.f32.mrf.mxu0
        %801 = vmatprep.mubr.bf16.mxu0 0
        %802 = vmatmul.mubr.bf16.gmra.mxu0 %v703
        %v803 = vpop.f32.mrf.mxu0
        %v804 = vadd.f32 0.0, %v803
        %v805 = vpop.f32.mrf.mxu0
        %v806 = vpop.f32.mrf.mxu0
        %v807 = vadd.f32 0.0, %v806
        %v808 = vpop.f32.mrf.mxu0
        %809 = vmatprep.mubr.bf16.mxu0 0
        %810 = vmatmul.mubr.bf16.gmra.mxu0 %v706
        %v811 = vpop.f32.mrf.mxu0
        %v812 = vadd.f32 0.0, %v811
        %v813 = vpop.f32.mrf.mxu0
        %v814 = vpop.f32.mrf.mxu0
        %v815 = vadd.f32 0.0, %v814
        %v816 = vpop.f32.mrf.mxu0
        %817 = vmatprep.mubr.bf16.mxu0 0
        %818 = vmatmul.mubr.bf16.gmra.mxu0 %v709
        %v819 = vpop.f32.mrf.mxu0
        %v820 = vadd.f32 0.0, %v819
        %v821 = vpop.f32.mrf.mxu0
        %v822 = vpop.f32.mrf.mxu0
        %v823 = vadd.f32 0.0, %v822
        %v824 = vpop.f32.mrf.mxu0
        %825 = vmatprep.mubr.bf16.mxu0 0
        %826 = vmatmul.mubr.bf16.gmra.mxu0 %v712
        %v827 = vpop.f32.mrf.mxu0
        %v828 = vadd.f32 0.0, %v827
        %v829 = vpop.f32.mrf.mxu0
        %v830 = vpop.f32.mrf.mxu0
        %v831 = vadd.f32 0.0, %v830
        %v832 = vpop.f32.mrf.mxu0
        %833 = vmatprep.mubr.bf16.mxu0 0
        %834 = vmatmul.mubr.bf16.gmra.mxu0 %v715
        %v835 = vpop.f32.mrf.mxu0
        %v836 = vadd.f32 0.0, %v835
        %v837 = vpop.f32.mrf.mxu0
        %v838 = vpop.f32.mrf.mxu0
        %v839 = vadd.f32 0.0, %v838
        %v840 = vpop.f32.mrf.mxu0
        %841 = vmatprep.mubr.bf16.mxu0 0
        %842 = vmatmul.mubr.bf16.gmra.mxu0 %v718
        %v843 = vpop.f32.mrf.mxu0
        %v844 = vadd.f32 0.0, %v843
        %v845 = vpop.f32.mrf.mxu0
        %v846 = vpop.f32.mrf.mxu0
        %v847 = vadd.f32 0.0, %v846
        %v848 = vpop.f32.mrf.mxu0
        %849 = vmatprep.mubr.bf16.mxu0 0
        %850 = vmatmul.mubr.bf16.gmra.mxu0 %v721
        %v851 = vpop.f32.mrf.mxu0
        %v852 = vadd.f32 0.0, %v851
        %v853 = vpop.f32.mrf.mxu0
        %v854 = vpop.f32.mrf.mxu0
        %v855 = vadd.f32 0.0, %v854
        %v856 = vpop.f32.mrf.mxu0
        %857 = vmatprep.mubr.bf16.mxu0 0
        %858 = vmatmul.mubr.bf16.gmra.mxu0 %v724
        %v859 = vpop.f32.mrf.mxu0
        %v860 = vadd.f32 0.0, %v859
        %v861 = vpop.f32.mrf.mxu0
        %v862 = vpop.f32.mrf.mxu0
        %v863 = vadd.f32 0.0, %v862
        %v864 = vpop.f32.mrf.mxu0
        %865 = vmatprep.mubr.bf16.mxu0 0
        %866 = vmatmul.mubr.bf16.gmra.mxu0 %v727
        %v867 = vpop.f32.mrf.mxu0
        %v868 = vadd.f32 0.0, %v867
        %v869 = vpop.f32.mrf.mxu0
        %v870 = vpop.f32.mrf.mxu0
        %v871 = vadd.f32 0.0, %v870
        %v872 = vpop.f32.mrf.mxu0
        %873 = vmatprep.mubr.bf16.mxu0 0
        %874 = vmatmul.mubr.bf16.gmra.mxu0 %v730
        %v875 = vpop.f32.mrf.mxu0
        %v876 = vadd.f32 0.0, %v875
        %v877 = vpop.f32.mrf.mxu0
        %v878 = vpop.f32.mrf.mxu0
        %v879 = vadd.f32 0.0, %v878
        %v880 = vpop.f32.mrf.mxu0
        %881 = vmatprep.mubr.bf16.mxu0 0
        %882 = vmatmul.mubr.bf16.gmra.mxu0 %v733
        %v883 = vpop.f32.mrf.mxu0
        %v884 = vadd.f32 0.0, %v883
        %v885 = vpop.f32.mrf.mxu0
        %v886 = vpop.f32.mrf.mxu0
        %v887 = vadd.f32 0.0, %v886
        %v888 = vpop.f32.mrf.mxu0
        %889 = vmatprep.mubr.bf16.mxu0 0
        %890 = vmatmul.mubr.bf16.gmra.mxu0 %v736
        %v891 = vpop.f32.mrf.mxu0
        %v892 = vadd.f32 0.0, %v891
        %v893 = vpop.f32.mrf.mxu0
        %v894 = vpop.f32.mrf.mxu0
        %v895 = vadd.f32 0.0, %v894
        %v896 = vpop.f32.mrf.mxu0
        %897 = vmatprep.mubr.bf16.mxu0 0
        %898 = vmatmul.mubr.bf16.gmra.mxu0 %v739
        %v899 = vpop.f32.mrf.mxu0
        %v900 = vadd.f32 0.0, %v899
        %v901 = vpop.f32.mrf.mxu0
        %v902 = vpop.f32.mrf.mxu0
        %v903 = vadd.f32 0.0, %v902
        %v904 = vpop.f32.mrf.mxu0
        %905 = vdwg.mxu0
        %v907 = vsel %vm439, %v626, 0
        %v910 = vsel %vm439, %v627, 0
        %v913 = vsel %vm439, %v628, 0
        %v916 = vsel %vm439, %v629, 0
        %v919 = vsel %vm439, %v630, 0
        %v922 = vsel %vm439, %v631, 0
        %v925 = vsel %vm439, %v632, 0
        %v928 = vsel %vm439, %v633, 0
        %v931 = vsel %vm439, %v634, 0
        %v934 = vsel %vm439, %v635, 0
        %v937 = vsel %vm439, %v636, 0
        %v940 = vsel %vm439, %v637, 0
        %v943 = vsel %vm439, %v638, 0
        %v946 = vsel %vm439, %v639, 0
        %v949 = vsel %vm439, %v640, 0
        %v952 = vsel %vm439, %v641, 0
        %v955 = vsel %vm741, %v642, 0
        %957 = vmatprep.subr.bf16.mxu0 0
        %958 = vmatpush1.bf16.msra.mxu0 0
        %959 = vmatprep.subr.bf16.mxu0 0
        %960 = vmatpush1.bf16.msra.mxu0 0
        %961 = vmatprep.subr.bf16.mxu0 0
        %962 = vmatpush1.bf16.msra.mxu0 0
        %963 = vmatprep.subr.bf16.mxu0 0
        %964 = vmatpush1.bf16.msra.mxu0 0
        %965 = vmatprep.subr.bf16.mxu0 0
        %966 = vmatpush1.bf16.msra.mxu0 0
        %967 = vmatprep.subr.bf16.mxu0 0
        %968 = vmatpush1.bf16.msra.mxu0 0
        %969 = vmatprep.subr.bf16.mxu0 0
        %970 = vmatpush1.bf16.msra.mxu0 0
        %971 = vmatprep.subr.bf16.mxu0 0
        %972 = vmatpush1.bf16.msra.mxu0 %v955
        %973 = vmatprep.subr.bf16.mxu0 0
        %974 = vmatpush2.bf16.msra.mxu0 0
        %975 = vmatprep.subr.bf16.mxu0 0
        %976 = vmatpush2.bf16.msra.mxu0 0
        %977 = vmatprep.subr.bf16.mxu0 0
        %978 = vmatpush2.bf16.msra.mxu0 0
        %979 = vmatprep.subr.bf16.mxu0 0
        %980 = vmatpush2.bf16.msra.mxu0 0
        %981 = vmatprep.subr.bf16.mxu0 0
        %982 = vmatpush2.bf16.msra.mxu0 0
        %983 = vmatprep.subr.bf16.mxu0 0
        %984 = vmatpush2.bf16.msra.mxu0 0
        %985 = vmatprep.subr.bf16.mxu0 0
        %986 = vmatpush2.bf16.msra.mxu0 0
        %987 = vmatprep.subr.bf16.mxu0 0
        %988 = vmatpush2.bf16.msra.mxu0 0
        %989 = vmatprep.mubr.bf16.mxu0 0
        %990 = vmatmul.mubr.bf16.gmra.mxu0 %v907
        %v991 = vpop.f32.mrf.mxu0
        %v992 = vadd.f32 %v780, %v991
        %v993 = vpop.f32.mrf.mxu0
        %v994 = vpop.f32.mrf.mxu0
        %v995 = vadd.f32 %v783, %v994
        %v996 = vpop.f32.mrf.mxu0
        %997 = vmatprep.mubr.bf16.mxu0 0
        %998 = vmatmul.mubr.bf16.gmra.mxu0 %v910
        %v999 = vpop.f32.mrf.mxu0
        %v1000 = vadd.f32 %v788, %v999
        %v1001 = vpop.f32.mrf.mxu0
        %v1002 = vpop.f32.mrf.mxu0
        %v1003 = vadd.f32 %v791, %v1002
        %v1004 = vpop.f32.mrf.mxu0
        %1005 = vmatprep.mubr.bf16.mxu0 0
        %1006 = vmatmul.mubr.bf16.gmra.mxu0 %v913
        %v1007 = vpop.f32.mrf.mxu0
        %v1008 = vadd.f32 %v796, %v1007
        %v1009 = vpop.f32.mrf.mxu0
        %v1010 = vpop.f32.mrf.mxu0
        %v1011 = vadd.f32 %v799, %v1010
        %v1012 = vpop.f32.mrf.mxu0
        %1013 = vmatprep.mubr.bf16.mxu0 0
        %1014 = vmatmul.mubr.bf16.gmra.mxu0 %v916
        %v1015 = vpop.f32.mrf.mxu0
        %v1016 = vadd.f32 %v804, %v1015
        %v1017 = vpop.f32.mrf.mxu0
        %v1018 = vpop.f32.mrf.mxu0
        %v1019 = vadd.f32 %v807, %v1018
        %v1020 = vpop.f32.mrf.mxu0
        %1021 = vmatprep.mubr.bf16.mxu0 0
        %1022 = vmatmul.mubr.bf16.gmra.mxu0 %v919
        %v1023 = vpop.f32.mrf.mxu0
        %v1024 = vadd.f32 %v812, %v1023
        %v1025 = vpop.f32.mrf.mxu0
        %v1026 = vpop.f32.mrf.mxu0
        %v1027 = vadd.f32 %v815, %v1026
        %v1028 = vpop.f32.mrf.mxu0
        %1029 = vmatprep.mubr.bf16.mxu0 0
        %1030 = vmatmul.mubr.bf16.gmra.mxu0 %v922
        %v1031 = vpop.f32.mrf.mxu0
        %v1032 = vadd.f32 %v820, %v1031
        %v1033 = vpop.f32.mrf.mxu0
        %v1034 = vpop.f32.mrf.mxu0
        %v1035 = vadd.f32 %v823, %v1034
        %v1036 = vpop.f32.mrf.mxu0
        %1037 = vmatprep.mubr.bf16.mxu0 0
        %1038 = vmatmul.mubr.bf16.gmra.mxu0 %v925
        %v1039 = vpop.f32.mrf.mxu0
        %v1040 = vadd.f32 %v828, %v1039
        %v1041 = vpop.f32.mrf.mxu0
        %v1042 = vpop.f32.mrf.mxu0
        %v1043 = vadd.f32 %v831, %v1042
        %v1044 = vpop.f32.mrf.mxu0
        %1045 = vmatprep.mubr.bf16.mxu0 0
        %1046 = vmatmul.mubr.bf16.gmra.mxu0 %v928
        %v1047 = vpop.f32.mrf.mxu0
        %v1048 = vadd.f32 %v836, %v1047
        %v1049 = vpop.f32.mrf.mxu0
        %v1050 = vpop.f32.mrf.mxu0
        %v1051 = vadd.f32 %v839, %v1050
        %v1052 = vpop.f32.mrf.mxu0
        %1053 = vmatprep.mubr.bf16.mxu0 0
        %1054 = vmatmul.mubr.bf16.gmra.mxu0 %v931
        %v1055 = vpop.f32.mrf.mxu0
        %v1056 = vadd.f32 %v844, %v1055
        %v1057 = vpop.f32.mrf.mxu0
        %v1058 = vpop.f32.mrf.mxu0
        %v1059 = vadd.f32 %v847, %v1058
        %v1060 = vpop.f32.mrf.mxu0
        %1061 = vmatprep.mubr.bf16.mxu0 0
        %1062 = vmatmul.mubr.bf16.gmra.mxu0 %v934
        %v1063 = vpop.f32.mrf.mxu0
        %v1064 = vadd.f32 %v852, %v1063
        %v1065 = vpop.f32.mrf.mxu0
        %v1066 = vpop.f32.mrf.mxu0
        %v1067 = vadd.f32 %v855, %v1066
        %v1068 = vpop.f32.mrf.mxu0
        %1069 = vmatprep.mubr.bf16.mxu0 0
        %1070 = vmatmul.mubr.bf16.gmra.mxu0 %v937
        %v1071 = vpop.f32.mrf.mxu0
        %v1072 = vadd.f32 %v860, %v1071
        %v1073 = vpop.f32.mrf.mxu0
        %v1074 = vpop.f32.mrf.mxu0
        %v1075 = vadd.f32 %v863, %v1074
        %v1076 = vpop.f32.mrf.mxu0
        %1077 = vmatprep.mubr.bf16.mxu0 0
        %1078 = vmatmul.mubr.bf16.gmra.mxu0 %v940
        %v1079 = vpop.f32.mrf.mxu0
        %v1080 = vadd.f32 %v868, %v1079
        %v1081 = vpop.f32.mrf.mxu0
        %v1082 = vpop.f32.mrf.mxu0
        %v1083 = vadd.f32 %v871, %v1082
        %v1084 = vpop.f32.mrf.mxu0
        %1085 = vmatprep.mubr.bf16.mxu0 0
        %1086 = vmatmul.mubr.bf16.gmra.mxu0 %v943
        %v1087 = vpop.f32.mrf.mxu0
        %v1088 = vadd.f32 %v876, %v1087
        %v1089 = vpop.f32.mrf.mxu0
        %v1090 = vpop.f32.mrf.mxu0
        %v1091 = vadd.f32 %v879, %v1090
        %v1092 = vpop.f32.mrf.mxu0
        %1093 = vmatprep.mubr.bf16.mxu0 0
        %1094 = vmatmul.mubr.bf16.gmra.mxu0 %v946
        %v1095 = vpop.f32.mrf.mxu0
        %v1096 = vadd.f32 %v884, %v1095
        %v1097 = vpop.f32.mrf.mxu0
        %v1098 = vpop.f32.mrf.mxu0
        %v1099 = vadd.f32 %v887, %v1098
        %v1100 = vpop.f32.mrf.mxu0
        %1101 = vmatprep.mubr.bf16.mxu0 0
        %1102 = vmatmul.mubr.bf16.gmra.mxu0 %v949
        %v1103 = vpop.f32.mrf.mxu0
        %v1104 = vadd.f32 %v892, %v1103
        %v1105 = vpop.f32.mrf.mxu0
        %v1106 = vpop.f32.mrf.mxu0
        %v1107 = vadd.f32 %v895, %v1106
        %v1108 = vpop.f32.mrf.mxu0
        %1109 = vmatprep.mubr.bf16.mxu0 0
        %1110 = vmatmul.mubr.bf16.gmra.mxu0 %v952
        %v1111 = vpop.f32.mrf.mxu0
        %v1112 = vadd.f32 %v900, %v1111
        %v1113 = vpop.f32.mrf.mxu0
        %v1114 = vpop.f32.mrf.mxu0
        %v1115 = vadd.f32 %v903, %v1114
        %v1116 = vpop.f32.mrf.mxu0
        %1117 = vdwg.mxu0
        %v1118 = vld [vmem:[#allocation2 + $0x2] sm:$0xff]
        %v1119 = vld [vmem:[#allocation2 + $0xa] sm:$0xff]
        %v1120 = vld [vmem:[#allocation2 + $0x1a] sm:$0xff]
        %v1121 = vld [vmem:[#allocation2 + $0x22] sm:$0xff]
        %v1122 = vld [vmem:[#allocation2 + $0x32] sm:$0xff]
        %v1123 = vld [vmem:[#allocation2 + $0x3a] sm:$0xff]
        %v1124 = vld [vmem:[#allocation2 + $0x4a] sm:$0xff]
        %v1125 = vld [vmem:[#allocation2 + $0x52] sm:$0xff]
        %v1126 = vld [vmem:[#allocation2 + $0x62] sm:$0xff]
        %v1127 = vld [vmem:[#allocation2 + $0x6a] sm:$0xff]
        %v1128 = vld [vmem:[#allocation2 + $0x7a] sm:$0xff]
        %v1129 = vld [vmem:[#allocation2 + $0x82] sm:$0xff]
        %v1130 = vld [vmem:[#allocation2 + $0x92] sm:$0xff]
        %v1131 = vld [vmem:[#allocation2 + $0x9a] sm:$0xff]
        %v1132 = vld [vmem:[#allocation2 + $0xaa] sm:$0xff]
        %v1133 = vld [vmem:[#allocation2 + $0xb2] sm:$0xff]
        %v1134 = vld [vmem:[#allocation2 + $0xc2] sm:$0xff]
        %v1135 = vld [vmem:[#allocation2 + $0xca] sm:$0xff]
        %v1136 = vld [vmem:[#allocation2 + $0xda] sm:$0xff]
        %v1137 = vld [vmem:[#allocation2 + $0xe2] sm:$0xff]
        %v1138 = vld [vmem:[#allocation2 + $0xf2] sm:$0xff]
        %v1139 = vld [vmem:[#allocation2 + $0xfa] sm:$0xff]
        %v1140 = vld [vmem:[#allocation2 + $0x10a] sm:$0xff]
        %v1141 = vld [vmem:[#allocation2 + $0x112] sm:$0xff]
        %v1142 = vld [vmem:[#allocation2 + $0x122] sm:$0xff]
        %v1143 = vld [vmem:[#allocation2 + $0x12a] sm:$0xff]
        %v1144 = vld [vmem:[#allocation2 + $0x13a] sm:$0xff]
        %v1145 = vld [vmem:[#allocation2 + $0x142] sm:$0xff]
        %v1146 = vld [vmem:[#allocation2 + $0x152] sm:$0xff]
        %v1147 = vld [vmem:[#allocation2 + $0x15a] sm:$0xff]
        %v1148 = vld [vmem:[#allocation2 + $0x16a] sm:$0xff]
        %v1149 = vld [vmem:[#allocation2 + $0x172] sm:$0xff]
        %v1150 = vpack.c.bf16 %v1119, %v1118
        %v1151 = vpack.c.bf16 %v1121, %v1120
        %v1152 = vpack.c.bf16 %v1123, %v1122
        %v1153 = vpack.c.bf16 %v1125, %v1124
        %v1154 = vpack.c.bf16 %v1127, %v1126
        %v1155 = vpack.c.bf16 %v1129, %v1128
        %v1156 = vpack.c.bf16 %v1131, %v1130
        %v1157 = vpack.c.bf16 %v1133, %v1132
        %v1158 = vpack.c.bf16 %v1135, %v1134
        %v1159 = vpack.c.bf16 %v1137, %v1136
        %v1160 = vpack.c.bf16 %v1139, %v1138
        %v1161 = vpack.c.bf16 %v1141, %v1140
        %v1162 = vpack.c.bf16 %v1143, %v1142
        %v1163 = vpack.c.bf16 %v1145, %v1144
        %v1164 = vpack.c.bf16 %v1147, %v1146
        %v1165 = vpack.c.bf16 %v1149, %v1148
        %s1166 = scalar_lea.vmem %s1, 4
        %v1167 = vld [vmem:[%s1166] sm:$0x3]
        %v1169 = vsel %vm439, %v1150, 0
        %v1172 = vsel %vm439, %v1151, 0
        %v1175 = vsel %vm439, %v1152, 0
        %v1178 = vsel %vm439, %v1153, 0
        %v1181 = vsel %vm439, %v1154, 0
        %v1184 = vsel %vm439, %v1155, 0
        %v1187 = vsel %vm439, %v1156, 0
        %v1190 = vsel %vm439, %v1157, 0
        %v1193 = vsel %vm439, %v1158, 0
        %v1196 = vsel %vm439, %v1159, 0
        %v1199 = vsel %vm439, %v1160, 0
        %v1202 = vsel %vm439, %v1161, 0
        %v1205 = vsel %vm439, %v1162, 0
        %v1208 = vsel %vm439, %v1163, 0
        %v1211 = vsel %vm439, %v1164, 0
        %v1214 = vsel %vm439, %v1165, 0
        %v1217 = vsel %vm741, %v1167, 0
        %1219 = vmatprep.subr.bf16.mxu0 0
        %1220 = vmatpush1.bf16.msra.mxu0 0
        %1221 = vmatprep.subr.bf16.mxu0 0
        %1222 = vmatpush1.bf16.msra.mxu0 0
        %1223 = vmatprep.subr.bf16.mxu0 0
        %1224 = vmatpush1.bf16.msra.mxu0 0
        %1225 = vmatprep.subr.bf16.mxu0 0
        %1226 = vmatpush1.bf16.msra.mxu0 0
        %1227 = vmatprep.subr.bf16.mxu0 0
        %1228 = vmatpush1.bf16.msra.mxu0 0
        %1229 = vmatprep.subr.bf16.mxu0 0
        %1230 = vmatpush1.bf16.msra.mxu0 0
        %1231 = vmatprep.subr.bf16.mxu0 0
        %1232 = vmatpush1.bf16.msra.mxu0 0
        %1233 = vmatprep.subr.bf16.mxu0 0
        %1234 = vmatpush1.bf16.msra.mxu0 %v1217
        %1235 = vmatprep.subr.bf16.mxu0 0
        %1236 = vmatpush2.bf16.msra.mxu0 0
        %1237 = vmatprep.subr.bf16.mxu0 0
        %1238 = vmatpush2.bf16.msra.mxu0 0
        %1239 = vmatprep.subr.bf16.mxu0 0
        %1240 = vmatpush2.bf16.msra.mxu0 0
        %1241 = vmatprep.subr.bf16.mxu0 0
        %1242 = vmatpush2.bf16.msra.mxu0 0
        %1243 = vmatprep.subr.bf16.mxu0 0
        %1244 = vmatpush2.bf16.msra.mxu0 0
        %1245 = vmatprep.subr.bf16.mxu0 0
        %1246 = vmatpush2.bf16.msra.mxu0 0
        %1247 = vmatprep.subr.bf16.mxu0 0
        %1248 = vmatpush2.bf16.msra.mxu0 0
        %1249 = vmatprep.subr.bf16.mxu0 0
        %1250 = vmatpush2.bf16.msra.mxu0 0
        %1251 = vmatprep.mubr.bf16.mxu0 0
        %1252 = vmatmul.mubr.bf16.gmra.mxu0 %v1169
        %v1253 = vpop.f32.mrf.mxu0
        %v1254 = vadd.f32 0.0, %v1253
        %v1255 = vpop.f32.mrf.mxu0
        %v1256 = vpop.f32.mrf.mxu0
        %v1257 = vadd.f32 0.0, %v1256
        %v1258 = vpop.f32.mrf.mxu0
        %1259 = vmatprep.mubr.bf16.mxu0 0
        %1260 = vmatmul.mubr.bf16.gmra.mxu0 %v1172
        %v1261 = vpop.f32.mrf.mxu0
        %v1262 = vadd.f32 0.0, %v1261
        %v1263 = vpop.f32.mrf.mxu0
        %v1264 = vpop.f32.mrf.mxu0
        %v1265 = vadd.f32 0.0, %v1264
        %v1266 = vpop.f32.mrf.mxu0
        %1267 = vmatprep.mubr.bf16.mxu0 0
        %1268 = vmatmul.mubr.bf16.gmra.mxu0 %v1175
        %v1269 = vpop.f32.mrf.mxu0
        %v1270 = vadd.f32 0.0, %v1269
        %v1271 = vpop.f32.mrf.mxu0
        %v1272 = vpop.f32.mrf.mxu0
        %v1273 = vadd.f32 0.0, %v1272
        %v1274 = vpop.f32.mrf.mxu0
        %1275 = vmatprep.mubr.bf16.mxu0 0
        %1276 = vmatmul.mubr.bf16.gmra.mxu0 %v1178
        %v1277 = vpop.f32.mrf.mxu0
        %v1278 = vadd.f32 0.0, %v1277
        %v1279 = vpop.f32.mrf.mxu0
        %v1280 = vpop.f32.mrf.mxu0
        %v1281 = vadd.f32 0.0, %v1280
        %v1282 = vpop.f32.mrf.mxu0
        %1283 = vmatprep.mubr.bf16.mxu0 0
        %1284 = vmatmul.mubr.bf16.gmra.mxu0 %v1181
        %v1285 = vpop.f32.mrf.mxu0
        %v1286 = vadd.f32 0.0, %v1285
        %v1287 = vpop.f32.mrf.mxu0
        %v1288 = vpop.f32.mrf.mxu0
        %v1289 = vadd.f32 0.0, %v1288
        %v1290 = vpop.f32.mrf.mxu0
        %1291 = vmatprep.mubr.bf16.mxu0 0
        %1292 = vmatmul.mubr.bf16.gmra.mxu0 %v1184
        %v1293 = vpop.f32.mrf.mxu0
        %v1294 = vadd.f32 0.0, %v1293
        %v1295 = vpop.f32.mrf.mxu0
        %v1296 = vpop.f32.mrf.mxu0
        %v1297 = vadd.f32 0.0, %v1296
        %v1298 = vpop.f32.mrf.mxu0
        %1299 = vmatprep.mubr.bf16.mxu0 0
        %1300 = vmatmul.mubr.bf16.gmra.mxu0 %v1187
        %v1301 = vpop.f32.mrf.mxu0
        %v1302 = vadd.f32 0.0, %v1301
        %v1303 = vpop.f32.mrf.mxu0
        %v1304 = vpop.f32.mrf.mxu0
        %v1305 = vadd.f32 0.0, %v1304
        %v1306 = vpop.f32.mrf.mxu0
        %1307 = vmatprep.mubr.bf16.mxu0 0
        %1308 = vmatmul.mubr.bf16.gmra.mxu0 %v1190
        %v1309 = vpop.f32.mrf.mxu0
        %v1310 = vadd.f32 0.0, %v1309
        %v1311 = vpop.f32.mrf.mxu0
        %v1312 = vpop.f32.mrf.mxu0
        %v1313 = vadd.f32 0.0, %v1312
        %v1314 = vpop.f32.mrf.mxu0
        %1315 = vmatprep.mubr.bf16.mxu0 0
        %1316 = vmatmul.mubr.bf16.gmra.mxu0 %v1193
        %v1317 = vpop.f32.mrf.mxu0
        %v1318 = vadd.f32 0.0, %v1317
        %v1319 = vpop.f32.mrf.mxu0
        %v1320 = vpop.f32.mrf.mxu0
        %v1321 = vadd.f32 0.0, %v1320
        %v1322 = vpop.f32.mrf.mxu0
        %1323 = vmatprep.mubr.bf16.mxu0 0
        %1324 = vmatmul.mubr.bf16.gmra.mxu0 %v1196
        %v1325 = vpop.f32.mrf.mxu0
        %v1326 = vadd.f32 0.0, %v1325
        %v1327 = vpop.f32.mrf.mxu0
        %v1328 = vpop.f32.mrf.mxu0
        %v1329 = vadd.f32 0.0, %v1328
        %v1330 = vpop.f32.mrf.mxu0
        %1331 = vmatprep.mubr.bf16.mxu0 0
        %1332 = vmatmul.mubr.bf16.gmra.mxu0 %v1199
        %v1333 = vpop.f32.mrf.mxu0
        %v1334 = vadd.f32 0.0, %v1333
        %v1335 = vpop.f32.mrf.mxu0
        %v1336 = vpop.f32.mrf.mxu0
        %v1337 = vadd.f32 0.0, %v1336
        %v1338 = vpop.f32.mrf.mxu0
        %1339 = vmatprep.mubr.bf16.mxu0 0
        %1340 = vmatmul.mubr.bf16.gmra.mxu0 %v1202
        %v1341 = vpop.f32.mrf.mxu0
        %v1342 = vadd.f32 0.0, %v1341
        %v1343 = vpop.f32.mrf.mxu0
        %v1344 = vpop.f32.mrf.mxu0
        %v1345 = vadd.f32 0.0, %v1344
        %v1346 = vpop.f32.mrf.mxu0
        %1347 = vmatprep.mubr.bf16.mxu0 0
        %1348 = vmatmul.mubr.bf16.gmra.mxu0 %v1205
        %v1349 = vpop.f32.mrf.mxu0
        %v1350 = vadd.f32 0.0, %v1349
        %v1351 = vpop.f32.mrf.mxu0
        %v1352 = vpop.f32.mrf.mxu0
        %v1353 = vadd.f32 0.0, %v1352
        %v1354 = vpop.f32.mrf.mxu0
        %1355 = vmatprep.mubr.bf16.mxu0 0
        %1356 = vmatmul.mubr.bf16.gmra.mxu0 %v1208
        %v1357 = vpop.f32.mrf.mxu0
        %v1358 = vadd.f32 0.0, %v1357
        %v1359 = vpop.f32.mrf.mxu0
        %v1360 = vpop.f32.mrf.mxu0
        %v1361 = vadd.f32 0.0, %v1360
        %v1362 = vpop.f32.mrf.mxu0
        %1363 = vmatprep.mubr.bf16.mxu0 0
        %1364 = vmatmul.mubr.bf16.gmra.mxu0 %v1211
        %v1365 = vpop.f32.mrf.mxu0
        %v1366 = vadd.f32 0.0, %v1365
        %v1367 = vpop.f32.mrf.mxu0
        %v1368 = vpop.f32.mrf.mxu0
        %v1369 = vadd.f32 0.0, %v1368
        %v1370 = vpop.f32.mrf.mxu0
        %1371 = vmatprep.mubr.bf16.mxu0 0
        %1372 = vmatmul.mubr.bf16.gmra.mxu0 %v1214
        %v1373 = vpop.f32.mrf.mxu0
        %v1374 = vadd.f32 0.0, %v1373
        %v1375 = vpop.f32.mrf.mxu0
        %v1376 = vpop.f32.mrf.mxu0
        %v1377 = vadd.f32 0.0, %v1376
        %v1378 = vpop.f32.mrf.mxu0
        %1379 = vdwg.mxu0
        %v1380 = vadd.f32 %v992, %v1254
        %v1381 = vadd.f32 %v995, %v1257
        %v1382 = vadd.f32 %v1000, %v1262
        %v1383 = vadd.f32 %v1003, %v1265
        %v1384 = vadd.f32 %v1008, %v1270
        %v1385 = vadd.f32 %v1011, %v1273
        %v1386 = vadd.f32 %v1016, %v1278
        %v1387 = vadd.f32 %v1019, %v1281
        %v1388 = vadd.f32 %v1024, %v1286
        %v1389 = vadd.f32 %v1027, %v1289
        %v1390 = vadd.f32 %v1032, %v1294
        %v1391 = vadd.f32 %v1035, %v1297
        %v1392 = vadd.f32 %v1040, %v1302
        %v1393 = vadd.f32 %v1043, %v1305
        %v1394 = vadd.f32 %v1048, %v1310
        %v1395 = vadd.f32 %v1051, %v1313
        %v1396 = vadd.f32 %v1056, %v1318
        %v1397 = vadd.f32 %v1059, %v1321
        %v1398 = vadd.f32 %v1064, %v1326
        %v1399 = vadd.f32 %v1067, %v1329
        %v1400 = vadd.f32 %v1072, %v1334
        %v1401 = vadd.f32 %v1075, %v1337
        %v1402 = vadd.f32 %v1080, %v1342
        %v1403 = vadd.f32 %v1083, %v1345
        %v1404 = vadd.f32 %v1088, %v1350
        %v1405 = vadd.f32 %v1091, %v1353
        %v1406 = vadd.f32 %v1096, %v1358
        %v1407 = vadd.f32 %v1099, %v1361
        %v1408 = vadd.f32 %v1104, %v1366
        %v1409 = vadd.f32 %v1107, %v1369
        %v1410 = vadd.f32 %v1112, %v1374
        %v1411 = vadd.f32 %v1115, %v1377
        %v1412 = vld [vmem:[%s561] sm:$0xff]
        %v1413 = vld [vmem:[%s561 + $0x8] sm:$0xff]
        %v1414 = vld [vmem:[%s561 + $0x18] sm:$0xff]
        %v1415 = vld [vmem:[%s561 + $0x20] sm:$0xff]
        %v1416 = vld [vmem:[%s561 + $0x30] sm:$0xff]
        %v1417 = vld [vmem:[%s561 + $0x38] sm:$0xff]
        %v1418 = vld [vmem:[%s561 + $0x48] sm:$0xff]
        %v1419 = vld [vmem:[%s561 + $0x50] sm:$0xff]
        %v1420 = vld [vmem:[%s561 + $0x60] sm:$0xff]
        %v1421 = vld [vmem:[%s561 + $0x68] sm:$0xff]
        %v1422 = vld [vmem:[%s561 + $0x78] sm:$0xff]
        %v1423 = vld [vmem:[%s561 + $0x80] sm:$0xff]
        %v1424 = vld [vmem:[%s561 + $0x90] sm:$0xff]
        %v1425 = vld [vmem:[%s561 + $0x98] sm:$0xff]
        %v1426 = vld [vmem:[%s561 + $0xa8] sm:$0xff]
        %v1427 = vld [vmem:[%s561 + $0xb0] sm:$0xff]
        %v1428 = vld [vmem:[%s561 + $0xc0] sm:$0xff]
        %v1429 = vld [vmem:[%s561 + $0xc8] sm:$0xff]
        %v1430 = vld [vmem:[%s561 + $0xd8] sm:$0xff]
        %v1431 = vld [vmem:[%s561 + $0xe0] sm:$0xff]
        %v1432 = vld [vmem:[%s561 + $0xf0] sm:$0xff]
        %v1433 = vld [vmem:[%s561 + $0xf8] sm:$0xff]
        %v1434 = vld [vmem:[%s561 + $0x108] sm:$0xff]
        %v1435 = vld [vmem:[%s561 + $0x110] sm:$0xff]
        %v1436 = vld [vmem:[%s561 + $0x120] sm:$0xff]
        %v1437 = vld [vmem:[%s561 + $0x128] sm:$0xff]
        %v1438 = vld [vmem:[%s561 + $0x138] sm:$0xff]
        %v1439 = vld [vmem:[%s561 + $0x140] sm:$0xff]
        %v1440 = vld [vmem:[%s561 + $0x150] sm:$0xff]
        %v1441 = vld [vmem:[%s561 + $0x158] sm:$0xff]
        %v1442 = vld [vmem:[%s561 + $0x168] sm:$0xff]
        %v1443 = vld [vmem:[%s561 + $0x170] sm:$0xff]
        %v1444 = vpack.c.bf16 %v1413, %v1412
        %v1445 = vpack.c.bf16 %v1415, %v1414
        %v1446 = vpack.c.bf16 %v1417, %v1416
        %v1447 = vpack.c.bf16 %v1419, %v1418
        %v1448 = vpack.c.bf16 %v1421, %v1420
        %v1449 = vpack.c.bf16 %v1423, %v1422
        %v1450 = vpack.c.bf16 %v1425, %v1424
        %v1451 = vpack.c.bf16 %v1427, %v1426
        %v1452 = vpack.c.bf16 %v1429, %v1428
        %v1453 = vpack.c.bf16 %v1431, %v1430
        %v1454 = vpack.c.bf16 %v1433, %v1432
        %v1455 = vpack.c.bf16 %v1435, %v1434
        %v1456 = vpack.c.bf16 %v1437, %v1436
        %v1457 = vpack.c.bf16 %v1439, %v1438
        %v1458 = vpack.c.bf16 %v1441, %v1440
        %v1459 = vpack.c.bf16 %v1443, %v1442
        %s1460 = scalar_lea.vmem %s1, 6
        %v1461 = vld [vmem:[%s1460] sm:$0x3]
        %v1463 = vsel %vm439, %v1444, 0
        %v1466 = vsel %vm439, %v1445, 0
        %v1469 = vsel %vm439, %v1446, 0
        %v1472 = vsel %vm439, %v1447, 0
        %v1475 = vsel %vm439, %v1448, 0
        %v1478 = vsel %vm439, %v1449, 0
        %v1481 = vsel %vm439, %v1450, 0
        %v1484 = vsel %vm439, %v1451, 0
        %v1487 = vsel %vm439, %v1452, 0
        %v1490 = vsel %vm439, %v1453, 0
        %v1493 = vsel %vm439, %v1454, 0
        %v1496 = vsel %vm439, %v1455, 0
        %v1499 = vsel %vm439, %v1456, 0
        %v1502 = vsel %vm439, %v1457, 0
        %v1505 = vsel %vm439, %v1458, 0
        %v1508 = vsel %vm439, %v1459, 0
        %v1511 = vsel %vm741, %v1461, 0
        %1513 = vmatprep.subr.bf16.mxu0 0
        %1514 = vmatpush1.bf16.msra.mxu0 0
        %1515 = vmatprep.subr.bf16.mxu0 0
        %1516 = vmatpush1.bf16.msra.mxu0 0
        %1517 = vmatprep.subr.bf16.mxu0 0
        %1518 = vmatpush1.bf16.msra.mxu0 0
        %1519 = vmatprep.subr.bf16.mxu0 0
        %1520 = vmatpush1.bf16.msra.mxu0 0
        %1521 = vmatprep.subr.bf16.mxu0 0
        %1522 = vmatpush1.bf16.msra.mxu0 0
        %1523 = vmatprep.subr.bf16.mxu0 0
        %1524 = vmatpush1.bf16.msra.mxu0 0
        %1525 = vmatprep.subr.bf16.mxu0 0
        %1526 = vmatpush1.bf16.msra.mxu0 0
        %1527 = vmatprep.subr.bf16.mxu0 0
        %1528 = vmatpush1.bf16.msra.mxu0 %v1511
        %1529 = vmatprep.subr.bf16.mxu0 0
        %1530 = vmatpush2.bf16.msra.mxu0 0
        %1531 = vmatprep.subr.bf16.mxu0 0
        %1532 = vmatpush2.bf16.msra.mxu0 0
        %1533 = vmatprep.subr.bf16.mxu0 0
        %1534 = vmatpush2.bf16.msra.mxu0 0
        %1535 = vmatprep.subr.bf16.mxu0 0
        %1536 = vmatpush2.bf16.msra.mxu0 0
        %1537 = vmatprep.subr.bf16.mxu0 0
        %1538 = vmatpush2.bf16.msra.mxu0 0
        %1539 = vmatprep.subr.bf16.mxu0 0
        %1540 = vmatpush2.bf16.msra.mxu0 0
        %1541 = vmatprep.subr.bf16.mxu0 0
        %1542 = vmatpush2.bf16.msra.mxu0 0
        %1543 = vmatprep.subr.bf16.mxu0 0
        %1544 = vmatpush2.bf16.msra.mxu0 0
        %1545 = vmatprep.mubr.bf16.mxu0 0
        %1546 = vmatmul.mubr.bf16.gmra.mxu0 %v1463
        %v1547 = vpop.f32.mrf.mxu0
        %v1548 = vadd.f32 0.0, %v1547
        %v1549 = vpop.f32.mrf.mxu0
        %v1550 = vpop.f32.mrf.mxu0
        %v1551 = vadd.f32 0.0, %v1550
        %v1552 = vpop.f32.mrf.mxu0
        %1553 = vmatprep.mubr.bf16.mxu0 0
        %1554 = vmatmul.mubr.bf16.gmra.mxu0 %v1466
        %v1555 = vpop.f32.mrf.mxu0
        %v1556 = vadd.f32 0.0, %v1555
        %v1557 = vpop.f32.mrf.mxu0
        %v1558 = vpop.f32.mrf.mxu0
        %v1559 = vadd.f32 0.0, %v1558
        %v1560 = vpop.f32.mrf.mxu0
        %1561 = vmatprep.mubr.bf16.mxu0 0
        %1562 = vmatmul.mubr.bf16.gmra.mxu0 %v1469
        %v1563 = vpop.f32.mrf.mxu0
        %v1564 = vadd.f32 0.0, %v1563
        %v1565 = vpop.f32.mrf.mxu0
        %v1566 = vpop.f32.mrf.mxu0
        %v1567 = vadd.f32 0.0, %v1566
        %v1568 = vpop.f32.mrf.mxu0
        %1569 = vmatprep.mubr.bf16.mxu0 0
        %1570 = vmatmul.mubr.bf16.gmra.mxu0 %v1472
        %v1571 = vpop.f32.mrf.mxu0
        %v1572 = vadd.f32 0.0, %v1571
        %v1573 = vpop.f32.mrf.mxu0
        %v1574 = vpop.f32.mrf.mxu0
        %v1575 = vadd.f32 0.0, %v1574
        %v1576 = vpop.f32.mrf.mxu0
        %1577 = vmatprep.mubr.bf16.mxu0 0
        %1578 = vmatmul.mubr.bf16.gmra.mxu0 %v1475
        %v1579 = vpop.f32.mrf.mxu0
        %v1580 = vadd.f32 0.0, %v1579
        %v1581 = vpop.f32.mrf.mxu0
        %v1582 = vpop.f32.mrf.mxu0
        %v1583 = vadd.f32 0.0, %v1582
        %v1584 = vpop.f32.mrf.mxu0
        %1585 = vmatprep.mubr.bf16.mxu0 0
        %1586 = vmatmul.mubr.bf16.gmra.mxu0 %v1478
        %v1587 = vpop.f32.mrf.mxu0
        %v1588 = vadd.f32 0.0, %v1587
        %v1589 = vpop.f32.mrf.mxu0
        %v1590 = vpop.f32.mrf.mxu0
        %v1591 = vadd.f32 0.0, %v1590
        %v1592 = vpop.f32.mrf.mxu0
        %1593 = vmatprep.mubr.bf16.mxu0 0
        %1594 = vmatmul.mubr.bf16.gmra.mxu0 %v1481
        %v1595 = vpop.f32.mrf.mxu0
        %v1596 = vadd.f32 0.0, %v1595
        %v1597 = vpop.f32.mrf.mxu0
        %v1598 = vpop.f32.mrf.mxu0
        %v1599 = vadd.f32 0.0, %v1598
        %v1600 = vpop.f32.mrf.mxu0
        %1601 = vmatprep.mubr.bf16.mxu0 0
        %1602 = vmatmul.mubr.bf16.gmra.mxu0 %v1484
        %v1603 = vpop.f32.mrf.mxu0
        %v1604 = vadd.f32 0.0, %v1603
        %v1605 = vpop.f32.mrf.mxu0
        %v1606 = vpop.f32.mrf.mxu0
        %v1607 = vadd.f32 0.0, %v1606
        %v1608 = vpop.f32.mrf.mxu0
        %1609 = vmatprep.mubr.bf16.mxu0 0
        %1610 = vmatmul.mubr.bf16.gmra.mxu0 %v1487
        %v1611 = vpop.f32.mrf.mxu0
        %v1612 = vadd.f32 0.0, %v1611
        %v1613 = vpop.f32.mrf.mxu0
        %v1614 = vpop.f32.mrf.mxu0
        %v1615 = vadd.f32 0.0, %v1614
        %v1616 = vpop.f32.mrf.mxu0
        %1617 = vmatprep.mubr.bf16.mxu0 0
        %1618 = vmatmul.mubr.bf16.gmra.mxu0 %v1490
        %v1619 = vpop.f32.mrf.mxu0
        %v1620 = vadd.f32 0.0, %v1619
        %v1621 = vpop.f32.mrf.mxu0
        %v1622 = vpop.f32.mrf.mxu0
        %v1623 = vadd.f32 0.0, %v1622
        %v1624 = vpop.f32.mrf.mxu0
        %1625 = vmatprep.mubr.bf16.mxu0 0
        %1626 = vmatmul.mubr.bf16.gmra.mxu0 %v1493
        %v1627 = vpop.f32.mrf.mxu0
        %v1628 = vadd.f32 0.0, %v1627
        %v1629 = vpop.f32.mrf.mxu0
        %v1630 = vpop.f32.mrf.mxu0
        %v1631 = vadd.f32 0.0, %v1630
        %v1632 = vpop.f32.mrf.mxu0
        %1633 = vmatprep.mubr.bf16.mxu0 0
        %1634 = vmatmul.mubr.bf16.gmra.mxu0 %v1496
        %v1635 = vpop.f32.mrf.mxu0
        %v1636 = vadd.f32 0.0, %v1635
        %v1637 = vpop.f32.mrf.mxu0
        %v1638 = vpop.f32.mrf.mxu0
        %v1639 = vadd.f32 0.0, %v1638
        %v1640 = vpop.f32.mrf.mxu0
        %1641 = vmatprep.mubr.bf16.mxu0 0
        %1642 = vmatmul.mubr.bf16.gmra.mxu0 %v1499
        %v1643 = vpop.f32.mrf.mxu0
        %v1644 = vadd.f32 0.0, %v1643
        %v1645 = vpop.f32.mrf.mxu0
        %v1646 = vpop.f32.mrf.mxu0
        %v1647 = vadd.f32 0.0, %v1646
        %v1648 = vpop.f32.mrf.mxu0
        %1649 = vmatprep.mubr.bf16.mxu0 0
        %1650 = vmatmul.mubr.bf16.gmra.mxu0 %v1502
        %v1651 = vpop.f32.mrf.mxu0
        %v1652 = vadd.f32 0.0, %v1651
        %v1653 = vpop.f32.mrf.mxu0
        %v1654 = vpop.f32.mrf.mxu0
        %v1655 = vadd.f32 0.0, %v1654
        %v1656 = vpop.f32.mrf.mxu0
        %1657 = vmatprep.mubr.bf16.mxu0 0
        %1658 = vmatmul.mubr.bf16.gmra.mxu0 %v1505
        %v1659 = vpop.f32.mrf.mxu0
        %v1660 = vadd.f32 0.0, %v1659
        %v1661 = vpop.f32.mrf.mxu0
        %v1662 = vpop.f32.mrf.mxu0
        %v1663 = vadd.f32 0.0, %v1662
        %v1664 = vpop.f32.mrf.mxu0
        %1665 = vmatprep.mubr.bf16.mxu0 0
        %1666 = vmatmul.mubr.bf16.gmra.mxu0 %v1508
        %v1667 = vpop.f32.mrf.mxu0
        %v1668 = vadd.f32 0.0, %v1667
        %v1669 = vpop.f32.mrf.mxu0
        %v1670 = vpop.f32.mrf.mxu0
        %v1671 = vadd.f32 0.0, %v1670
        %v1672 = vpop.f32.mrf.mxu0
        %1673 = vdwg.mxu0
        %v1674 = vadd.f32 %v1380, %v1548
        %v1675 = vadd.f32 %v1381, %v1551
        %v1676 = vadd.f32 %v1382, %v1556
        %v1677 = vadd.f32 %v1383, %v1559
        %v1678 = vadd.f32 %v1384, %v1564
        %v1679 = vadd.f32 %v1385, %v1567
        %v1680 = vadd.f32 %v1386, %v1572
        %v1681 = vadd.f32 %v1387, %v1575
        %v1682 = vadd.f32 %v1388, %v1580
        %v1683 = vadd.f32 %v1389, %v1583
        %v1684 = vadd.f32 %v1390, %v1588
        %v1685 = vadd.f32 %v1391, %v1591
        %v1686 = vadd.f32 %v1392, %v1596
        %v1687 = vadd.f32 %v1393, %v1599
        %v1688 = vadd.f32 %v1394, %v1604
        %v1689 = vadd.f32 %v1395, %v1607
        %v1690 = vadd.f32 %v1396, %v1612
        %v1691 = vadd.f32 %v1397, %v1615
        %v1692 = vadd.f32 %v1398, %v1620
        %v1693 = vadd.f32 %v1399, %v1623
        %v1694 = vadd.f32 %v1400, %v1628
        %v1695 = vadd.f32 %v1401, %v1631
        %v1696 = vadd.f32 %v1402, %v1636
        %v1697 = vadd.f32 %v1403, %v1639
        %v1698 = vadd.f32 %v1404, %v1644
        %v1699 = vadd.f32 %v1405, %v1647
        %v1700 = vadd.f32 %v1406, %v1652
        %v1701 = vadd.f32 %v1407, %v1655
        %v1702 = vadd.f32 %v1408, %v1660
        %v1703 = vadd.f32 %v1409, %v1663
        %v1704 = vadd.f32 %v1410, %v1668
        %v1705 = vadd.f32 %v1411, %v1671
        %v1706 = vld [vmem:[%s561 + $0x1] sm:$0xff]
        %v1707 = vld [vmem:[%s561 + $0x9] sm:$0xff]
        %v1708 = vld [vmem:[%s561 + $0x19] sm:$0xff]
        %v1709 = vld [vmem:[%s561 + $0x21] sm:$0xff]
        %v1710 = vld [vmem:[%s561 + $0x31] sm:$0xff]
        %v1711 = vld [vmem:[%s561 + $0x39] sm:$0xff]
        %v1712 = vld [vmem:[%s561 + $0x49] sm:$0xff]
        %v1713 = vld [vmem:[%s561 + $0x51] sm:$0xff]
        %v1714 = vld [vmem:[%s561 + $0x61] sm:$0xff]
        %v1715 = vld [vmem:[%s561 + $0x69] sm:$0xff]
        %v1716 = vld [vmem:[%s561 + $0x79] sm:$0xff]
        %v1717 = vld [vmem:[%s561 + $0x81] sm:$0xff]
        %v1718 = vld [vmem:[%s561 + $0x91] sm:$0xff]
        %v1719 = vld [vmem:[%s561 + $0x99] sm:$0xff]
        %v1720 = vld [vmem:[%s561 + $0xa9] sm:$0xff]
        %v1721 = vld [vmem:[%s561 + $0xb1] sm:$0xff]
        %v1722 = vld [vmem:[%s561 + $0xc1] sm:$0xff]
        %v1723 = vld [vmem:[%s561 + $0xc9] sm:$0xff]
        %v1724 = vld [vmem:[%s561 + $0xd9] sm:$0xff]
        %v1725 = vld [vmem:[%s561 + $0xe1] sm:$0xff]
        %v1726 = vld [vmem:[%s561 + $0xf1] sm:$0xff]
        %v1727 = vld [vmem:[%s561 + $0xf9] sm:$0xff]
        %v1728 = vld [vmem:[%s561 + $0x109] sm:$0xff]
        %v1729 = vld [vmem:[%s561 + $0x111] sm:$0xff]
        %v1730 = vld [vmem:[%s561 + $0x121] sm:$0xff]
        %v1731 = vld [vmem:[%s561 + $0x129] sm:$0xff]
        %v1732 = vld [vmem:[%s561 + $0x139] sm:$0xff]
        %v1733 = vld [vmem:[%s561 + $0x141] sm:$0xff]
        %v1734 = vld [vmem:[%s561 + $0x151] sm:$0xff]
        %v1735 = vld [vmem:[%s561 + $0x159] sm:$0xff]
        %v1736 = vld [vmem:[%s561 + $0x169] sm:$0xff]
        %v1737 = vld [vmem:[%s561 + $0x171] sm:$0xff]
        %v1738 = vpack.c.bf16 %v1707, %v1706
        %v1739 = vpack.c.bf16 %v1709, %v1708
        %v1740 = vpack.c.bf16 %v1711, %v1710
        %v1741 = vpack.c.bf16 %v1713, %v1712
        %v1742 = vpack.c.bf16 %v1715, %v1714
        %v1743 = vpack.c.bf16 %v1717, %v1716
        %v1744 = vpack.c.bf16 %v1719, %v1718
        %v1745 = vpack.c.bf16 %v1721, %v1720
        %v1746 = vpack.c.bf16 %v1723, %v1722
        %v1747 = vpack.c.bf16 %v1725, %v1724
        %v1748 = vpack.c.bf16 %v1727, %v1726
        %v1749 = vpack.c.bf16 %v1729, %v1728
        %v1750 = vpack.c.bf16 %v1731, %v1730
        %v1751 = vpack.c.bf16 %v1733, %v1732
        %v1752 = vpack.c.bf16 %v1735, %v1734
        %v1753 = vpack.c.bf16 %v1737, %v1736
        %s1754 = scalar_lea.vmem %s1, 8
        %v1755 = vld [vmem:[%s1754] sm:$0x3]
        %v1757 = vsel %vm439, %v1738, 0
        %v1760 = vsel %vm439, %v1739, 0
        %v1763 = vsel %vm439, %v1740, 0
        %v1766 = vsel %vm439, %v1741, 0
        %v1769 = vsel %vm439, %v1742, 0
        %v1772 = vsel %vm439, %v1743, 0
        %v1775 = vsel %vm439, %v1744, 0
        %v1778 = vsel %vm439, %v1745, 0
        %v1781 = vsel %vm439, %v1746, 0
        %v1784 = vsel %vm439, %v1747, 0
        %v1787 = vsel %vm439, %v1748, 0
        %v1790 = vsel %vm439, %v1749, 0
        %v1793 = vsel %vm439, %v1750, 0
        %v1796 = vsel %vm439, %v1751, 0
        %v1799 = vsel %vm439, %v1752, 0
        %v1802 = vsel %vm439, %v1753, 0
        %v1805 = vsel %vm741, %v1755, 0
        %1807 = vmatprep.subr.bf16.mxu0 0
        %1808 = vmatpush1.bf16.msra.mxu0 0
        %1809 = vmatprep.subr.bf16.mxu0 0
        %1810 = vmatpush1.bf16.msra.mxu0 0
        %1811 = vmatprep.subr.bf16.mxu0 0
        %1812 = vmatpush1.bf16.msra.mxu0 0
        %1813 = vmatprep.subr.bf16.mxu0 0
        %1814 = vmatpush1.bf16.msra.mxu0 0
        %1815 = vmatprep.subr.bf16.mxu0 0
        %1816 = vmatpush1.bf16.msra.mxu0 0
        %1817 = vmatprep.subr.bf16.mxu0 0
        %1818 = vmatpush1.bf16.msra.mxu0 0
        %1819 = vmatprep.subr.bf16.mxu0 0
        %1820 = vmatpush1.bf16.msra.mxu0 0
        %1821 = vmatprep.subr.bf16.mxu0 0
        %1822 = vmatpush1.bf16.msra.mxu0 %v1805
        %1823 = vmatprep.subr.bf16.mxu0 0
        %1824 = vmatpush2.bf16.msra.mxu0 0
        %1825 = vmatprep.subr.bf16.mxu0 0
        %1826 = vmatpush2.bf16.msra.mxu0 0
        %1827 = vmatprep.subr.bf16.mxu0 0
        %1828 = vmatpush2.bf16.msra.mxu0 0
        %1829 = vmatprep.subr.bf16.mxu0 0
        %1830 = vmatpush2.bf16.msra.mxu0 0
        %1831 = vmatprep.subr.bf16.mxu0 0
        %1832 = vmatpush2.bf16.msra.mxu0 0
        %1833 = vmatprep.subr.bf16.mxu0 0
        %1834 = vmatpush2.bf16.msra.mxu0 0
        %1835 = vmatprep.subr.bf16.mxu0 0
        %1836 = vmatpush2.bf16.msra.mxu0 0
        %1837 = vmatprep.subr.bf16.mxu0 0
        %1838 = vmatpush2.bf16.msra.mxu0 0
        %1839 = vmatprep.mubr.bf16.mxu0 0
        %1840 = vmatmul.mubr.bf16.gmra.mxu0 %v1757
        %v1841 = vpop.f32.mrf.mxu0
        %v1842 = vadd.f32 0.0, %v1841
        %v1843 = vpop.f32.mrf.mxu0
        %v1844 = vpop.f32.mrf.mxu0
        %v1845 = vadd.f32 0.0, %v1844
        %v1846 = vpop.f32.mrf.mxu0
        %1847 = vmatprep.mubr.bf16.mxu0 0
        %1848 = vmatmul.mubr.bf16.gmra.mxu0 %v1760
        %v1849 = vpop.f32.mrf.mxu0
        %v1850 = vadd.f32 0.0, %v1849
        %v1851 = vpop.f32.mrf.mxu0
        %v1852 = vpop.f32.mrf.mxu0
        %v1853 = vadd.f32 0.0, %v1852
        %v1854 = vpop.f32.mrf.mxu0
        %1855 = vmatprep.mubr.bf16.mxu0 0
        %1856 = vmatmul.mubr.bf16.gmra.mxu0 %v1763
        %v1857 = vpop.f32.mrf.mxu0
        %v1858 = vadd.f32 0.0, %v1857
        %v1859 = vpop.f32.mrf.mxu0
        %v1860 = vpop.f32.mrf.mxu0
        %v1861 = vadd.f32 0.0, %v1860
        %v1862 = vpop.f32.mrf.mxu0
        %1863 = vmatprep.mubr.bf16.mxu0 0
        %1864 = vmatmul.mubr.bf16.gmra.mxu0 %v1766
        %v1865 = vpop.f32.mrf.mxu0
        %v1866 = vadd.f32 0.0, %v1865
        %v1867 = vpop.f32.mrf.mxu0
        %v1868 = vpop.f32.mrf.mxu0
        %v1869 = vadd.f32 0.0, %v1868
        %v1870 = vpop.f32.mrf.mxu0
        %1871 = vmatprep.mubr.bf16.mxu0 0
        %1872 = vmatmul.mubr.bf16.gmra.mxu0 %v1769
        %v1873 = vpop.f32.mrf.mxu0
        %v1874 = vadd.f32 0.0, %v1873
        %v1875 = vpop.f32.mrf.mxu0
        %v1876 = vpop.f32.mrf.mxu0
        %v1877 = vadd.f32 0.0, %v1876
        %v1878 = vpop.f32.mrf.mxu0
        %1879 = vmatprep.mubr.bf16.mxu0 0
        %1880 = vmatmul.mubr.bf16.gmra.mxu0 %v1772
        %v1881 = vpop.f32.mrf.mxu0
        %v1882 = vadd.f32 0.0, %v1881
        %v1883 = vpop.f32.mrf.mxu0
        %v1884 = vpop.f32.mrf.mxu0
        %v1885 = vadd.f32 0.0, %v1884
        %v1886 = vpop.f32.mrf.mxu0
        %1887 = vmatprep.mubr.bf16.mxu0 0
        %1888 = vmatmul.mubr.bf16.gmra.mxu0 %v1775
        %v1889 = vpop.f32.mrf.mxu0
        %v1890 = vadd.f32 0.0, %v1889
        %v1891 = vpop.f32.mrf.mxu0
        %v1892 = vpop.f32.mrf.mxu0
        %v1893 = vadd.f32 0.0, %v1892
        %v1894 = vpop.f32.mrf.mxu0
        %1895 = vmatprep.mubr.bf16.mxu0 0
        %1896 = vmatmul.mubr.bf16.gmra.mxu0 %v1778
        %v1897 = vpop.f32.mrf.mxu0
        %v1898 = vadd.f32 0.0, %v1897
        %v1899 = vpop.f32.mrf.mxu0
        %v1900 = vpop.f32.mrf.mxu0
        %v1901 = vadd.f32 0.0, %v1900
        %v1902 = vpop.f32.mrf.mxu0
        %1903 = vmatprep.mubr.bf16.mxu0 0
        %1904 = vmatmul.mubr.bf16.gmra.mxu0 %v1781
        %v1905 = vpop.f32.mrf.mxu0
        %v1906 = vadd.f32 0.0, %v1905
        %v1907 = vpop.f32.mrf.mxu0
        %v1908 = vpop.f32.mrf.mxu0
        %v1909 = vadd.f32 0.0, %v1908
        %v1910 = vpop.f32.mrf.mxu0
        %1911 = vmatprep.mubr.bf16.mxu0 0
        %1912 = vmatmul.mubr.bf16.gmra.mxu0 %v1784
        %v1913 = vpop.f32.mrf.mxu0
        %v1914 = vadd.f32 0.0, %v1913
        %v1915 = vpop.f32.mrf.mxu0
        %v1916 = vpop.f32.mrf.mxu0
        %v1917 = vadd.f32 0.0, %v1916
        %v1918 = vpop.f32.mrf.mxu0
        %1919 = vmatprep.mubr.bf16.mxu0 0
        %1920 = vmatmul.mubr.bf16.gmra.mxu0 %v1787
        %v1921 = vpop.f32.mrf.mxu0
        %v1922 = vadd.f32 0.0, %v1921
        %v1923 = vpop.f32.mrf.mxu0
        %v1924 = vpop.f32.mrf.mxu0
        %v1925 = vadd.f32 0.0, %v1924
        %v1926 = vpop.f32.mrf.mxu0
        %1927 = vmatprep.mubr.bf16.mxu0 0
        %1928 = vmatmul.mubr.bf16.gmra.mxu0 %v1790
        %v1929 = vpop.f32.mrf.mxu0
        %v1930 = vadd.f32 0.0, %v1929
        %v1931 = vpop.f32.mrf.mxu0
        %v1932 = vpop.f32.mrf.mxu0
        %v1933 = vadd.f32 0.0, %v1932
        %v1934 = vpop.f32.mrf.mxu0
        %1935 = vmatprep.mubr.bf16.mxu0 0
        %1936 = vmatmul.mubr.bf16.gmra.mxu0 %v1793
        %v1937 = vpop.f32.mrf.mxu0
        %v1938 = vadd.f32 0.0, %v1937
        %v1939 = vpop.f32.mrf.mxu0
        %v1940 = vpop.f32.mrf.mxu0
        %v1941 = vadd.f32 0.0, %v1940
        %v1942 = vpop.f32.mrf.mxu0
        %1943 = vmatprep.mubr.bf16.mxu0 0
        %1944 = vmatmul.mubr.bf16.gmra.mxu0 %v1796
        %v1945 = vpop.f32.mrf.mxu0
        %v1946 = vadd.f32 0.0, %v1945
        %v1947 = vpop.f32.mrf.mxu0
        %v1948 = vpop.f32.mrf.mxu0
        %v1949 = vadd.f32 0.0, %v1948
        %v1950 = vpop.f32.mrf.mxu0
        %1951 = vmatprep.mubr.bf16.mxu0 0
        %1952 = vmatmul.mubr.bf16.gmra.mxu0 %v1799
        %v1953 = vpop.f32.mrf.mxu0
        %v1954 = vadd.f32 0.0, %v1953
        %v1955 = vpop.f32.mrf.mxu0
        %v1956 = vpop.f32.mrf.mxu0
        %v1957 = vadd.f32 0.0, %v1956
        %v1958 = vpop.f32.mrf.mxu0
        %1959 = vmatprep.mubr.bf16.mxu0 0
        %1960 = vmatmul.mubr.bf16.gmra.mxu0 %v1802
        %v1961 = vpop.f32.mrf.mxu0
        %v1962 = vadd.f32 0.0, %v1961
        %v1963 = vpop.f32.mrf.mxu0
        %v1964 = vpop.f32.mrf.mxu0
        %v1965 = vadd.f32 0.0, %v1964
        %v1966 = vpop.f32.mrf.mxu0
        %1967 = vdwg.mxu0
        %v1968 = vadd.f32 %v1674, %v1842
        %v1969 = vadd.f32 %v1675, %v1845
        %v1970 = vadd.f32 %v1676, %v1850
        %v1971 = vadd.f32 %v1677, %v1853
        %v1972 = vadd.f32 %v1678, %v1858
        %v1973 = vadd.f32 %v1679, %v1861
        %v1974 = vadd.f32 %v1680, %v1866
        %v1975 = vadd.f32 %v1681, %v1869
        %v1976 = vadd.f32 %v1682, %v1874
        %v1977 = vadd.f32 %v1683, %v1877
        %v1978 = vadd.f32 %v1684, %v1882
        %v1979 = vadd.f32 %v1685, %v1885
        %v1980 = vadd.f32 %v1686, %v1890
        %v1981 = vadd.f32 %v1687, %v1893
        %v1982 = vadd.f32 %v1688, %v1898
        %v1983 = vadd.f32 %v1689, %v1901
        %v1984 = vadd.f32 %v1690, %v1906
        %v1985 = vadd.f32 %v1691, %v1909
        %v1986 = vadd.f32 %v1692, %v1914
        %v1987 = vadd.f32 %v1693, %v1917
        %v1988 = vadd.f32 %v1694, %v1922
        %v1989 = vadd.f32 %v1695, %v1925
        %v1990 = vadd.f32 %v1696, %v1930
        %v1991 = vadd.f32 %v1697, %v1933
        %v1992 = vadd.f32 %v1698, %v1938
        %v1993 = vadd.f32 %v1699, %v1941
        %v1994 = vadd.f32 %v1700, %v1946
        %v1995 = vadd.f32 %v1701, %v1949
        %v1996 = vadd.f32 %v1702, %v1954
        %v1997 = vadd.f32 %v1703, %v1957
        %v1998 = vadd.f32 %v1704, %v1962
        %v1999 = vadd.f32 %v1705, %v1965
        %v2000 = vld [vmem:[%s561 + $0x2] sm:$0xff]
        %v2001 = vld [vmem:[%s561 + $0xa] sm:$0xff]
        %v2002 = vld [vmem:[%s561 + $0x1a] sm:$0xff]
        %v2003 = vld [vmem:[%s561 + $0x22] sm:$0xff]
        %v2004 = vld [vmem:[%s561 + $0x32] sm:$0xff]
        %v2005 = vld [vmem:[%s561 + $0x3a] sm:$0xff]
        %v2006 = vld [vmem:[%s561 + $0x4a] sm:$0xff]
        %v2007 = vld [vmem:[%s561 + $0x52] sm:$0xff]
        %v2008 = vld [vmem:[%s561 + $0x62] sm:$0xff]
        %v2009 = vld [vmem:[%s561 + $0x6a] sm:$0xff]
        %v2010 = vld [vmem:[%s561 + $0x7a] sm:$0xff]
        %v2011 = vld [vmem:[%s561 + $0x82] sm:$0xff]
        %v2012 = vld [vmem:[%s561 + $0x92] sm:$0xff]
        %v2013 = vld [vmem:[%s561 + $0x9a] sm:$0xff]
        %v2014 = vld [vmem:[%s561 + $0xaa] sm:$0xff]
        %v2015 = vld [vmem:[%s561 + $0xb2] sm:$0xff]
        %v2016 = vld [vmem:[%s561 + $0xc2] sm:$0xff]
        %v2017 = vld [vmem:[%s561 + $0xca] sm:$0xff]
        %v2018 = vld [vmem:[%s561 + $0xda] sm:$0xff]
        %v2019 = vld [vmem:[%s561 + $0xe2] sm:$0xff]
        %v2020 = vld [vmem:[%s561 + $0xf2] sm:$0xff]
        %v2021 = vld [vmem:[%s561 + $0xfa] sm:$0xff]
        %v2022 = vld [vmem:[%s561 + $0x10a] sm:$0xff]
        %v2023 = vld [vmem:[%s561 + $0x112] sm:$0xff]
        %v2024 = vld [vmem:[%s561 + $0x122] sm:$0xff]
        %v2025 = vld [vmem:[%s561 + $0x12a] sm:$0xff]
        %v2026 = vld [vmem:[%s561 + $0x13a] sm:$0xff]
        %v2027 = vld [vmem:[%s561 + $0x142] sm:$0xff]
        %v2028 = vld [vmem:[%s561 + $0x152] sm:$0xff]
        %v2029 = vld [vmem:[%s561 + $0x15a] sm:$0xff]
        %v2030 = vld [vmem:[%s561 + $0x16a] sm:$0xff]
        %v2031 = vld [vmem:[%s561 + $0x172] sm:$0xff]
        %v2032 = vpack.c.bf16 %v2001, %v2000
        %v2033 = vpack.c.bf16 %v2003, %v2002
        %v2034 = vpack.c.bf16 %v2005, %v2004
        %v2035 = vpack.c.bf16 %v2007, %v2006
        %v2036 = vpack.c.bf16 %v2009, %v2008
        %v2037 = vpack.c.bf16 %v2011, %v2010
        %v2038 = vpack.c.bf16 %v2013, %v2012
        %v2039 = vpack.c.bf16 %v2015, %v2014
        %v2040 = vpack.c.bf16 %v2017, %v2016
        %v2041 = vpack.c.bf16 %v2019, %v2018
        %v2042 = vpack.c.bf16 %v2021, %v2020
        %v2043 = vpack.c.bf16 %v2023, %v2022
        %v2044 = vpack.c.bf16 %v2025, %v2024
        %v2045 = vpack.c.bf16 %v2027, %v2026
        %v2046 = vpack.c.bf16 %v2029, %v2028
        %v2047 = vpack.c.bf16 %v2031, %v2030
        %s2048 = scalar_lea.vmem %s1, 10
        %v2049 = vld [vmem:[%s2048] sm:$0x3]
        %v2051 = vsel %vm439, %v2032, 0
        %v2054 = vsel %vm439, %v2033, 0
        %v2057 = vsel %vm439, %v2034, 0
        %v2060 = vsel %vm439, %v2035, 0
        %v2063 = vsel %vm439, %v2036, 0
        %v2066 = vsel %vm439, %v2037, 0
        %v2069 = vsel %vm439, %v2038, 0
        %v2072 = vsel %vm439, %v2039, 0
        %v2075 = vsel %vm439, %v2040, 0
        %v2078 = vsel %vm439, %v2041, 0
        %v2081 = vsel %vm439, %v2042, 0
        %v2084 = vsel %vm439, %v2043, 0
        %v2087 = vsel %vm439, %v2044, 0
        %v2090 = vsel %vm439, %v2045, 0
        %v2093 = vsel %vm439, %v2046, 0
        %v2096 = vsel %vm439, %v2047, 0
        %v2099 = vsel %vm741, %v2049, 0
        %2101 = vmatprep.subr.bf16.mxu0 0
        %2102 = vmatpush1.bf16.msra.mxu0 0
        %2103 = vmatprep.subr.bf16.mxu0 0
        %2104 = vmatpush1.bf16.msra.mxu0 0
        %2105 = vmatprep.subr.bf16.mxu0 0
        %2106 = vmatpush1.bf16.msra.mxu0 0
        %2107 = vmatprep.subr.bf16.mxu0 0
        %2108 = vmatpush1.bf16.msra.mxu0 0
        %2109 = vmatprep.subr.bf16.mxu0 0
        %2110 = vmatpush1.bf16.msra.mxu0 0
        %2111 = vmatprep.subr.bf16.mxu0 0
        %2112 = vmatpush1.bf16.msra.mxu0 0
        %2113 = vmatprep.subr.bf16.mxu0 0
        %2114 = vmatpush1.bf16.msra.mxu0 0
        %2115 = vmatprep.subr.bf16.mxu0 0
        %2116 = vmatpush1.bf16.msra.mxu0 %v2099
        %2117 = vmatprep.subr.bf16.mxu0 0
        %2118 = vmatpush2.bf16.msra.mxu0 0
        %2119 = vmatprep.subr.bf16.mxu0 0
        %2120 = vmatpush2.bf16.msra.mxu0 0
        %2121 = vmatprep.subr.bf16.mxu0 0
        %2122 = vmatpush2.bf16.msra.mxu0 0
        %2123 = vmatprep.subr.bf16.mxu0 0
        %2124 = vmatpush2.bf16.msra.mxu0 0
        %2125 = vmatprep.subr.bf16.mxu0 0
        %2126 = vmatpush2.bf16.msra.mxu0 0
        %2127 = vmatprep.subr.bf16.mxu0 0
        %2128 = vmatpush2.bf16.msra.mxu0 0
        %2129 = vmatprep.subr.bf16.mxu0 0
        %2130 = vmatpush2.bf16.msra.mxu0 0
        %2131 = vmatprep.subr.bf16.mxu0 0
        %2132 = vmatpush2.bf16.msra.mxu0 0
        %2133 = vmatprep.mubr.bf16.mxu0 0
        %2134 = vmatmul.mubr.bf16.gmra.mxu0 %v2051
        %v2135 = vpop.f32.mrf.mxu0
        %v2136 = vadd.f32 0.0, %v2135
        %v2137 = vpop.f32.mrf.mxu0
        %v2138 = vpop.f32.mrf.mxu0
        %v2139 = vadd.f32 0.0, %v2138
        %v2140 = vpop.f32.mrf.mxu0
        %2141 = vmatprep.mubr.bf16.mxu0 0
        %2142 = vmatmul.mubr.bf16.gmra.mxu0 %v2054
        %v2143 = vpop.f32.mrf.mxu0
        %v2144 = vadd.f32 0.0, %v2143
        %v2145 = vpop.f32.mrf.mxu0
        %v2146 = vpop.f32.mrf.mxu0
        %v2147 = vadd.f32 0.0, %v2146
        %v2148 = vpop.f32.mrf.mxu0
        %2149 = vmatprep.mubr.bf16.mxu0 0
        %2150 = vmatmul.mubr.bf16.gmra.mxu0 %v2057
        %v2151 = vpop.f32.mrf.mxu0
        %v2152 = vadd.f32 0.0, %v2151
        %v2153 = vpop.f32.mrf.mxu0
        %v2154 = vpop.f32.mrf.mxu0
        %v2155 = vadd.f32 0.0, %v2154
        %v2156 = vpop.f32.mrf.mxu0
        %2157 = vmatprep.mubr.bf16.mxu0 0
        %2158 = vmatmul.mubr.bf16.gmra.mxu0 %v2060
        %v2159 = vpop.f32.mrf.mxu0
        %v2160 = vadd.f32 0.0, %v2159
        %v2161 = vpop.f32.mrf.mxu0
        %v2162 = vpop.f32.mrf.mxu0
        %v2163 = vadd.f32 0.0, %v2162
        %v2164 = vpop.f32.mrf.mxu0
        %2165 = vmatprep.mubr.bf16.mxu0 0
        %2166 = vmatmul.mubr.bf16.gmra.mxu0 %v2063
        %v2167 = vpop.f32.mrf.mxu0
        %v2168 = vadd.f32 0.0, %v2167
        %v2169 = vpop.f32.mrf.mxu0
        %v2170 = vpop.f32.mrf.mxu0
        %v2171 = vadd.f32 0.0, %v2170
        %v2172 = vpop.f32.mrf.mxu0
        %2173 = vmatprep.mubr.bf16.mxu0 0
        %2174 = vmatmul.mubr.bf16.gmra.mxu0 %v2066
        %v2175 = vpop.f32.mrf.mxu0
        %v2176 = vadd.f32 0.0, %v2175
        %v2177 = vpop.f32.mrf.mxu0
        %v2178 = vpop.f32.mrf.mxu0
        %v2179 = vadd.f32 0.0, %v2178
        %v2180 = vpop.f32.mrf.mxu0
        %2181 = vmatprep.mubr.bf16.mxu0 0
        %2182 = vmatmul.mubr.bf16.gmra.mxu0 %v2069
        %v2183 = vpop.f32.mrf.mxu0
        %v2184 = vadd.f32 0.0, %v2183
        %v2185 = vpop.f32.mrf.mxu0
        %v2186 = vpop.f32.mrf.mxu0
        %v2187 = vadd.f32 0.0, %v2186
        %v2188 = vpop.f32.mrf.mxu0
        %2189 = vmatprep.mubr.bf16.mxu0 0
        %2190 = vmatmul.mubr.bf16.gmra.mxu0 %v2072
        %v2191 = vpop.f32.mrf.mxu0
        %v2192 = vadd.f32 0.0, %v2191
        %v2193 = vpop.f32.mrf.mxu0
        %v2194 = vpop.f32.mrf.mxu0
        %v2195 = vadd.f32 0.0, %v2194
        %v2196 = vpop.f32.mrf.mxu0
        %2197 = vmatprep.mubr.bf16.mxu0 0
        %2198 = vmatmul.mubr.bf16.gmra.mxu0 %v2075
        %v2199 = vpop.f32.mrf.mxu0
        %v2200 = vadd.f32 0.0, %v2199
        %v2201 = vpop.f32.mrf.mxu0
        %v2202 = vpop.f32.mrf.mxu0
        %v2203 = vadd.f32 0.0, %v2202
        %v2204 = vpop.f32.mrf.mxu0
        %2205 = vmatprep.mubr.bf16.mxu0 0
        %2206 = vmatmul.mubr.bf16.gmra.mxu0 %v2078
        %v2207 = vpop.f32.mrf.mxu0
        %v2208 = vadd.f32 0.0, %v2207
        %v2209 = vpop.f32.mrf.mxu0
        %v2210 = vpop.f32.mrf.mxu0
        %v2211 = vadd.f32 0.0, %v2210
        %v2212 = vpop.f32.mrf.mxu0
        %2213 = vmatprep.mubr.bf16.mxu0 0
        %2214 = vmatmul.mubr.bf16.gmra.mxu0 %v2081
        %v2215 = vpop.f32.mrf.mxu0
        %v2216 = vadd.f32 0.0, %v2215
        %v2217 = vpop.f32.mrf.mxu0
        %v2218 = vpop.f32.mrf.mxu0
        %v2219 = vadd.f32 0.0, %v2218
        %v2220 = vpop.f32.mrf.mxu0
        %2221 = vmatprep.mubr.bf16.mxu0 0
        %2222 = vmatmul.mubr.bf16.gmra.mxu0 %v2084
        %v2223 = vpop.f32.mrf.mxu0
        %v2224 = vadd.f32 0.0, %v2223
        %v2225 = vpop.f32.mrf.mxu0
        %v2226 = vpop.f32.mrf.mxu0
        %v2227 = vadd.f32 0.0, %v2226
        %v2228 = vpop.f32.mrf.mxu0
        %2229 = vmatprep.mubr.bf16.mxu0 0
        %2230 = vmatmul.mubr.bf16.gmra.mxu0 %v2087
        %v2231 = vpop.f32.mrf.mxu0
        %v2232 = vadd.f32 0.0, %v2231
        %v2233 = vpop.f32.mrf.mxu0
        %v2234 = vpop.f32.mrf.mxu0
        %v2235 = vadd.f32 0.0, %v2234
        %v2236 = vpop.f32.mrf.mxu0
        %2237 = vmatprep.mubr.bf16.mxu0 0
        %2238 = vmatmul.mubr.bf16.gmra.mxu0 %v2090
        %v2239 = vpop.f32.mrf.mxu0
        %v2240 = vadd.f32 0.0, %v2239
        %v2241 = vpop.f32.mrf.mxu0
        %v2242 = vpop.f32.mrf.mxu0
        %v2243 = vadd.f32 0.0, %v2242
        %v2244 = vpop.f32.mrf.mxu0
        %2245 = vmatprep.mubr.bf16.mxu0 0
        %2246 = vmatmul.mubr.bf16.gmra.mxu0 %v2093
        %v2247 = vpop.f32.mrf.mxu0
        %v2248 = vadd.f32 0.0, %v2247
        %v2249 = vpop.f32.mrf.mxu0
        %v2250 = vpop.f32.mrf.mxu0
        %v2251 = vadd.f32 0.0, %v2250
        %v2252 = vpop.f32.mrf.mxu0
        %2253 = vmatprep.mubr.bf16.mxu0 0
        %2254 = vmatmul.mubr.bf16.gmra.mxu0 %v2096
        %v2255 = vpop.f32.mrf.mxu0
        %v2256 = vadd.f32 0.0, %v2255
        %v2257 = vpop.f32.mrf.mxu0
        %v2258 = vpop.f32.mrf.mxu0
        %v2259 = vadd.f32 0.0, %v2258
        %v2260 = vpop.f32.mrf.mxu0
        %2261 = vdwg.mxu0
        %v2262 = vadd.f32 %v1968, %v2136
        %v2263 = vadd.f32 %v1969, %v2139
        %v2264 = vadd.f32 %v1970, %v2144
        %v2265 = vadd.f32 %v1971, %v2147
        %v2266 = vadd.f32 %v1972, %v2152
        %v2267 = vadd.f32 %v1973, %v2155
        %v2268 = vadd.f32 %v1974, %v2160
        %v2269 = vadd.f32 %v1975, %v2163
        %v2270 = vadd.f32 %v1976, %v2168
        %v2271 = vadd.f32 %v1977, %v2171
        %v2272 = vadd.f32 %v1978, %v2176
        %v2273 = vadd.f32 %v1979, %v2179
        %v2274 = vadd.f32 %v1980, %v2184
        %v2275 = vadd.f32 %v1981, %v2187
        %v2276 = vadd.f32 %v1982, %v2192
        %v2277 = vadd.f32 %v1983, %v2195
        %v2278 = vadd.f32 %v1984, %v2200
        %v2279 = vadd.f32 %v1985, %v2203
        %v2280 = vadd.f32 %v1986, %v2208
        %v2281 = vadd.f32 %v1987, %v2211
        %v2282 = vadd.f32 %v1988, %v2216
        %v2283 = vadd.f32 %v1989, %v2219
        %v2284 = vadd.f32 %v1990, %v2224
        %v2285 = vadd.f32 %v1991, %v2227
        %v2286 = vadd.f32 %v1992, %v2232
        %v2287 = vadd.f32 %v1993, %v2235
        %v2288 = vadd.f32 %v1994, %v2240
        %v2289 = vadd.f32 %v1995, %v2243
        %v2290 = vadd.f32 %v1996, %v2248
        %v2291 = vadd.f32 %v1997, %v2251
        %v2292 = vadd.f32 %v1998, %v2256
        %v2293 = vadd.f32 %v1999, %v2259
        %s2294 = scalar_lea.vmem [#allocation2], 48
        %v2295 = vld [vmem:[%s2294] sm:$0xff]
        %v2296 = vld [vmem:[%s2294 + $0x8] sm:$0xff]
        %v2297 = vld [vmem:[%s2294 + $0x18] sm:$0xff]
        %v2298 = vld [vmem:[%s2294 + $0x20] sm:$0xff]
        %v2299 = vld [vmem:[%s2294 + $0x30] sm:$0xff]
        %v2300 = vld [vmem:[%s2294 + $0x38] sm:$0xff]
        %v2301 = vld [vmem:[%s2294 + $0x48] sm:$0xff]
        %v2302 = vld [vmem:[%s2294 + $0x50] sm:$0xff]
        %v2303 = vld [vmem:[%s2294 + $0x60] sm:$0xff]
        %v2304 = vld [vmem:[%s2294 + $0x68] sm:$0xff]
        %v2305 = vld [vmem:[%s2294 + $0x78] sm:$0xff]
        %v2306 = vld [vmem:[%s2294 + $0x80] sm:$0xff]
        %v2307 = vld [vmem:[%s2294 + $0x90] sm:$0xff]
        %v2308 = vld [vmem:[%s2294 + $0x98] sm:$0xff]
        %v2309 = vld [vmem:[%s2294 + $0xa8] sm:$0xff]
        %v2310 = vld [vmem:[%s2294 + $0xb0] sm:$0xff]
        %v2311 = vld [vmem:[%s2294 + $0xc0] sm:$0xff]
        %v2312 = vld [vmem:[%s2294 + $0xc8] sm:$0xff]
        %v2313 = vld [vmem:[%s2294 + $0xd8] sm:$0xff]
        %v2314 = vld [vmem:[%s2294 + $0xe0] sm:$0xff]
        %v2315 = vld [vmem:[%s2294 + $0xf0] sm:$0xff]
        %v2316 = vld [vmem:[%s2294 + $0xf8] sm:$0xff]
        %v2317 = vld [vmem:[%s2294 + $0x108] sm:$0xff]
        %v2318 = vld [vmem:[%s2294 + $0x110] sm:$0xff]
        %v2319 = vld [vmem:[%s2294 + $0x120] sm:$0xff]
        %v2320 = vld [vmem:[%s2294 + $0x128] sm:$0xff]
        %v2321 = vld [vmem:[%s2294 + $0x138] sm:$0xff]
        %v2322 = vld [vmem:[%s2294 + $0x140] sm:$0xff]
        %v2323 = vld [vmem:[%s2294 + $0x150] sm:$0xff]
        %v2324 = vld [vmem:[%s2294 + $0x158] sm:$0xff]
        %v2325 = vld [vmem:[%s2294 + $0x168] sm:$0xff]
        %v2326 = vld [vmem:[%s2294 + $0x170] sm:$0xff]
        %v2327 = vpack.c.bf16 %v2296, %v2295
        %v2328 = vpack.c.bf16 %v2298, %v2297
        %v2329 = vpack.c.bf16 %v2300, %v2299
        %v2330 = vpack.c.bf16 %v2302, %v2301
        %v2331 = vpack.c.bf16 %v2304, %v2303
        %v2332 = vpack.c.bf16 %v2306, %v2305
        %v2333 = vpack.c.bf16 %v2308, %v2307
        %v2334 = vpack.c.bf16 %v2310, %v2309
        %v2335 = vpack.c.bf16 %v2312, %v2311
        %v2336 = vpack.c.bf16 %v2314, %v2313
        %v2337 = vpack.c.bf16 %v2316, %v2315
        %v2338 = vpack.c.bf16 %v2318, %v2317
        %v2339 = vpack.c.bf16 %v2320, %v2319
        %v2340 = vpack.c.bf16 %v2322, %v2321
        %v2341 = vpack.c.bf16 %v2324, %v2323
        %v2342 = vpack.c.bf16 %v2326, %v2325
        %s2343 = scalar_lea.vmem %s1, 12
        %v2344 = vld [vmem:[%s2343] sm:$0x3]
        %v2346 = vsel %vm439, %v2327, 0
        %v2349 = vsel %vm439, %v2328, 0
        %v2352 = vsel %vm439, %v2329, 0
        %v2355 = vsel %vm439, %v2330, 0
        %v2358 = vsel %vm439, %v2331, 0
        %v2361 = vsel %vm439, %v2332, 0
        %v2364 = vsel %vm439, %v2333, 0
        %v2367 = vsel %vm439, %v2334, 0
        %v2370 = vsel %vm439, %v2335, 0
        %v2373 = vsel %vm439, %v2336, 0
        %v2376 = vsel %vm439, %v2337, 0
        %v2379 = vsel %vm439, %v2338, 0
        %v2382 = vsel %vm439, %v2339, 0
        %v2385 = vsel %vm439, %v2340, 0
        %v2388 = vsel %vm439, %v2341, 0
        %v2391 = vsel %vm439, %v2342, 0
        %v2394 = vsel %vm741, %v2344, 0
        %2396 = vmatprep.subr.bf16.mxu0 0
        %2397 = vmatpush1.bf16.msra.mxu0 0
        %2398 = vmatprep.subr.bf16.mxu0 0
        %2399 = vmatpush1.bf16.msra.mxu0 0
        %2400 = vmatprep.subr.bf16.mxu0 0
        %2401 = vmatpush1.bf16.msra.mxu0 0
        %2402 = vmatprep.subr.bf16.mxu0 0
        %2403 = vmatpush1.bf16.msra.mxu0 0
        %2404 = vmatprep.subr.bf16.mxu0 0
        %2405 = vmatpush1.bf16.msra.mxu0 0
        %2406 = vmatprep.subr.bf16.mxu0 0
        %2407 = vmatpush1.bf16.msra.mxu0 0
        %2408 = vmatprep.subr.bf16.mxu0 0
        %2409 = vmatpush1.bf16.msra.mxu0 0
        %2410 = vmatprep.subr.bf16.mxu0 0
        %2411 = vmatpush1.bf16.msra.mxu0 %v2394
        %2412 = vmatprep.subr.bf16.mxu0 0
        %2413 = vmatpush2.bf16.msra.mxu0 0
        %2414 = vmatprep.subr.bf16.mxu0 0
        %2415 = vmatpush2.bf16.msra.mxu0 0
        %2416 = vmatprep.subr.bf16.mxu0 0
        %2417 = vmatpush2.bf16.msra.mxu0 0
        %2418 = vmatprep.subr.bf16.mxu0 0
        %2419 = vmatpush2.bf16.msra.mxu0 0
        %2420 = vmatprep.subr.bf16.mxu0 0
        %2421 = vmatpush2.bf16.msra.mxu0 0
        %2422 = vmatprep.subr.bf16.mxu0 0
        %2423 = vmatpush2.bf16.msra.mxu0 0
        %2424 = vmatprep.subr.bf16.mxu0 0
        %2425 = vmatpush2.bf16.msra.mxu0 0
        %2426 = vmatprep.subr.bf16.mxu0 0
        %2427 = vmatpush2.bf16.msra.mxu0 0
        %2428 = vmatprep.mubr.bf16.mxu0 0
        %2429 = vmatmul.mubr.bf16.gmra.mxu0 %v2346
        %v2430 = vpop.f32.mrf.mxu0
        %v2431 = vadd.f32 0.0, %v2430
        %v2432 = vpop.f32.mrf.mxu0
        %v2433 = vpop.f32.mrf.mxu0
        %v2434 = vadd.f32 0.0, %v2433
        %v2435 = vpop.f32.mrf.mxu0
        %2436 = vmatprep.mubr.bf16.mxu0 0
        %2437 = vmatmul.mubr.bf16.gmra.mxu0 %v2349
        %v2438 = vpop.f32.mrf.mxu0
        %v2439 = vadd.f32 0.0, %v2438
        %v2440 = vpop.f32.mrf.mxu0
        %v2441 = vpop.f32.mrf.mxu0
        %v2442 = vadd.f32 0.0, %v2441
        %v2443 = vpop.f32.mrf.mxu0
        %2444 = vmatprep.mubr.bf16.mxu0 0
        %2445 = vmatmul.mubr.bf16.gmra.mxu0 %v2352
        %v2446 = vpop.f32.mrf.mxu0
        %v2447 = vadd.f32 0.0, %v2446
        %v2448 = vpop.f32.mrf.mxu0
        %v2449 = vpop.f32.mrf.mxu0
        %v2450 = vadd.f32 0.0, %v2449
        %v2451 = vpop.f32.mrf.mxu0
        %2452 = vmatprep.mubr.bf16.mxu0 0
        %2453 = vmatmul.mubr.bf16.gmra.mxu0 %v2355
        %v2454 = vpop.f32.mrf.mxu0
        %v2455 = vadd.f32 0.0, %v2454
        %v2456 = vpop.f32.mrf.mxu0
        %v2457 = vpop.f32.mrf.mxu0
        %v2458 = vadd.f32 0.0, %v2457
        %v2459 = vpop.f32.mrf.mxu0
        %2460 = vmatprep.mubr.bf16.mxu0 0
        %2461 = vmatmul.mubr.bf16.gmra.mxu0 %v2358
        %v2462 = vpop.f32.mrf.mxu0
        %v2463 = vadd.f32 0.0, %v2462
        %v2464 = vpop.f32.mrf.mxu0
        %v2465 = vpop.f32.mrf.mxu0
        %v2466 = vadd.f32 0.0, %v2465
        %v2467 = vpop.f32.mrf.mxu0
        %2468 = vmatprep.mubr.bf16.mxu0 0
        %2469 = vmatmul.mubr.bf16.gmra.mxu0 %v2361
        %v2470 = vpop.f32.mrf.mxu0
        %v2471 = vadd.f32 0.0, %v2470
        %v2472 = vpop.f32.mrf.mxu0
        %v2473 = vpop.f32.mrf.mxu0
        %v2474 = vadd.f32 0.0, %v2473
        %v2475 = vpop.f32.mrf.mxu0
        %2476 = vmatprep.mubr.bf16.mxu0 0
        %2477 = vmatmul.mubr.bf16.gmra.mxu0 %v2364
        %v2478 = vpop.f32.mrf.mxu0
        %v2479 = vadd.f32 0.0, %v2478
        %v2480 = vpop.f32.mrf.mxu0
        %v2481 = vpop.f32.mrf.mxu0
        %v2482 = vadd.f32 0.0, %v2481
        %v2483 = vpop.f32.mrf.mxu0
        %2484 = vmatprep.mubr.bf16.mxu0 0
        %2485 = vmatmul.mubr.bf16.gmra.mxu0 %v2367
        %v2486 = vpop.f32.mrf.mxu0
        %v2487 = vadd.f32 0.0, %v2486
        %v2488 = vpop.f32.mrf.mxu0
        %v2489 = vpop.f32.mrf.mxu0
        %v2490 = vadd.f32 0.0, %v2489
        %v2491 = vpop.f32.mrf.mxu0
        %2492 = vmatprep.mubr.bf16.mxu0 0
        %2493 = vmatmul.mubr.bf16.gmra.mxu0 %v2370
        %v2494 = vpop.f32.mrf.mxu0
        %v2495 = vadd.f32 0.0, %v2494
        %v2496 = vpop.f32.mrf.mxu0
        %v2497 = vpop.f32.mrf.mxu0
        %v2498 = vadd.f32 0.0, %v2497
        %v2499 = vpop.f32.mrf.mxu0
        %2500 = vmatprep.mubr.bf16.mxu0 0
        %2501 = vmatmul.mubr.bf16.gmra.mxu0 %v2373
        %v2502 = vpop.f32.mrf.mxu0
        %v2503 = vadd.f32 0.0, %v2502
        %v2504 = vpop.f32.mrf.mxu0
        %v2505 = vpop.f32.mrf.mxu0
        %v2506 = vadd.f32 0.0, %v2505
        %v2507 = vpop.f32.mrf.mxu0
        %2508 = vmatprep.mubr.bf16.mxu0 0
        %2509 = vmatmul.mubr.bf16.gmra.mxu0 %v2376
        %v2510 = vpop.f32.mrf.mxu0
        %v2511 = vadd.f32 0.0, %v2510
        %v2512 = vpop.f32.mrf.mxu0
        %v2513 = vpop.f32.mrf.mxu0
        %v2514 = vadd.f32 0.0, %v2513
        %v2515 = vpop.f32.mrf.mxu0
        %2516 = vmatprep.mubr.bf16.mxu0 0
        %2517 = vmatmul.mubr.bf16.gmra.mxu0 %v2379
        %v2518 = vpop.f32.mrf.mxu0
        %v2519 = vadd.f32 0.0, %v2518
        %v2520 = vpop.f32.mrf.mxu0
        %v2521 = vpop.f32.mrf.mxu0
        %v2522 = vadd.f32 0.0, %v2521
        %v2523 = vpop.f32.mrf.mxu0
        %2524 = vmatprep.mubr.bf16.mxu0 0
        %2525 = vmatmul.mubr.bf16.gmra.mxu0 %v2382
        %v2526 = vpop.f32.mrf.mxu0
        %v2527 = vadd.f32 0.0, %v2526
        %v2528 = vpop.f32.mrf.mxu0
        %v2529 = vpop.f32.mrf.mxu0
        %v2530 = vadd.f32 0.0, %v2529
        %v2531 = vpop.f32.mrf.mxu0
        %2532 = vmatprep.mubr.bf16.mxu0 0
        %2533 = vmatmul.mubr.bf16.gmra.mxu0 %v2385
        %v2534 = vpop.f32.mrf.mxu0
        %v2535 = vadd.f32 0.0, %v2534
        %v2536 = vpop.f32.mrf.mxu0
        %v2537 = vpop.f32.mrf.mxu0
        %v2538 = vadd.f32 0.0, %v2537
        %v2539 = vpop.f32.mrf.mxu0
        %2540 = vmatprep.mubr.bf16.mxu0 0
        %2541 = vmatmul.mubr.bf16.gmra.mxu0 %v2388
        %v2542 = vpop.f32.mrf.mxu0
        %v2543 = vadd.f32 0.0, %v2542
        %v2544 = vpop.f32.mrf.mxu0
        %v2545 = vpop.f32.mrf.mxu0
        %v2546 = vadd.f32 0.0, %v2545
        %v2547 = vpop.f32.mrf.mxu0
        %2548 = vmatprep.mubr.bf16.mxu0 0
        %2549 = vmatmul.mubr.bf16.gmra.mxu0 %v2391
        %v2550 = vpop.f32.mrf.mxu0
        %v2551 = vadd.f32 0.0, %v2550
        %v2552 = vpop.f32.mrf.mxu0
        %v2553 = vpop.f32.mrf.mxu0
        %v2554 = vadd.f32 0.0, %v2553
        %v2555 = vpop.f32.mrf.mxu0
        %2556 = vdwg.mxu0
        %v2557 = vadd.f32 %v2262, %v2431
        %v2558 = vadd.f32 %v2263, %v2434
        %v2559 = vadd.f32 %v2264, %v2439
        %v2560 = vadd.f32 %v2265, %v2442
        %v2561 = vadd.f32 %v2266, %v2447
        %v2562 = vadd.f32 %v2267, %v2450
        %v2563 = vadd.f32 %v2268, %v2455
        %v2564 = vadd.f32 %v2269, %v2458
        %v2565 = vadd.f32 %v2270, %v2463
        %v2566 = vadd.f32 %v2271, %v2466
        %v2567 = vadd.f32 %v2272, %v2471
        %v2568 = vadd.f32 %v2273, %v2474
        %v2569 = vadd.f32 %v2274, %v2479
        %v2570 = vadd.f32 %v2275, %v2482
        %v2571 = vadd.f32 %v2276, %v2487
        %v2572 = vadd.f32 %v2277, %v2490
        %v2573 = vadd.f32 %v2278, %v2495
        %v2574 = vadd.f32 %v2279, %v2498
        %v2575 = vadd.f32 %v2280, %v2503
        %v2576 = vadd.f32 %v2281, %v2506
        %v2577 = vadd.f32 %v2282, %v2511
        %v2578 = vadd.f32 %v2283, %v2514
        %v2579 = vadd.f32 %v2284, %v2519
        %v2580 = vadd.f32 %v2285, %v2522
        %v2581 = vadd.f32 %v2286, %v2527
        %v2582 = vadd.f32 %v2287, %v2530
        %v2583 = vadd.f32 %v2288, %v2535
        %v2584 = vadd.f32 %v2289, %v2538
        %v2585 = vadd.f32 %v2290, %v2543
        %v2586 = vadd.f32 %v2291, %v2546
        %v2587 = vadd.f32 %v2292, %v2551
        %v2588 = vadd.f32 %v2293, %v2554
        %v2589 = vld [vmem:[%s2294 + $0x1] sm:$0xff]
        %v2590 = vld [vmem:[%s2294 + $0x9] sm:$0xff]
        %v2591 = vld [vmem:[%s2294 + $0x19] sm:$0xff]
        %v2592 = vld [vmem:[%s2294 + $0x21] sm:$0xff]
        %v2593 = vld [vmem:[%s2294 + $0x31] sm:$0xff]
        %v2594 = vld [vmem:[%s2294 + $0x39] sm:$0xff]
        %v2595 = vld [vmem:[%s2294 + $0x49] sm:$0xff]
        %v2596 = vld [vmem:[%s2294 + $0x51] sm:$0xff]
        %v2597 = vld [vmem:[%s2294 + $0x61] sm:$0xff]
        %v2598 = vld [vmem:[%s2294 + $0x69] sm:$0xff]
        %v2599 = vld [vmem:[%s2294 + $0x79] sm:$0xff]
        %v2600 = vld [vmem:[%s2294 + $0x81] sm:$0xff]
        %v2601 = vld [vmem:[%s2294 + $0x91] sm:$0xff]
        %v2602 = vld [vmem:[%s2294 + $0x99] sm:$0xff]
        %v2603 = vld [vmem:[%s2294 + $0xa9] sm:$0xff]
        %v2604 = vld [vmem:[%s2294 + $0xb1] sm:$0xff]
        %v2605 = vld [vmem:[%s2294 + $0xc1] sm:$0xff]
        %v2606 = vld [vmem:[%s2294 + $0xc9] sm:$0xff]
        %v2607 = vld [vmem:[%s2294 + $0xd9] sm:$0xff]
        %v2608 = vld [vmem:[%s2294 + $0xe1] sm:$0xff]
        %v2609 = vld [vmem:[%s2294 + $0xf1] sm:$0xff]
        %v2610 = vld [vmem:[%s2294 + $0xf9] sm:$0xff]
        %v2611 = vld [vmem:[%s2294 + $0x109] sm:$0xff]
        %v2612 = vld [vmem:[%s2294 + $0x111] sm:$0xff]
        %v2613 = vld [vmem:[%s2294 + $0x121] sm:$0xff]
        %v2614 = vld [vmem:[%s2294 + $0x129] sm:$0xff]
        %v2615 = vld [vmem:[%s2294 + $0x139] sm:$0xff]
        %v2616 = vld [vmem:[%s2294 + $0x141] sm:$0xff]
        %v2617 = vld [vmem:[%s2294 + $0x151] sm:$0xff]
        %v2618 = vld [vmem:[%s2294 + $0x159] sm:$0xff]
        %v2619 = vld [vmem:[%s2294 + $0x169] sm:$0xff]
        %v2620 = vld [vmem:[%s2294 + $0x171] sm:$0xff]
        %v2621 = vpack.c.bf16 %v2590, %v2589
        %v2622 = vpack.c.bf16 %v2592, %v2591
        %v2623 = vpack.c.bf16 %v2594, %v2593
        %v2624 = vpack.c.bf16 %v2596, %v2595
        %v2625 = vpack.c.bf16 %v2598, %v2597
        %v2626 = vpack.c.bf16 %v2600, %v2599
        %v2627 = vpack.c.bf16 %v2602, %v2601
        %v2628 = vpack.c.bf16 %v2604, %v2603
        %v2629 = vpack.c.bf16 %v2606, %v2605
        %v2630 = vpack.c.bf16 %v2608, %v2607
        %v2631 = vpack.c.bf16 %v2610, %v2609
        %v2632 = vpack.c.bf16 %v2612, %v2611
        %v2633 = vpack.c.bf16 %v2614, %v2613
        %v2634 = vpack.c.bf16 %v2616, %v2615
        %v2635 = vpack.c.bf16 %v2618, %v2617
        %v2636 = vpack.c.bf16 %v2620, %v2619
        %s2637 = scalar_lea.vmem %s1, 14
        %v2638 = vld [vmem:[%s2637] sm:$0x3]
        %v2640 = vsel %vm439, %v2621, 0
        %v2643 = vsel %vm439, %v2622, 0
        %v2646 = vsel %vm439, %v2623, 0
        %v2649 = vsel %vm439, %v2624, 0
        %v2652 = vsel %vm439, %v2625, 0
        %v2655 = vsel %vm439, %v2626, 0
        %v2658 = vsel %vm439, %v2627, 0
        %v2661 = vsel %vm439, %v2628, 0
        %v2664 = vsel %vm439, %v2629, 0
        %v2667 = vsel %vm439, %v2630, 0
        %v2670 = vsel %vm439, %v2631, 0
        %v2673 = vsel %vm439, %v2632, 0
        %v2676 = vsel %vm439, %v2633, 0
        %v2679 = vsel %vm439, %v2634, 0
        %v2682 = vsel %vm439, %v2635, 0
        %v2685 = vsel %vm439, %v2636, 0
        %v2688 = vsel %vm741, %v2638, 0
        %2690 = vmatprep.subr.bf16.mxu0 0
        %2691 = vmatpush1.bf16.msra.mxu0 0
        %2692 = vmatprep.subr.bf16.mxu0 0
        %2693 = vmatpush1.bf16.msra.mxu0 0
        %2694 = vmatprep.subr.bf16.mxu0 0
        %2695 = vmatpush1.bf16.msra.mxu0 0
        %2696 = vmatprep.subr.bf16.mxu0 0
        %2697 = vmatpush1.bf16.msra.mxu0 0
        %2698 = vmatprep.subr.bf16.mxu0 0
        %2699 = vmatpush1.bf16.msra.mxu0 0
        %2700 = vmatprep.subr.bf16.mxu0 0
        %2701 = vmatpush1.bf16.msra.mxu0 0
        %2702 = vmatprep.subr.bf16.mxu0 0
        %2703 = vmatpush1.bf16.msra.mxu0 0
        %2704 = vmatprep.subr.bf16.mxu0 0
        %2705 = vmatpush1.bf16.msra.mxu0 %v2688
        %2706 = vmatprep.subr.bf16.mxu0 0
        %2707 = vmatpush2.bf16.msra.mxu0 0
        %2708 = vmatprep.subr.bf16.mxu0 0
        %2709 = vmatpush2.bf16.msra.mxu0 0
        %2710 = vmatprep.subr.bf16.mxu0 0
        %2711 = vmatpush2.bf16.msra.mxu0 0
        %2712 = vmatprep.subr.bf16.mxu0 0
        %2713 = vmatpush2.bf16.msra.mxu0 0
        %2714 = vmatprep.subr.bf16.mxu0 0
        %2715 = vmatpush2.bf16.msra.mxu0 0
        %2716 = vmatprep.subr.bf16.mxu0 0
        %2717 = vmatpush2.bf16.msra.mxu0 0
        %2718 = vmatprep.subr.bf16.mxu0 0
        %2719 = vmatpush2.bf16.msra.mxu0 0
        %2720 = vmatprep.subr.bf16.mxu0 0
        %2721 = vmatpush2.bf16.msra.mxu0 0
        %2722 = vmatprep.mubr.bf16.mxu0 0
        %2723 = vmatmul.mubr.bf16.gmra.mxu0 %v2640
        %v2724 = vpop.f32.mrf.mxu0
        %v2725 = vadd.f32 0.0, %v2724
        %v2726 = vpop.f32.mrf.mxu0
        %v2727 = vpop.f32.mrf.mxu0
        %v2728 = vadd.f32 0.0, %v2727
        %v2729 = vpop.f32.mrf.mxu0
        %2730 = vmatprep.mubr.bf16.mxu0 0
        %2731 = vmatmul.mubr.bf16.gmra.mxu0 %v2643
        %v2732 = vpop.f32.mrf.mxu0
        %v2733 = vadd.f32 0.0, %v2732
        %v2734 = vpop.f32.mrf.mxu0
        %v2735 = vpop.f32.mrf.mxu0
        %v2736 = vadd.f32 0.0, %v2735
        %v2737 = vpop.f32.mrf.mxu0
        %2738 = vmatprep.mubr.bf16.mxu0 0
        %2739 = vmatmul.mubr.bf16.gmra.mxu0 %v2646
        %v2740 = vpop.f32.mrf.mxu0
        %v2741 = vadd.f32 0.0, %v2740
        %v2742 = vpop.f32.mrf.mxu0
        %v2743 = vpop.f32.mrf.mxu0
        %v2744 = vadd.f32 0.0, %v2743
        %v2745 = vpop.f32.mrf.mxu0
        %2746 = vmatprep.mubr.bf16.mxu0 0
        %2747 = vmatmul.mubr.bf16.gmra.mxu0 %v2649
        %v2748 = vpop.f32.mrf.mxu0
        %v2749 = vadd.f32 0.0, %v2748
        %v2750 = vpop.f32.mrf.mxu0
        %v2751 = vpop.f32.mrf.mxu0
        %v2752 = vadd.f32 0.0, %v2751
        %v2753 = vpop.f32.mrf.mxu0
        %2754 = vmatprep.mubr.bf16.mxu0 0
        %2755 = vmatmul.mubr.bf16.gmra.mxu0 %v2652
        %v2756 = vpop.f32.mrf.mxu0
        %v2757 = vadd.f32 0.0, %v2756
        %v2758 = vpop.f32.mrf.mxu0
        %v2759 = vpop.f32.mrf.mxu0
        %v2760 = vadd.f32 0.0, %v2759
        %v2761 = vpop.f32.mrf.mxu0
        %2762 = vmatprep.mubr.bf16.mxu0 0
        %2763 = vmatmul.mubr.bf16.gmra.mxu0 %v2655
        %v2764 = vpop.f32.mrf.mxu0
        %v2765 = vadd.f32 0.0, %v2764
        %v2766 = vpop.f32.mrf.mxu0
        %v2767 = vpop.f32.mrf.mxu0
        %v2768 = vadd.f32 0.0, %v2767
        %v2769 = vpop.f32.mrf.mxu0
        %2770 = vmatprep.mubr.bf16.mxu0 0
        %2771 = vmatmul.mubr.bf16.gmra.mxu0 %v2658
        %v2772 = vpop.f32.mrf.mxu0
        %v2773 = vadd.f32 0.0, %v2772
        %v2774 = vpop.f32.mrf.mxu0
        %v2775 = vpop.f32.mrf.mxu0
        %v2776 = vadd.f32 0.0, %v2775
        %v2777 = vpop.f32.mrf.mxu0
        %2778 = vmatprep.mubr.bf16.mxu0 0
        %2779 = vmatmul.mubr.bf16.gmra.mxu0 %v2661
        %v2780 = vpop.f32.mrf.mxu0
        %v2781 = vadd.f32 0.0, %v2780
        %v2782 = vpop.f32.mrf.mxu0
        %v2783 = vpop.f32.mrf.mxu0
        %v2784 = vadd.f32 0.0, %v2783
        %v2785 = vpop.f32.mrf.mxu0
        %2786 = vmatprep.mubr.bf16.mxu0 0
        %2787 = vmatmul.mubr.bf16.gmra.mxu0 %v2664
        %v2788 = vpop.f32.mrf.mxu0
        %v2789 = vadd.f32 0.0, %v2788
        %v2790 = vpop.f32.mrf.mxu0
        %v2791 = vpop.f32.mrf.mxu0
        %v2792 = vadd.f32 0.0, %v2791
        %v2793 = vpop.f32.mrf.mxu0
        %2794 = vmatprep.mubr.bf16.mxu0 0
        %2795 = vmatmul.mubr.bf16.gmra.mxu0 %v2667
        %v2796 = vpop.f32.mrf.mxu0
        %v2797 = vadd.f32 0.0, %v2796
        %v2798 = vpop.f32.mrf.mxu0
        %v2799 = vpop.f32.mrf.mxu0
        %v2800 = vadd.f32 0.0, %v2799
        %v2801 = vpop.f32.mrf.mxu0
        %2802 = vmatprep.mubr.bf16.mxu0 0
        %2803 = vmatmul.mubr.bf16.gmra.mxu0 %v2670
        %v2804 = vpop.f32.mrf.mxu0
        %v2805 = vadd.f32 0.0, %v2804
        %v2806 = vpop.f32.mrf.mxu0
        %v2807 = vpop.f32.mrf.mxu0
        %v2808 = vadd.f32 0.0, %v2807
        %v2809 = vpop.f32.mrf.mxu0
        %2810 = vmatprep.mubr.bf16.mxu0 0
        %2811 = vmatmul.mubr.bf16.gmra.mxu0 %v2673
        %v2812 = vpop.f32.mrf.mxu0
        %v2813 = vadd.f32 0.0, %v2812
        %v2814 = vpop.f32.mrf.mxu0
        %v2815 = vpop.f32.mrf.mxu0
        %v2816 = vadd.f32 0.0, %v2815
        %v2817 = vpop.f32.mrf.mxu0
        %2818 = vmatprep.mubr.bf16.mxu0 0
        %2819 = vmatmul.mubr.bf16.gmra.mxu0 %v2676
        %v2820 = vpop.f32.mrf.mxu0
        %v2821 = vadd.f32 0.0, %v2820
        %v2822 = vpop.f32.mrf.mxu0
        %v2823 = vpop.f32.mrf.mxu0
        %v2824 = vadd.f32 0.0, %v2823
        %v2825 = vpop.f32.mrf.mxu0
        %2826 = vmatprep.mubr.bf16.mxu0 0
        %2827 = vmatmul.mubr.bf16.gmra.mxu0 %v2679
        %v2828 = vpop.f32.mrf.mxu0
        %v2829 = vadd.f32 0.0, %v2828
        %v2830 = vpop.f32.mrf.mxu0
        %v2831 = vpop.f32.mrf.mxu0
        %v2832 = vadd.f32 0.0, %v2831
        %v2833 = vpop.f32.mrf.mxu0
        %2834 = vmatprep.mubr.bf16.mxu0 0
        %2835 = vmatmul.mubr.bf16.gmra.mxu0 %v2682
        %v2836 = vpop.f32.mrf.mxu0
        %v2837 = vadd.f32 0.0, %v2836
        %v2838 = vpop.f32.mrf.mxu0
        %v2839 = vpop.f32.mrf.mxu0
        %v2840 = vadd.f32 0.0, %v2839
        %v2841 = vpop.f32.mrf.mxu0
        %2842 = vmatprep.mubr.bf16.mxu0 0
        %2843 = vmatmul.mubr.bf16.gmra.mxu0 %v2685
        %v2844 = vpop.f32.mrf.mxu0
        %v2845 = vadd.f32 0.0, %v2844
        %v2846 = vpop.f32.mrf.mxu0
        %v2847 = vpop.f32.mrf.mxu0
        %v2848 = vadd.f32 0.0, %v2847
        %v2849 = vpop.f32.mrf.mxu0
        %2850 = vdwg.mxu0
        %v2851 = vadd.f32 %v2557, %v2725
        %v2852 = vadd.f32 %v2558, %v2728
        %v2853 = vadd.f32 %v2559, %v2733
        %v2854 = vadd.f32 %v2560, %v2736
        %v2855 = vadd.f32 %v2561, %v2741
        %v2856 = vadd.f32 %v2562, %v2744
        %v2857 = vadd.f32 %v2563, %v2749
        %v2858 = vadd.f32 %v2564, %v2752
        %v2859 = vadd.f32 %v2565, %v2757
        %v2860 = vadd.f32 %v2566, %v2760
        %v2861 = vadd.f32 %v2567, %v2765
        %v2862 = vadd.f32 %v2568, %v2768
        %v2863 = vadd.f32 %v2569, %v2773
        %v2864 = vadd.f32 %v2570, %v2776
        %v2865 = vadd.f32 %v2571, %v2781
        %v2866 = vadd.f32 %v2572, %v2784
        %v2867 = vadd.f32 %v2573, %v2789
        %v2868 = vadd.f32 %v2574, %v2792
        %v2869 = vadd.f32 %v2575, %v2797
        %v2870 = vadd.f32 %v2576, %v2800
        %v2871 = vadd.f32 %v2577, %v2805
        %v2872 = vadd.f32 %v2578, %v2808
        %v2873 = vadd.f32 %v2579, %v2813
        %v2874 = vadd.f32 %v2580, %v2816
        %v2875 = vadd.f32 %v2581, %v2821
        %v2876 = vadd.f32 %v2582, %v2824
        %v2877 = vadd.f32 %v2583, %v2829
        %v2878 = vadd.f32 %v2584, %v2832
        %v2879 = vadd.f32 %v2585, %v2837
        %v2880 = vadd.f32 %v2586, %v2840
        %v2881 = vadd.f32 %v2587, %v2845
        %v2882 = vadd.f32 %v2588, %v2848
        %v2883 = vld [vmem:[%s2294 + $0x2] sm:$0xff]
        %v2884 = vld [vmem:[%s2294 + $0xa] sm:$0xff]
        %v2885 = vld [vmem:[%s2294 + $0x1a] sm:$0xff]
        %v2886 = vld [vmem:[%s2294 + $0x22] sm:$0xff]
        %v2887 = vld [vmem:[%s2294 + $0x32] sm:$0xff]
        %v2888 = vld [vmem:[%s2294 + $0x3a] sm:$0xff]
        %v2889 = vld [vmem:[%s2294 + $0x4a] sm:$0xff]
        %v2890 = vld [vmem:[%s2294 + $0x52] sm:$0xff]
        %v2891 = vld [vmem:[%s2294 + $0x62] sm:$0xff]
        %v2892 = vld [vmem:[%s2294 + $0x6a] sm:$0xff]
        %v2893 = vld [vmem:[%s2294 + $0x7a] sm:$0xff]
        %v2894 = vld [vmem:[%s2294 + $0x82] sm:$0xff]
        %v2895 = vld [vmem:[%s2294 + $0x92] sm:$0xff]
        %v2896 = vld [vmem:[%s2294 + $0x9a] sm:$0xff]
        %v2897 = vld [vmem:[%s2294 + $0xaa] sm:$0xff]
        %v2898 = vld [vmem:[%s2294 + $0xb2] sm:$0xff]
        %v2899 = vld [vmem:[%s2294 + $0xc2] sm:$0xff]
        %v2900 = vld [vmem:[%s2294 + $0xca] sm:$0xff]
        %v2901 = vld [vmem:[%s2294 + $0xda] sm:$0xff]
        %v2902 = vld [vmem:[%s2294 + $0xe2] sm:$0xff]
        %v2903 = vld [vmem:[%s2294 + $0xf2] sm:$0xff]
        %v2904 = vld [vmem:[%s2294 + $0xfa] sm:$0xff]
        %v2905 = vld [vmem:[%s2294 + $0x10a] sm:$0xff]
        %v2906 = vld [vmem:[%s2294 + $0x112] sm:$0xff]
        %v2907 = vld [vmem:[%s2294 + $0x122] sm:$0xff]
        %v2908 = vld [vmem:[%s2294 + $0x12a] sm:$0xff]
        %v2909 = vld [vmem:[%s2294 + $0x13a] sm:$0xff]
        %v2910 = vld [vmem:[%s2294 + $0x142] sm:$0xff]
        %v2911 = vld [vmem:[%s2294 + $0x152] sm:$0xff]
        %v2912 = vld [vmem:[%s2294 + $0x15a] sm:$0xff]
        %v2913 = vld [vmem:[%s2294 + $0x16a] sm:$0xff]
        %v2914 = vld [vmem:[%s2294 + $0x172] sm:$0xff]
        %v2915 = vpack.c.bf16 %v2884, %v2883
        %v2916 = vpack.c.bf16 %v2886, %v2885
        %v2917 = vpack.c.bf16 %v2888, %v2887
        %v2918 = vpack.c.bf16 %v2890, %v2889
        %v2919 = vpack.c.bf16 %v2892, %v2891
        %v2920 = vpack.c.bf16 %v2894, %v2893
        %v2921 = vpack.c.bf16 %v2896, %v2895
        %v2922 = vpack.c.bf16 %v2898, %v2897
        %v2923 = vpack.c.bf16 %v2900, %v2899
        %v2924 = vpack.c.bf16 %v2902, %v2901
        %v2925 = vpack.c.bf16 %v2904, %v2903
        %v2926 = vpack.c.bf16 %v2906, %v2905
        %v2927 = vpack.c.bf16 %v2908, %v2907
        %v2928 = vpack.c.bf16 %v2910, %v2909
        %v2929 = vpack.c.bf16 %v2912, %v2911
        %v2930 = vpack.c.bf16 %v2914, %v2913
        %s2931 = scalar_lea.vmem %s1, 16
        %v2932 = vld [vmem:[%s2931] sm:$0x3]
        %v2934 = vsel %vm439, %v2915, 0
        %v2937 = vsel %vm439, %v2916, 0
        %v2940 = vsel %vm439, %v2917, 0
        %v2943 = vsel %vm439, %v2918, 0
        %v2946 = vsel %vm439, %v2919, 0
        %v2949 = vsel %vm439, %v2920, 0
        %v2952 = vsel %vm439, %v2921, 0
        %v2955 = vsel %vm439, %v2922, 0
        %v2958 = vsel %vm439, %v2923, 0
        %v2961 = vsel %vm439, %v2924, 0
        %v2964 = vsel %vm439, %v2925, 0
        %v2967 = vsel %vm439, %v2926, 0
        %v2970 = vsel %vm439, %v2927, 0
        %v2973 = vsel %vm439, %v2928, 0
        %v2976 = vsel %vm439, %v2929, 0
        %v2979 = vsel %vm439, %v2930, 0
        %v2982 = vsel %vm741, %v2932, 0
        %2984 = vmatprep.subr.bf16.mxu0 0
        %2985 = vmatpush1.bf16.msra.mxu0 0
        %2986 = vmatprep.subr.bf16.mxu0 0
        %2987 = vmatpush1.bf16.msra.mxu0 0
        %2988 = vmatprep.subr.bf16.mxu0 0
        %2989 = vmatpush1.bf16.msra.mxu0 0
        %2990 = vmatprep.subr.bf16.mxu0 0
        %2991 = vmatpush1.bf16.msra.mxu0 0
        %2992 = vmatprep.subr.bf16.mxu0 0
        %2993 = vmatpush1.bf16.msra.mxu0 0
        %2994 = vmatprep.subr.bf16.mxu0 0
        %2995 = vmatpush1.bf16.msra.mxu0 0
        %2996 = vmatprep.subr.bf16.mxu0 0
        %2997 = vmatpush1.bf16.msra.mxu0 0
        %2998 = vmatprep.subr.bf16.mxu0 0
        %2999 = vmatpush1.bf16.msra.mxu0 %v2982
        %3000 = vmatprep.subr.bf16.mxu0 0
        %3001 = vmatpush2.bf16.msra.mxu0 0
        %3002 = vmatprep.subr.bf16.mxu0 0
        %3003 = vmatpush2.bf16.msra.mxu0 0
        %3004 = vmatprep.subr.bf16.mxu0 0
        %3005 = vmatpush2.bf16.msra.mxu0 0
        %3006 = vmatprep.subr.bf16.mxu0 0
        %3007 = vmatpush2.bf16.msra.mxu0 0
        %3008 = vmatprep.subr.bf16.mxu0 0
        %3009 = vmatpush2.bf16.msra.mxu0 0
        %3010 = vmatprep.subr.bf16.mxu0 0
        %3011 = vmatpush2.bf16.msra.mxu0 0
        %3012 = vmatprep.subr.bf16.mxu0 0
        %3013 = vmatpush2.bf16.msra.mxu0 0
        %3014 = vmatprep.subr.bf16.mxu0 0
        %3015 = vmatpush2.bf16.msra.mxu0 0
        %3016 = vmatprep.mubr.bf16.mxu0 0
        %3017 = vmatmul.mubr.bf16.gmra.mxu0 %v2934
        %v3018 = vpop.f32.mrf.mxu0
        %v3019 = vadd.f32 0.0, %v3018
        %v3020 = vpop.f32.mrf.mxu0
        %v3021 = vpop.f32.mrf.mxu0
        %v3022 = vadd.f32 0.0, %v3021
        %v3023 = vpop.f32.mrf.mxu0
        %3024 = vmatprep.mubr.bf16.mxu0 0
        %3025 = vmatmul.mubr.bf16.gmra.mxu0 %v2937
        %v3026 = vpop.f32.mrf.mxu0
        %v3027 = vadd.f32 0.0, %v3026
        %v3028 = vpop.f32.mrf.mxu0
        %v3029 = vpop.f32.mrf.mxu0
        %v3030 = vadd.f32 0.0, %v3029
        %v3031 = vpop.f32.mrf.mxu0
        %3032 = vmatprep.mubr.bf16.mxu0 0
        %3033 = vmatmul.mubr.bf16.gmra.mxu0 %v2940
        %v3034 = vpop.f32.mrf.mxu0
        %v3035 = vadd.f32 0.0, %v3034
        %v3036 = vpop.f32.mrf.mxu0
        %v3037 = vpop.f32.mrf.mxu0
        %v3038 = vadd.f32 0.0, %v3037
        %v3039 = vpop.f32.mrf.mxu0
        %3040 = vmatprep.mubr.bf16.mxu0 0
        %3041 = vmatmul.mubr.bf16.gmra.mxu0 %v2943
        %v3042 = vpop.f32.mrf.mxu0
        %v3043 = vadd.f32 0.0, %v3042
        %v3044 = vpop.f32.mrf.mxu0
        %v3045 = vpop.f32.mrf.mxu0
        %v3046 = vadd.f32 0.0, %v3045
        %v3047 = vpop.f32.mrf.mxu0
        %3048 = vmatprep.mubr.bf16.mxu0 0
        %3049 = vmatmul.mubr.bf16.gmra.mxu0 %v2946
        %v3050 = vpop.f32.mrf.mxu0
        %v3051 = vadd.f32 0.0, %v3050
        %v3052 = vpop.f32.mrf.mxu0
        %v3053 = vpop.f32.mrf.mxu0
        %v3054 = vadd.f32 0.0, %v3053
        %v3055 = vpop.f32.mrf.mxu0
        %3056 = vmatprep.mubr.bf16.mxu0 0
        %3057 = vmatmul.mubr.bf16.gmra.mxu0 %v2949
        %v3058 = vpop.f32.mrf.mxu0
        %v3059 = vadd.f32 0.0, %v3058
        %v3060 = vpop.f32.mrf.mxu0
        %v3061 = vpop.f32.mrf.mxu0
        %v3062 = vadd.f32 0.0, %v3061
        %v3063 = vpop.f32.mrf.mxu0
        %3064 = vmatprep.mubr.bf16.mxu0 0
        %3065 = vmatmul.mubr.bf16.gmra.mxu0 %v2952
        %v3066 = vpop.f32.mrf.mxu0
        %v3067 = vadd.f32 0.0, %v3066
        %v3068 = vpop.f32.mrf.mxu0
        %v3069 = vpop.f32.mrf.mxu0
        %v3070 = vadd.f32 0.0, %v3069
        %v3071 = vpop.f32.mrf.mxu0
        %3072 = vmatprep.mubr.bf16.mxu0 0
        %3073 = vmatmul.mubr.bf16.gmra.mxu0 %v2955
        %v3074 = vpop.f32.mrf.mxu0
        %v3075 = vadd.f32 0.0, %v3074
        %v3076 = vpop.f32.mrf.mxu0
        %v3077 = vpop.f32.mrf.mxu0
        %v3078 = vadd.f32 0.0, %v3077
        %v3079 = vpop.f32.mrf.mxu0
        %3080 = vmatprep.mubr.bf16.mxu0 0
        %3081 = vmatmul.mubr.bf16.gmra.mxu0 %v2958
        %v3082 = vpop.f32.mrf.mxu0
        %v3083 = vadd.f32 0.0, %v3082
        %v3084 = vpop.f32.mrf.mxu0
        %v3085 = vpop.f32.mrf.mxu0
        %v3086 = vadd.f32 0.0, %v3085
        %v3087 = vpop.f32.mrf.mxu0
        %3088 = vmatprep.mubr.bf16.mxu0 0
        %3089 = vmatmul.mubr.bf16.gmra.mxu0 %v2961
        %v3090 = vpop.f32.mrf.mxu0
        %v3091 = vadd.f32 0.0, %v3090
        %v3092 = vpop.f32.mrf.mxu0
        %v3093 = vpop.f32.mrf.mxu0
        %v3094 = vadd.f32 0.0, %v3093
        %v3095 = vpop.f32.mrf.mxu0
        %3096 = vmatprep.mubr.bf16.mxu0 0
        %3097 = vmatmul.mubr.bf16.gmra.mxu0 %v2964
        %v3098 = vpop.f32.mrf.mxu0
        %v3099 = vadd.f32 0.0, %v3098
        %v3100 = vpop.f32.mrf.mxu0
        %v3101 = vpop.f32.mrf.mxu0
        %v3102 = vadd.f32 0.0, %v3101
        %v3103 = vpop.f32.mrf.mxu0
        %3104 = vmatprep.mubr.bf16.mxu0 0
        %3105 = vmatmul.mubr.bf16.gmra.mxu0 %v2967
        %v3106 = vpop.f32.mrf.mxu0
        %v3107 = vadd.f32 0.0, %v3106
        %v3108 = vpop.f32.mrf.mxu0
        %v3109 = vpop.f32.mrf.mxu0
        %v3110 = vadd.f32 0.0, %v3109
        %v3111 = vpop.f32.mrf.mxu0
        %3112 = vmatprep.mubr.bf16.mxu0 0
        %3113 = vmatmul.mubr.bf16.gmra.mxu0 %v2970
        %v3114 = vpop.f32.mrf.mxu0
        %v3115 = vadd.f32 0.0, %v3114
        %v3116 = vpop.f32.mrf.mxu0
        %v3117 = vpop.f32.mrf.mxu0
        %v3118 = vadd.f32 0.0, %v3117
        %v3119 = vpop.f32.mrf.mxu0
        %3120 = vmatprep.mubr.bf16.mxu0 0
        %3121 = vmatmul.mubr.bf16.gmra.mxu0 %v2973
        %v3122 = vpop.f32.mrf.mxu0
        %v3123 = vadd.f32 0.0, %v3122
        %v3124 = vpop.f32.mrf.mxu0
        %v3125 = vpop.f32.mrf.mxu0
        %v3126 = vadd.f32 0.0, %v3125
        %v3127 = vpop.f32.mrf.mxu0
        %3128 = vmatprep.mubr.bf16.mxu0 0
        %3129 = vmatmul.mubr.bf16.gmra.mxu0 %v2976
        %v3130 = vpop.f32.mrf.mxu0
        %v3131 = vadd.f32 0.0, %v3130
        %v3132 = vpop.f32.mrf.mxu0
        %v3133 = vpop.f32.mrf.mxu0
        %v3134 = vadd.f32 0.0, %v3133
        %v3135 = vpop.f32.mrf.mxu0
        %3136 = vmatprep.mubr.bf16.mxu0 0
        %3137 = vmatmul.mubr.bf16.gmra.mxu0 %v2979
        %v3138 = vpop.f32.mrf.mxu0
        %v3139 = vadd.f32 0.0, %v3138
        %v3140 = vpop.f32.mrf.mxu0
        %v3141 = vpop.f32.mrf.mxu0
        %v3142 = vadd.f32 0.0, %v3141
        %v3143 = vpop.f32.mrf.mxu0
        %3144 = vdwg.mxu0
        %v3145 = vadd.f32 %v2851, %v3019
        %v3146 = vadd.f32 %v2852, %v3022
        %v3147 = vadd.f32 %v2853, %v3027
        %v3148 = vadd.f32 %v2854, %v3030
        %v3149 = vadd.f32 %v2855, %v3035
        %v3150 = vadd.f32 %v2856, %v3038
        %v3151 = vadd.f32 %v2857, %v3043
        %v3152 = vadd.f32 %v2858, %v3046
        %v3153 = vadd.f32 %v2859, %v3051
        %v3154 = vadd.f32 %v2860, %v3054
        %v3155 = vadd.f32 %v2861, %v3059
        %v3156 = vadd.f32 %v2862, %v3062
        %v3157 = vadd.f32 %v2863, %v3067
        %v3158 = vadd.f32 %v2864, %v3070
        %v3159 = vadd.f32 %v2865, %v3075
        %v3160 = vadd.f32 %v2866, %v3078
        %v3161 = vadd.f32 %v2867, %v3083
        %v3162 = vadd.f32 %v2868, %v3086
        %v3163 = vadd.f32 %v2869, %v3091
        %v3164 = vadd.f32 %v2870, %v3094
        %v3165 = vadd.f32 %v2871, %v3099
        %v3166 = vadd.f32 %v2872, %v3102
        %v3167 = vadd.f32 %v2873, %v3107
        %v3168 = vadd.f32 %v2874, %v3110
        %v3169 = vadd.f32 %v2875, %v3115
        %v3170 = vadd.f32 %v2876, %v3118
        %v3171 = vadd.f32 %v2877, %v3123
        %v3172 = vadd.f32 %v2878, %v3126
        %v3173 = vadd.f32 %v2879, %v3131
        %v3174 = vadd.f32 %v2880, %v3134
        %v3175 = vadd.f32 %v2881, %v3139
        %v3176 = vadd.f32 %v2882, %v3142
        %v3177 = vld [vmem:[%s3] sm:$0xff]
        %v3178 = vld [vmem:[%s3 + $0x8] sm:$0xff]
        %v3179 = vld [vmem:[%s3 + $0x10] sm:$0xff]
        %v3180 = vld [vmem:[%s3 + $0x18] sm:$0xff]
        %v3181 = vld [vmem:[%s3 + $0x20] sm:$0xff]
        %v3182 = vld [vmem:[%s3 + $0x28] sm:$0xff]
        %v3183 = vld [vmem:[%s3 + $0x30] sm:$0xff]
        %v3184 = vld [vmem:[%s3 + $0x38] sm:$0xff]
        %v3185 = vld [vmem:[%s3 + $0x40] sm:$0xff]
        %v3186 = vld [vmem:[%s3 + $0x48] sm:$0xff]
        %v3187 = vld [vmem:[%s3 + $0x50] sm:$0xff]
        %v3188 = vld [vmem:[%s3 + $0x58] sm:$0xff]
        %v3189 = vld [vmem:[%s3 + $0x60] sm:$0xff]
        %v3190 = vld [vmem:[%s3 + $0x68] sm:$0xff]
        %v3191 = vld [vmem:[%s3 + $0x70] sm:$0xff]
        %v3192 = vld [vmem:[%s3 + $0x78] sm:$0xff]
        %3193 = vmatprep.subr.mxu0 0.0
        %3194 = vmatpush1.msra.mxu0 %v3160
        %3195 = vmatprep.subr.mxu0 0.0
        %3196 = vmatpush1.msra.mxu0 %v3159
        %3197 = vmatprep.subr.mxu0 0.0
        %3198 = vmatpush1.msra.mxu0 %v3158
        %3199 = vmatprep.subr.mxu0 0.0
        %3200 = vmatpush1.msra.mxu0 %v3157
        %3201 = vmatprep.subr.mxu0 0.0
        %3202 = vmatpush1.msra.mxu0 %v3156
        %3203 = vmatprep.subr.mxu0 0.0
        %3204 = vmatpush1.msra.mxu0 %v3155
        %3205 = vmatprep.subr.mxu0 0.0
        %3206 = vmatpush1.msra.mxu0 %v3154
        %3207 = vmatprep.subr.mxu0 0.0
        %3208 = vmatpush1.msra.mxu0 %v3153
        %3209 = vmatprep.subr.mxu0 0.0
        %3210 = vmatpush1.msra.mxu0 %v3152
        %3211 = vmatprep.subr.mxu0 0.0
        %3212 = vmatpush1.msra.mxu0 %v3151
        %3213 = vmatprep.subr.mxu0 0.0
        %3214 = vmatpush1.msra.mxu0 %v3150
        %3215 = vmatprep.subr.mxu0 0.0
        %3216 = vmatpush1.msra.mxu0 %v3149
        %3217 = vmatprep.subr.mxu0 0.0
        %3218 = vmatpush1.msra.mxu0 %v3148
        %3219 = vmatprep.subr.mxu0 0.0
        %3220 = vmatpush1.msra.mxu0 %v3147
        %3221 = vmatprep.subr.mxu0 0.0
        %3222 = vmatpush1.msra.mxu0 %v3146
        %3223 = vmatprep.subr.mxu0 0.0
        %3224 = vmatpush1.msra.mxu0 %v3145
        %3225 = vmatprep.subr.mxu0 0.0
        %3226 = vmatpush2.msra.mxu0 %v3176
        %3227 = vmatprep.subr.mxu0 0.0
        %3228 = vmatpush2.msra.mxu0 %v3175
        %3229 = vmatprep.subr.mxu0 0.0
        %3230 = vmatpush2.msra.mxu0 %v3174
        %3231 = vmatprep.subr.mxu0 0.0
        %3232 = vmatpush2.msra.mxu0 %v3173
        %3233 = vmatprep.subr.mxu0 0.0
        %3234 = vmatpush2.msra.mxu0 %v3172
        %3235 = vmatprep.subr.mxu0 0.0
        %3236 = vmatpush2.msra.mxu0 %v3171
        %3237 = vmatprep.subr.mxu0 0.0
        %3238 = vmatpush2.msra.mxu0 %v3170
        %3239 = vmatprep.subr.mxu0 0.0
        %3240 = vmatpush2.msra.mxu0 %v3169
        %3241 = vmatprep.subr.mxu0 0.0
        %3242 = vmatpush2.msra.mxu0 %v3168
        %3243 = vmatprep.subr.mxu0 0.0
        %3244 = vmatpush2.msra.mxu0 %v3167
        %3245 = vmatprep.subr.mxu0 0.0
        %3246 = vmatpush2.msra.mxu0 %v3166
        %3247 = vmatprep.subr.mxu0 0.0
        %3248 = vmatpush2.msra.mxu0 %v3165
        %3249 = vmatprep.subr.mxu0 0.0
        %3250 = vmatpush2.msra.mxu0 %v3164
        %3251 = vmatprep.subr.mxu0 0.0
        %3252 = vmatpush2.msra.mxu0 %v3163
        %3253 = vmatprep.subr.mxu0 0.0
        %3254 = vmatpush2.msra.mxu0 %v3162
        %3255 = vmatprep.subr.mxu0 0.0
        %3256 = vmatpush2.msra.mxu0 %v3161
        %3257 = vmatprep.mubr.f32.mxu0 %v3178
        %3258 = vmatmul.mubr.f32.gmra.mxu0 %v3177
        %v3259 = vpop.f32.mrf.mxu0
        %v3260 = vadd.f32 0.0, %v3259
        %v3261 = vpop.f32.mrf.mxu0
        %3262 = vmatprep.mubr.f32.mxu0 %v3180
        %3263 = vmatmul.mubr.f32.gmra.mxu0 %v3179
        %v3264 = vpop.f32.mrf.mxu0
        %v3265 = vadd.f32 0.0, %v3264
        %v3266 = vpop.f32.mrf.mxu0
        %3267 = vmatprep.mubr.f32.mxu0 %v3182
        %3268 = vmatmul.mubr.f32.gmra.mxu0 %v3181
        %v3269 = vpop.f32.mrf.mxu0
        %v3270 = vadd.f32 0.0, %v3269
        %v3271 = vpop.f32.mrf.mxu0
        %3272 = vmatprep.mubr.f32.mxu0 %v3184
        %3273 = vmatmul.mubr.f32.gmra.mxu0 %v3183
        %v3274 = vpop.f32.mrf.mxu0
        %v3275 = vadd.f32 0.0, %v3274
        %v3276 = vpop.f32.mrf.mxu0
        %3277 = vmatprep.mubr.f32.mxu0 %v3186
        %3278 = vmatmul.mubr.f32.gmra.mxu0 %v3185
        %v3279 = vpop.f32.mrf.mxu0
        %v3280 = vadd.f32 0.0, %v3279
        %v3281 = vpop.f32.mrf.mxu0
        %3282 = vmatprep.mubr.f32.mxu0 %v3188
        %3283 = vmatmul.mubr.f32.gmra.mxu0 %v3187
        %v3284 = vpop.f32.mrf.mxu0
        %v3285 = vadd.f32 0.0, %v3284
        %v3286 = vpop.f32.mrf.mxu0
        %3287 = vmatprep.mubr.f32.mxu0 %v3190
        %3288 = vmatmul.mubr.f32.gmra.mxu0 %v3189
        %v3289 = vpop.f32.mrf.mxu0
        %v3290 = vadd.f32 0.0, %v3289
        %v3291 = vpop.f32.mrf.mxu0
        %3292 = vmatprep.mubr.f32.mxu0 %v3192
        %3293 = vmatmul.mubr.f32.gmra.mxu0 %v3191
        %v3294 = vpop.f32.mrf.mxu0
        %v3295 = vadd.f32 0.0, %v3294
        %v3296 = vpop.f32.mrf.mxu0
        %3297 = vdwg.mxu0
        %s3298 = scalar_lea.vmem %s3, 128
        %v3299 = vld [vmem:[%s3298] sm:$0xff]
        %v3300 = vld [vmem:[%s3298 + $0x8] sm:$0xff]
        %v3301 = vld [vmem:[%s3298 + $0x10] sm:$0xff]
        %v3302 = vld [vmem:[%s3298 + $0x18] sm:$0xff]
        %v3303 = vld [vmem:[%s3298 + $0x20] sm:$0xff]
        %v3304 = vld [vmem:[%s3298 + $0x28] sm:$0xff]
        %v3305 = vld [vmem:[%s3298 + $0x30] sm:$0xff]
        %v3306 = vld [vmem:[%s3298 + $0x38] sm:$0xff]
        %v3307 = vld [vmem:[%s3298 + $0x40] sm:$0xff]
        %v3308 = vld [vmem:[%s3298 + $0x48] sm:$0xff]
        %v3309 = vld [vmem:[%s3298 + $0x50] sm:$0xff]
        %v3310 = vld [vmem:[%s3298 + $0x58] sm:$0xff]
        %v3311 = vld [vmem:[%s3298 + $0x60] sm:$0xff]
        %v3312 = vld [vmem:[%s3298 + $0x68] sm:$0xff]
        %v3313 = vld [vmem:[%s3298 + $0x70] sm:$0xff]
        %v3314 = vld [vmem:[%s3298 + $0x78] sm:$0xff]
        %3315 = vmatprep.subr.mxu0 0.0
        %3316 = vmatpush1.msra.mxu0 %v3160
        %3317 = vmatprep.subr.mxu0 0.0
        %3318 = vmatpush1.msra.mxu0 %v3159
        %3319 = vmatprep.subr.mxu0 0.0
        %3320 = vmatpush1.msra.mxu0 %v3158
        %3321 = vmatprep.subr.mxu0 0.0
        %3322 = vmatpush1.msra.mxu0 %v3157
        %3323 = vmatprep.subr.mxu0 0.0
        %3324 = vmatpush1.msra.mxu0 %v3156
        %3325 = vmatprep.subr.mxu0 0.0
        %3326 = vmatpush1.msra.mxu0 %v3155
        %3327 = vmatprep.subr.mxu0 0.0
        %3328 = vmatpush1.msra.mxu0 %v3154
        %3329 = vmatprep.subr.mxu0 0.0
        %3330 = vmatpush1.msra.mxu0 %v3153
        %3331 = vmatprep.subr.mxu0 0.0
        %3332 = vmatpush1.msra.mxu0 %v3152
        %3333 = vmatprep.subr.mxu0 0.0
        %3334 = vmatpush1.msra.mxu0 %v3151
        %3335 = vmatprep.subr.mxu0 0.0
        %3336 = vmatpush1.msra.mxu0 %v3150
        %3337 = vmatprep.subr.mxu0 0.0
        %3338 = vmatpush1.msra.mxu0 %v3149
        %3339 = vmatprep.subr.mxu0 0.0
        %3340 = vmatpush1.msra.mxu0 %v3148
        %3341 = vmatprep.subr.mxu0 0.0
        %3342 = vmatpush1.msra.mxu0 %v3147
        %3343 = vmatprep.subr.mxu0 0.0
        %3344 = vmatpush1.msra.mxu0 %v3146
        %3345 = vmatprep.subr.mxu0 0.0
        %3346 = vmatpush1.msra.mxu0 %v3145
        %3347 = vmatprep.subr.mxu0 0.0
        %3348 = vmatpush2.msra.mxu0 %v3176
        %3349 = vmatprep.subr.mxu0 0.0
        %3350 = vmatpush2.msra.mxu0 %v3175
        %3351 = vmatprep.subr.mxu0 0.0
        %3352 = vmatpush2.msra.mxu0 %v3174
        %3353 = vmatprep.subr.mxu0 0.0
        %3354 = vmatpush2.msra.mxu0 %v3173
        %3355 = vmatprep.subr.mxu0 0.0
        %3356 = vmatpush2.msra.mxu0 %v3172
        %3357 = vmatprep.subr.mxu0 0.0
        %3358 = vmatpush2.msra.mxu0 %v3171
        %3359 = vmatprep.subr.mxu0 0.0
        %3360 = vmatpush2.msra.mxu0 %v3170
        %3361 = vmatprep.subr.mxu0 0.0
        %3362 = vmatpush2.msra.mxu0 %v3169
        %3363 = vmatprep.subr.mxu0 0.0
        %3364 = vmatpush2.msra.mxu0 %v3168
        %3365 = vmatprep.subr.mxu0 0.0
        %3366 = vmatpush2.msra.mxu0 %v3167
        %3367 = vmatprep.subr.mxu0 0.0
        %3368 = vmatpush2.msra.mxu0 %v3166
        %3369 = vmatprep.subr.mxu0 0.0
        %3370 = vmatpush2.msra.mxu0 %v3165
        %3371 = vmatprep.subr.mxu0 0.0
        %3372 = vmatpush2.msra.mxu0 %v3164
        %3373 = vmatprep.subr.mxu0 0.0
        %3374 = vmatpush2.msra.mxu0 %v3163
        %3375 = vmatprep.subr.mxu0 0.0
        %3376 = vmatpush2.msra.mxu0 %v3162
        %3377 = vmatprep.subr.mxu0 0.0
        %3378 = vmatpush2.msra.mxu0 %v3161
        %3379 = vmatprep.mubr.f32.mxu0 %v3300
        %3380 = vmatmul.mubr.f32.gmra.mxu0 %v3299
        %v3381 = vpop.f32.mrf.mxu0
        %v3382 = vadd.f32 0.0, %v3381
        %v3383 = vpop.f32.mrf.mxu0
        %3384 = vmatprep.mubr.f32.mxu0 %v3302
        %3385 = vmatmul.mubr.f32.gmra.mxu0 %v3301
        %v3386 = vpop.f32.mrf.mxu0
        %v3387 = vadd.f32 0.0, %v3386
        %v3388 = vpop.f32.mrf.mxu0
        %3389 = vmatprep.mubr.f32.mxu0 %v3304
        %3390 = vmatmul.mubr.f32.gmra.mxu0 %v3303
        %v3391 = vpop.f32.mrf.mxu0
        %v3392 = vadd.f32 0.0, %v3391
        %v3393 = vpop.f32.mrf.mxu0
        %3394 = vmatprep.mubr.f32.mxu0 %v3306
        %3395 = vmatmul.mubr.f32.gmra.mxu0 %v3305
        %v3396 = vpop.f32.mrf.mxu0
        %v3397 = vadd.f32 0.0, %v3396
        %v3398 = vpop.f32.mrf.mxu0
        %3399 = vmatprep.mubr.f32.mxu0 %v3308
        %3400 = vmatmul.mubr.f32.gmra.mxu0 %v3307
        %v3401 = vpop.f32.mrf.mxu0
        %v3402 = vadd.f32 0.0, %v3401
        %v3403 = vpop.f32.mrf.mxu0
        %3404 = vmatprep.mubr.f32.mxu0 %v3310
        %3405 = vmatmul.mubr.f32.gmra.mxu0 %v3309
        %v3406 = vpop.f32.mrf.mxu0
        %v3407 = vadd.f32 0.0, %v3406
        %v3408 = vpop.f32.mrf.mxu0
        %3409 = vmatprep.mubr.f32.mxu0 %v3312
        %3410 = vmatmul.mubr.f32.gmra.mxu0 %v3311
        %v3411 = vpop.f32.mrf.mxu0
        %v3412 = vadd.f32 0.0, %v3411
        %v3413 = vpop.f32.mrf.mxu0
        %3414 = vmatprep.mubr.f32.mxu0 %v3314
        %3415 = vmatmul.mubr.f32.gmra.mxu0 %v3313
        %v3416 = vpop.f32.mrf.mxu0
        %v3417 = vadd.f32 0.0, %v3416
        %v3418 = vpop.f32.mrf.mxu0
        %3419 = vdwg.mxu0
        %v3420 = vmax.f32 %v3260, %v3382
        %v3421 = vmax.f32 %v3265, %v3387
        %v3422 = vmax.f32 %v3270, %v3392
        %v3423 = vmax.f32 %v3275, %v3397
        %v3424 = vmax.f32 %v3280, %v3402
        %v3425 = vmax.f32 %v3285, %v3407
        %v3426 = vmax.f32 %v3290, %v3412
        %v3427 = vmax.f32 %v3295, %v3417
        %s3428 = scalar_lea.vmem %s3, 256
        %v3429 = vld [vmem:[%s3428] sm:$0xff]
        %v3430 = vld [vmem:[%s3428 + $0x8] sm:$0xff]
        %v3431 = vld [vmem:[%s3428 + $0x10] sm:$0xff]
        %v3432 = vld [vmem:[%s3428 + $0x18] sm:$0xff]
        %v3433 = vld [vmem:[%s3428 + $0x20] sm:$0xff]
        %v3434 = vld [vmem:[%s3428 + $0x28] sm:$0xff]
        %v3435 = vld [vmem:[%s3428 + $0x30] sm:$0xff]
        %v3436 = vld [vmem:[%s3428 + $0x38] sm:$0xff]
        %v3437 = vld [vmem:[%s3428 + $0x40] sm:$0xff]
        %v3438 = vld [vmem:[%s3428 + $0x48] sm:$0xff]
        %v3439 = vld [vmem:[%s3428 + $0x50] sm:$0xff]
        %v3440 = vld [vmem:[%s3428 + $0x58] sm:$0xff]
        %v3441 = vld [vmem:[%s3428 + $0x60] sm:$0xff]
        %v3442 = vld [vmem:[%s3428 + $0x68] sm:$0xff]
        %v3443 = vld [vmem:[%s3428 + $0x70] sm:$0xff]
        %v3444 = vld [vmem:[%s3428 + $0x78] sm:$0xff]
        %3445 = vmatprep.subr.mxu0 0.0
        %3446 = vmatpush1.msra.mxu0 %v3160
        %3447 = vmatprep.subr.mxu0 0.0
        %3448 = vmatpush1.msra.mxu0 %v3159
        %3449 = vmatprep.subr.mxu0 0.0
        %3450 = vmatpush1.msra.mxu0 %v3158
        %3451 = vmatprep.subr.mxu0 0.0
        %3452 = vmatpush1.msra.mxu0 %v3157
        %3453 = vmatprep.subr.mxu0 0.0
        %3454 = vmatpush1.msra.mxu0 %v3156
        %3455 = vmatprep.subr.mxu0 0.0
        %3456 = vmatpush1.msra.mxu0 %v3155
        %3457 = vmatprep.subr.mxu0 0.0
        %3458 = vmatpush1.msra.mxu0 %v3154
        %3459 = vmatprep.subr.mxu0 0.0
        %3460 = vmatpush1.msra.mxu0 %v3153
        %3461 = vmatprep.subr.mxu0 0.0
        %3462 = vmatpush1.msra.mxu0 %v3152
        %3463 = vmatprep.subr.mxu0 0.0
        %3464 = vmatpush1.msra.mxu0 %v3151
        %3465 = vmatprep.subr.mxu0 0.0
        %3466 = vmatpush1.msra.mxu0 %v3150
        %3467 = vmatprep.subr.mxu0 0.0
        %3468 = vmatpush1.msra.mxu0 %v3149
        %3469 = vmatprep.subr.mxu0 0.0
        %3470 = vmatpush1.msra.mxu0 %v3148
        %3471 = vmatprep.subr.mxu0 0.0
        %3472 = vmatpush1.msra.mxu0 %v3147
        %3473 = vmatprep.subr.mxu0 0.0
        %3474 = vmatpush1.msra.mxu0 %v3146
        %3475 = vmatprep.subr.mxu0 0.0
        %3476 = vmatpush1.msra.mxu0 %v3145
        %3477 = vmatprep.subr.mxu0 0.0
        %3478 = vmatpush2.msra.mxu0 %v3176
        %3479 = vmatprep.subr.mxu0 0.0
        %3480 = vmatpush2.msra.mxu0 %v3175
        %3481 = vmatprep.subr.mxu0 0.0
        %3482 = vmatpush2.msra.mxu0 %v3174
        %3483 = vmatprep.subr.mxu0 0.0
        %3484 = vmatpush2.msra.mxu0 %v3173
        %3485 = vmatprep.subr.mxu0 0.0
        %3486 = vmatpush2.msra.mxu0 %v3172
        %3487 = vmatprep.subr.mxu0 0.0
        %3488 = vmatpush2.msra.mxu0 %v3171
        %3489 = vmatprep.subr.mxu0 0.0
        %3490 = vmatpush2.msra.mxu0 %v3170
        %3491 = vmatprep.subr.mxu0 0.0
        %3492 = vmatpush2.msra.mxu0 %v3169
        %3493 = vmatprep.subr.mxu0 0.0
        %3494 = vmatpush2.msra.mxu0 %v3168
        %3495 = vmatprep.subr.mxu0 0.0
        %3496 = vmatpush2.msra.mxu0 %v3167
        %3497 = vmatprep.subr.mxu0 0.0
        %3498 = vmatpush2.msra.mxu0 %v3166
        %3499 = vmatprep.subr.mxu0 0.0
        %3500 = vmatpush2.msra.mxu0 %v3165
        %3501 = vmatprep.subr.mxu0 0.0
        %3502 = vmatpush2.msra.mxu0 %v3164
        %3503 = vmatprep.subr.mxu0 0.0
        %3504 = vmatpush2.msra.mxu0 %v3163
        %3505 = vmatprep.subr.mxu0 0.0
        %3506 = vmatpush2.msra.mxu0 %v3162
        %3507 = vmatprep.subr.mxu0 0.0
        %3508 = vmatpush2.msra.mxu0 %v3161
        %3509 = vmatprep.mubr.f32.mxu0 %v3430
        %3510 = vmatmul.mubr.f32.gmra.mxu0 %v3429
        %v3511 = vpop.f32.mrf.mxu0
        %v3512 = vadd.f32 0.0, %v3511
        %v3513 = vpop.f32.mrf.mxu0
        %3514 = vmatprep.mubr.f32.mxu0 %v3432
        %3515 = vmatmul.mubr.f32.gmra.mxu0 %v3431
        %v3516 = vpop.f32.mrf.mxu0
        %v3517 = vadd.f32 0.0, %v3516
        %v3518 = vpop.f32.mrf.mxu0
        %3519 = vmatprep.mubr.f32.mxu0 %v3434
        %3520 = vmatmul.mubr.f32.gmra.mxu0 %v3433
        %v3521 = vpop.f32.mrf.mxu0
        %v3522 = vadd.f32 0.0, %v3521
        %v3523 = vpop.f32.mrf.mxu0
        %3524 = vmatprep.mubr.f32.mxu0 %v3436
        %3525 = vmatmul.mubr.f32.gmra.mxu0 %v3435
        %v3526 = vpop.f32.mrf.mxu0
        %v3527 = vadd.f32 0.0, %v3526
        %v3528 = vpop.f32.mrf.mxu0
        %3529 = vmatprep.mubr.f32.mxu0 %v3438
        %3530 = vmatmul.mubr.f32.gmra.mxu0 %v3437
        %v3531 = vpop.f32.mrf.mxu0
        %v3532 = vadd.f32 0.0, %v3531
        %v3533 = vpop.f32.mrf.mxu0
        %3534 = vmatprep.mubr.f32.mxu0 %v3440
        %3535 = vmatmul.mubr.f32.gmra.mxu0 %v3439
        %v3536 = vpop.f32.mrf.mxu0
        %v3537 = vadd.f32 0.0, %v3536
        %v3538 = vpop.f32.mrf.mxu0
        %3539 = vmatprep.mubr.f32.mxu0 %v3442
        %3540 = vmatmul.mubr.f32.gmra.mxu0 %v3441
        %v3541 = vpop.f32.mrf.mxu0
        %v3542 = vadd.f32 0.0, %v3541
        %v3543 = vpop.f32.mrf.mxu0
        %3544 = vmatprep.mubr.f32.mxu0 %v3444
        %3545 = vmatmul.mubr.f32.gmra.mxu0 %v3443
        %v3546 = vpop.f32.mrf.mxu0
        %v3547 = vadd.f32 0.0, %v3546
        %v3548 = vpop.f32.mrf.mxu0
        %3549 = vdwg.mxu0
        %v3550 = vmax.f32 %v3420, %v3512
        %v3551 = vmax.f32 %v3421, %v3517
        %v3552 = vmax.f32 %v3422, %v3522
        %v3553 = vmax.f32 %v3423, %v3527
        %v3554 = vmax.f32 %v3424, %v3532
        %v3555 = vmax.f32 %v3425, %v3537
        %v3556 = vmax.f32 %v3426, %v3542
        %v3557 = vmax.f32 %v3427, %v3547
        %s3558 = scalar_lea.vmem %s3, 384
        %v3559 = vld [vmem:[%s3558] sm:$0xff]
        %v3560 = vld [vmem:[%s3558 + $0x8] sm:$0xff]
        %v3561 = vld [vmem:[%s3558 + $0x10] sm:$0xff]
        %v3562 = vld [vmem:[%s3558 + $0x18] sm:$0xff]
        %v3563 = vld [vmem:[%s3558 + $0x20] sm:$0xff]
        %v3564 = vld [vmem:[%s3558 + $0x28] sm:$0xff]
        %v3565 = vld [vmem:[%s3558 + $0x30] sm:$0xff]
        %v3566 = vld [vmem:[%s3558 + $0x38] sm:$0xff]
        %v3567 = vld [vmem:[%s3558 + $0x40] sm:$0xff]
        %v3568 = vld [vmem:[%s3558 + $0x48] sm:$0xff]
        %v3569 = vld [vmem:[%s3558 + $0x50] sm:$0xff]
        %v3570 = vld [vmem:[%s3558 + $0x58] sm:$0xff]
        %v3571 = vld [vmem:[%s3558 + $0x60] sm:$0xff]
        %v3572 = vld [vmem:[%s3558 + $0x68] sm:$0xff]
        %v3573 = vld [vmem:[%s3558 + $0x70] sm:$0xff]
        %v3574 = vld [vmem:[%s3558 + $0x78] sm:$0xff]
        %3575 = vmatprep.subr.mxu0 0.0
        %3576 = vmatpush1.msra.mxu0 %v3160
        %3577 = vmatprep.subr.mxu0 0.0
        %3578 = vmatpush1.msra.mxu0 %v3159
        %3579 = vmatprep.subr.mxu0 0.0
        %3580 = vmatpush1.msra.mxu0 %v3158
        %3581 = vmatprep.subr.mxu0 0.0
        %3582 = vmatpush1.msra.mxu0 %v3157
        %3583 = vmatprep.subr.mxu0 0.0
        %3584 = vmatpush1.msra.mxu0 %v3156
        %3585 = vmatprep.subr.mxu0 0.0
        %3586 = vmatpush1.msra.mxu0 %v3155
        %3587 = vmatprep.subr.mxu0 0.0
        %3588 = vmatpush1.msra.mxu0 %v3154
        %3589 = vmatprep.subr.mxu0 0.0
        %3590 = vmatpush1.msra.mxu0 %v3153
        %3591 = vmatprep.subr.mxu0 0.0
        %3592 = vmatpush1.msra.mxu0 %v3152
        %3593 = vmatprep.subr.mxu0 0.0
        %3594 = vmatpush1.msra.mxu0 %v3151
        %3595 = vmatprep.subr.mxu0 0.0
        %3596 = vmatpush1.msra.mxu0 %v3150
        %3597 = vmatprep.subr.mxu0 0.0
        %3598 = vmatpush1.msra.mxu0 %v3149
        %3599 = vmatprep.subr.mxu0 0.0
        %3600 = vmatpush1.msra.mxu0 %v3148
        %3601 = vmatprep.subr.mxu0 0.0
        %3602 = vmatpush1.msra.mxu0 %v3147
        %3603 = vmatprep.subr.mxu0 0.0
        %3604 = vmatpush1.msra.mxu0 %v3146
        %3605 = vmatprep.subr.mxu0 0.0
        %3606 = vmatpush1.msra.mxu0 %v3145
        %3607 = vmatprep.subr.mxu0 0.0
        %3608 = vmatpush2.msra.mxu0 %v3176
        %3609 = vmatprep.subr.mxu0 0.0
        %3610 = vmatpush2.msra.mxu0 %v3175
        %3611 = vmatprep.subr.mxu0 0.0
        %3612 = vmatpush2.msra.mxu0 %v3174
        %3613 = vmatprep.subr.mxu0 0.0
        %3614 = vmatpush2.msra.mxu0 %v3173
        %3615 = vmatprep.subr.mxu0 0.0
        %3616 = vmatpush2.msra.mxu0 %v3172
        %3617 = vmatprep.subr.mxu0 0.0
        %3618 = vmatpush2.msra.mxu0 %v3171
        %3619 = vmatprep.subr.mxu0 0.0
        %3620 = vmatpush2.msra.mxu0 %v3170
        %3621 = vmatprep.subr.mxu0 0.0
        %3622 = vmatpush2.msra.mxu0 %v3169
        %3623 = vmatprep.subr.mxu0 0.0
        %3624 = vmatpush2.msra.mxu0 %v3168
        %3625 = vmatprep.subr.mxu0 0.0
        %3626 = vmatpush2.msra.mxu0 %v3167
        %3627 = vmatprep.subr.mxu0 0.0
        %3628 = vmatpush2.msra.mxu0 %v3166
        %3629 = vmatprep.subr.mxu0 0.0
        %3630 = vmatpush2.msra.mxu0 %v3165
        %3631 = vmatprep.subr.mxu0 0.0
        %3632 = vmatpush2.msra.mxu0 %v3164
        %3633 = vmatprep.subr.mxu0 0.0
        %3634 = vmatpush2.msra.mxu0 %v3163
        %3635 = vmatprep.subr.mxu0 0.0
        %3636 = vmatpush2.msra.mxu0 %v3162
        %3637 = vmatprep.subr.mxu0 0.0
        %3638 = vmatpush2.msra.mxu0 %v3161
        %3639 = vmatprep.mubr.f32.mxu0 %v3560
        %3640 = vmatmul.mubr.f32.gmra.mxu0 %v3559
        %v3641 = vpop.f32.mrf.mxu0
        %v3642 = vadd.f32 0.0, %v3641
        %v3643 = vpop.f32.mrf.mxu0
        %3644 = vmatprep.mubr.f32.mxu0 %v3562
        %3645 = vmatmul.mubr.f32.gmra.mxu0 %v3561
        %v3646 = vpop.f32.mrf.mxu0
        %v3647 = vadd.f32 0.0, %v3646
        %v3648 = vpop.f32.mrf.mxu0
        %3649 = vmatprep.mubr.f32.mxu0 %v3564
        %3650 = vmatmul.mubr.f32.gmra.mxu0 %v3563
        %v3651 = vpop.f32.mrf.mxu0
        %v3652 = vadd.f32 0.0, %v3651
        %v3653 = vpop.f32.mrf.mxu0
        %3654 = vmatprep.mubr.f32.mxu0 %v3566
        %3655 = vmatmul.mubr.f32.gmra.mxu0 %v3565
        %v3656 = vpop.f32.mrf.mxu0
        %v3657 = vadd.f32 0.0, %v3656
        %v3658 = vpop.f32.mrf.mxu0
        %3659 = vmatprep.mubr.f32.mxu0 %v3568
        %3660 = vmatmul.mubr.f32.gmra.mxu0 %v3567
        %v3661 = vpop.f32.mrf.mxu0
        %v3662 = vadd.f32 0.0, %v3661
        %v3663 = vpop.f32.mrf.mxu0
        %3664 = vmatprep.mubr.f32.mxu0 %v3570
        %3665 = vmatmul.mubr.f32.gmra.mxu0 %v3569
        %v3666 = vpop.f32.mrf.mxu0
        %v3667 = vadd.f32 0.0, %v3666
        %v3668 = vpop.f32.mrf.mxu0
        %3669 = vmatprep.mubr.f32.mxu0 %v3572
        %3670 = vmatmul.mubr.f32.gmra.mxu0 %v3571
        %v3671 = vpop.f32.mrf.mxu0
        %v3672 = vadd.f32 0.0, %v3671
        %v3673 = vpop.f32.mrf.mxu0
        %3674 = vmatprep.mubr.f32.mxu0 %v3574
        %3675 = vmatmul.mubr.f32.gmra.mxu0 %v3573
        %v3676 = vpop.f32.mrf.mxu0
        %v3677 = vadd.f32 0.0, %v3676
        %v3678 = vpop.f32.mrf.mxu0
        %3679 = vdwg.mxu0
        %v3680 = vmax.f32 %v3550, %v3642
        %v3681 = vmax.f32 %v3551, %v3647
        %v3682 = vmax.f32 %v3552, %v3652
        %v3683 = vmax.f32 %v3553, %v3657
        %v3684 = vmax.f32 %v3554, %v3662
        %v3685 = vmax.f32 %v3555, %v3667
        %v3686 = vmax.f32 %v3556, %v3672
        %v3687 = vmax.f32 %v3557, %v3677
        %v3688 = vld [vmem:[%s2] sm:$0x1]
        %v3690 = vlaneseq
        %v3691 = vshrl.u32 %v3690, 7
        %v3692 = vsub.s32 0, %v3691
        %v3693 = vrot.slane %v3688, %v3692
        %v3695 = vadd.f32 %v3680, %v3693
        %v3696 = vadd.f32 %v3681, %v3693
        %v3697 = vadd.f32 %v3682, %v3693
        %v3698 = vadd.f32 %v3683, %v3693
        %v3699 = vadd.f32 %v3684, %v3693
        %v3700 = vadd.f32 %v3685, %v3693
        %v3701 = vadd.f32 %v3686, %v3693
        %v3702 = vadd.f32 %v3687, %v3693
        %v3703 = vmax.f32 %v3695, 0.0
        %v3704 = vmax.f32 %v3696, 0.0
        %v3705 = vmax.f32 %v3697, 0.0
        %v3706 = vmax.f32 %v3698, 0.0
        %v3707 = vmax.f32 %v3699, 0.0
        %v3708 = vmax.f32 %v3700, 0.0
        %v3709 = vmax.f32 %v3701, 0.0
        %v3710 = vmax.f32 %v3702, 0.0
        %s3711 = scalar_lea.vmem [#allocation3], 16
        %3712 = vst.msk [vmem:[%s3711 + $0x1] sm:$0xff] %vm495, %v3703
        %3713 = vst.msk [vmem:[%s3711 + $0x11] sm:$0xff] %vm495, %v3704
        %3714 = vst.msk [vmem:[%s3711 + $0x21] sm:$0xff] %vm495, %v3705
        %3715 = vst.msk [vmem:[%s3711 + $0x31] sm:$0xff] %vm495, %v3706
        %3716 = vst.msk [vmem:[%s3711 + $0x41] sm:$0xff] %vm495, %v3707
        %3717 = vst.msk [vmem:[%s3711 + $0x51] sm:$0xff] %vm495, %v3708
        %3718 = vst.msk [vmem:[%s3711 + $0x61] sm:$0xff] %vm495, %v3709
        %3719 = vst.msk [vmem:[%s3711 + $0x71] sm:$0xff] %vm495, %v3710
        %v3720 = vld [vmem:[#allocation3] sm:$0xff]
        %v3721 = vld [vmem:[#allocation3 + $0x10] sm:$0xff]
        %v3722 = vld [vmem:[#allocation3 + $0x20] sm:$0xff]
        %v3723 = vld [vmem:[#allocation3 + $0x30] sm:$0xff]
        %v3724 = vld [vmem:[#allocation3 + $0x40] sm:$0xff]
        %v3725 = vld [vmem:[#allocation3 + $0x50] sm:$0xff]
        %v3726 = vld [vmem:[#allocation3 + $0x60] sm:$0xff]
        %v3727 = vld [vmem:[#allocation3 + $0x70] sm:$0xff]
        %v3728 = vpack.c.bf16 %v3721, %v3720
        %v3729 = vpack.c.bf16 %v3723, %v3722
        %v3730 = vpack.c.bf16 %v3725, %v3724
        %v3731 = vpack.c.bf16 %v3727, %v3726
        %v3732 = vld [vmem:[%s4] sm:$0xf]
        %v3733 = vld [vmem:[%s4 + $0x4] sm:$0xf]
        %v3734 = vld [vmem:[%s4 + $0x8] sm:$0xf]
        %v3735 = vld [vmem:[%s4 + $0xc] sm:$0xf]
        %v3736 = vld [vmem:[#allocation3 + $0x1] sm:$0xff]
        %v3737 = vld [vmem:[#allocation3 + $0x11] sm:$0xff]
        %v3738 = vld [vmem:[#allocation3 + $0x21] sm:$0xff]
        %v3739 = vld [vmem:[#allocation3 + $0x31] sm:$0xff]
        %v3740 = vld [vmem:[#allocation3 + $0x41] sm:$0xff]
        %v3741 = vld [vmem:[#allocation3 + $0x51] sm:$0xff]
        %v3742 = vld [vmem:[#allocation3 + $0x61] sm:$0xff]
        %v3743 = vld [vmem:[#allocation3 + $0x71] sm:$0xff]
        %v3744 = vpack.c.bf16 %v3737, %v3736
        %v3745 = vpack.c.bf16 %v3739, %v3738
        %v3746 = vpack.c.bf16 %v3741, %v3740
        %v3747 = vpack.c.bf16 %v3743, %v3742
        %s3748 = scalar_lea.vmem %s4, 16
        %v3749 = vld [vmem:[%s3748] sm:$0xf]
        %v3750 = vld [vmem:[%s3748 + $0x4] sm:$0xf]
        %v3751 = vld [vmem:[%s3748 + $0x8] sm:$0xf]
        %v3752 = vld [vmem:[%s3748 + $0xc] sm:$0xf]
        %v3757 = vunpack.c.l.b16 %v3749
        %v3758 = vunpack.c.l.b16 %v3750
        %v3759 = vunpack.c.l.b16 %v3751
        %v3760 = vunpack.c.l.b16 %v3752
        %v3761 = vpack.c.b16 %v3758, %v3757
        %v3762 = vpack.c.b16 %v3760, %v3759
        %v3766 = vsel %vm495, %v3744, 0
        %v3769 = vsel %vm495, %v3745, 0
        %v3772 = vsel %vm495, %v3746, 0
        %v3775 = vsel %vm495, %v3747, 0
        %3777 = vmatprep.subr.bf16.mxu0 0
        %3778 = vmatpush1.bf16.msra.mxu0 0
        %3779 = vmatprep.subr.bf16.mxu0 0
        %3780 = vmatpush1.bf16.msra.mxu0 0
        %3781 = vmatprep.subr.bf16.mxu0 0
        %3782 = vmatpush1.bf16.msra.mxu0 0
        %3783 = vmatprep.subr.bf16.mxu0 0
        %3784 = vmatpush1.bf16.msra.mxu0 0
        %3785 = vmatprep.subr.bf16.mxu0 0
        %3786 = vmatpush1.bf16.msra.mxu0 0
        %3787 = vmatprep.subr.bf16.mxu0 0
        %3788 = vmatpush1.bf16.msra.mxu0 0
        %3789 = vmatprep.subr.bf16.mxu0 0
        %3790 = vmatpush1.bf16.msra.mxu0 %v3762
        %3791 = vmatprep.subr.bf16.mxu0 0
        %3792 = vmatpush1.bf16.msra.mxu0 %v3761
        %3793 = vmatprep.subr.bf16.mxu0 0
        %3794 = vmatpush2.bf16.msra.mxu0 0
        %3795 = vmatprep.subr.bf16.mxu0 0
        %3796 = vmatpush2.bf16.msra.mxu0 0
        %3797 = vmatprep.subr.bf16.mxu0 0
        %3798 = vmatpush2.bf16.msra.mxu0 0
        %3799 = vmatprep.subr.bf16.mxu0 0
        %3800 = vmatpush2.bf16.msra.mxu0 0
        %3801 = vmatprep.subr.bf16.mxu0 0
        %3802 = vmatpush2.bf16.msra.mxu0 0
        %3803 = vmatprep.subr.bf16.mxu0 0
        %3804 = vmatpush2.bf16.msra.mxu0 0
        %3805 = vmatprep.subr.bf16.mxu0 0
        %3806 = vmatpush2.bf16.msra.mxu0 0
        %3807 = vmatprep.subr.bf16.mxu0 0
        %3808 = vmatpush2.bf16.msra.mxu0 0
        %3809 = vmatprep.mubr.bf16.mxu0 0
        %3810 = vmatmul.mubr.bf16.gmra.mxu0 %v3766
        %v3811 = vpop.f32.mrf.mxu0
        %v3812 = vadd.f32 0.0, %v3811
        %v3813 = vpop.f32.mrf.mxu0
        %v3814 = vpop.f32.mrf.mxu0
        %v3815 = vadd.f32 0.0, %v3814
        %v3816 = vpop.f32.mrf.mxu0
        %3817 = vmatprep.mubr.bf16.mxu0 0
        %3818 = vmatmul.mubr.bf16.gmra.mxu0 %v3769
        %v3819 = vpop.f32.mrf.mxu0
        %v3820 = vadd.f32 0.0, %v3819
        %v3821 = vpop.f32.mrf.mxu0
        %v3822 = vpop.f32.mrf.mxu0
        %v3823 = vadd.f32 0.0, %v3822
        %v3824 = vpop.f32.mrf.mxu0
        %3825 = vmatprep.mubr.bf16.mxu0 0
        %3826 = vmatmul.mubr.bf16.gmra.mxu0 %v3772
        %v3827 = vpop.f32.mrf.mxu0
        %v3828 = vadd.f32 0.0, %v3827
        %v3829 = vpop.f32.mrf.mxu0
        %v3830 = vpop.f32.mrf.mxu0
        %v3831 = vadd.f32 0.0, %v3830
        %v3832 = vpop.f32.mrf.mxu0
        %3833 = vmatprep.mubr.bf16.mxu0 0
        %3834 = vmatmul.mubr.bf16.gmra.mxu0 %v3775
        %v3835 = vpop.f32.mrf.mxu0
        %v3836 = vadd.f32 0.0, %v3835
        %v3837 = vpop.f32.mrf.mxu0
        %v3838 = vpop.f32.mrf.mxu0
        %v3839 = vadd.f32 0.0, %v3838
        %v3840 = vpop.f32.mrf.mxu0
        %3841 = vdwg.mxu0
        %v3846 = vunpack.c.l.b16 %v3732
        %v3847 = vunpack.c.l.b16 %v3733
        %v3848 = vunpack.c.l.b16 %v3734
        %v3849 = vunpack.c.l.b16 %v3735
        %v3850 = vpack.c.b16 %v3847, %v3846
        %v3851 = vpack.c.b16 %v3849, %v3848
        %v3855 = vsel %vm495, %v3728, 0
        %v3858 = vsel %vm495, %v3729, 0
        %v3861 = vsel %vm495, %v3730, 0
        %v3864 = vsel %vm495, %v3731, 0
        %3866 = vmatprep.subr.bf16.mxu0 0
        %3867 = vmatpush1.bf16.msra.mxu0 0
        %3868 = vmatprep.subr.bf16.mxu0 0
        %3869 = vmatpush1.bf16.msra.mxu0 0
        %3870 = vmatprep.subr.bf16.mxu0 0
        %3871 = vmatpush1.bf16.msra.mxu0 0
        %3872 = vmatprep.subr.bf16.mxu0 0
        %3873 = vmatpush1.bf16.msra.mxu0 0
        %3874 = vmatprep.subr.bf16.mxu0 0
        %3875 = vmatpush1.bf16.msra.mxu0 0
        %3876 = vmatprep.subr.bf16.mxu0 0
        %3877 = vmatpush1.bf16.msra.mxu0 0
        %3878 = vmatprep.subr.bf16.mxu0 0
        %3879 = vmatpush1.bf16.msra.mxu0 %v3851
        %3880 = vmatprep.subr.bf16.mxu0 0
        %3881 = vmatpush1.bf16.msra.mxu0 %v3850
        %3882 = vmatprep.subr.bf16.mxu0 0
        %3883 = vmatpush2.bf16.msra.mxu0 0
        %3884 = vmatprep.subr.bf16.mxu0 0
        %3885 = vmatpush2.bf16.msra.mxu0 0
        %3886 = vmatprep.subr.bf16.mxu0 0
        %3887 = vmatpush2.bf16.msra.mxu0 0
        %3888 = vmatprep.subr.bf16.mxu0 0
        %3889 = vmatpush2.bf16.msra.mxu0 0
        %3890 = vmatprep.subr.bf16.mxu0 0
        %3891 = vmatpush2.bf16.msra.mxu0 0
        %3892 = vmatprep.subr.bf16.mxu0 0
        %3893 = vmatpush2.bf16.msra.mxu0 0
        %3894 = vmatprep.subr.bf16.mxu0 0
        %3895 = vmatpush2.bf16.msra.mxu0 0
        %3896 = vmatprep.subr.bf16.mxu0 0
        %3897 = vmatpush2.bf16.msra.mxu0 0
        %3898 = vmatprep.mubr.bf16.mxu0 0
        %3899 = vmatmul.mubr.bf16.gmra.mxu0 %v3855
        %v3900 = vpop.f32.mrf.mxu0
        %v3901 = vadd.f32 %v3812, %v3900
        %v3902 = vpop.f32.mrf.mxu0
        %v3903 = vpop.f32.mrf.mxu0
        %v3904 = vadd.f32 %v3815, %v3903
        %v3905 = vpop.f32.mrf.mxu0
        %3906 = vmatprep.mubr.bf16.mxu0 0
        %3907 = vmatmul.mubr.bf16.gmra.mxu0 %v3858
        %v3908 = vpop.f32.mrf.mxu0
        %v3909 = vadd.f32 %v3820, %v3908
        %v3910 = vpop.f32.mrf.mxu0
        %v3911 = vpop.f32.mrf.mxu0
        %v3912 = vadd.f32 %v3823, %v3911
        %v3913 = vpop.f32.mrf.mxu0
        %3914 = vmatprep.mubr.bf16.mxu0 0
        %3915 = vmatmul.mubr.bf16.gmra.mxu0 %v3861
        %v3916 = vpop.f32.mrf.mxu0
        %v3917 = vadd.f32 %v3828, %v3916
        %v3918 = vpop.f32.mrf.mxu0
        %v3919 = vpop.f32.mrf.mxu0
        %v3920 = vadd.f32 %v3831, %v3919
        %v3921 = vpop.f32.mrf.mxu0
        %3922 = vmatprep.mubr.bf16.mxu0 0
        %3923 = vmatmul.mubr.bf16.gmra.mxu0 %v3864
        %v3924 = vpop.f32.mrf.mxu0
        %v3925 = vadd.f32 %v3836, %v3924
        %v3926 = vpop.f32.mrf.mxu0
        %v3927 = vpop.f32.mrf.mxu0
        %v3928 = vadd.f32 %v3839, %v3927
        %v3929 = vpop.f32.mrf.mxu0
        %3930 = vdwg.mxu0
        %v3931 = vld [vmem:[#allocation3 + $0x2] sm:$0xff]
        %v3932 = vld [vmem:[#allocation3 + $0x12] sm:$0xff]
        %v3933 = vld [vmem:[#allocation3 + $0x22] sm:$0xff]
        %v3934 = vld [vmem:[#allocation3 + $0x32] sm:$0xff]
        %v3935 = vld [vmem:[#allocation3 + $0x42] sm:$0xff]
        %v3936 = vld [vmem:[#allocation3 + $0x52] sm:$0xff]
        %v3937 = vld [vmem:[#allocation3 + $0x62] sm:$0xff]
        %v3938 = vld [vmem:[#allocation3 + $0x72] sm:$0xff]
        %v3939 = vpack.c.bf16 %v3932, %v3931
        %v3940 = vpack.c.bf16 %v3934, %v3933
        %v3941 = vpack.c.bf16 %v3936, %v3935
        %v3942 = vpack.c.bf16 %v3938, %v3937
        %s3943 = scalar_lea.vmem %s4, 32
        %v3944 = vld [vmem:[%s3943] sm:$0xf]
        %v3945 = vld [vmem:[%s3943 + $0x4] sm:$0xf]
        %v3946 = vld [vmem:[%s3943 + $0x8] sm:$0xf]
        %v3947 = vld [vmem:[%s3943 + $0xc] sm:$0xf]
        %v3952 = vunpack.c.l.b16 %v3944
        %v3953 = vunpack.c.l.b16 %v3945
        %v3954 = vunpack.c.l.b16 %v3946
        %v3955 = vunpack.c.l.b16 %v3947
        %v3956 = vpack.c.b16 %v3953, %v3952
        %v3957 = vpack.c.b16 %v3955, %v3954
        %v3961 = vsel %vm495, %v3939, 0
        %v3964 = vsel %vm495, %v3940, 0
        %v3967 = vsel %vm495, %v3941, 0
        %v3970 = vsel %vm495, %v3942, 0
        %3972 = vmatprep.subr.bf16.mxu0 0
        %3973 = vmatpush1.bf16.msra.mxu0 0
        %3974 = vmatprep.subr.bf16.mxu0 0
        %3975 = vmatpush1.bf16.msra.mxu0 0
        %3976 = vmatprep.subr.bf16.mxu0 0
        %3977 = vmatpush1.bf16.msra.mxu0 0
        %3978 = vmatprep.subr.bf16.mxu0 0
        %3979 = vmatpush1.bf16.msra.mxu0 0
        %3980 = vmatprep.subr.bf16.mxu0 0
        %3981 = vmatpush1.bf16.msra.mxu0 0
        %3982 = vmatprep.subr.bf16.mxu0 0
        %3983 = vmatpush1.bf16.msra.mxu0 0
        %3984 = vmatprep.subr.bf16.mxu0 0
        %3985 = vmatpush1.bf16.msra.mxu0 %v3957
        %3986 = vmatprep.subr.bf16.mxu0 0
        %3987 = vmatpush1.bf16.msra.mxu0 %v3956
        %3988 = vmatprep.subr.bf16.mxu0 0
        %3989 = vmatpush2.bf16.msra.mxu0 0
        %3990 = vmatprep.subr.bf16.mxu0 0
        %3991 = vmatpush2.bf16.msra.mxu0 0
        %3992 = vmatprep.subr.bf16.mxu0 0
        %3993 = vmatpush2.bf16.msra.mxu0 0
        %3994 = vmatprep.subr.bf16.mxu0 0
        %3995 = vmatpush2.bf16.msra.mxu0 0
        %3996 = vmatprep.subr.bf16.mxu0 0
        %3997 = vmatpush2.bf16.msra.mxu0 0
        %3998 = vmatprep.subr.bf16.mxu0 0
        %3999 = vmatpush2.bf16.msra.mxu0 0
        %4000 = vmatprep.subr.bf16.mxu0 0
        %4001 = vmatpush2.bf16.msra.mxu0 0
        %4002 = vmatprep.subr.bf16.mxu0 0
        %4003 = vmatpush2.bf16.msra.mxu0 0
        %4004 = vmatprep.mubr.bf16.mxu0 0
        %4005 = vmatmul.mubr.bf16.gmra.mxu0 %v3961
        %v4006 = vpop.f32.mrf.mxu0
        %v4007 = vadd.f32 0.0, %v4006
        %v4008 = vpop.f32.mrf.mxu0
        %v4009 = vpop.f32.mrf.mxu0
        %v4010 = vadd.f32 0.0, %v4009
        %v4011 = vpop.f32.mrf.mxu0
        %4012 = vmatprep.mubr.bf16.mxu0 0
        %4013 = vmatmul.mubr.bf16.gmra.mxu0 %v3964
        %v4014 = vpop.f32.mrf.mxu0
        %v4015 = vadd.f32 0.0, %v4014
        %v4016 = vpop.f32.mrf.mxu0
        %v4017 = vpop.f32.mrf.mxu0
        %v4018 = vadd.f32 0.0, %v4017
        %v4019 = vpop.f32.mrf.mxu0
        %4020 = vmatprep.mubr.bf16.mxu0 0
        %4021 = vmatmul.mubr.bf16.gmra.mxu0 %v3967
        %v4022 = vpop.f32.mrf.mxu0
        %v4023 = vadd.f32 0.0, %v4022
        %v4024 = vpop.f32.mrf.mxu0
        %v4025 = vpop.f32.mrf.mxu0
        %v4026 = vadd.f32 0.0, %v4025
        %v4027 = vpop.f32.mrf.mxu0
        %4028 = vmatprep.mubr.bf16.mxu0 0
        %4029 = vmatmul.mubr.bf16.gmra.mxu0 %v3970
        %v4030 = vpop.f32.mrf.mxu0
        %v4031 = vadd.f32 0.0, %v4030
        %v4032 = vpop.f32.mrf.mxu0
        %v4033 = vpop.f32.mrf.mxu0
        %v4034 = vadd.f32 0.0, %v4033
        %v4035 = vpop.f32.mrf.mxu0
        %4036 = vdwg.mxu0
        %v4037 = vadd.f32 %v3901, %v4007
        %v4038 = vadd.f32 %v3904, %v4010
        %v4039 = vadd.f32 %v3909, %v4015
        %v4040 = vadd.f32 %v3912, %v4018
        %v4041 = vadd.f32 %v3917, %v4023
        %v4042 = vadd.f32 %v3920, %v4026
        %v4043 = vadd.f32 %v3925, %v4031
        %v4044 = vadd.f32 %v3928, %v4034
        %v4045 = vld [vmem:[%s3711] sm:$0xff]
        %v4046 = vld [vmem:[%s3711 + $0x10] sm:$0xff]
        %v4047 = vld [vmem:[%s3711 + $0x20] sm:$0xff]
        %v4048 = vld [vmem:[%s3711 + $0x30] sm:$0xff]
        %v4049 = vld [vmem:[%s3711 + $0x40] sm:$0xff]
        %v4050 = vld [vmem:[%s3711 + $0x50] sm:$0xff]
        %v4051 = vld [vmem:[%s3711 + $0x60] sm:$0xff]
        %v4052 = vld [vmem:[%s3711 + $0x70] sm:$0xff]
        %v4053 = vpack.c.bf16 %v4046, %v4045
        %v4054 = vpack.c.bf16 %v4048, %v4047
        %v4055 = vpack.c.bf16 %v4050, %v4049
        %v4056 = vpack.c.bf16 %v4052, %v4051
        %s4057 = scalar_lea.vmem %s4, 48
        %v4058 = vld [vmem:[%s4057] sm:$0xf]
        %v4059 = vld [vmem:[%s4057 + $0x4] sm:$0xf]
        %v4060 = vld [vmem:[%s4057 + $0x8] sm:$0xf]
        %v4061 = vld [vmem:[%s4057 + $0xc] sm:$0xf]
        %v4066 = vunpack.c.l.b16 %v4058
        %v4067 = vunpack.c.l.b16 %v4059
        %v4068 = vunpack.c.l.b16 %v4060
        %v4069 = vunpack.c.l.b16 %v4061
        %v4070 = vpack.c.b16 %v4067, %v4066
        %v4071 = vpack.c.b16 %v4069, %v4068
        %v4075 = vsel %vm495, %v4053, 0
        %v4078 = vsel %vm495, %v4054, 0
        %v4081 = vsel %vm495, %v4055, 0
        %v4084 = vsel %vm495, %v4056, 0
        %4086 = vmatprep.subr.bf16.mxu0 0
        %4087 = vmatpush1.bf16.msra.mxu0 0
        %4088 = vmatprep.subr.bf16.mxu0 0
        %4089 = vmatpush1.bf16.msra.mxu0 0
        %4090 = vmatprep.subr.bf16.mxu0 0
        %4091 = vmatpush1.bf16.msra.mxu0 0
        %4092 = vmatprep.subr.bf16.mxu0 0
        %4093 = vmatpush1.bf16.msra.mxu0 0
        %4094 = vmatprep.subr.bf16.mxu0 0
        %4095 = vmatpush1.bf16.msra.mxu0 0
        %4096 = vmatprep.subr.bf16.mxu0 0
        %4097 = vmatpush1.bf16.msra.mxu0 0
        %4098 = vmatprep.subr.bf16.mxu0 0
        %4099 = vmatpush1.bf16.msra.mxu0 %v4071
        %4100 = vmatprep.subr.bf16.mxu0 0
        %4101 = vmatpush1.bf16.msra.mxu0 %v4070
        %4102 = vmatprep.subr.bf16.mxu0 0
        %4103 = vmatpush2.bf16.msra.mxu0 0
        %4104 = vmatprep.subr.bf16.mxu0 0
        %4105 = vmatpush2.bf16.msra.mxu0 0
        %4106 = vmatprep.subr.bf16.mxu0 0
        %4107 = vmatpush2.bf16.msra.mxu0 0
        %4108 = vmatprep.subr.bf16.mxu0 0
        %4109 = vmatpush2.bf16.msra.mxu0 0
        %4110 = vmatprep.subr.bf16.mxu0 0
        %4111 = vmatpush2.bf16.msra.mxu0 0
        %4112 = vmatprep.subr.bf16.mxu0 0
        %4113 = vmatpush2.bf16.msra.mxu0 0
        %4114 = vmatprep.subr.bf16.mxu0 0
        %4115 = vmatpush2.bf16.msra.mxu0 0
        %4116 = vmatprep.subr.bf16.mxu0 0
        %4117 = vmatpush2.bf16.msra.mxu0 0
        %4118 = vmatprep.mubr.bf16.mxu0 0
        %4119 = vmatmul.mubr.bf16.gmra.mxu0 %v4075
        %v4120 = vpop.f32.mrf.mxu0
        %v4121 = vadd.f32 0.0, %v4120
        %v4122 = vpop.f32.mrf.mxu0
        %v4123 = vpop.f32.mrf.mxu0
        %v4124 = vadd.f32 0.0, %v4123
        %v4125 = vpop.f32.mrf.mxu0
        %4126 = vmatprep.mubr.bf16.mxu0 0
        %4127 = vmatmul.mubr.bf16.gmra.mxu0 %v4078
        %v4128 = vpop.f32.mrf.mxu0
        %v4129 = vadd.f32 0.0, %v4128
        %v4130 = vpop.f32.mrf.mxu0
        %v4131 = vpop.f32.mrf.mxu0
        %v4132 = vadd.f32 0.0, %v4131
        %v4133 = vpop.f32.mrf.mxu0
        %4134 = vmatprep.mubr.bf16.mxu0 0
        %4135 = vmatmul.mubr.bf16.gmra.mxu0 %v4081
        %v4136 = vpop.f32.mrf.mxu0
        %v4137 = vadd.f32 0.0, %v4136
        %v4138 = vpop.f32.mrf.mxu0
        %v4139 = vpop.f32.mrf.mxu0
        %v4140 = vadd.f32 0.0, %v4139
        %v4141 = vpop.f32.mrf.mxu0
        %4142 = vmatprep.mubr.bf16.mxu0 0
        %4143 = vmatmul.mubr.bf16.gmra.mxu0 %v4084
        %v4144 = vpop.f32.mrf.mxu0
        %v4145 = vadd.f32 0.0, %v4144
        %v4146 = vpop.f32.mrf.mxu0
        %v4147 = vpop.f32.mrf.mxu0
        %v4148 = vadd.f32 0.0, %v4147
        %v4149 = vpop.f32.mrf.mxu0
        %4150 = vdwg.mxu0
        %v4151 = vadd.f32 %v4037, %v4121
        %v4152 = vadd.f32 %v4038, %v4124
        %v4153 = vadd.f32 %v4039, %v4129
        %v4154 = vadd.f32 %v4040, %v4132
        %v4155 = vadd.f32 %v4041, %v4137
        %v4156 = vadd.f32 %v4042, %v4140
        %v4157 = vadd.f32 %v4043, %v4145
        %v4158 = vadd.f32 %v4044, %v4148
        %v4159 = vld [vmem:[%s3711 + $0x1] sm:$0xff]
        %v4160 = vld [vmem:[%s3711 + $0x11] sm:$0xff]
        %v4161 = vld [vmem:[%s3711 + $0x21] sm:$0xff]
        %v4162 = vld [vmem:[%s3711 + $0x31] sm:$0xff]
        %v4163 = vld [vmem:[%s3711 + $0x41] sm:$0xff]
        %v4164 = vld [vmem:[%s3711 + $0x51] sm:$0xff]
        %v4165 = vld [vmem:[%s3711 + $0x61] sm:$0xff]
        %v4166 = vld [vmem:[%s3711 + $0x71] sm:$0xff]
        %v4167 = vpack.c.bf16 %v4160, %v4159
        %v4168 = vpack.c.bf16 %v4162, %v4161
        %v4169 = vpack.c.bf16 %v4164, %v4163
        %v4170 = vpack.c.bf16 %v4166, %v4165
        %s4171 = scalar_lea.vmem %s4, 64
        %v4172 = vld [vmem:[%s4171] sm:$0xf]
        %v4173 = vld [vmem:[%s4171 + $0x4] sm:$0xf]
        %v4174 = vld [vmem:[%s4171 + $0x8] sm:$0xf]
        %v4175 = vld [vmem:[%s4171 + $0xc] sm:$0xf]
        %v4180 = vunpack.c.l.b16 %v4172
        %v4181 = vunpack.c.l.b16 %v4173
        %v4182 = vunpack.c.l.b16 %v4174
        %v4183 = vunpack.c.l.b16 %v4175
        %v4184 = vpack.c.b16 %v4181, %v4180
        %v4185 = vpack.c.b16 %v4183, %v4182
        %v4189 = vsel %vm495, %v4167, 0
        %v4192 = vsel %vm495, %v4168, 0
        %v4195 = vsel %vm495, %v4169, 0
        %v4198 = vsel %vm495, %v4170, 0
        %4200 = vmatprep.subr.bf16.mxu0 0
        %4201 = vmatpush1.bf16.msra.mxu0 0
        %4202 = vmatprep.subr.bf16.mxu0 0
        %4203 = vmatpush1.bf16.msra.mxu0 0
        %4204 = vmatprep.subr.bf16.mxu0 0
        %4205 = vmatpush1.bf16.msra.mxu0 0
        %4206 = vmatprep.subr.bf16.mxu0 0
        %4207 = vmatpush1.bf16.msra.mxu0 0
        %4208 = vmatprep.subr.bf16.mxu0 0
        %4209 = vmatpush1.bf16.msra.mxu0 0
        %4210 = vmatprep.subr.bf16.mxu0 0
        %4211 = vmatpush1.bf16.msra.mxu0 0
        %4212 = vmatprep.subr.bf16.mxu0 0
        %4213 = vmatpush1.bf16.msra.mxu0 %v4185
        %4214 = vmatprep.subr.bf16.mxu0 0
        %4215 = vmatpush1.bf16.msra.mxu0 %v4184
        %4216 = vmatprep.subr.bf16.mxu0 0
        %4217 = vmatpush2.bf16.msra.mxu0 0
        %4218 = vmatprep.subr.bf16.mxu0 0
        %4219 = vmatpush2.bf16.msra.mxu0 0
        %4220 = vmatprep.subr.bf16.mxu0 0
        %4221 = vmatpush2.bf16.msra.mxu0 0
        %4222 = vmatprep.subr.bf16.mxu0 0
        %4223 = vmatpush2.bf16.msra.mxu0 0
        %4224 = vmatprep.subr.bf16.mxu0 0
        %4225 = vmatpush2.bf16.msra.mxu0 0
        %4226 = vmatprep.subr.bf16.mxu0 0
        %4227 = vmatpush2.bf16.msra.mxu0 0
        %4228 = vmatprep.subr.bf16.mxu0 0
        %4229 = vmatpush2.bf16.msra.mxu0 0
        %4230 = vmatprep.subr.bf16.mxu0 0
        %4231 = vmatpush2.bf16.msra.mxu0 0
        %4232 = vmatprep.mubr.bf16.mxu0 0
        %4233 = vmatmul.mubr.bf16.gmra.mxu0 %v4189
        %v4234 = vpop.f32.mrf.mxu0
        %v4235 = vadd.f32 0.0, %v4234
        %v4236 = vpop.f32.mrf.mxu0
        %v4237 = vpop.f32.mrf.mxu0
        %v4238 = vadd.f32 0.0, %v4237
        %v4239 = vpop.f32.mrf.mxu0
        %4240 = vmatprep.mubr.bf16.mxu0 0
        %4241 = vmatmul.mubr.bf16.gmra.mxu0 %v4192
        %v4242 = vpop.f32.mrf.mxu0
        %v4243 = vadd.f32 0.0, %v4242
        %v4244 = vpop.f32.mrf.mxu0
        %v4245 = vpop.f32.mrf.mxu0
        %v4246 = vadd.f32 0.0, %v4245
        %v4247 = vpop.f32.mrf.mxu0
        %4248 = vmatprep.mubr.bf16.mxu0 0
        %4249 = vmatmul.mubr.bf16.gmra.mxu0 %v4195
        %v4250 = vpop.f32.mrf.mxu0
        %v4251 = vadd.f32 0.0, %v4250
        %v4252 = vpop.f32.mrf.mxu0
        %v4253 = vpop.f32.mrf.mxu0
        %v4254 = vadd.f32 0.0, %v4253
        %v4255 = vpop.f32.mrf.mxu0
        %4256 = vmatprep.mubr.bf16.mxu0 0
        %4257 = vmatmul.mubr.bf16.gmra.mxu0 %v4198
        %v4258 = vpop.f32.mrf.mxu0
        %v4259 = vadd.f32 0.0, %v4258
        %v4260 = vpop.f32.mrf.mxu0
        %v4261 = vpop.f32.mrf.mxu0
        %v4262 = vadd.f32 0.0, %v4261
        %v4263 = vpop.f32.mrf.mxu0
        %4264 = vdwg.mxu0
        %v4265 = vadd.f32 %v4151, %v4235
        %v4266 = vadd.f32 %v4152, %v4238
        %v4267 = vadd.f32 %v4153, %v4243
        %v4268 = vadd.f32 %v4154, %v4246
        %v4269 = vadd.f32 %v4155, %v4251
        %v4270 = vadd.f32 %v4156, %v4254
        %v4271 = vadd.f32 %v4157, %v4259
        %v4272 = vadd.f32 %v4158, %v4262
        %v4273 = vld [vmem:[%s3711 + $0x2] sm:$0xff]
        %v4274 = vld [vmem:[%s3711 + $0x12] sm:$0xff]
        %v4275 = vld [vmem:[%s3711 + $0x22] sm:$0xff]
        %v4276 = vld [vmem:[%s3711 + $0x32] sm:$0xff]
        %v4277 = vld [vmem:[%s3711 + $0x42] sm:$0xff]
        %v4278 = vld [vmem:[%s3711 + $0x52] sm:$0xff]
        %v4279 = vld [vmem:[%s3711 + $0x62] sm:$0xff]
        %v4280 = vld [vmem:[%s3711 + $0x72] sm:$0xff]
        %v4281 = vpack.c.bf16 %v4274, %v4273
        %v4282 = vpack.c.bf16 %v4276, %v4275
        %v4283 = vpack.c.bf16 %v4278, %v4277
        %v4284 = vpack.c.bf16 %v4280, %v4279
        %s4285 = scalar_lea.vmem %s4, 80
        %v4286 = vld [vmem:[%s4285] sm:$0xf]
        %v4287 = vld [vmem:[%s4285 + $0x4] sm:$0xf]
        %v4288 = vld [vmem:[%s4285 + $0x8] sm:$0xf]
        %v4289 = vld [vmem:[%s4285 + $0xc] sm:$0xf]
        %v4294 = vunpack.c.l.b16 %v4286
        %v4295 = vunpack.c.l.b16 %v4287
        %v4296 = vunpack.c.l.b16 %v4288
        %v4297 = vunpack.c.l.b16 %v4289
        %v4298 = vpack.c.b16 %v4295, %v4294
        %v4299 = vpack.c.b16 %v4297, %v4296
        %v4303 = vsel %vm495, %v4281, 0
        %v4306 = vsel %vm495, %v4282, 0
        %v4309 = vsel %vm495, %v4283, 0
        %v4312 = vsel %vm495, %v4284, 0
        %4314 = vmatprep.subr.bf16.mxu0 0
        %4315 = vmatpush1.bf16.msra.mxu0 0
        %4316 = vmatprep.subr.bf16.mxu0 0
        %4317 = vmatpush1.bf16.msra.mxu0 0
        %4318 = vmatprep.subr.bf16.mxu0 0
        %4319 = vmatpush1.bf16.msra.mxu0 0
        %4320 = vmatprep.subr.bf16.mxu0 0
        %4321 = vmatpush1.bf16.msra.mxu0 0
        %4322 = vmatprep.subr.bf16.mxu0 0
        %4323 = vmatpush1.bf16.msra.mxu0 0
        %4324 = vmatprep.subr.bf16.mxu0 0
        %4325 = vmatpush1.bf16.msra.mxu0 0
        %4326 = vmatprep.subr.bf16.mxu0 0
        %4327 = vmatpush1.bf16.msra.mxu0 %v4299
        %4328 = vmatprep.subr.bf16.mxu0 0
        %4329 = vmatpush1.bf16.msra.mxu0 %v4298
        %4330 = vmatprep.subr.bf16.mxu0 0
        %4331 = vmatpush2.bf16.msra.mxu0 0
        %4332 = vmatprep.subr.bf16.mxu0 0
        %4333 = vmatpush2.bf16.msra.mxu0 0
        %4334 = vmatprep.subr.bf16.mxu0 0
        %4335 = vmatpush2.bf16.msra.mxu0 0
        %4336 = vmatprep.subr.bf16.mxu0 0
        %4337 = vmatpush2.bf16.msra.mxu0 0
        %4338 = vmatprep.subr.bf16.mxu0 0
        %4339 = vmatpush2.bf16.msra.mxu0 0
        %4340 = vmatprep.subr.bf16.mxu0 0
        %4341 = vmatpush2.bf16.msra.mxu0 0
        %4342 = vmatprep.subr.bf16.mxu0 0
        %4343 = vmatpush2.bf16.msra.mxu0 0
        %4344 = vmatprep.subr.bf16.mxu0 0
        %4345 = vmatpush2.bf16.msra.mxu0 0
        %4346 = vmatprep.mubr.bf16.mxu0 0
        %4347 = vmatmul.mubr.bf16.gmra.mxu0 %v4303
        %v4348 = vpop.f32.mrf.mxu0
        %v4349 = vadd.f32 0.0, %v4348
        %v4350 = vpop.f32.mrf.mxu0
        %v4351 = vpop.f32.mrf.mxu0
        %v4352 = vadd.f32 0.0, %v4351
        %v4353 = vpop.f32.mrf.mxu0
        %4354 = vmatprep.mubr.bf16.mxu0 0
        %4355 = vmatmul.mubr.bf16.gmra.mxu0 %v4306
        %v4356 = vpop.f32.mrf.mxu0
        %v4357 = vadd.f32 0.0, %v4356
        %v4358 = vpop.f32.mrf.mxu0
        %v4359 = vpop.f32.mrf.mxu0
        %v4360 = vadd.f32 0.0, %v4359
        %v4361 = vpop.f32.mrf.mxu0
        %4362 = vmatprep.mubr.bf16.mxu0 0
        %4363 = vmatmul.mubr.bf16.gmra.mxu0 %v4309
        %v4364 = vpop.f32.mrf.mxu0
        %v4365 = vadd.f32 0.0, %v4364
        %v4366 = vpop.f32.mrf.mxu0
        %v4367 = vpop.f32.mrf.mxu0
        %v4368 = vadd.f32 0.0, %v4367
        %v4369 = vpop.f32.mrf.mxu0
        %4370 = vmatprep.mubr.bf16.mxu0 0
        %4371 = vmatmul.mubr.bf16.gmra.mxu0 %v4312
        %v4372 = vpop.f32.mrf.mxu0
        %v4373 = vadd.f32 0.0, %v4372
        %v4374 = vpop.f32.mrf.mxu0
        %v4375 = vpop.f32.mrf.mxu0
        %v4376 = vadd.f32 0.0, %v4375
        %v4377 = vpop.f32.mrf.mxu0
        %4378 = vdwg.mxu0
        %v4379 = vadd.f32 %v4265, %v4349
        %v4380 = vadd.f32 %v4266, %v4352
        %v4381 = vadd.f32 %v4267, %v4357
        %v4382 = vadd.f32 %v4268, %v4360
        %v4383 = vadd.f32 %v4269, %v4365
        %v4384 = vadd.f32 %v4270, %v4368
        %v4385 = vadd.f32 %v4271, %v4373
        %v4386 = vadd.f32 %v4272, %v4376
        %s4387 = scalar_lea.vmem [#allocation3], 32
        %v4388 = vld [vmem:[%s4387] sm:$0xff]
        %v4389 = vld [vmem:[%s4387 + $0x10] sm:$0xff]
        %v4390 = vld [vmem:[%s4387 + $0x20] sm:$0xff]
        %v4391 = vld [vmem:[%s4387 + $0x30] sm:$0xff]
        %v4392 = vld [vmem:[%s4387 + $0x40] sm:$0xff]
        %v4393 = vld [vmem:[%s4387 + $0x50] sm:$0xff]
        %v4394 = vld [vmem:[%s4387 + $0x60] sm:$0xff]
        %v4395 = vld [vmem:[%s4387 + $0x70] sm:$0xff]
        %v4396 = vpack.c.bf16 %v4389, %v4388
        %v4397 = vpack.c.bf16 %v4391, %v4390
        %v4398 = vpack.c.bf16 %v4393, %v4392
        %v4399 = vpack.c.bf16 %v4395, %v4394
        %s4400 = scalar_lea.vmem %s4, 96
        %v4401 = vld [vmem:[%s4400] sm:$0xf]
        %v4402 = vld [vmem:[%s4400 + $0x4] sm:$0xf]
        %v4403 = vld [vmem:[%s4400 + $0x8] sm:$0xf]
        %v4404 = vld [vmem:[%s4400 + $0xc] sm:$0xf]
        %v4409 = vunpack.c.l.b16 %v4401
        %v4410 = vunpack.c.l.b16 %v4402
        %v4411 = vunpack.c.l.b16 %v4403
        %v4412 = vunpack.c.l.b16 %v4404
        %v4413 = vpack.c.b16 %v4410, %v4409
        %v4414 = vpack.c.b16 %v4412, %v4411
        %v4418 = vsel %vm495, %v4396, 0
        %v4421 = vsel %vm495, %v4397, 0
        %v4424 = vsel %vm495, %v4398, 0
        %v4427 = vsel %vm495, %v4399, 0
        %4429 = vmatprep.subr.bf16.mxu0 0
        %4430 = vmatpush1.bf16.msra.mxu0 0
        %4431 = vmatprep.subr.bf16.mxu0 0
        %4432 = vmatpush1.bf16.msra.mxu0 0
        %4433 = vmatprep.subr.bf16.mxu0 0
        %4434 = vmatpush1.bf16.msra.mxu0 0
        %4435 = vmatprep.subr.bf16.mxu0 0
        %4436 = vmatpush1.bf16.msra.mxu0 0
        %4437 = vmatprep.subr.bf16.mxu0 0
        %4438 = vmatpush1.bf16.msra.mxu0 0
        %4439 = vmatprep.subr.bf16.mxu0 0
        %4440 = vmatpush1.bf16.msra.mxu0 0
        %4441 = vmatprep.subr.bf16.mxu0 0
        %4442 = vmatpush1.bf16.msra.mxu0 %v4414
        %4443 = vmatprep.subr.bf16.mxu0 0
        %4444 = vmatpush1.bf16.msra.mxu0 %v4413
        %4445 = vmatprep.subr.bf16.mxu0 0
        %4446 = vmatpush2.bf16.msra.mxu0 0
        %4447 = vmatprep.subr.bf16.mxu0 0
        %4448 = vmatpush2.bf16.msra.mxu0 0
        %4449 = vmatprep.subr.bf16.mxu0 0
        %4450 = vmatpush2.bf16.msra.mxu0 0
        %4451 = vmatprep.subr.bf16.mxu0 0
        %4452 = vmatpush2.bf16.msra.mxu0 0
        %4453 = vmatprep.subr.bf16.mxu0 0
        %4454 = vmatpush2.bf16.msra.mxu0 0
        %4455 = vmatprep.subr.bf16.mxu0 0
        %4456 = vmatpush2.bf16.msra.mxu0 0
        %4457 = vmatprep.subr.bf16.mxu0 0
        %4458 = vmatpush2.bf16.msra.mxu0 0
        %4459 = vmatprep.subr.bf16.mxu0 0
        %4460 = vmatpush2.bf16.msra.mxu0 0
        %4461 = vmatprep.mubr.bf16.mxu0 0
        %4462 = vmatmul.mubr.bf16.gmra.mxu0 %v4418
        %v4463 = vpop.f32.mrf.mxu0
        %v4464 = vadd.f32 0.0, %v4463
        %v4465 = vpop.f32.mrf.mxu0
        %v4466 = vpop.f32.mrf.mxu0
        %v4467 = vadd.f32 0.0, %v4466
        %v4468 = vpop.f32.mrf.mxu0
        %4469 = vmatprep.mubr.bf16.mxu0 0
        %4470 = vmatmul.mubr.bf16.gmra.mxu0 %v4421
        %v4471 = vpop.f32.mrf.mxu0
        %v4472 = vadd.f32 0.0, %v4471
        %v4473 = vpop.f32.mrf.mxu0
        %v4474 = vpop.f32.mrf.mxu0
        %v4475 = vadd.f32 0.0, %v4474
        %v4476 = vpop.f32.mrf.mxu0
        %4477 = vmatprep.mubr.bf16.mxu0 0
        %4478 = vmatmul.mubr.bf16.gmra.mxu0 %v4424
        %v4479 = vpop.f32.mrf.mxu0
        %v4480 = vadd.f32 0.0, %v4479
        %v4481 = vpop.f32.mrf.mxu0
        %v4482 = vpop.f32.mrf.mxu0
        %v4483 = vadd.f32 0.0, %v4482
        %v4484 = vpop.f32.mrf.mxu0
        %4485 = vmatprep.mubr.bf16.mxu0 0
        %4486 = vmatmul.mubr.bf16.gmra.mxu0 %v4427
        %v4487 = vpop.f32.mrf.mxu0
        %v4488 = vadd.f32 0.0, %v4487
        %v4489 = vpop.f32.mrf.mxu0
        %v4490 = vpop.f32.mrf.mxu0
        %v4491 = vadd.f32 0.0, %v4490
        %v4492 = vpop.f32.mrf.mxu0
        %4493 = vdwg.mxu0
        %v4494 = vadd.f32 %v4379, %v4464
        %v4495 = vadd.f32 %v4380, %v4467
        %v4496 = vadd.f32 %v4381, %v4472
        %v4497 = vadd.f32 %v4382, %v4475
        %v4498 = vadd.f32 %v4383, %v4480
        %v4499 = vadd.f32 %v4384, %v4483
        %v4500 = vadd.f32 %v4385, %v4488
        %v4501 = vadd.f32 %v4386, %v4491
        %v4502 = vld [vmem:[%s4387 + $0x1] sm:$0xff]
        %v4503 = vld [vmem:[%s4387 + $0x11] sm:$0xff]
        %v4504 = vld [vmem:[%s4387 + $0x21] sm:$0xff]
        %v4505 = vld [vmem:[%s4387 + $0x31] sm:$0xff]
        %v4506 = vld [vmem:[%s4387 + $0x41] sm:$0xff]
        %v4507 = vld [vmem:[%s4387 + $0x51] sm:$0xff]
        %v4508 = vld [vmem:[%s4387 + $0x61] sm:$0xff]
        %v4509 = vld [vmem:[%s4387 + $0x71] sm:$0xff]
        %v4510 = vpack.c.bf16 %v4503, %v4502
        %v4511 = vpack.c.bf16 %v4505, %v4504
        %v4512 = vpack.c.bf16 %v4507, %v4506
        %v4513 = vpack.c.bf16 %v4509, %v4508
        %s4514 = scalar_lea.vmem %s4, 112
        %v4515 = vld [vmem:[%s4514] sm:$0xf]
        %v4516 = vld [vmem:[%s4514 + $0x4] sm:$0xf]
        %v4517 = vld [vmem:[%s4514 + $0x8] sm:$0xf]
        %v4518 = vld [vmem:[%s4514 + $0xc] sm:$0xf]
        %v4523 = vunpack.c.l.b16 %v4515
        %v4524 = vunpack.c.l.b16 %v4516
        %v4525 = vunpack.c.l.b16 %v4517
        %v4526 = vunpack.c.l.b16 %v4518
        %v4527 = vpack.c.b16 %v4524, %v4523
        %v4528 = vpack.c.b16 %v4526, %v4525
        %v4532 = vsel %vm495, %v4510, 0
        %v4535 = vsel %vm495, %v4511, 0
        %v4538 = vsel %vm495, %v4512, 0
        %v4541 = vsel %vm495, %v4513, 0
        %4543 = vmatprep.subr.bf16.mxu0 0
        %4544 = vmatpush1.bf16.msra.mxu0 0
        %4545 = vmatprep.subr.bf16.mxu0 0
        %4546 = vmatpush1.bf16.msra.mxu0 0
        %4547 = vmatprep.subr.bf16.mxu0 0
        %4548 = vmatpush1.bf16.msra.mxu0 0
        %4549 = vmatprep.subr.bf16.mxu0 0
        %4550 = vmatpush1.bf16.msra.mxu0 0
        %4551 = vmatprep.subr.bf16.mxu0 0
        %4552 = vmatpush1.bf16.msra.mxu0 0
        %4553 = vmatprep.subr.bf16.mxu0 0
        %4554 = vmatpush1.bf16.msra.mxu0 0
        %4555 = vmatprep.subr.bf16.mxu0 0
        %4556 = vmatpush1.bf16.msra.mxu0 %v4528
        %4557 = vmatprep.subr.bf16.mxu0 0
        %4558 = vmatpush1.bf16.msra.mxu0 %v4527
        %4559 = vmatprep.subr.bf16.mxu0 0
        %4560 = vmatpush2.bf16.msra.mxu0 0
        %4561 = vmatprep.subr.bf16.mxu0 0
        %4562 = vmatpush2.bf16.msra.mxu0 0
        %4563 = vmatprep.subr.bf16.mxu0 0
        %4564 = vmatpush2.bf16.msra.mxu0 0
        %4565 = vmatprep.subr.bf16.mxu0 0
        %4566 = vmatpush2.bf16.msra.mxu0 0
        %4567 = vmatprep.subr.bf16.mxu0 0
        %4568 = vmatpush2.bf16.msra.mxu0 0
        %4569 = vmatprep.subr.bf16.mxu0 0
        %4570 = vmatpush2.bf16.msra.mxu0 0
        %4571 = vmatprep.subr.bf16.mxu0 0
        %4572 = vmatpush2.bf16.msra.mxu0 0
        %4573 = vmatprep.subr.bf16.mxu0 0
        %4574 = vmatpush2.bf16.msra.mxu0 0
        %4575 = vmatprep.mubr.bf16.mxu0 0
        %4576 = vmatmul.mubr.bf16.gmra.mxu0 %v4532
        %v4577 = vpop.f32.mrf.mxu0
        %v4578 = vadd.f32 0.0, %v4577
        %v4579 = vpop.f32.mrf.mxu0
        %v4580 = vpop.f32.mrf.mxu0
        %v4581 = vadd.f32 0.0, %v4580
        %v4582 = vpop.f32.mrf.mxu0
        %4583 = vmatprep.mubr.bf16.mxu0 0
        %4584 = vmatmul.mubr.bf16.gmra.mxu0 %v4535
        %v4585 = vpop.f32.mrf.mxu0
        %v4586 = vadd.f32 0.0, %v4585
        %v4587 = vpop.f32.mrf.mxu0
        %v4588 = vpop.f32.mrf.mxu0
        %v4589 = vadd.f32 0.0, %v4588
        %v4590 = vpop.f32.mrf.mxu0
        %4591 = vmatprep.mubr.bf16.mxu0 0
        %4592 = vmatmul.mubr.bf16.gmra.mxu0 %v4538
        %v4593 = vpop.f32.mrf.mxu0
        %v4594 = vadd.f32 0.0, %v4593
        %v4595 = vpop.f32.mrf.mxu0
        %v4596 = vpop.f32.mrf.mxu0
        %v4597 = vadd.f32 0.0, %v4596
        %v4598 = vpop.f32.mrf.mxu0
        %4599 = vmatprep.mubr.bf16.mxu0 0
        %4600 = vmatmul.mubr.bf16.gmra.mxu0 %v4541
        %v4601 = vpop.f32.mrf.mxu0
        %v4602 = vadd.f32 0.0, %v4601
        %v4603 = vpop.f32.mrf.mxu0
        %v4604 = vpop.f32.mrf.mxu0
        %v4605 = vadd.f32 0.0, %v4604
        %v4606 = vpop.f32.mrf.mxu0
        %4607 = vdwg.mxu0
        %v4608 = vadd.f32 %v4494, %v4578
        %v4609 = vadd.f32 %v4495, %v4581
        %v4610 = vadd.f32 %v4496, %v4586
        %v4611 = vadd.f32 %v4497, %v4589
        %v4612 = vadd.f32 %v4498, %v4594
        %v4613 = vadd.f32 %v4499, %v4597
        %v4614 = vadd.f32 %v4500, %v4602
        %v4615 = vadd.f32 %v4501, %v4605
        %v4616 = vld [vmem:[%s4387 + $0x2] sm:$0xff]
        %v4617 = vld [vmem:[%s4387 + $0x12] sm:$0xff]
        %v4618 = vld [vmem:[%s4387 + $0x22] sm:$0xff]
        %v4619 = vld [vmem:[%s4387 + $0x32] sm:$0xff]
        %v4620 = vld [vmem:[%s4387 + $0x42] sm:$0xff]
        %v4621 = vld [vmem:[%s4387 + $0x52] sm:$0xff]
        %v4622 = vld [vmem:[%s4387 + $0x62] sm:$0xff]
        %v4623 = vld [vmem:[%s4387 + $0x72] sm:$0xff]
        %v4624 = vpack.c.bf16 %v4617, %v4616
        %v4625 = vpack.c.bf16 %v4619, %v4618
        %v4626 = vpack.c.bf16 %v4621, %v4620
        %v4627 = vpack.c.bf16 %v4623, %v4622
        %s4628 = scalar_lea.vmem %s4, 128
        %v4629 = vld [vmem:[%s4628] sm:$0xf]
        %v4630 = vld [vmem:[%s4628 + $0x4] sm:$0xf]
        %v4631 = vld [vmem:[%s4628 + $0x8] sm:$0xf]
        %v4632 = vld [vmem:[%s4628 + $0xc] sm:$0xf]
        %v4637 = vunpack.c.l.b16 %v4629
        %v4638 = vunpack.c.l.b16 %v4630
        %v4639 = vunpack.c.l.b16 %v4631
        %v4640 = vunpack.c.l.b16 %v4632
        %v4641 = vpack.c.b16 %v4638, %v4637
        %v4642 = vpack.c.b16 %v4640, %v4639
        %v4646 = vsel %vm495, %v4624, 0
        %v4649 = vsel %vm495, %v4625, 0
        %v4652 = vsel %vm495, %v4626, 0
        %v4655 = vsel %vm495, %v4627, 0
        %4657 = vmatprep.subr.bf16.mxu0 0
        %4658 = vmatpush1.bf16.msra.mxu0 0
        %4659 = vmatprep.subr.bf16.mxu0 0
        %4660 = vmatpush1.bf16.msra.mxu0 0
        %4661 = vmatprep.subr.bf16.mxu0 0
        %4662 = vmatpush1.bf16.msra.mxu0 0
        %4663 = vmatprep.subr.bf16.mxu0 0
        %4664 = vmatpush1.bf16.msra.mxu0 0
        %4665 = vmatprep.subr.bf16.mxu0 0
        %4666 = vmatpush1.bf16.msra.mxu0 0
        %4667 = vmatprep.subr.bf16.mxu0 0
        %4668 = vmatpush1.bf16.msra.mxu0 0
        %4669 = vmatprep.subr.bf16.mxu0 0
        %4670 = vmatpush1.bf16.msra.mxu0 %v4642
        %4671 = vmatprep.subr.bf16.mxu0 0
        %4672 = vmatpush1.bf16.msra.mxu0 %v4641
        %4673 = vmatprep.subr.bf16.mxu0 0
        %4674 = vmatpush2.bf16.msra.mxu0 0
        %4675 = vmatprep.subr.bf16.mxu0 0
        %4676 = vmatpush2.bf16.msra.mxu0 0
        %4677 = vmatprep.subr.bf16.mxu0 0
        %4678 = vmatpush2.bf16.msra.mxu0 0
        %4679 = vmatprep.subr.bf16.mxu0 0
        %4680 = vmatpush2.bf16.msra.mxu0 0
        %4681 = vmatprep.subr.bf16.mxu0 0
        %4682 = vmatpush2.bf16.msra.mxu0 0
        %4683 = vmatprep.subr.bf16.mxu0 0
        %4684 = vmatpush2.bf16.msra.mxu0 0
        %4685 = vmatprep.subr.bf16.mxu0 0
        %4686 = vmatpush2.bf16.msra.mxu0 0
        %4687 = vmatprep.subr.bf16.mxu0 0
        %4688 = vmatpush2.bf16.msra.mxu0 0
        %4689 = vmatprep.mubr.bf16.mxu0 0
        %4690 = vmatmul.mubr.bf16.gmra.mxu0 %v4646
        %v4691 = vpop.f32.mrf.mxu0
        %v4692 = vadd.f32 0.0, %v4691
        %v4693 = vpop.f32.mrf.mxu0
        %v4694 = vpop.f32.mrf.mxu0
        %v4695 = vadd.f32 0.0, %v4694
        %v4696 = vpop.f32.mrf.mxu0
        %4697 = vmatprep.mubr.bf16.mxu0 0
        %4698 = vmatmul.mubr.bf16.gmra.mxu0 %v4649
        %v4699 = vpop.f32.mrf.mxu0
        %v4700 = vadd.f32 0.0, %v4699
        %v4701 = vpop.f32.mrf.mxu0
        %v4702 = vpop.f32.mrf.mxu0
        %v4703 = vadd.f32 0.0, %v4702
        %v4704 = vpop.f32.mrf.mxu0
        %4705 = vmatprep.mubr.bf16.mxu0 0
        %4706 = vmatmul.mubr.bf16.gmra.mxu0 %v4652
        %v4707 = vpop.f32.mrf.mxu0
        %v4708 = vadd.f32 0.0, %v4707
        %v4709 = vpop.f32.mrf.mxu0
        %v4710 = vpop.f32.mrf.mxu0
        %v4711 = vadd.f32 0.0, %v4710
        %v4712 = vpop.f32.mrf.mxu0
        %4713 = vmatprep.mubr.bf16.mxu0 0
        %4714 = vmatmul.mubr.bf16.gmra.mxu0 %v4655
        %v4715 = vpop.f32.mrf.mxu0
        %v4716 = vadd.f32 0.0, %v4715
        %v4717 = vpop.f32.mrf.mxu0
        %v4718 = vpop.f32.mrf.mxu0
        %v4719 = vadd.f32 0.0, %v4718
        %v4720 = vpop.f32.mrf.mxu0
        %4721 = vdwg.mxu0
        %v4722 = vadd.f32 %v4608, %v4692
        %v4723 = vadd.f32 %v4609, %v4695
        %v4724 = vadd.f32 %v4610, %v4700
        %v4725 = vadd.f32 %v4611, %v4703
        %v4726 = vadd.f32 %v4612, %v4708
        %v4727 = vadd.f32 %v4613, %v4711
        %v4728 = vadd.f32 %v4614, %v4716
        %v4729 = vadd.f32 %v4615, %v4719
        %v4730 = vld [vmem:[%s6] sm:$0xff]
        %v4731 = vld [vmem:[%s6 + $0x8] sm:$0xff]
        %vm4732 = vcmask 523264
        %v4734 = vsel %vm4732, %v4730, 0
        %v4737 = vsel %vm4732, %v4731, 0
        %4739 = vmatprep.subr.mxu0 0.0
        %4740 = vmatpush1.msra.mxu0 0.0
        %4741 = vmatprep.subr.mxu0 0.0
        %4742 = vmatpush1.msra.mxu0 0.0
        %4743 = vmatprep.subr.mxu0 0.0
        %4744 = vmatpush1.msra.mxu0 0.0
        %4745 = vmatprep.subr.mxu0 0.0
        %4746 = vmatpush1.msra.mxu0 0.0
        %4747 = vmatprep.subr.mxu0 0.0
        %4748 = vmatpush1.msra.mxu0 0.0
        %4749 = vmatprep.subr.mxu0 0.0
        %4750 = vmatpush1.msra.mxu0 0.0
        %4751 = vmatprep.subr.mxu0 0.0
        %4752 = vmatpush1.msra.mxu0 0.0
        %4753 = vmatprep.subr.mxu0 0.0
        %4754 = vmatpush1.msra.mxu0 0.0
        %4755 = vmatprep.subr.mxu0 0.0
        %4756 = vmatpush1.msra.mxu0 %v4729
        %4757 = vmatprep.subr.mxu0 0.0
        %4758 = vmatpush1.msra.mxu0 %v4728
        %4759 = vmatprep.subr.mxu0 0.0
        %4760 = vmatpush1.msra.mxu0 %v4727
        %4761 = vmatprep.subr.mxu0 0.0
        %4762 = vmatpush1.msra.mxu0 %v4726
        %4763 = vmatprep.subr.mxu0 0.0
        %4764 = vmatpush1.msra.mxu0 %v4725
        %4765 = vmatprep.subr.mxu0 0.0
        %4766 = vmatpush1.msra.mxu0 %v4724
        %4767 = vmatprep.subr.mxu0 0.0
        %4768 = vmatpush1.msra.mxu0 %v4723
        %4769 = vmatprep.subr.mxu0 0.0
        %4770 = vmatpush1.msra.mxu0 %v4722
        %4771 = vmatprep.subr.mxu0 0.0
        %4772 = vmatpush2.msra.mxu0 0.0
        %4773 = vmatprep.subr.mxu0 0.0
        %4774 = vmatpush2.msra.mxu0 0.0
        %4775 = vmatprep.subr.mxu0 0.0
        %4776 = vmatpush2.msra.mxu0 0.0
        %4777 = vmatprep.subr.mxu0 0.0
        %4778 = vmatpush2.msra.mxu0 0.0
        %4779 = vmatprep.subr.mxu0 0.0
        %4780 = vmatpush2.msra.mxu0 0.0
        %4781 = vmatprep.subr.mxu0 0.0
        %4782 = vmatpush2.msra.mxu0 0.0
        %4783 = vmatprep.subr.mxu0 0.0
        %4784 = vmatpush2.msra.mxu0 0.0
        %4785 = vmatprep.subr.mxu0 0.0
        %4786 = vmatpush2.msra.mxu0 0.0
        %4787 = vmatprep.subr.mxu0 0.0
        %4788 = vmatpush2.msra.mxu0 0.0
        %4789 = vmatprep.subr.mxu0 0.0
        %4790 = vmatpush2.msra.mxu0 0.0
        %4791 = vmatprep.subr.mxu0 0.0
        %4792 = vmatpush2.msra.mxu0 0.0
        %4793 = vmatprep.subr.mxu0 0.0
        %4794 = vmatpush2.msra.mxu0 0.0
        %4795 = vmatprep.subr.mxu0 0.0
        %4796 = vmatpush2.msra.mxu0 0.0
        %4797 = vmatprep.subr.mxu0 0.0
        %4798 = vmatpush2.msra.mxu0 0.0
        %4799 = vmatprep.subr.mxu0 0.0
        %4800 = vmatpush2.msra.mxu0 0.0
        %4801 = vmatprep.subr.mxu0 0.0
        %4802 = vmatpush2.msra.mxu0 0.0
        %4803 = vmatprep.mubr.f32.mxu0 0.0
        %4804 = vmatmul.mubr.f32.gmra.mxu0 %v4734
        %v4805 = vpop.f32.mrf.mxu0
        %v4806 = vadd.f32 0.0, %v4805
        %v4807 = vpop.f32.mrf.mxu0
        %4808 = vmatprep.mubr.f32.mxu0 0.0
        %4809 = vmatmul.mubr.f32.gmra.mxu0 %v4737
        %v4810 = vpop.f32.mrf.mxu0
        %v4811 = vadd.f32 0.0, %v4810
        %v4812 = vpop.f32.mrf.mxu0
        %4813 = vdwg.mxu0
        %s4814 = scalar_lea.vmem %s6, 16
        %v4815 = vld [vmem:[%s4814] sm:$0xff]
        %v4816 = vld [vmem:[%s4814 + $0x8] sm:$0xff]
        %v4818 = vsel %vm4732, %v4815, 0
        %v4821 = vsel %vm4732, %v4816, 0
        %4823 = vmatprep.subr.mxu0 0.0
        %4824 = vmatpush1.msra.mxu0 0.0
        %4825 = vmatprep.subr.mxu0 0.0
        %4826 = vmatpush1.msra.mxu0 0.0
        %4827 = vmatprep.subr.mxu0 0.0
        %4828 = vmatpush1.msra.mxu0 0.0
        %4829 = vmatprep.subr.mxu0 0.0
        %4830 = vmatpush1.msra.mxu0 0.0
        %4831 = vmatprep.subr.mxu0 0.0
        %4832 = vmatpush1.msra.mxu0 0.0
        %4833 = vmatprep.subr.mxu0 0.0
        %4834 = vmatpush1.msra.mxu0 0.0
        %4835 = vmatprep.subr.mxu0 0.0
        %4836 = vmatpush1.msra.mxu0 0.0
        %4837 = vmatprep.subr.mxu0 0.0
        %4838 = vmatpush1.msra.mxu0 0.0
        %4839 = vmatprep.subr.mxu0 0.0
        %4840 = vmatpush1.msra.mxu0 %v4729
        %4841 = vmatprep.subr.mxu0 0.0
        %4842 = vmatpush1.msra.mxu0 %v4728
        %4843 = vmatprep.subr.mxu0 0.0
        %4844 = vmatpush1.msra.mxu0 %v4727
        %4845 = vmatprep.subr.mxu0 0.0
        %4846 = vmatpush1.msra.mxu0 %v4726
        %4847 = vmatprep.subr.mxu0 0.0
        %4848 = vmatpush1.msra.mxu0 %v4725
        %4849 = vmatprep.subr.mxu0 0.0
        %4850 = vmatpush1.msra.mxu0 %v4724
        %4851 = vmatprep.subr.mxu0 0.0
        %4852 = vmatpush1.msra.mxu0 %v4723
        %4853 = vmatprep.subr.mxu0 0.0
        %4854 = vmatpush1.msra.mxu0 %v4722
        %4855 = vmatprep.subr.mxu0 0.0
        %4856 = vmatpush2.msra.mxu0 0.0
        %4857 = vmatprep.subr.mxu0 0.0
        %4858 = vmatpush2.msra.mxu0 0.0
        %4859 = vmatprep.subr.mxu0 0.0
        %4860 = vmatpush2.msra.mxu0 0.0
        %4861 = vmatprep.subr.mxu0 0.0
        %4862 = vmatpush2.msra.mxu0 0.0
        %4863 = vmatprep.subr.mxu0 0.0
        %4864 = vmatpush2.msra.mxu0 0.0
        %4865 = vmatprep.subr.mxu0 0.0
        %4866 = vmatpush2.msra.mxu0 0.0
        %4867 = vmatprep.subr.mxu0 0.0
        %4868 = vmatpush2.msra.mxu0 0.0
        %4869 = vmatprep.subr.mxu0 0.0
        %4870 = vmatpush2.msra.mxu0 0.0
        %4871 = vmatprep.subr.mxu0 0.0
        %4872 = vmatpush2.msra.mxu0 0.0
        %4873 = vmatprep.subr.mxu0 0.0
        %4874 = vmatpush2.msra.mxu0 0.0
        %4875 = vmatprep.subr.mxu0 0.0
        %4876 = vmatpush2.msra.mxu0 0.0
        %4877 = vmatprep.subr.mxu0 0.0
        %4878 = vmatpush2.msra.mxu0 0.0
        %4879 = vmatprep.subr.mxu0 0.0
        %4880 = vmatpush2.msra.mxu0 0.0
        %4881 = vmatprep.subr.mxu0 0.0
        %4882 = vmatpush2.msra.mxu0 0.0
        %4883 = vmatprep.subr.mxu0 0.0
        %4884 = vmatpush2.msra.mxu0 0.0
        %4885 = vmatprep.subr.mxu0 0.0
        %4886 = vmatpush2.msra.mxu0 0.0
        %4887 = vmatprep.mubr.f32.mxu0 0.0
        %4888 = vmatmul.mubr.f32.gmra.mxu0 %v4818
        %v4889 = vpop.f32.mrf.mxu0
        %v4890 = vadd.f32 0.0, %v4889
        %v4891 = vpop.f32.mrf.mxu0
        %4892 = vmatprep.mubr.f32.mxu0 0.0
        %4893 = vmatmul.mubr.f32.gmra.mxu0 %v4821
        %v4894 = vpop.f32.mrf.mxu0
        %v4895 = vadd.f32 0.0, %v4894
        %v4896 = vpop.f32.mrf.mxu0
        %4897 = vdwg.mxu0
        %v4898 = vmax.f32 %v4806, %v4890
        %v4899 = vmax.f32 %v4811, %v4895
        %s4900 = scalar_lea.vmem %s6, 32
        %v4901 = vld [vmem:[%s4900] sm:$0xff]
        %v4902 = vld [vmem:[%s4900 + $0x8] sm:$0xff]
        %v4904 = vsel %vm4732, %v4901, 0
        %v4907 = vsel %vm4732, %v4902, 0
        %4909 = vmatprep.subr.mxu0 0.0
        %4910 = vmatpush1.msra.mxu0 0.0
        %4911 = vmatprep.subr.mxu0 0.0
        %4912 = vmatpush1.msra.mxu0 0.0
        %4913 = vmatprep.subr.mxu0 0.0
        %4914 = vmatpush1.msra.mxu0 0.0
        %4915 = vmatprep.subr.mxu0 0.0
        %4916 = vmatpush1.msra.mxu0 0.0
        %4917 = vmatprep.subr.mxu0 0.0
        %4918 = vmatpush1.msra.mxu0 0.0
        %4919 = vmatprep.subr.mxu0 0.0
        %4920 = vmatpush1.msra.mxu0 0.0
        %4921 = vmatprep.subr.mxu0 0.0
        %4922 = vmatpush1.msra.mxu0 0.0
        %4923 = vmatprep.subr.mxu0 0.0
        %4924 = vmatpush1.msra.mxu0 0.0
        %4925 = vmatprep.subr.mxu0 0.0
        %4926 = vmatpush1.msra.mxu0 %v4729
        %4927 = vmatprep.subr.mxu0 0.0
        %4928 = vmatpush1.msra.mxu0 %v4728
        %4929 = vmatprep.subr.mxu0 0.0
        %4930 = vmatpush1.msra.mxu0 %v4727
        %4931 = vmatprep.subr.mxu0 0.0
        %4932 = vmatpush1.msra.mxu0 %v4726
        %4933 = vmatprep.subr.mxu0 0.0
        %4934 = vmatpush1.msra.mxu0 %v4725
        %4935 = vmatprep.subr.mxu0 0.0
        %4936 = vmatpush1.msra.mxu0 %v4724
        %4937 = vmatprep.subr.mxu0 0.0
        %4938 = vmatpush1.msra.mxu0 %v4723
        %4939 = vmatprep.subr.mxu0 0.0
        %4940 = vmatpush1.msra.mxu0 %v4722
        %4941 = vmatprep.subr.mxu0 0.0
        %4942 = vmatpush2.msra.mxu0 0.0
        %4943 = vmatprep.subr.mxu0 0.0
        %4944 = vmatpush2.msra.mxu0 0.0
        %4945 = vmatprep.subr.mxu0 0.0
        %4946 = vmatpush2.msra.mxu0 0.0
        %4947 = vmatprep.subr.mxu0 0.0
        %4948 = vmatpush2.msra.mxu0 0.0
        %4949 = vmatprep.subr.mxu0 0.0
        %4950 = vmatpush2.msra.mxu0 0.0
        %4951 = vmatprep.subr.mxu0 0.0
        %4952 = vmatpush2.msra.mxu0 0.0
        %4953 = vmatprep.subr.mxu0 0.0
        %4954 = vmatpush2.msra.mxu0 0.0
        %4955 = vmatprep.subr.mxu0 0.0
        %4956 = vmatpush2.msra.mxu0 0.0
        %4957 = vmatprep.subr.mxu0 0.0
        %4958 = vmatpush2.msra.mxu0 0.0
        %4959 = vmatprep.subr.mxu0 0.0
        %4960 = vmatpush2.msra.mxu0 0.0
        %4961 = vmatprep.subr.mxu0 0.0
        %4962 = vmatpush2.msra.mxu0 0.0
        %4963 = vmatprep.subr.mxu0 0.0
        %4964 = vmatpush2.msra.mxu0 0.0
        %4965 = vmatprep.subr.mxu0 0.0
        %4966 = vmatpush2.msra.mxu0 0.0
        %4967 = vmatprep.subr.mxu0 0.0
        %4968 = vmatpush2.msra.mxu0 0.0
        %4969 = vmatprep.subr.mxu0 0.0
        %4970 = vmatpush2.msra.mxu0 0.0
        %4971 = vmatprep.subr.mxu0 0.0
        %4972 = vmatpush2.msra.mxu0 0.0
        %4973 = vmatprep.mubr.f32.mxu0 0.0
        %4974 = vmatmul.mubr.f32.gmra.mxu0 %v4904
        %v4975 = vpop.f32.mrf.mxu0
        %v4976 = vadd.f32 0.0, %v4975
        %v4977 = vpop.f32.mrf.mxu0
        %4978 = vmatprep.mubr.f32.mxu0 0.0
        %4979 = vmatmul.mubr.f32.gmra.mxu0 %v4907
        %v4980 = vpop.f32.mrf.mxu0
        %v4981 = vadd.f32 0.0, %v4980
        %v4982 = vpop.f32.mrf.mxu0
        %4983 = vdwg.mxu0
        %v4984 = vmax.f32 %v4898, %v4976
        %v4985 = vmax.f32 %v4899, %v4981
        %s4986 = scalar_lea.vmem %s6, 48
        %v4987 = vld [vmem:[%s4986] sm:$0xff]
        %v4988 = vld [vmem:[%s4986 + $0x8] sm:$0xff]
        %v4990 = vsel %vm4732, %v4987, 0
        %v4993 = vsel %vm4732, %v4988, 0
        %4995 = vmatprep.subr.mxu0 0.0
        %4996 = vmatpush1.msra.mxu0 0.0
        %4997 = vmatprep.subr.mxu0 0.0
        %4998 = vmatpush1.msra.mxu0 0.0
        %4999 = vmatprep.subr.mxu0 0.0
        %5000 = vmatpush1.msra.mxu0 0.0
        %5001 = vmatprep.subr.mxu0 0.0
        %5002 = vmatpush1.msra.mxu0 0.0
        %5003 = vmatprep.subr.mxu0 0.0
        %5004 = vmatpush1.msra.mxu0 0.0
        %5005 = vmatprep.subr.mxu0 0.0
        %5006 = vmatpush1.msra.mxu0 0.0
        %5007 = vmatprep.subr.mxu0 0.0
        %5008 = vmatpush1.msra.mxu0 0.0
        %5009 = vmatprep.subr.mxu0 0.0
        %5010 = vmatpush1.msra.mxu0 0.0
        %5011 = vmatprep.subr.mxu0 0.0
        %5012 = vmatpush1.msra.mxu0 %v4729
        %5013 = vmatprep.subr.mxu0 0.0
        %5014 = vmatpush1.msra.mxu0 %v4728
        %5015 = vmatprep.subr.mxu0 0.0
        %5016 = vmatpush1.msra.mxu0 %v4727
        %5017 = vmatprep.subr.mxu0 0.0
        %5018 = vmatpush1.msra.mxu0 %v4726
        %5019 = vmatprep.subr.mxu0 0.0
        %5020 = vmatpush1.msra.mxu0 %v4725
        %5021 = vmatprep.subr.mxu0 0.0
        %5022 = vmatpush1.msra.mxu0 %v4724
        %5023 = vmatprep.subr.mxu0 0.0
        %5024 = vmatpush1.msra.mxu0 %v4723
        %5025 = vmatprep.subr.mxu0 0.0
        %5026 = vmatpush1.msra.mxu0 %v4722
        %5027 = vmatprep.subr.mxu0 0.0
        %5028 = vmatpush2.msra.mxu0 0.0
        %5029 = vmatprep.subr.mxu0 0.0
        %5030 = vmatpush2.msra.mxu0 0.0
        %5031 = vmatprep.subr.mxu0 0.0
        %5032 = vmatpush2.msra.mxu0 0.0
        %5033 = vmatprep.subr.mxu0 0.0
        %5034 = vmatpush2.msra.mxu0 0.0
        %5035 = vmatprep.subr.mxu0 0.0
        %5036 = vmatpush2.msra.mxu0 0.0
        %5037 = vmatprep.subr.mxu0 0.0
        %5038 = vmatpush2.msra.mxu0 0.0
        %5039 = vmatprep.subr.mxu0 0.0
        %5040 = vmatpush2.msra.mxu0 0.0
        %5041 = vmatprep.subr.mxu0 0.0
        %5042 = vmatpush2.msra.mxu0 0.0
        %5043 = vmatprep.subr.mxu0 0.0
        %5044 = vmatpush2.msra.mxu0 0.0
        %5045 = vmatprep.subr.mxu0 0.0
        %5046 = vmatpush2.msra.mxu0 0.0
        %5047 = vmatprep.subr.mxu0 0.0
        %5048 = vmatpush2.msra.mxu0 0.0
        %5049 = vmatprep.subr.mxu0 0.0
        %5050 = vmatpush2.msra.mxu0 0.0
        %5051 = vmatprep.subr.mxu0 0.0
        %5052 = vmatpush2.msra.mxu0 0.0
        %5053 = vmatprep.subr.mxu0 0.0
        %5054 = vmatpush2.msra.mxu0 0.0
        %5055 = vmatprep.subr.mxu0 0.0
        %5056 = vmatpush2.msra.mxu0 0.0
        %5057 = vmatprep.subr.mxu0 0.0
        %5058 = vmatpush2.msra.mxu0 0.0
        %5059 = vmatprep.mubr.f32.mxu0 0.0
        %5060 = vmatmul.mubr.f32.gmra.mxu0 %v4990
        %v5061 = vpop.f32.mrf.mxu0
        %v5062 = vadd.f32 0.0, %v5061
        %v5063 = vpop.f32.mrf.mxu0
        %5064 = vmatprep.mubr.f32.mxu0 0.0
        %5065 = vmatmul.mubr.f32.gmra.mxu0 %v4993
        %v5066 = vpop.f32.mrf.mxu0
        %v5067 = vadd.f32 0.0, %v5066
        %v5068 = vpop.f32.mrf.mxu0
        %5069 = vdwg.mxu0
        %v5070 = vmax.f32 %v4984, %v5062
        %v5071 = vmax.f32 %v4985, %v5067
        %v5072 = vld [vmem:[%s5] sm:$0x1]
        %v5074 = vlaneseq
        %v5075 = vshrl.u32 %v5074, 7
        %v5076 = vsub.s32 0, %v5075
        %v5077 = vrot.slane %v5072, %v5076
        %v5079 = vadd.f32 %v5070, %v5077
        %v5080 = vadd.f32 %v5071, %v5077
        %v5081 = vmax.f32 %v5079, 0.0
        %v5082 = vmax.f32 %v5080, 0.0
        %v5085 = vcombine.high %v5081, %v5081
        %v5086 = vcombine.high %v5082, %v5082
        %s5089 = scalar_lea.vmem [#allocation4], 8
        %5090 = vst.msk [vmem:[%s5089 + $0x1] sm:$0xf] %vm524, %v5081
        %5091 = vst.msk [vmem:[%s5089 + $0x9] sm:$0xf] %vm524, %v5085
        %5092 = vst.msk [vmem:[%s5089 + $0x11] sm:$0xf] %vm524, %v5082
        %5093 = vst.msk [vmem:[%s5089 + $0x19] sm:$0xf] %vm524, %v5086
        %v5094 = vld [vmem:[#allocation4] sm:$0xf]
        %v5095 = vld [vmem:[#allocation4 + $0x8] sm:$0xf]
        %v5096 = vld [vmem:[#allocation4 + $0x10] sm:$0xf]
        %v5097 = vld [vmem:[#allocation4 + $0x18] sm:$0xf]
        %v5102 = vcombine.low %v5094, %v5095
        %v5103 = vcombine.low %v5096, %v5097
        %v5106 = vpack.c.bf16 %v5103, %v5102
        %v5107 = vld [vmem:[%s7] sm:$0xf]
        %v5108 = vld [vmem:[%s7 + $0x4] sm:$0xf]
        %v5109 = vld [vmem:[%s7 + $0x8] sm:$0xf]
        %v5110 = vld [vmem:[%s7 + $0xc] sm:$0xf]
        %v5111 = vld [vmem:[#allocation4 + $0x1] sm:$0xf]
        %v5112 = vld [vmem:[#allocation4 + $0x9] sm:$0xf]
        %v5113 = vld [vmem:[#allocation4 + $0x11] sm:$0xf]
        %v5114 = vld [vmem:[#allocation4 + $0x19] sm:$0xf]
        %v5119 = vcombine.low %v5111, %v5112
        %v5120 = vcombine.low %v5113, %v5114
        %v5123 = vpack.c.bf16 %v5120, %v5119
        %s5124 = scalar_lea.vmem %s7, 16
        %v5125 = vld [vmem:[%s5124] sm:$0xf]
        %v5126 = vld [vmem:[%s5124 + $0x4] sm:$0xf]
        %v5127 = vld [vmem:[%s5124 + $0x8] sm:$0xf]
        %v5128 = vld [vmem:[%s5124 + $0xc] sm:$0xf]
        %v5133 = vunpack.c.l.b16 %v5125
        %v5134 = vunpack.c.l.b16 %v5126
        %v5135 = vunpack.c.l.b16 %v5127
        %v5136 = vunpack.c.l.b16 %v5128
        %v5137 = vpack.c.b16 %v5134, %v5133
        %v5138 = vpack.c.b16 %v5136, %v5135
        %v5142 = vsel %vm495, %v5123, 0
        %5144 = vmatprep.subr.bf16.mxu0 0
        %5145 = vmatpush1.bf16.msra.mxu0 0
        %5146 = vmatprep.subr.bf16.mxu0 0
        %5147 = vmatpush1.bf16.msra.mxu0 0
        %5148 = vmatprep.subr.bf16.mxu0 0
        %5149 = vmatpush1.bf16.msra.mxu0 0
        %5150 = vmatprep.subr.bf16.mxu0 0
        %5151 = vmatpush1.bf16.msra.mxu0 0
        %5152 = vmatprep.subr.bf16.mxu0 0
        %5153 = vmatpush1.bf16.msra.mxu0 0
        %5154 = vmatprep.subr.bf16.mxu0 0
        %5155 = vmatpush1.bf16.msra.mxu0 0
        %5156 = vmatprep.subr.bf16.mxu0 0
        %5157 = vmatpush1.bf16.msra.mxu0 %v5138
        %5158 = vmatprep.subr.bf16.mxu0 0
        %5159 = vmatpush1.bf16.msra.mxu0 %v5137
        %5160 = vmatprep.subr.bf16.mxu0 0
        %5161 = vmatpush2.bf16.msra.mxu0 0
        %5162 = vmatprep.subr.bf16.mxu0 0
        %5163 = vmatpush2.bf16.msra.mxu0 0
        %5164 = vmatprep.subr.bf16.mxu0 0
        %5165 = vmatpush2.bf16.msra.mxu0 0
        %5166 = vmatprep.subr.bf16.mxu0 0
        %5167 = vmatpush2.bf16.msra.mxu0 0
        %5168 = vmatprep.subr.bf16.mxu0 0
        %5169 = vmatpush2.bf16.msra.mxu0 0
        %5170 = vmatprep.subr.bf16.mxu0 0
        %5171 = vmatpush2.bf16.msra.mxu0 0
        %5172 = vmatprep.subr.bf16.mxu0 0
        %5173 = vmatpush2.bf16.msra.mxu0 0
        %5174 = vmatprep.subr.bf16.mxu0 0
        %5175 = vmatpush2.bf16.msra.mxu0 0
        %5176 = vmatprep.mubr.bf16.mxu0 0
        %5177 = vmatmul.mubr.bf16.gmra.mxu0 %v5142
        %v5178 = vpop.f32.mrf.mxu0
        %v5179 = vadd.f32 0.0, %v5178
        %v5180 = vpop.f32.mrf.mxu0
        %v5181 = vpop.f32.mrf.mxu0
        %v5182 = vadd.f32 0.0, %v5181
        %v5183 = vpop.f32.mrf.mxu0
        %5184 = vdwg.mxu0
        %v5189 = vunpack.c.l.b16 %v5107
        %v5190 = vunpack.c.l.b16 %v5108
        %v5191 = vunpack.c.l.b16 %v5109
        %v5192 = vunpack.c.l.b16 %v5110
        %v5193 = vpack.c.b16 %v5190, %v5189
        %v5194 = vpack.c.b16 %v5192, %v5191
        %v5198 = vsel %vm495, %v5106, 0
        %5200 = vmatprep.subr.bf16.mxu0 0
        %5201 = vmatpush1.bf16.msra.mxu0 0
        %5202 = vmatprep.subr.bf16.mxu0 0
        %5203 = vmatpush1.bf16.msra.mxu0 0
        %5204 = vmatprep.subr.bf16.mxu0 0
        %5205 = vmatpush1.bf16.msra.mxu0 0
        %5206 = vmatprep.subr.bf16.mxu0 0
        %5207 = vmatpush1.bf16.msra.mxu0 0
        %5208 = vmatprep.subr.bf16.mxu0 0
        %5209 = vmatpush1.bf16.msra.mxu0 0
        %5210 = vmatprep.subr.bf16.mxu0 0
        %5211 = vmatpush1.bf16.msra.mxu0 0
        %5212 = vmatprep.subr.bf16.mxu0 0
        %5213 = vmatpush1.bf16.msra.mxu0 %v5194
        %5214 = vmatprep.subr.bf16.mxu0 0
        %5215 = vmatpush1.bf16.msra.mxu0 %v5193
        %5216 = vmatprep.subr.bf16.mxu0 0
        %5217 = vmatpush2.bf16.msra.mxu0 0
        %5218 = vmatprep.subr.bf16.mxu0 0
        %5219 = vmatpush2.bf16.msra.mxu0 0
        %5220 = vmatprep.subr.bf16.mxu0 0
        %5221 = vmatpush2.bf16.msra.mxu0 0
        %5222 = vmatprep.subr.bf16.mxu0 0
        %5223 = vmatpush2.bf16.msra.mxu0 0
        %5224 = vmatprep.subr.bf16.mxu0 0
        %5225 = vmatpush2.bf16.msra.mxu0 0
        %5226 = vmatprep.subr.bf16.mxu0 0
        %5227 = vmatpush2.bf16.msra.mxu0 0
        %5228 = vmatprep.subr.bf16.mxu0 0
        %5229 = vmatpush2.bf16.msra.mxu0 0
        %5230 = vmatprep.subr.bf16.mxu0 0
        %5231 = vmatpush2.bf16.msra.mxu0 0
        %5232 = vmatprep.mubr.bf16.mxu0 0
        %5233 = vmatmul.mubr.bf16.gmra.mxu0 %v5198
        %v5234 = vpop.f32.mrf.mxu0
        %v5235 = vadd.f32 %v5179, %v5234
        %v5236 = vpop.f32.mrf.mxu0
        %v5237 = vpop.f32.mrf.mxu0
        %v5238 = vadd.f32 %v5182, %v5237
        %v5239 = vpop.f32.mrf.mxu0
        %5240 = vdwg.mxu0
        %v5241 = vld [vmem:[#allocation4 + $0x2] sm:$0xf]
        %v5242 = vld [vmem:[#allocation4 + $0xa] sm:$0xf]
        %v5243 = vld [vmem:[#allocation4 + $0x12] sm:$0xf]
        %v5244 = vld [vmem:[#allocation4 + $0x1a] sm:$0xf]
        %v5249 = vcombine.low %v5241, %v5242
        %v5250 = vcombine.low %v5243, %v5244
        %v5253 = vpack.c.bf16 %v5250, %v5249
        %s5254 = scalar_lea.vmem %s7, 32
        %v5255 = vld [vmem:[%s5254] sm:$0xf]
        %v5256 = vld [vmem:[%s5254 + $0x4] sm:$0xf]
        %v5257 = vld [vmem:[%s5254 + $0x8] sm:$0xf]
        %v5258 = vld [vmem:[%s5254 + $0xc] sm:$0xf]
        %v5263 = vunpack.c.l.b16 %v5255
        %v5264 = vunpack.c.l.b16 %v5256
        %v5265 = vunpack.c.l.b16 %v5257
        %v5266 = vunpack.c.l.b16 %v5258
        %v5267 = vpack.c.b16 %v5264, %v5263
        %v5268 = vpack.c.b16 %v5266, %v5265
        %v5272 = vsel %vm495, %v5253, 0
        %5274 = vmatprep.subr.bf16.mxu0 0
        %5275 = vmatpush1.bf16.msra.mxu0 0
        %5276 = vmatprep.subr.bf16.mxu0 0
        %5277 = vmatpush1.bf16.msra.mxu0 0
        %5278 = vmatprep.subr.bf16.mxu0 0
        %5279 = vmatpush1.bf16.msra.mxu0 0
        %5280 = vmatprep.subr.bf16.mxu0 0
        %5281 = vmatpush1.bf16.msra.mxu0 0
        %5282 = vmatprep.subr.bf16.mxu0 0
        %5283 = vmatpush1.bf16.msra.mxu0 0
        %5284 = vmatprep.subr.bf16.mxu0 0
        %5285 = vmatpush1.bf16.msra.mxu0 0
        %5286 = vmatprep.subr.bf16.mxu0 0
        %5287 = vmatpush1.bf16.msra.mxu0 %v5268
        %5288 = vmatprep.subr.bf16.mxu0 0
        %5289 = vmatpush1.bf16.msra.mxu0 %v5267
        %5290 = vmatprep.subr.bf16.mxu0 0
        %5291 = vmatpush2.bf16.msra.mxu0 0
        %5292 = vmatprep.subr.bf16.mxu0 0
        %5293 = vmatpush2.bf16.msra.mxu0 0
        %5294 = vmatprep.subr.bf16.mxu0 0
        %5295 = vmatpush2.bf16.msra.mxu0 0
        %5296 = vmatprep.subr.bf16.mxu0 0
        %5297 = vmatpush2.bf16.msra.mxu0 0
        %5298 = vmatprep.subr.bf16.mxu0 0
        %5299 = vmatpush2.bf16.msra.mxu0 0
        %5300 = vmatprep.subr.bf16.mxu0 0
        %5301 = vmatpush2.bf16.msra.mxu0 0
        %5302 = vmatprep.subr.bf16.mxu0 0
        %5303 = vmatpush2.bf16.msra.mxu0 0
        %5304 = vmatprep.subr.bf16.mxu0 0
        %5305 = vmatpush2.bf16.msra.mxu0 0
        %5306 = vmatprep.mubr.bf16.mxu0 0
        %5307 = vmatmul.mubr.bf16.gmra.mxu0 %v5272
        %v5308 = vpop.f32.mrf.mxu0
        %v5309 = vadd.f32 0.0, %v5308
        %v5310 = vpop.f32.mrf.mxu0
        %v5311 = vpop.f32.mrf.mxu0
        %v5312 = vadd.f32 0.0, %v5311
        %v5313 = vpop.f32.mrf.mxu0
        %5314 = vdwg.mxu0
        %v5315 = vadd.f32 %v5235, %v5309
        %v5316 = vadd.f32 %v5238, %v5312
        %v5317 = vld [vmem:[%s5089] sm:$0xf]
        %v5318 = vld [vmem:[%s5089 + $0x8] sm:$0xf]
        %v5319 = vld [vmem:[%s5089 + $0x10] sm:$0xf]
        %v5320 = vld [vmem:[%s5089 + $0x18] sm:$0xf]
        %v5325 = vcombine.low %v5317, %v5318
        %v5326 = vcombine.low %v5319, %v5320
        %v5329 = vpack.c.bf16 %v5326, %v5325
        %s5330 = scalar_lea.vmem %s7, 48
        %v5331 = vld [vmem:[%s5330] sm:$0xf]
        %v5332 = vld [vmem:[%s5330 + $0x4] sm:$0xf]
        %v5333 = vld [vmem:[%s5330 + $0x8] sm:$0xf]
        %v5334 = vld [vmem:[%s5330 + $0xc] sm:$0xf]
        %v5339 = vunpack.c.l.b16 %v5331
        %v5340 = vunpack.c.l.b16 %v5332
        %v5341 = vunpack.c.l.b16 %v5333
        %v5342 = vunpack.c.l.b16 %v5334
        %v5343 = vpack.c.b16 %v5340, %v5339
        %v5344 = vpack.c.b16 %v5342, %v5341
        %v5348 = vsel %vm495, %v5329, 0
        %5350 = vmatprep.subr.bf16.mxu0 0
        %5351 = vmatpush1.bf16.msra.mxu0 0
        %5352 = vmatprep.subr.bf16.mxu0 0
        %5353 = vmatpush1.bf16.msra.mxu0 0
        %5354 = vmatprep.subr.bf16.mxu0 0
        %5355 = vmatpush1.bf16.msra.mxu0 0
        %5356 = vmatprep.subr.bf16.mxu0 0
        %5357 = vmatpush1.bf16.msra.mxu0 0
        %5358 = vmatprep.subr.bf16.mxu0 0
        %5359 = vmatpush1.bf16.msra.mxu0 0
        %5360 = vmatprep.subr.bf16.mxu0 0
        %5361 = vmatpush1.bf16.msra.mxu0 0
        %5362 = vmatprep.subr.bf16.mxu0 0
        %5363 = vmatpush1.bf16.msra.mxu0 %v5344
        %5364 = vmatprep.subr.bf16.mxu0 0
        %5365 = vmatpush1.bf16.msra.mxu0 %v5343
        %5366 = vmatprep.subr.bf16.mxu0 0
        %5367 = vmatpush2.bf16.msra.mxu0 0
        %5368 = vmatprep.subr.bf16.mxu0 0
        %5369 = vmatpush2.bf16.msra.mxu0 0
        %5370 = vmatprep.subr.bf16.mxu0 0
        %5371 = vmatpush2.bf16.msra.mxu0 0
        %5372 = vmatprep.subr.bf16.mxu0 0
        %5373 = vmatpush2.bf16.msra.mxu0 0
        %5374 = vmatprep.subr.bf16.mxu0 0
        %5375 = vmatpush2.bf16.msra.mxu0 0
        %5376 = vmatprep.subr.bf16.mxu0 0
        %5377 = vmatpush2.bf16.msra.mxu0 0
        %5378 = vmatprep.subr.bf16.mxu0 0
        %5379 = vmatpush2.bf16.msra.mxu0 0
        %5380 = vmatprep.subr.bf16.mxu0 0
        %5381 = vmatpush2.bf16.msra.mxu0 0
        %5382 = vmatprep.mubr.bf16.mxu0 0
        %5383 = vmatmul.mubr.bf16.gmra.mxu0 %v5348
        %v5384 = vpop.f32.mrf.mxu0
        %v5385 = vadd.f32 0.0, %v5384
        %v5386 = vpop.f32.mrf.mxu0
        %v5387 = vpop.f32.mrf.mxu0
        %v5388 = vadd.f32 0.0, %v5387
        %v5389 = vpop.f32.mrf.mxu0
        %5390 = vdwg.mxu0
        %v5391 = vadd.f32 %v5315, %v5385
        %v5392 = vadd.f32 %v5316, %v5388
        %v5393 = vld [vmem:[%s5089 + $0x1] sm:$0xf]
        %v5394 = vld [vmem:[%s5089 + $0x9] sm:$0xf]
        %v5395 = vld [vmem:[%s5089 + $0x11] sm:$0xf]
        %v5396 = vld [vmem:[%s5089 + $0x19] sm:$0xf]
        %v5401 = vcombine.low %v5393, %v5394
        %v5402 = vcombine.low %v5395, %v5396
        %v5405 = vpack.c.bf16 %v5402, %v5401
        %s5406 = scalar_lea.vmem %s7, 64
        %v5407 = vld [vmem:[%s5406] sm:$0xf]
        %v5408 = vld [vmem:[%s5406 + $0x4] sm:$0xf]
        %v5409 = vld [vmem:[%s5406 + $0x8] sm:$0xf]
        %v5410 = vld [vmem:[%s5406 + $0xc] sm:$0xf]
        %v5415 = vunpack.c.l.b16 %v5407
        %v5416 = vunpack.c.l.b16 %v5408
        %v5417 = vunpack.c.l.b16 %v5409
        %v5418 = vunpack.c.l.b16 %v5410
        %v5419 = vpack.c.b16 %v5416, %v5415
        %v5420 = vpack.c.b16 %v5418, %v5417
        %v5424 = vsel %vm495, %v5405, 0
        %5426 = vmatprep.subr.bf16.mxu0 0
        %5427 = vmatpush1.bf16.msra.mxu0 0
        %5428 = vmatprep.subr.bf16.mxu0 0
        %5429 = vmatpush1.bf16.msra.mxu0 0
        %5430 = vmatprep.subr.bf16.mxu0 0
        %5431 = vmatpush1.bf16.msra.mxu0 0
        %5432 = vmatprep.subr.bf16.mxu0 0
        %5433 = vmatpush1.bf16.msra.mxu0 0
        %5434 = vmatprep.subr.bf16.mxu0 0
        %5435 = vmatpush1.bf16.msra.mxu0 0
        %5436 = vmatprep.subr.bf16.mxu0 0
        %5437 = vmatpush1.bf16.msra.mxu0 0
        %5438 = vmatprep.subr.bf16.mxu0 0
        %5439 = vmatpush1.bf16.msra.mxu0 %v5420
        %5440 = vmatprep.subr.bf16.mxu0 0
        %5441 = vmatpush1.bf16.msra.mxu0 %v5419
        %5442 = vmatprep.subr.bf16.mxu0 0
        %5443 = vmatpush2.bf16.msra.mxu0 0
        %5444 = vmatprep.subr.bf16.mxu0 0
        %5445 = vmatpush2.bf16.msra.mxu0 0
        %5446 = vmatprep.subr.bf16.mxu0 0
        %5447 = vmatpush2.bf16.msra.mxu0 0
        %5448 = vmatprep.subr.bf16.mxu0 0
        %5449 = vmatpush2.bf16.msra.mxu0 0
        %5450 = vmatprep.subr.bf16.mxu0 0
        %5451 = vmatpush2.bf16.msra.mxu0 0
        %5452 = vmatprep.subr.bf16.mxu0 0
        %5453 = vmatpush2.bf16.msra.mxu0 0
        %5454 = vmatprep.subr.bf16.mxu0 0
        %5455 = vmatpush2.bf16.msra.mxu0 0
        %5456 = vmatprep.subr.bf16.mxu0 0
        %5457 = vmatpush2.bf16.msra.mxu0 0
        %5458 = vmatprep.mubr.bf16.mxu0 0
        %5459 = vmatmul.mubr.bf16.gmra.mxu0 %v5424
        %v5460 = vpop.f32.mrf.mxu0
        %v5461 = vadd.f32 0.0, %v5460
        %v5462 = vpop.f32.mrf.mxu0
        %v5463 = vpop.f32.mrf.mxu0
        %v5464 = vadd.f32 0.0, %v5463
        %v5465 = vpop.f32.mrf.mxu0
        %5466 = vdwg.mxu0
        %v5467 = vadd.f32 %v5391, %v5461
        %v5468 = vadd.f32 %v5392, %v5464
        %v5469 = vld [vmem:[%s5089 + $0x2] sm:$0xf]
        %v5470 = vld [vmem:[%s5089 + $0xa] sm:$0xf]
        %v5471 = vld [vmem:[%s5089 + $0x12] sm:$0xf]
        %v5472 = vld [vmem:[%s5089 + $0x1a] sm:$0xf]
        %v5477 = vcombine.low %v5469, %v5470
        %v5478 = vcombine.low %v5471, %v5472
        %v5481 = vpack.c.bf16 %v5478, %v5477
        %s5482 = scalar_lea.vmem %s7, 80
        %v5483 = vld [vmem:[%s5482] sm:$0xf]
        %v5484 = vld [vmem:[%s5482 + $0x4] sm:$0xf]
        %v5485 = vld [vmem:[%s5482 + $0x8] sm:$0xf]
        %v5486 = vld [vmem:[%s5482 + $0xc] sm:$0xf]
        %v5491 = vunpack.c.l.b16 %v5483
        %v5492 = vunpack.c.l.b16 %v5484
        %v5493 = vunpack.c.l.b16 %v5485
        %v5494 = vunpack.c.l.b16 %v5486
        %v5495 = vpack.c.b16 %v5492, %v5491
        %v5496 = vpack.c.b16 %v5494, %v5493
        %v5500 = vsel %vm495, %v5481, 0
        %5502 = vmatprep.subr.bf16.mxu0 0
        %5503 = vmatpush1.bf16.msra.mxu0 0
        %5504 = vmatprep.subr.bf16.mxu0 0
        %5505 = vmatpush1.bf16.msra.mxu0 0
        %5506 = vmatprep.subr.bf16.mxu0 0
        %5507 = vmatpush1.bf16.msra.mxu0 0
        %5508 = vmatprep.subr.bf16.mxu0 0
        %5509 = vmatpush1.bf16.msra.mxu0 0
        %5510 = vmatprep.subr.bf16.mxu0 0
        %5511 = vmatpush1.bf16.msra.mxu0 0
        %5512 = vmatprep.subr.bf16.mxu0 0
        %5513 = vmatpush1.bf16.msra.mxu0 0
        %5514 = vmatprep.subr.bf16.mxu0 0
        %5515 = vmatpush1.bf16.msra.mxu0 %v5496
        %5516 = vmatprep.subr.bf16.mxu0 0
        %5517 = vmatpush1.bf16.msra.mxu0 %v5495
        %5518 = vmatprep.subr.bf16.mxu0 0
        %5519 = vmatpush2.bf16.msra.mxu0 0
        %5520 = vmatprep.subr.bf16.mxu0 0
        %5521 = vmatpush2.bf16.msra.mxu0 0
        %5522 = vmatprep.subr.bf16.mxu0 0
        %5523 = vmatpush2.bf16.msra.mxu0 0
        %5524 = vmatprep.subr.bf16.mxu0 0
        %5525 = vmatpush2.bf16.msra.mxu0 0
        %5526 = vmatprep.subr.bf16.mxu0 0
        %5527 = vmatpush2.bf16.msra.mxu0 0
        %5528 = vmatprep.subr.bf16.mxu0 0
        %5529 = vmatpush2.bf16.msra.mxu0 0
        %5530 = vmatprep.subr.bf16.mxu0 0
        %5531 = vmatpush2.bf16.msra.mxu0 0
        %5532 = vmatprep.subr.bf16.mxu0 0
        %5533 = vmatpush2.bf16.msra.mxu0 0
        %5534 = vmatprep.mubr.bf16.mxu0 0
        %5535 = vmatmul.mubr.bf16.gmra.mxu0 %v5500
        %v5536 = vpop.f32.mrf.mxu0
        %v5537 = vadd.f32 0.0, %v5536
        %v5538 = vpop.f32.mrf.mxu0
        %v5539 = vpop.f32.mrf.mxu0
        %v5540 = vadd.f32 0.0, %v5539
        %v5541 = vpop.f32.mrf.mxu0
        %5542 = vdwg.mxu0
        %v5543 = vadd.f32 %v5467, %v5537
        %v5544 = vadd.f32 %v5468, %v5540
        %s5545 = scalar_lea.vmem [#allocation4], 16
        %v5546 = vld [vmem:[%s5545] sm:$0xf]
        %v5547 = vld [vmem:[%s5545 + $0x8] sm:$0xf]
        %v5548 = vld [vmem:[%s5545 + $0x10] sm:$0xf]
        %v5549 = vld [vmem:[%s5545 + $0x18] sm:$0xf]
        %v5554 = vcombine.low %v5546, %v5547
        %v5555 = vcombine.low %v5548, %v5549
        %v5558 = vpack.c.bf16 %v5555, %v5554
        %s5559 = scalar_lea.vmem %s7, 96
        %v5560 = vld [vmem:[%s5559] sm:$0xf]
        %v5561 = vld [vmem:[%s5559 + $0x4] sm:$0xf]
        %v5562 = vld [vmem:[%s5559 + $0x8] sm:$0xf]
        %v5563 = vld [vmem:[%s5559 + $0xc] sm:$0xf]
        %v5568 = vunpack.c.l.b16 %v5560
        %v5569 = vunpack.c.l.b16 %v5561
        %v5570 = vunpack.c.l.b16 %v5562
        %v5571 = vunpack.c.l.b16 %v5563
        %v5572 = vpack.c.b16 %v5569, %v5568
        %v5573 = vpack.c.b16 %v5571, %v5570
        %v5577 = vsel %vm495, %v5558, 0
        %5579 = vmatprep.subr.bf16.mxu0 0
        %5580 = vmatpush1.bf16.msra.mxu0 0
        %5581 = vmatprep.subr.bf16.mxu0 0
        %5582 = vmatpush1.bf16.msra.mxu0 0
        %5583 = vmatprep.subr.bf16.mxu0 0
        %5584 = vmatpush1.bf16.msra.mxu0 0
        %5585 = vmatprep.subr.bf16.mxu0 0
        %5586 = vmatpush1.bf16.msra.mxu0 0
        %5587 = vmatprep.subr.bf16.mxu0 0
        %5588 = vmatpush1.bf16.msra.mxu0 0
        %5589 = vmatprep.subr.bf16.mxu0 0
        %5590 = vmatpush1.bf16.msra.mxu0 0
        %5591 = vmatprep.subr.bf16.mxu0 0
        %5592 = vmatpush1.bf16.msra.mxu0 %v5573
        %5593 = vmatprep.subr.bf16.mxu0 0
        %5594 = vmatpush1.bf16.msra.mxu0 %v5572
        %5595 = vmatprep.subr.bf16.mxu0 0
        %5596 = vmatpush2.bf16.msra.mxu0 0
        %5597 = vmatprep.subr.bf16.mxu0 0
        %5598 = vmatpush2.bf16.msra.mxu0 0
        %5599 = vmatprep.subr.bf16.mxu0 0
        %5600 = vmatpush2.bf16.msra.mxu0 0
        %5601 = vmatprep.subr.bf16.mxu0 0
        %5602 = vmatpush2.bf16.msra.mxu0 0
        %5603 = vmatprep.subr.bf16.mxu0 0
        %5604 = vmatpush2.bf16.msra.mxu0 0
        %5605 = vmatprep.subr.bf16.mxu0 0
        %5606 = vmatpush2.bf16.msra.mxu0 0
        %5607 = vmatprep.subr.bf16.mxu0 0
        %5608 = vmatpush2.bf16.msra.mxu0 0
        %5609 = vmatprep.subr.bf16.mxu0 0
        %5610 = vmatpush2.bf16.msra.mxu0 0
        %5611 = vmatprep.mubr.bf16.mxu0 0
        %5612 = vmatmul.mubr.bf16.gmra.mxu0 %v5577
        %v5613 = vpop.f32.mrf.mxu0
        %v5614 = vadd.f32 0.0, %v5613
        %v5615 = vpop.f32.mrf.mxu0
        %v5616 = vpop.f32.mrf.mxu0
        %v5617 = vadd.f32 0.0, %v5616
        %v5618 = vpop.f32.mrf.mxu0
        %5619 = vdwg.mxu0
        %v5620 = vadd.f32 %v5543, %v5614
        %v5621 = vadd.f32 %v5544, %v5617
        %v5622 = vld [vmem:[%s5545 + $0x1] sm:$0xf]
        %v5623 = vld [vmem:[%s5545 + $0x9] sm:$0xf]
        %v5624 = vld [vmem:[%s5545 + $0x11] sm:$0xf]
        %v5625 = vld [vmem:[%s5545 + $0x19] sm:$0xf]
        %v5630 = vcombine.low %v5622, %v5623
        %v5631 = vcombine.low %v5624, %v5625
        %v5634 = vpack.c.bf16 %v5631, %v5630
        %s5635 = scalar_lea.vmem %s7, 112
        %v5636 = vld [vmem:[%s5635] sm:$0xf]
        %v5637 = vld [vmem:[%s5635 + $0x4] sm:$0xf]
        %v5638 = vld [vmem:[%s5635 + $0x8] sm:$0xf]
        %v5639 = vld [vmem:[%s5635 + $0xc] sm:$0xf]
        %v5644 = vunpack.c.l.b16 %v5636
        %v5645 = vunpack.c.l.b16 %v5637
        %v5646 = vunpack.c.l.b16 %v5638
        %v5647 = vunpack.c.l.b16 %v5639
        %v5648 = vpack.c.b16 %v5645, %v5644
        %v5649 = vpack.c.b16 %v5647, %v5646
        %v5653 = vsel %vm495, %v5634, 0
        %5655 = vmatprep.subr.bf16.mxu0 0
        %5656 = vmatpush1.bf16.msra.mxu0 0
        %5657 = vmatprep.subr.bf16.mxu0 0
        %5658 = vmatpush1.bf16.msra.mxu0 0
        %5659 = vmatprep.subr.bf16.mxu0 0
        %5660 = vmatpush1.bf16.msra.mxu0 0
        %5661 = vmatprep.subr.bf16.mxu0 0
        %5662 = vmatpush1.bf16.msra.mxu0 0
        %5663 = vmatprep.subr.bf16.mxu0 0
        %5664 = vmatpush1.bf16.msra.mxu0 0
        %5665 = vmatprep.subr.bf16.mxu0 0
        %5666 = vmatpush1.bf16.msra.mxu0 0
        %5667 = vmatprep.subr.bf16.mxu0 0
        %5668 = vmatpush1.bf16.msra.mxu0 %v5649
        %5669 = vmatprep.subr.bf16.mxu0 0
        %5670 = vmatpush1.bf16.msra.mxu0 %v5648
        %5671 = vmatprep.subr.bf16.mxu0 0
        %5672 = vmatpush2.bf16.msra.mxu0 0
        %5673 = vmatprep.subr.bf16.mxu0 0
        %5674 = vmatpush2.bf16.msra.mxu0 0
        %5675 = vmatprep.subr.bf16.mxu0 0
        %5676 = vmatpush2.bf16.msra.mxu0 0
        %5677 = vmatprep.subr.bf16.mxu0 0
        %5678 = vmatpush2.bf16.msra.mxu0 0
        %5679 = vmatprep.subr.bf16.mxu0 0
        %5680 = vmatpush2.bf16.msra.mxu0 0
        %5681 = vmatprep.subr.bf16.mxu0 0
        %5682 = vmatpush2.bf16.msra.mxu0 0
        %5683 = vmatprep.subr.bf16.mxu0 0
        %5684 = vmatpush2.bf16.msra.mxu0 0
        %5685 = vmatprep.subr.bf16.mxu0 0
        %5686 = vmatpush2.bf16.msra.mxu0 0
        %5687 = vmatprep.mubr.bf16.mxu0 0
        %5688 = vmatmul.mubr.bf16.gmra.mxu0 %v5653
        %v5689 = vpop.f32.mrf.mxu0
        %v5690 = vadd.f32 0.0, %v5689
        %v5691 = vpop.f32.mrf.mxu0
        %v5692 = vpop.f32.mrf.mxu0
        %v5693 = vadd.f32 0.0, %v5692
        %v5694 = vpop.f32.mrf.mxu0
        %5695 = vdwg.mxu0
        %v5696 = vadd.f32 %v5620, %v5690
        %v5697 = vadd.f32 %v5621, %v5693
        %v5698 = vld [vmem:[%s5545 + $0x2] sm:$0xf]
        %v5699 = vld [vmem:[%s5545 + $0xa] sm:$0xf]
        %v5700 = vld [vmem:[%s5545 + $0x12] sm:$0xf]
        %v5701 = vld [vmem:[%s5545 + $0x1a] sm:$0xf]
        %v5706 = vcombine.low %v5698, %v5699
        %v5707 = vcombine.low %v5700, %v5701
        %v5710 = vpack.c.bf16 %v5707, %v5706
        %s5711 = scalar_lea.vmem %s7, 128
        %v5712 = vld [vmem:[%s5711] sm:$0xf]
        %v5713 = vld [vmem:[%s5711 + $0x4] sm:$0xf]
        %v5714 = vld [vmem:[%s5711 + $0x8] sm:$0xf]
        %v5715 = vld [vmem:[%s5711 + $0xc] sm:$0xf]
        %v5720 = vunpack.c.l.b16 %v5712
        %v5721 = vunpack.c.l.b16 %v5713
        %v5722 = vunpack.c.l.b16 %v5714
        %v5723 = vunpack.c.l.b16 %v5715
        %v5724 = vpack.c.b16 %v5721, %v5720
        %v5725 = vpack.c.b16 %v5723, %v5722
        %v5729 = vsel %vm495, %v5710, 0
        %5731 = vmatprep.subr.bf16.mxu0 0
        %5732 = vmatpush1.bf16.msra.mxu0 0
        %5733 = vmatprep.subr.bf16.mxu0 0
        %5734 = vmatpush1.bf16.msra.mxu0 0
        %5735 = vmatprep.subr.bf16.mxu0 0
        %5736 = vmatpush1.bf16.msra.mxu0 0
        %5737 = vmatprep.subr.bf16.mxu0 0
        %5738 = vmatpush1.bf16.msra.mxu0 0
        %5739 = vmatprep.subr.bf16.mxu0 0
        %5740 = vmatpush1.bf16.msra.mxu0 0
        %5741 = vmatprep.subr.bf16.mxu0 0
        %5742 = vmatpush1.bf16.msra.mxu0 0
        %5743 = vmatprep.subr.bf16.mxu0 0
        %5744 = vmatpush1.bf16.msra.mxu0 %v5725
        %5745 = vmatprep.subr.bf16.mxu0 0
        %5746 = vmatpush1.bf16.msra.mxu0 %v5724
        %5747 = vmatprep.subr.bf16.mxu0 0
        %5748 = vmatpush2.bf16.msra.mxu0 0
        %5749 = vmatprep.subr.bf16.mxu0 0
        %5750 = vmatpush2.bf16.msra.mxu0 0
        %5751 = vmatprep.subr.bf16.mxu0 0
        %5752 = vmatpush2.bf16.msra.mxu0 0
        %5753 = vmatprep.subr.bf16.mxu0 0
        %5754 = vmatpush2.bf16.msra.mxu0 0
        %5755 = vmatprep.subr.bf16.mxu0 0
        %5756 = vmatpush2.bf16.msra.mxu0 0
        %5757 = vmatprep.subr.bf16.mxu0 0
        %5758 = vmatpush2.bf16.msra.mxu0 0
        %5759 = vmatprep.subr.bf16.mxu0 0
        %5760 = vmatpush2.bf16.msra.mxu0 0
        %5761 = vmatprep.subr.bf16.mxu0 0
        %5762 = vmatpush2.bf16.msra.mxu0 0
        %5763 = vmatprep.mubr.bf16.mxu0 0
        %5764 = vmatmul.mubr.bf16.gmra.mxu0 %v5729
        %v5765 = vpop.f32.mrf.mxu0
        %v5766 = vadd.f32 0.0, %v5765
        %v5767 = vpop.f32.mrf.mxu0
        %v5768 = vpop.f32.mrf.mxu0
        %v5769 = vadd.f32 0.0, %v5768
        %v5770 = vpop.f32.mrf.mxu0
        %5771 = vdwg.mxu0
        %v5772 = vadd.f32 %v5696, %v5766
        %v5773 = vadd.f32 %v5697, %v5769
        %v5774 = vld [vmem:[%s9] sm:$0xf]
        %vm5775 = vcmask 130048
        %v5777 = vsel %vm5775, %v5774, 0
        %5779 = vmatprep.subr.mxu0 0.0
        %5780 = vmatpush1.msra.mxu0 0.0
        %5781 = vmatprep.subr.mxu0 0.0
        %5782 = vmatpush1.msra.mxu0 0.0
        %5783 = vmatprep.subr.mxu0 0.0
        %5784 = vmatpush1.msra.mxu0 0.0
        %5785 = vmatprep.subr.mxu0 0.0
        %5786 = vmatpush1.msra.mxu0 0.0
        %5787 = vmatprep.subr.mxu0 0.0
        %5788 = vmatpush1.msra.mxu0 0.0
        %5789 = vmatprep.subr.mxu0 0.0
        %5790 = vmatpush1.msra.mxu0 0.0
        %5791 = vmatprep.subr.mxu0 0.0
        %5792 = vmatpush1.msra.mxu0 0.0
        %5793 = vmatprep.subr.mxu0 0.0
        %5794 = vmatpush1.msra.mxu0 0.0
        %5795 = vmatprep.subr.mxu0 0.0
        %5796 = vmatpush1.msra.mxu0 0.0
        %5797 = vmatprep.subr.mxu0 0.0
        %5798 = vmatpush1.msra.mxu0 0.0
        %5799 = vmatprep.subr.mxu0 0.0
        %5800 = vmatpush1.msra.mxu0 0.0
        %5801 = vmatprep.subr.mxu0 0.0
        %5802 = vmatpush1.msra.mxu0 0.0
        %5803 = vmatprep.subr.mxu0 0.0
        %5804 = vmatpush1.msra.mxu0 0.0
        %5805 = vmatprep.subr.mxu0 0.0
        %5806 = vmatpush1.msra.mxu0 0.0
        %5807 = vmatprep.subr.mxu0 0.0
        %5808 = vmatpush1.msra.mxu0 %v5773
        %5809 = vmatprep.subr.mxu0 0.0
        %5810 = vmatpush1.msra.mxu0 %v5772
        %5811 = vmatprep.subr.mxu0 0.0
        %5812 = vmatpush2.msra.mxu0 0.0
        %5813 = vmatprep.subr.mxu0 0.0
        %5814 = vmatpush2.msra.mxu0 0.0
        %5815 = vmatprep.subr.mxu0 0.0
        %5816 = vmatpush2.msra.mxu0 0.0
        %5817 = vmatprep.subr.mxu0 0.0
        %5818 = vmatpush2.msra.mxu0 0.0
        %5819 = vmatprep.subr.mxu0 0.0
        %5820 = vmatpush2.msra.mxu0 0.0
        %5821 = vmatprep.subr.mxu0 0.0
        %5822 = vmatpush2.msra.mxu0 0.0
        %5823 = vmatprep.subr.mxu0 0.0
        %5824 = vmatpush2.msra.mxu0 0.0
        %5825 = vmatprep.subr.mxu0 0.0
        %5826 = vmatpush2.msra.mxu0 0.0
        %5827 = vmatprep.subr.mxu0 0.0
        %5828 = vmatpush2.msra.mxu0 0.0
        %5829 = vmatprep.subr.mxu0 0.0
        %5830 = vmatpush2.msra.mxu0 0.0
        %5831 = vmatprep.subr.mxu0 0.0
        %5832 = vmatpush2.msra.mxu0 0.0
        %5833 = vmatprep.subr.mxu0 0.0
        %5834 = vmatpush2.msra.mxu0 0.0
        %5835 = vmatprep.subr.mxu0 0.0
        %5836 = vmatpush2.msra.mxu0 0.0
        %5837 = vmatprep.subr.mxu0 0.0
        %5838 = vmatpush2.msra.mxu0 0.0
        %5839 = vmatprep.subr.mxu0 0.0
        %5840 = vmatpush2.msra.mxu0 0.0
        %5841 = vmatprep.subr.mxu0 0.0
        %5842 = vmatpush2.msra.mxu0 0.0
        %5843 = vmatprep.mubr.f32.mxu0 0.0
        %5844 = vmatmul.mubr.f32.gmra.mxu0 %v5777
        %v5845 = vpop.f32.mrf.mxu0
        %v5846 = vadd.f32 0.0, %v5845
        %v5847 = vpop.f32.mrf.mxu0
        %5848 = vdwg.mxu0
        %s5849 = scalar_lea.vmem %s9, 4
        %v5850 = vld [vmem:[%s5849] sm:$0xf]
        %v5852 = vsel %vm5775, %v5850, 0
        %5854 = vmatprep.subr.mxu0 0.0
        %5855 = vmatpush1.msra.mxu0 0.0
        %5856 = vmatprep.subr.mxu0 0.0
        %5857 = vmatpush1.msra.mxu0 0.0
        %5858 = vmatprep.subr.mxu0 0.0
        %5859 = vmatpush1.msra.mxu0 0.0
        %5860 = vmatprep.subr.mxu0 0.0
        %5861 = vmatpush1.msra.mxu0 0.0
        %5862 = vmatprep.subr.mxu0 0.0
        %5863 = vmatpush1.msra.mxu0 0.0
        %5864 = vmatprep.subr.mxu0 0.0
        %5865 = vmatpush1.msra.mxu0 0.0
        %5866 = vmatprep.subr.mxu0 0.0
        %5867 = vmatpush1.msra.mxu0 0.0
        %5868 = vmatprep.subr.mxu0 0.0
        %5869 = vmatpush1.msra.mxu0 0.0
        %5870 = vmatprep.subr.mxu0 0.0
        %5871 = vmatpush1.msra.mxu0 0.0
        %5872 = vmatprep.subr.mxu0 0.0
        %5873 = vmatpush1.msra.mxu0 0.0
        %5874 = vmatprep.subr.mxu0 0.0
        %5875 = vmatpush1.msra.mxu0 0.0
        %5876 = vmatprep.subr.mxu0 0.0
        %5877 = vmatpush1.msra.mxu0 0.0
        %5878 = vmatprep.subr.mxu0 0.0
        %5879 = vmatpush1.msra.mxu0 0.0
        %5880 = vmatprep.subr.mxu0 0.0
        %5881 = vmatpush1.msra.mxu0 0.0
        %5882 = vmatprep.subr.mxu0 0.0
        %5883 = vmatpush1.msra.mxu0 %v5773
        %5884 = vmatprep.subr.mxu0 0.0
        %5885 = vmatpush1.msra.mxu0 %v5772
        %5886 = vmatprep.subr.mxu0 0.0
        %5887 = vmatpush2.msra.mxu0 0.0
        %5888 = vmatprep.subr.mxu0 0.0
        %5889 = vmatpush2.msra.mxu0 0.0
        %5890 = vmatprep.subr.mxu0 0.0
        %5891 = vmatpush2.msra.mxu0 0.0
        %5892 = vmatprep.subr.mxu0 0.0
        %5893 = vmatpush2.msra.mxu0 0.0
        %5894 = vmatprep.subr.mxu0 0.0
        %5895 = vmatpush2.msra.mxu0 0.0
        %5896 = vmatprep.subr.mxu0 0.0
        %5897 = vmatpush2.msra.mxu0 0.0
        %5898 = vmatprep.subr.mxu0 0.0
        %5899 = vmatpush2.msra.mxu0 0.0
        %5900 = vmatprep.subr.mxu0 0.0
        %5901 = vmatpush2.msra.mxu0 0.0
        %5902 = vmatprep.subr.mxu0 0.0
        %5903 = vmatpush2.msra.mxu0 0.0
        %5904 = vmatprep.subr.mxu0 0.0
        %5905 = vmatpush2.msra.mxu0 0.0
        %5906 = vmatprep.subr.mxu0 0.0
        %5907 = vmatpush2.msra.mxu0 0.0
        %5908 = vmatprep.subr.mxu0 0.0
        %5909 = vmatpush2.msra.mxu0 0.0
        %5910 = vmatprep.subr.mxu0 0.0
        %5911 = vmatpush2.msra.mxu0 0.0
        %5912 = vmatprep.subr.mxu0 0.0
        %5913 = vmatpush2.msra.mxu0 0.0
        %5914 = vmatprep.subr.mxu0 0.0
        %5915 = vmatpush2.msra.mxu0 0.0
        %5916 = vmatprep.subr.mxu0 0.0
        %5917 = vmatpush2.msra.mxu0 0.0
        %5918 = vmatprep.mubr.f32.mxu0 0.0
        %5919 = vmatmul.mubr.f32.gmra.mxu0 %v5852
        %v5920 = vpop.f32.mrf.mxu0
        %v5921 = vadd.f32 0.0, %v5920
        %v5922 = vpop.f32.mrf.mxu0
        %5923 = vdwg.mxu0
        %v5924 = vmax.f32 %v5846, %v5921
        %s5925 = scalar_lea.vmem %s9, 8
        %v5926 = vld [vmem:[%s5925] sm:$0xf]
        %v5928 = vsel %vm5775, %v5926, 0
        %5930 = vmatprep.subr.mxu0 0.0
        %5931 = vmatpush1.msra.mxu0 0.0
        %5932 = vmatprep.subr.mxu0 0.0
        %5933 = vmatpush1.msra.mxu0 0.0
        %5934 = vmatprep.subr.mxu0 0.0
        %5935 = vmatpush1.msra.mxu0 0.0
        %5936 = vmatprep.subr.mxu0 0.0
        %5937 = vmatpush1.msra.mxu0 0.0
        %5938 = vmatprep.subr.mxu0 0.0
        %5939 = vmatpush1.msra.mxu0 0.0
        %5940 = vmatprep.subr.mxu0 0.0
        %5941 = vmatpush1.msra.mxu0 0.0
        %5942 = vmatprep.subr.mxu0 0.0
        %5943 = vmatpush1.msra.mxu0 0.0
        %5944 = vmatprep.subr.mxu0 0.0
        %5945 = vmatpush1.msra.mxu0 0.0
        %5946 = vmatprep.subr.mxu0 0.0
        %5947 = vmatpush1.msra.mxu0 0.0
        %5948 = vmatprep.subr.mxu0 0.0
        %5949 = vmatpush1.msra.mxu0 0.0
        %5950 = vmatprep.subr.mxu0 0.0
        %5951 = vmatpush1.msra.mxu0 0.0
        %5952 = vmatprep.subr.mxu0 0.0
        %5953 = vmatpush1.msra.mxu0 0.0
        %5954 = vmatprep.subr.mxu0 0.0
        %5955 = vmatpush1.msra.mxu0 0.0
        %5956 = vmatprep.subr.mxu0 0.0
        %5957 = vmatpush1.msra.mxu0 0.0
        %5958 = vmatprep.subr.mxu0 0.0
        %5959 = vmatpush1.msra.mxu0 %v5773
        %5960 = vmatprep.subr.mxu0 0.0
        %5961 = vmatpush1.msra.mxu0 %v5772
        %5962 = vmatprep.subr.mxu0 0.0
        %5963 = vmatpush2.msra.mxu0 0.0
        %5964 = vmatprep.subr.mxu0 0.0
        %5965 = vmatpush2.msra.mxu0 0.0
        %5966 = vmatprep.subr.mxu0 0.0
        %5967 = vmatpush2.msra.mxu0 0.0
        %5968 = vmatprep.subr.mxu0 0.0
        %5969 = vmatpush2.msra.mxu0 0.0
        %5970 = vmatprep.subr.mxu0 0.0
        %5971 = vmatpush2.msra.mxu0 0.0
        %5972 = vmatprep.subr.mxu0 0.0
        %5973 = vmatpush2.msra.mxu0 0.0
        %5974 = vmatprep.subr.mxu0 0.0
        %5975 = vmatpush2.msra.mxu0 0.0
        %5976 = vmatprep.subr.mxu0 0.0
        %5977 = vmatpush2.msra.mxu0 0.0
        %5978 = vmatprep.subr.mxu0 0.0
        %5979 = vmatpush2.msra.mxu0 0.0
        %5980 = vmatprep.subr.mxu0 0.0
        %5981 = vmatpush2.msra.mxu0 0.0
        %5982 = vmatprep.subr.mxu0 0.0
        %5983 = vmatpush2.msra.mxu0 0.0
        %5984 = vmatprep.subr.mxu0 0.0
        %5985 = vmatpush2.msra.mxu0 0.0
        %5986 = vmatprep.subr.mxu0 0.0
        %5987 = vmatpush2.msra.mxu0 0.0
        %5988 = vmatprep.subr.mxu0 0.0
        %5989 = vmatpush2.msra.mxu0 0.0
        %5990 = vmatprep.subr.mxu0 0.0
        %5991 = vmatpush2.msra.mxu0 0.0
        %5992 = vmatprep.subr.mxu0 0.0
        %5993 = vmatpush2.msra.mxu0 0.0
        %5994 = vmatprep.mubr.f32.mxu0 0.0
        %5995 = vmatmul.mubr.f32.gmra.mxu0 %v5928
        %v5996 = vpop.f32.mrf.mxu0
        %v5997 = vadd.f32 0.0, %v5996
        %v5998 = vpop.f32.mrf.mxu0
        %5999 = vdwg.mxu0
        %v6000 = vmax.f32 %v5924, %v5997
        %s6001 = scalar_lea.vmem %s9, 12
        %v6002 = vld [vmem:[%s6001] sm:$0xf]
        %v6004 = vsel %vm5775, %v6002, 0
        %6006 = vmatprep.subr.mxu0 0.0
        %6007 = vmatpush1.msra.mxu0 0.0
        %6008 = vmatprep.subr.mxu0 0.0
        %6009 = vmatpush1.msra.mxu0 0.0
        %6010 = vmatprep.subr.mxu0 0.0
        %6011 = vmatpush1.msra.mxu0 0.0
        %6012 = vmatprep.subr.mxu0 0.0
        %6013 = vmatpush1.msra.mxu0 0.0
        %6014 = vmatprep.subr.mxu0 0.0
        %6015 = vmatpush1.msra.mxu0 0.0
        %6016 = vmatprep.subr.mxu0 0.0
        %6017 = vmatpush1.msra.mxu0 0.0
        %6018 = vmatprep.subr.mxu0 0.0
        %6019 = vmatpush1.msra.mxu0 0.0
        %6020 = vmatprep.subr.mxu0 0.0
        %6021 = vmatpush1.msra.mxu0 0.0
        %6022 = vmatprep.subr.mxu0 0.0
        %6023 = vmatpush1.msra.mxu0 0.0
        %6024 = vmatprep.subr.mxu0 0.0
        %6025 = vmatpush1.msra.mxu0 0.0
        %6026 = vmatprep.subr.mxu0 0.0
        %6027 = vmatpush1.msra.mxu0 0.0
        %6028 = vmatprep.subr.mxu0 0.0
        %6029 = vmatpush1.msra.mxu0 0.0
        %6030 = vmatprep.subr.mxu0 0.0
        %6031 = vmatpush1.msra.mxu0 0.0
        %6032 = vmatprep.subr.mxu0 0.0
        %6033 = vmatpush1.msra.mxu0 0.0
        %6034 = vmatprep.subr.mxu0 0.0
        %6035 = vmatpush1.msra.mxu0 %v5773
        %6036 = vmatprep.subr.mxu0 0.0
        %6037 = vmatpush1.msra.mxu0 %v5772
        %6038 = vmatprep.subr.mxu0 0.0
        %6039 = vmatpush2.msra.mxu0 0.0
        %6040 = vmatprep.subr.mxu0 0.0
        %6041 = vmatpush2.msra.mxu0 0.0
        %6042 = vmatprep.subr.mxu0 0.0
        %6043 = vmatpush2.msra.mxu0 0.0
        %6044 = vmatprep.subr.mxu0 0.0
        %6045 = vmatpush2.msra.mxu0 0.0
        %6046 = vmatprep.subr.mxu0 0.0
        %6047 = vmatpush2.msra.mxu0 0.0
        %6048 = vmatprep.subr.mxu0 0.0
        %6049 = vmatpush2.msra.mxu0 0.0
        %6050 = vmatprep.subr.mxu0 0.0
        %6051 = vmatpush2.msra.mxu0 0.0
        %6052 = vmatprep.subr.mxu0 0.0
        %6053 = vmatpush2.msra.mxu0 0.0
        %6054 = vmatprep.subr.mxu0 0.0
        %6055 = vmatpush2.msra.mxu0 0.0
        %6056 = vmatprep.subr.mxu0 0.0
        %6057 = vmatpush2.msra.mxu0 0.0
        %6058 = vmatprep.subr.mxu0 0.0
        %6059 = vmatpush2.msra.mxu0 0.0
        %6060 = vmatprep.subr.mxu0 0.0
        %6061 = vmatpush2.msra.mxu0 0.0
        %6062 = vmatprep.subr.mxu0 0.0
        %6063 = vmatpush2.msra.mxu0 0.0
        %6064 = vmatprep.subr.mxu0 0.0
        %6065 = vmatpush2.msra.mxu0 0.0
        %6066 = vmatprep.subr.mxu0 0.0
        %6067 = vmatpush2.msra.mxu0 0.0
        %6068 = vmatprep.subr.mxu0 0.0
        %6069 = vmatpush2.msra.mxu0 0.0
        %6070 = vmatprep.mubr.f32.mxu0 0.0
        %6071 = vmatmul.mubr.f32.gmra.mxu0 %v6004
        %v6072 = vpop.f32.mrf.mxu0
        %v6073 = vadd.f32 0.0, %v6072
        %v6074 = vpop.f32.mrf.mxu0
        %6075 = vdwg.mxu0
        %v6076 = vmax.f32 %v6000, %v6073
        %v6077 = vld [vmem:[%s8] sm:$0x1]
        %v6079 = vlaneseq
        %v6080 = vshrl.u32 %v6079, 7
        %v6081 = vsub.s32 0, %v6080
        %v6082 = vrot.slane %v6077, %v6081
        %v6084 = vadd.f32 %v6076, %v6082
        %v6085 = vmax.f32 %v6084, 0.0
        %v6088 = vunpack.c.l.s4 1983009808
        %v6089 = vunpack.c.0.s8 %v6088
        %v6090 = vlaneseq
        %v6091 = vshrl.u32 %v6090, 7
        %v6092 = vsub.s32 %v6089, %v6091
        %v6093 = vrot.slane %v6085, %v6092
        %v6094 = vcombine.high %v6093, %v6093
        %s6097 = scalar_lea.vmem [#allocation5], 4
        %6098 = vst.msk [vmem:[%s6097 + $0x1] sm:$0x3] %vm497, %v6093
        %6099 = vst.msk [vmem:[%s6097 + $0x5] sm:$0x3] %vm497, %v6094
        %v6100 = vld [vmem:[#allocation5] sm:$0x3]
        %v6101 = vld [vmem:[#allocation5 + $0x4] sm:$0x3]
        %v6104 = vcombine.low %v6100, %v6101
        %v6106 = vunpack.c.l.s4 1983009808
        %v6107 = vunpack.c.0.s8 %v6106
        %v6108 = vlaneseq
        %v6109 = vshrl.u32 %v6108, 7
        %v6110 = vsub.s32 %v6107, %v6109
        %v6111 = vrot.slane %v6104, %v6110
        %v6113 = vpack.c.bf16 %v6111, %v6111
        %v6114 = vld [vmem:[%s10] sm:$0xf]
        %v6115 = vld [vmem:[%s10 + $0x4] sm:$0xf]
        %v6116 = vld [vmem:[%s10 + $0x8] sm:$0xf]
        %v6117 = vld [vmem:[%s10 + $0xc] sm:$0xf]
        %v6118 = vld [vmem:[#allocation5 + $0x1] sm:$0x3]
        %v6119 = vld [vmem:[#allocation5 + $0x5] sm:$0x3]
        %v6122 = vcombine.low %v6118, %v6119
        %v6124 = vunpack.c.l.s4 1983009808
        %v6125 = vunpack.c.0.s8 %v6124
        %v6126 = vlaneseq
        %v6127 = vshrl.u32 %v6126, 7
        %v6128 = vsub.s32 %v6125, %v6127
        %v6129 = vrot.slane %v6122, %v6128
        %v6131 = vpack.c.bf16 %v6129, %v6129
        %s6132 = scalar_lea.vmem %s10, 16
        %v6133 = vld [vmem:[%s6132] sm:$0xf]
        %v6134 = vld [vmem:[%s6132 + $0x4] sm:$0xf]
        %v6135 = vld [vmem:[%s6132 + $0x8] sm:$0xf]
        %v6136 = vld [vmem:[%s6132 + $0xc] sm:$0xf]
        %v6141 = vunpack.c.l.b16 %v6133
        %v6142 = vunpack.c.l.b16 %v6134
        %v6143 = vunpack.c.l.b16 %v6135
        %v6144 = vunpack.c.l.b16 %v6136
        %v6145 = vpack.c.b16 %v6142, %v6141
        %v6146 = vpack.c.b16 %v6144, %v6143
        %v6150 = vsel %vm495, %v6131, 0
        %6152 = vmatprep.subr.bf16.mxu0 0
        %6153 = vmatpush1.bf16.msra.mxu0 0
        %6154 = vmatprep.subr.bf16.mxu0 0
        %6155 = vmatpush1.bf16.msra.mxu0 0
        %6156 = vmatprep.subr.bf16.mxu0 0
        %6157 = vmatpush1.bf16.msra.mxu0 0
        %6158 = vmatprep.subr.bf16.mxu0 0
        %6159 = vmatpush1.bf16.msra.mxu0 0
        %6160 = vmatprep.subr.bf16.mxu0 0
        %6161 = vmatpush1.bf16.msra.mxu0 0
        %6162 = vmatprep.subr.bf16.mxu0 0
        %6163 = vmatpush1.bf16.msra.mxu0 0
        %6164 = vmatprep.subr.bf16.mxu0 0
        %6165 = vmatpush1.bf16.msra.mxu0 %v6146
        %6166 = vmatprep.subr.bf16.mxu0 0
        %6167 = vmatpush1.bf16.msra.mxu0 %v6145
        %6168 = vmatprep.subr.bf16.mxu0 0
        %6169 = vmatpush2.bf16.msra.mxu0 0
        %6170 = vmatprep.subr.bf16.mxu0 0
        %6171 = vmatpush2.bf16.msra.mxu0 0
        %6172 = vmatprep.subr.bf16.mxu0 0
        %6173 = vmatpush2.bf16.msra.mxu0 0
        %6174 = vmatprep.subr.bf16.mxu0 0
        %6175 = vmatpush2.bf16.msra.mxu0 0
        %6176 = vmatprep.subr.bf16.mxu0 0
        %6177 = vmatpush2.bf16.msra.mxu0 0
        %6178 = vmatprep.subr.bf16.mxu0 0
        %6179 = vmatpush2.bf16.msra.mxu0 0
        %6180 = vmatprep.subr.bf16.mxu0 0
        %6181 = vmatpush2.bf16.msra.mxu0 0
        %6182 = vmatprep.subr.bf16.mxu0 0
        %6183 = vmatpush2.bf16.msra.mxu0 0
        %6184 = vmatprep.mubr.bf16.mxu0 0
        %6185 = vmatmul.mubr.bf16.gmra.mxu0 %v6150
        %v6186 = vpop.f32.mrf.mxu0
        %v6187 = vadd.f32 0.0, %v6186
        %v6188 = vpop.f32.mrf.mxu0
        %v6189 = vpop.f32.mrf.mxu0
        %v6190 = vpop.f32.mrf.mxu0
        %6191 = vdwg.mxu0
        %v6196 = vunpack.c.l.b16 %v6114
        %v6197 = vunpack.c.l.b16 %v6115
        %v6198 = vunpack.c.l.b16 %v6116
        %v6199 = vunpack.c.l.b16 %v6117
        %v6200 = vpack.c.b16 %v6197, %v6196
        %v6201 = vpack.c.b16 %v6199, %v6198
        %v6205 = vsel %vm495, %v6113, 0
        %6207 = vmatprep.subr.bf16.mxu0 0
        %6208 = vmatpush1.bf16.msra.mxu0 0
        %6209 = vmatprep.subr.bf16.mxu0 0
        %6210 = vmatpush1.bf16.msra.mxu0 0
        %6211 = vmatprep.subr.bf16.mxu0 0
        %6212 = vmatpush1.bf16.msra.mxu0 0
        %6213 = vmatprep.subr.bf16.mxu0 0
        %6214 = vmatpush1.bf16.msra.mxu0 0
        %6215 = vmatprep.subr.bf16.mxu0 0
        %6216 = vmatpush1.bf16.msra.mxu0 0
        %6217 = vmatprep.subr.bf16.mxu0 0
        %6218 = vmatpush1.bf16.msra.mxu0 0
        %6219 = vmatprep.subr.bf16.mxu0 0
        %6220 = vmatpush1.bf16.msra.mxu0 %v6201
        %6221 = vmatprep.subr.bf16.mxu0 0
        %6222 = vmatpush1.bf16.msra.mxu0 %v6200
        %6223 = vmatprep.subr.bf16.mxu0 0
        %6224 = vmatpush2.bf16.msra.mxu0 0
        %6225 = vmatprep.subr.bf16.mxu0 0
        %6226 = vmatpush2.bf16.msra.mxu0 0
        %6227 = vmatprep.subr.bf16.mxu0 0
        %6228 = vmatpush2.bf16.msra.mxu0 0
        %6229 = vmatprep.subr.bf16.mxu0 0
        %6230 = vmatpush2.bf16.msra.mxu0 0
        %6231 = vmatprep.subr.bf16.mxu0 0
        %6232 = vmatpush2.bf16.msra.mxu0 0
        %6233 = vmatprep.subr.bf16.mxu0 0
        %6234 = vmatpush2.bf16.msra.mxu0 0
        %6235 = vmatprep.subr.bf16.mxu0 0
        %6236 = vmatpush2.bf16.msra.mxu0 0
        %6237 = vmatprep.subr.bf16.mxu0 0
        %6238 = vmatpush2.bf16.msra.mxu0 0
        %6239 = vmatprep.mubr.bf16.mxu0 0
        %6240 = vmatmul.mubr.bf16.gmra.mxu0 %v6205
        %v6241 = vpop.f32.mrf.mxu0
        %v6242 = vadd.f32 %v6187, %v6241
        %v6243 = vpop.f32.mrf.mxu0
        %v6244 = vpop.f32.mrf.mxu0
        %v6245 = vpop.f32.mrf.mxu0
        %6246 = vdwg.mxu0
        %v6247 = vld [vmem:[#allocation5 + $0x2] sm:$0x3]
        %v6248 = vld [vmem:[#allocation5 + $0x6] sm:$0x3]
        %v6251 = vcombine.low %v6247, %v6248
        %v6253 = vunpack.c.l.s4 1983009808
        %v6254 = vunpack.c.0.s8 %v6253
        %v6255 = vlaneseq
        %v6256 = vshrl.u32 %v6255, 7
        %v6257 = vsub.s32 %v6254, %v6256
        %v6258 = vrot.slane %v6251, %v6257
        %v6260 = vpack.c.bf16 %v6258, %v6258
        %s6261 = scalar_lea.vmem %s10, 32
        %v6262 = vld [vmem:[%s6261] sm:$0xf]
        %v6263 = vld [vmem:[%s6261 + $0x4] sm:$0xf]
        %v6264 = vld [vmem:[%s6261 + $0x8] sm:$0xf]
        %v6265 = vld [vmem:[%s6261 + $0xc] sm:$0xf]
        %v6270 = vunpack.c.l.b16 %v6262
        %v6271 = vunpack.c.l.b16 %v6263
        %v6272 = vunpack.c.l.b16 %v6264
        %v6273 = vunpack.c.l.b16 %v6265
        %v6274 = vpack.c.b16 %v6271, %v6270
        %v6275 = vpack.c.b16 %v6273, %v6272
        %v6279 = vsel %vm495, %v6260, 0
        %6281 = vmatprep.subr.bf16.mxu0 0
        %6282 = vmatpush1.bf16.msra.mxu0 0
        %6283 = vmatprep.subr.bf16.mxu0 0
        %6284 = vmatpush1.bf16.msra.mxu0 0
        %6285 = vmatprep.subr.bf16.mxu0 0
        %6286 = vmatpush1.bf16.msra.mxu0 0
        %6287 = vmatprep.subr.bf16.mxu0 0
        %6288 = vmatpush1.bf16.msra.mxu0 0
        %6289 = vmatprep.subr.bf16.mxu0 0
        %6290 = vmatpush1.bf16.msra.mxu0 0
        %6291 = vmatprep.subr.bf16.mxu0 0
        %6292 = vmatpush1.bf16.msra.mxu0 0
        %6293 = vmatprep.subr.bf16.mxu0 0
        %6294 = vmatpush1.bf16.msra.mxu0 %v6275
        %6295 = vmatprep.subr.bf16.mxu0 0
        %6296 = vmatpush1.bf16.msra.mxu0 %v6274
        %6297 = vmatprep.subr.bf16.mxu0 0
        %6298 = vmatpush2.bf16.msra.mxu0 0
        %6299 = vmatprep.subr.bf16.mxu0 0
        %6300 = vmatpush2.bf16.msra.mxu0 0
        %6301 = vmatprep.subr.bf16.mxu0 0
        %6302 = vmatpush2.bf16.msra.mxu0 0
        %6303 = vmatprep.subr.bf16.mxu0 0
        %6304 = vmatpush2.bf16.msra.mxu0 0
        %6305 = vmatprep.subr.bf16.mxu0 0
        %6306 = vmatpush2.bf16.msra.mxu0 0
        %6307 = vmatprep.subr.bf16.mxu0 0
        %6308 = vmatpush2.bf16.msra.mxu0 0
        %6309 = vmatprep.subr.bf16.mxu0 0
        %6310 = vmatpush2.bf16.msra.mxu0 0
        %6311 = vmatprep.subr.bf16.mxu0 0
        %6312 = vmatpush2.bf16.msra.mxu0 0
        %6313 = vmatprep.mubr.bf16.mxu0 0
        %6314 = vmatmul.mubr.bf16.gmra.mxu0 %v6279
        %v6315 = vpop.f32.mrf.mxu0
        %v6316 = vadd.f32 0.0, %v6315
        %v6317 = vpop.f32.mrf.mxu0
        %v6318 = vpop.f32.mrf.mxu0
        %v6319 = vpop.f32.mrf.mxu0
        %6320 = vdwg.mxu0
        %v6321 = vadd.f32 %v6242, %v6316
        %v6322 = vld [vmem:[%s6097] sm:$0x3]
        %v6323 = vld [vmem:[%s6097 + $0x4] sm:$0x3]
        %v6326 = vcombine.low %v6322, %v6323
        %v6328 = vunpack.c.l.s4 1983009808
        %v6329 = vunpack.c.0.s8 %v6328
        %v6330 = vlaneseq
        %v6331 = vshrl.u32 %v6330, 7
        %v6332 = vsub.s32 %v6329, %v6331
        %v6333 = vrot.slane %v6326, %v6332
        %v6335 = vpack.c.bf16 %v6333, %v6333
        %s6336 = scalar_lea.vmem %s10, 48
        %v6337 = vld [vmem:[%s6336] sm:$0xf]
        %v6338 = vld [vmem:[%s6336 + $0x4] sm:$0xf]
        %v6339 = vld [vmem:[%s6336 + $0x8] sm:$0xf]
        %v6340 = vld [vmem:[%s6336 + $0xc] sm:$0xf]
        %v6345 = vunpack.c.l.b16 %v6337
        %v6346 = vunpack.c.l.b16 %v6338
        %v6347 = vunpack.c.l.b16 %v6339
        %v6348 = vunpack.c.l.b16 %v6340
        %v6349 = vpack.c.b16 %v6346, %v6345
        %v6350 = vpack.c.b16 %v6348, %v6347
        %v6354 = vsel %vm495, %v6335, 0
        %6356 = vmatprep.subr.bf16.mxu0 0
        %6357 = vmatpush1.bf16.msra.mxu0 0
        %6358 = vmatprep.subr.bf16.mxu0 0
        %6359 = vmatpush1.bf16.msra.mxu0 0
        %6360 = vmatprep.subr.bf16.mxu0 0
        %6361 = vmatpush1.bf16.msra.mxu0 0
        %6362 = vmatprep.subr.bf16.mxu0 0
        %6363 = vmatpush1.bf16.msra.mxu0 0
        %6364 = vmatprep.subr.bf16.mxu0 0
        %6365 = vmatpush1.bf16.msra.mxu0 0
        %6366 = vmatprep.subr.bf16.mxu0 0
        %6367 = vmatpush1.bf16.msra.mxu0 0
        %6368 = vmatprep.subr.bf16.mxu0 0
        %6369 = vmatpush1.bf16.msra.mxu0 %v6350
        %6370 = vmatprep.subr.bf16.mxu0 0
        %6371 = vmatpush1.bf16.msra.mxu0 %v6349
        %6372 = vmatprep.subr.bf16.mxu0 0
        %6373 = vmatpush2.bf16.msra.mxu0 0
        %6374 = vmatprep.subr.bf16.mxu0 0
        %6375 = vmatpush2.bf16.msra.mxu0 0
        %6376 = vmatprep.subr.bf16.mxu0 0
        %6377 = vmatpush2.bf16.msra.mxu0 0
        %6378 = vmatprep.subr.bf16.mxu0 0
        %6379 = vmatpush2.bf16.msra.mxu0 0
        %6380 = vmatprep.subr.bf16.mxu0 0
        %6381 = vmatpush2.bf16.msra.mxu0 0
        %6382 = vmatprep.subr.bf16.mxu0 0
        %6383 = vmatpush2.bf16.msra.mxu0 0
        %6384 = vmatprep.subr.bf16.mxu0 0
        %6385 = vmatpush2.bf16.msra.mxu0 0
        %6386 = vmatprep.subr.bf16.mxu0 0
        %6387 = vmatpush2.bf16.msra.mxu0 0
        %6388 = vmatprep.mubr.bf16.mxu0 0
        %6389 = vmatmul.mubr.bf16.gmra.mxu0 %v6354
        %v6390 = vpop.f32.mrf.mxu0
        %v6391 = vadd.f32 0.0, %v6390
        %v6392 = vpop.f32.mrf.mxu0
        %v6393 = vpop.f32.mrf.mxu0
        %v6394 = vpop.f32.mrf.mxu0
        %6395 = vdwg.mxu0
        %v6396 = vadd.f32 %v6321, %v6391
        %v6397 = vld [vmem:[%s6097 + $0x1] sm:$0x3]
        %v6398 = vld [vmem:[%s6097 + $0x5] sm:$0x3]
        %v6401 = vcombine.low %v6397, %v6398
        %v6403 = vunpack.c.l.s4 1983009808
        %v6404 = vunpack.c.0.s8 %v6403
        %v6405 = vlaneseq
        %v6406 = vshrl.u32 %v6405, 7
        %v6407 = vsub.s32 %v6404, %v6406
        %v6408 = vrot.slane %v6401, %v6407
        %v6410 = vpack.c.bf16 %v6408, %v6408
        %s6411 = scalar_lea.vmem %s10, 64
        %v6412 = vld [vmem:[%s6411] sm:$0xf]
        %v6413 = vld [vmem:[%s6411 + $0x4] sm:$0xf]
        %v6414 = vld [vmem:[%s6411 + $0x8] sm:$0xf]
        %v6415 = vld [vmem:[%s6411 + $0xc] sm:$0xf]
        %v6420 = vunpack.c.l.b16 %v6412
        %v6421 = vunpack.c.l.b16 %v6413
        %v6422 = vunpack.c.l.b16 %v6414
        %v6423 = vunpack.c.l.b16 %v6415
        %v6424 = vpack.c.b16 %v6421, %v6420
        %v6425 = vpack.c.b16 %v6423, %v6422
        %v6429 = vsel %vm495, %v6410, 0
        %6431 = vmatprep.subr.bf16.mxu0 0
        %6432 = vmatpush1.bf16.msra.mxu0 0
        %6433 = vmatprep.subr.bf16.mxu0 0
        %6434 = vmatpush1.bf16.msra.mxu0 0
        %6435 = vmatprep.subr.bf16.mxu0 0
        %6436 = vmatpush1.bf16.msra.mxu0 0
        %6437 = vmatprep.subr.bf16.mxu0 0
        %6438 = vmatpush1.bf16.msra.mxu0 0
        %6439 = vmatprep.subr.bf16.mxu0 0
        %6440 = vmatpush1.bf16.msra.mxu0 0
        %6441 = vmatprep.subr.bf16.mxu0 0
        %6442 = vmatpush1.bf16.msra.mxu0 0
        %6443 = vmatprep.subr.bf16.mxu0 0
        %6444 = vmatpush1.bf16.msra.mxu0 %v6425
        %6445 = vmatprep.subr.bf16.mxu0 0
        %6446 = vmatpush1.bf16.msra.mxu0 %v6424
        %6447 = vmatprep.subr.bf16.mxu0 0
        %6448 = vmatpush2.bf16.msra.mxu0 0
        %6449 = vmatprep.subr.bf16.mxu0 0
        %6450 = vmatpush2.bf16.msra.mxu0 0
        %6451 = vmatprep.subr.bf16.mxu0 0
        %6452 = vmatpush2.bf16.msra.mxu0 0
        %6453 = vmatprep.subr.bf16.mxu0 0
        %6454 = vmatpush2.bf16.msra.mxu0 0
        %6455 = vmatprep.subr.bf16.mxu0 0
        %6456 = vmatpush2.bf16.msra.mxu0 0
        %6457 = vmatprep.subr.bf16.mxu0 0
        %6458 = vmatpush2.bf16.msra.mxu0 0
        %6459 = vmatprep.subr.bf16.mxu0 0
        %6460 = vmatpush2.bf16.msra.mxu0 0
        %6461 = vmatprep.subr.bf16.mxu0 0
        %6462 = vmatpush2.bf16.msra.mxu0 0
        %6463 = vmatprep.mubr.bf16.mxu0 0
        %6464 = vmatmul.mubr.bf16.gmra.mxu0 %v6429
        %v6465 = vpop.f32.mrf.mxu0
        %v6466 = vadd.f32 0.0, %v6465
        %v6467 = vpop.f32.mrf.mxu0
        %v6468 = vpop.f32.mrf.mxu0
        %v6469 = vpop.f32.mrf.mxu0
        %6470 = vdwg.mxu0
        %v6471 = vadd.f32 %v6396, %v6466
        %v6472 = vld [vmem:[%s6097 + $0x2] sm:$0x3]
        %v6473 = vld [vmem:[%s6097 + $0x6] sm:$0x3]
        %v6476 = vcombine.low %v6472, %v6473
        %v6478 = vunpack.c.l.s4 1983009808
        %v6479 = vunpack.c.0.s8 %v6478
        %v6480 = vlaneseq
        %v6481 = vshrl.u32 %v6480, 7
        %v6482 = vsub.s32 %v6479, %v6481
        %v6483 = vrot.slane %v6476, %v6482
        %v6485 = vpack.c.bf16 %v6483, %v6483
        %s6486 = scalar_lea.vmem %s10, 80
        %v6487 = vld [vmem:[%s6486] sm:$0xf]
        %v6488 = vld [vmem:[%s6486 + $0x4] sm:$0xf]
        %v6489 = vld [vmem:[%s6486 + $0x8] sm:$0xf]
        %v6490 = vld [vmem:[%s6486 + $0xc] sm:$0xf]
        %v6495 = vunpack.c.l.b16 %v6487
        %v6496 = vunpack.c.l.b16 %v6488
        %v6497 = vunpack.c.l.b16 %v6489
        %v6498 = vunpack.c.l.b16 %v6490
        %v6499 = vpack.c.b16 %v6496, %v6495
        %v6500 = vpack.c.b16 %v6498, %v6497
        %v6504 = vsel %vm495, %v6485, 0
        %6506 = vmatprep.subr.bf16.mxu0 0
        %6507 = vmatpush1.bf16.msra.mxu0 0
        %6508 = vmatprep.subr.bf16.mxu0 0
        %6509 = vmatpush1.bf16.msra.mxu0 0
        %6510 = vmatprep.subr.bf16.mxu0 0
        %6511 = vmatpush1.bf16.msra.mxu0 0
        %6512 = vmatprep.subr.bf16.mxu0 0
        %6513 = vmatpush1.bf16.msra.mxu0 0
        %6514 = vmatprep.subr.bf16.mxu0 0
        %6515 = vmatpush1.bf16.msra.mxu0 0
        %6516 = vmatprep.subr.bf16.mxu0 0
        %6517 = vmatpush1.bf16.msra.mxu0 0
        %6518 = vmatprep.subr.bf16.mxu0 0
        %6519 = vmatpush1.bf16.msra.mxu0 %v6500
        %6520 = vmatprep.subr.bf16.mxu0 0
        %6521 = vmatpush1.bf16.msra.mxu0 %v6499
        %6522 = vmatprep.subr.bf16.mxu0 0
        %6523 = vmatpush2.bf16.msra.mxu0 0
        %6524 = vmatprep.subr.bf16.mxu0 0
        %6525 = vmatpush2.bf16.msra.mxu0 0
        %6526 = vmatprep.subr.bf16.mxu0 0
        %6527 = vmatpush2.bf16.msra.mxu0 0
        %6528 = vmatprep.subr.bf16.mxu0 0
        %6529 = vmatpush2.bf16.msra.mxu0 0
        %6530 = vmatprep.subr.bf16.mxu0 0
        %6531 = vmatpush2.bf16.msra.mxu0 0
        %6532 = vmatprep.subr.bf16.mxu0 0
        %6533 = vmatpush2.bf16.msra.mxu0 0
        %6534 = vmatprep.subr.bf16.mxu0 0
        %6535 = vmatpush2.bf16.msra.mxu0 0
        %6536 = vmatprep.subr.bf16.mxu0 0
        %6537 = vmatpush2.bf16.msra.mxu0 0
        %6538 = vmatprep.mubr.bf16.mxu0 0
        %6539 = vmatmul.mubr.bf16.gmra.mxu0 %v6504
        %v6540 = vpop.f32.mrf.mxu0
        %v6541 = vadd.f32 0.0, %v6540
        %v6542 = vpop.f32.mrf.mxu0
        %v6543 = vpop.f32.mrf.mxu0
        %v6544 = vpop.f32.mrf.mxu0
        %6545 = vdwg.mxu0
        %v6546 = vadd.f32 %v6471, %v6541
        %s6547 = scalar_lea.vmem [#allocation5], 8
        %v6548 = vld [vmem:[%s6547] sm:$0x3]
        %v6549 = vld [vmem:[%s6547 + $0x4] sm:$0x3]
        %v6552 = vcombine.low %v6548, %v6549
        %v6554 = vunpack.c.l.s4 1983009808
        %v6555 = vunpack.c.0.s8 %v6554
        %v6556 = vlaneseq
        %v6557 = vshrl.u32 %v6556, 7
        %v6558 = vsub.s32 %v6555, %v6557
        %v6559 = vrot.slane %v6552, %v6558
        %v6561 = vpack.c.bf16 %v6559, %v6559
        %s6562 = scalar_lea.vmem %s10, 96
        %v6563 = vld [vmem:[%s6562] sm:$0xf]
        %v6564 = vld [vmem:[%s6562 + $0x4] sm:$0xf]
        %v6565 = vld [vmem:[%s6562 + $0x8] sm:$0xf]
        %v6566 = vld [vmem:[%s6562 + $0xc] sm:$0xf]
        %v6571 = vunpack.c.l.b16 %v6563
        %v6572 = vunpack.c.l.b16 %v6564
        %v6573 = vunpack.c.l.b16 %v6565
        %v6574 = vunpack.c.l.b16 %v6566
        %v6575 = vpack.c.b16 %v6572, %v6571
        %v6576 = vpack.c.b16 %v6574, %v6573
        %v6580 = vsel %vm495, %v6561, 0
        %6582 = vmatprep.subr.bf16.mxu0 0
        %6583 = vmatpush1.bf16.msra.mxu0 0
        %6584 = vmatprep.subr.bf16.mxu0 0
        %6585 = vmatpush1.bf16.msra.mxu0 0
        %6586 = vmatprep.subr.bf16.mxu0 0
        %6587 = vmatpush1.bf16.msra.mxu0 0
        %6588 = vmatprep.subr.bf16.mxu0 0
        %6589 = vmatpush1.bf16.msra.mxu0 0
        %6590 = vmatprep.subr.bf16.mxu0 0
        %6591 = vmatpush1.bf16.msra.mxu0 0
        %6592 = vmatprep.subr.bf16.mxu0 0
        %6593 = vmatpush1.bf16.msra.mxu0 0
        %6594 = vmatprep.subr.bf16.mxu0 0
        %6595 = vmatpush1.bf16.msra.mxu0 %v6576
        %6596 = vmatprep.subr.bf16.mxu0 0
        %6597 = vmatpush1.bf16.msra.mxu0 %v6575
        %6598 = vmatprep.subr.bf16.mxu0 0
        %6599 = vmatpush2.bf16.msra.mxu0 0
        %6600 = vmatprep.subr.bf16.mxu0 0
        %6601 = vmatpush2.bf16.msra.mxu0 0
        %6602 = vmatprep.subr.bf16.mxu0 0
        %6603 = vmatpush2.bf16.msra.mxu0 0
        %6604 = vmatprep.subr.bf16.mxu0 0
        %6605 = vmatpush2.bf16.msra.mxu0 0
        %6606 = vmatprep.subr.bf16.mxu0 0
        %6607 = vmatpush2.bf16.msra.mxu0 0
        %6608 = vmatprep.subr.bf16.mxu0 0
        %6609 = vmatpush2.bf16.msra.mxu0 0
        %6610 = vmatprep.subr.bf16.mxu0 0
        %6611 = vmatpush2.bf16.msra.mxu0 0
        %6612 = vmatprep.subr.bf16.mxu0 0
        %6613 = vmatpush2.bf16.msra.mxu0 0
        %6614 = vmatprep.mubr.bf16.mxu0 0
        %6615 = vmatmul.mubr.bf16.gmra.mxu0 %v6580
        %v6616 = vpop.f32.mrf.mxu0
        %v6617 = vadd.f32 0.0, %v6616
        %v6618 = vpop.f32.mrf.mxu0
        %v6619 = vpop.f32.mrf.mxu0
        %v6620 = vpop.f32.mrf.mxu0
        %6621 = vdwg.mxu0
        %v6622 = vadd.f32 %v6546, %v6617
        %v6623 = vld [vmem:[%s6547 + $0x1] sm:$0x3]
        %v6624 = vld [vmem:[%s6547 + $0x5] sm:$0x3]
        %v6627 = vcombine.low %v6623, %v6624
        %v6629 = vunpack.c.l.s4 1983009808
        %v6630 = vunpack.c.0.s8 %v6629
        %v6631 = vlaneseq
        %v6632 = vshrl.u32 %v6631, 7
        %v6633 = vsub.s32 %v6630, %v6632
        %v6634 = vrot.slane %v6627, %v6633
        %v6636 = vpack.c.bf16 %v6634, %v6634
        %s6637 = scalar_lea.vmem %s10, 112
        %v6638 = vld [vmem:[%s6637] sm:$0xf]
        %v6639 = vld [vmem:[%s6637 + $0x4] sm:$0xf]
        %v6640 = vld [vmem:[%s6637 + $0x8] sm:$0xf]
        %v6641 = vld [vmem:[%s6637 + $0xc] sm:$0xf]
        %v6646 = vunpack.c.l.b16 %v6638
        %v6647 = vunpack.c.l.b16 %v6639
        %v6648 = vunpack.c.l.b16 %v6640
        %v6649 = vunpack.c.l.b16 %v6641
        %v6650 = vpack.c.b16 %v6647, %v6646
        %v6651 = vpack.c.b16 %v6649, %v6648
        %v6655 = vsel %vm495, %v6636, 0
        %6657 = vmatprep.subr.bf16.mxu0 0
        %6658 = vmatpush1.bf16.msra.mxu0 0
        %6659 = vmatprep.subr.bf16.mxu0 0
        %6660 = vmatpush1.bf16.msra.mxu0 0
        %6661 = vmatprep.subr.bf16.mxu0 0
        %6662 = vmatpush1.bf16.msra.mxu0 0
        %6663 = vmatprep.subr.bf16.mxu0 0
        %6664 = vmatpush1.bf16.msra.mxu0 0
        %6665 = vmatprep.subr.bf16.mxu0 0
        %6666 = vmatpush1.bf16.msra.mxu0 0
        %6667 = vmatprep.subr.bf16.mxu0 0
        %6668 = vmatpush1.bf16.msra.mxu0 0
        %6669 = vmatprep.subr.bf16.mxu0 0
        %6670 = vmatpush1.bf16.msra.mxu0 %v6651
        %6671 = vmatprep.subr.bf16.mxu0 0
        %6672 = vmatpush1.bf16.msra.mxu0 %v6650
        %6673 = vmatprep.subr.bf16.mxu0 0
        %6674 = vmatpush2.bf16.msra.mxu0 0
        %6675 = vmatprep.subr.bf16.mxu0 0
        %6676 = vmatpush2.bf16.msra.mxu0 0
        %6677 = vmatprep.subr.bf16.mxu0 0
        %6678 = vmatpush2.bf16.msra.mxu0 0
        %6679 = vmatprep.subr.bf16.mxu0 0
        %6680 = vmatpush2.bf16.msra.mxu0 0
        %6681 = vmatprep.subr.bf16.mxu0 0
        %6682 = vmatpush2.bf16.msra.mxu0 0
        %6683 = vmatprep.subr.bf16.mxu0 0
        %6684 = vmatpush2.bf16.msra.mxu0 0
        %6685 = vmatprep.subr.bf16.mxu0 0
        %6686 = vmatpush2.bf16.msra.mxu0 0
        %6687 = vmatprep.subr.bf16.mxu0 0
        %6688 = vmatpush2.bf16.msra.mxu0 0
        %6689 = vmatprep.mubr.bf16.mxu0 0
        %6690 = vmatmul.mubr.bf16.gmra.mxu0 %v6655
        %v6691 = vpop.f32.mrf.mxu0
        %v6692 = vadd.f32 0.0, %v6691
        %v6693 = vpop.f32.mrf.mxu0
        %v6694 = vpop.f32.mrf.mxu0
        %v6695 = vpop.f32.mrf.mxu0
        %6696 = vdwg.mxu0
        %v6697 = vadd.f32 %v6622, %v6692
        %v6698 = vld [vmem:[%s6547 + $0x2] sm:$0x3]
        %v6699 = vld [vmem:[%s6547 + $0x6] sm:$0x3]
        %v6702 = vcombine.low %v6698, %v6699
        %v6704 = vunpack.c.l.s4 1983009808
        %v6705 = vunpack.c.0.s8 %v6704
        %v6706 = vlaneseq
        %v6707 = vshrl.u32 %v6706, 7
        %v6708 = vsub.s32 %v6705, %v6707
        %v6709 = vrot.slane %v6702, %v6708
        %v6711 = vpack.c.bf16 %v6709, %v6709
        %s6712 = scalar_lea.vmem %s10, 128
        %v6713 = vld [vmem:[%s6712] sm:$0xf]
        %v6714 = vld [vmem:[%s6712 + $0x4] sm:$0xf]
        %v6715 = vld [vmem:[%s6712 + $0x8] sm:$0xf]
        %v6716 = vld [vmem:[%s6712 + $0xc] sm:$0xf]
        %v6721 = vunpack.c.l.b16 %v6713
        %v6722 = vunpack.c.l.b16 %v6714
        %v6723 = vunpack.c.l.b16 %v6715
        %v6724 = vunpack.c.l.b16 %v6716
        %v6725 = vpack.c.b16 %v6722, %v6721
        %v6726 = vpack.c.b16 %v6724, %v6723
        %v6730 = vsel %vm495, %v6711, 0
        %6732 = vmatprep.subr.bf16.mxu0 0
        %6733 = vmatpush1.bf16.msra.mxu0 0
        %6734 = vmatprep.subr.bf16.mxu0 0
        %6735 = vmatpush1.bf16.msra.mxu0 0
        %6736 = vmatprep.subr.bf16.mxu0 0
        %6737 = vmatpush1.bf16.msra.mxu0 0
        %6738 = vmatprep.subr.bf16.mxu0 0
        %6739 = vmatpush1.bf16.msra.mxu0 0
        %6740 = vmatprep.subr.bf16.mxu0 0
        %6741 = vmatpush1.bf16.msra.mxu0 0
        %6742 = vmatprep.subr.bf16.mxu0 0
        %6743 = vmatpush1.bf16.msra.mxu0 0
        %6744 = vmatprep.subr.bf16.mxu0 0
        %6745 = vmatpush1.bf16.msra.mxu0 %v6726
        %6746 = vmatprep.subr.bf16.mxu0 0
        %6747 = vmatpush1.bf16.msra.mxu0 %v6725
        %6748 = vmatprep.subr.bf16.mxu0 0
        %6749 = vmatpush2.bf16.msra.mxu0 0
        %6750 = vmatprep.subr.bf16.mxu0 0
        %6751 = vmatpush2.bf16.msra.mxu0 0
        %6752 = vmatprep.subr.bf16.mxu0 0
        %6753 = vmatpush2.bf16.msra.mxu0 0
        %6754 = vmatprep.subr.bf16.mxu0 0
        %6755 = vmatpush2.bf16.msra.mxu0 0
        %6756 = vmatprep.subr.bf16.mxu0 0
        %6757 = vmatpush2.bf16.msra.mxu0 0
        %6758 = vmatprep.subr.bf16.mxu0 0
        %6759 = vmatpush2.bf16.msra.mxu0 0
        %6760 = vmatprep.subr.bf16.mxu0 0
        %6761 = vmatpush2.bf16.msra.mxu0 0
        %6762 = vmatprep.subr.bf16.mxu0 0
        %6763 = vmatpush2.bf16.msra.mxu0 0
        %6764 = vmatprep.mubr.bf16.mxu0 0
        %6765 = vmatmul.mubr.bf16.gmra.mxu0 %v6730
        %v6766 = vpop.f32.mrf.mxu0
        %v6767 = vadd.f32 0.0, %v6766
        %v6768 = vpop.f32.mrf.mxu0
        %v6769 = vpop.f32.mrf.mxu0
        %v6770 = vpop.f32.mrf.mxu0
        %6771 = vdwg.mxu0
        %v6772 = vadd.f32 %v6697, %v6767
        %v6773 = vld [vmem:[%s12] sm:$0x1]
        %v6775 = vsel %vm439, %v6773, 0
        %vm6777 = vcmask 1043456
        %v6779 = vsel %vm6777, %v6772, 0
        %6781 = vmatprep.subr.mxu0 0.0
        %6782 = vmatpush1.msra.mxu0 0.0
        %6783 = vmatprep.subr.mxu0 0.0
        %6784 = vmatpush1.msra.mxu0 0.0
        %6785 = vmatprep.subr.mxu0 0.0
        %6786 = vmatpush1.msra.mxu0 0.0
        %6787 = vmatprep.subr.mxu0 0.0
        %6788 = vmatpush1.msra.mxu0 0.0
        %6789 = vmatprep.subr.mxu0 0.0
        %6790 = vmatpush1.msra.mxu0 0.0
        %6791 = vmatprep.subr.mxu0 0.0
        %6792 = vmatpush1.msra.mxu0 0.0
        %6793 = vmatprep.subr.mxu0 0.0
        %6794 = vmatpush1.msra.mxu0 0.0
        %6795 = vmatprep.subr.mxu0 0.0
        %6796 = vmatpush1.msra.mxu0 0.0
        %6797 = vmatprep.subr.mxu0 0.0
        %6798 = vmatpush1.msra.mxu0 0.0
        %6799 = vmatprep.subr.mxu0 0.0
        %6800 = vmatpush1.msra.mxu0 0.0
        %6801 = vmatprep.subr.mxu0 0.0
        %6802 = vmatpush1.msra.mxu0 0.0
        %6803 = vmatprep.subr.mxu0 0.0
        %6804 = vmatpush1.msra.mxu0 0.0
        %6805 = vmatprep.subr.mxu0 0.0
        %6806 = vmatpush1.msra.mxu0 0.0
        %6807 = vmatprep.subr.mxu0 0.0
        %6808 = vmatpush1.msra.mxu0 0.0
        %6809 = vmatprep.subr.mxu0 0.0
        %6810 = vmatpush1.msra.mxu0 0.0
        %6811 = vmatprep.subr.mxu0 0.0
        %6812 = vmatpush1.msra.mxu0 %v6779
        %6813 = vmatprep.subr.mxu0 0.0
        %6814 = vmatpush2.msra.mxu0 0.0
        %6815 = vmatprep.subr.mxu0 0.0
        %6816 = vmatpush2.msra.mxu0 0.0
        %6817 = vmatprep.subr.mxu0 0.0
        %6818 = vmatpush2.msra.mxu0 0.0
        %6819 = vmatprep.subr.mxu0 0.0
        %6820 = vmatpush2.msra.mxu0 0.0
        %6821 = vmatprep.subr.mxu0 0.0
        %6822 = vmatpush2.msra.mxu0 0.0
        %6823 = vmatprep.subr.mxu0 0.0
        %6824 = vmatpush2.msra.mxu0 0.0
        %6825 = vmatprep.subr.mxu0 0.0
        %6826 = vmatpush2.msra.mxu0 0.0
        %6827 = vmatprep.subr.mxu0 0.0
        %6828 = vmatpush2.msra.mxu0 0.0
        %6829 = vmatprep.subr.mxu0 0.0
        %6830 = vmatpush2.msra.mxu0 0.0
        %6831 = vmatprep.subr.mxu0 0.0
        %6832 = vmatpush2.msra.mxu0 0.0
        %6833 = vmatprep.subr.mxu0 0.0
        %6834 = vmatpush2.msra.mxu0 0.0
        %6835 = vmatprep.subr.mxu0 0.0
        %6836 = vmatpush2.msra.mxu0 0.0
        %6837 = vmatprep.subr.mxu0 0.0
        %6838 = vmatpush2.msra.mxu0 0.0
        %6839 = vmatprep.subr.mxu0 0.0
        %6840 = vmatpush2.msra.mxu0 0.0
        %6841 = vmatprep.subr.mxu0 0.0
        %6842 = vmatpush2.msra.mxu0 0.0
        %6843 = vmatprep.subr.mxu0 0.0
        %6844 = vmatpush2.msra.mxu0 0.0
        %6845 = vmatprep.mubr.f32.mxu0 0.0
        %6846 = vmatmul.mubr.f32.gmra.mxu0 %v6775
        %v6847 = vpop.f32.mrf.mxu0
        %v6848 = vadd.f32 0.0, %v6847
        %v6849 = vpop.f32.mrf.mxu0
        %6850 = vdwg.mxu0
        %s6851 = scalar_lea.vmem %s12, 1
        %v6852 = vld [vmem:[%s6851] sm:$0x1]
        %v6854 = vsel %vm439, %v6852, 0
        %6856 = vmatprep.subr.mxu0 0.0
        %6857 = vmatpush1.msra.mxu0 0.0
        %6858 = vmatprep.subr.mxu0 0.0
        %6859 = vmatpush1.msra.mxu0 0.0
        %6860 = vmatprep.subr.mxu0 0.0
        %6861 = vmatpush1.msra.mxu0 0.0
        %6862 = vmatprep.subr.mxu0 0.0
        %6863 = vmatpush1.msra.mxu0 0.0
        %6864 = vmatprep.subr.mxu0 0.0
        %6865 = vmatpush1.msra.mxu0 0.0
        %6866 = vmatprep.subr.mxu0 0.0
        %6867 = vmatpush1.msra.mxu0 0.0
        %6868 = vmatprep.subr.mxu0 0.0
        %6869 = vmatpush1.msra.mxu0 0.0
        %6870 = vmatprep.subr.mxu0 0.0
        %6871 = vmatpush1.msra.mxu0 0.0
        %6872 = vmatprep.subr.mxu0 0.0
        %6873 = vmatpush1.msra.mxu0 0.0
        %6874 = vmatprep.subr.mxu0 0.0
        %6875 = vmatpush1.msra.mxu0 0.0
        %6876 = vmatprep.subr.mxu0 0.0
        %6877 = vmatpush1.msra.mxu0 0.0
        %6878 = vmatprep.subr.mxu0 0.0
        %6879 = vmatpush1.msra.mxu0 0.0
        %6880 = vmatprep.subr.mxu0 0.0
        %6881 = vmatpush1.msra.mxu0 0.0
        %6882 = vmatprep.subr.mxu0 0.0
        %6883 = vmatpush1.msra.mxu0 0.0
        %6884 = vmatprep.subr.mxu0 0.0
        %6885 = vmatpush1.msra.mxu0 0.0
        %6886 = vmatprep.subr.mxu0 0.0
        %6887 = vmatpush1.msra.mxu0 %v6779
        %6888 = vmatprep.subr.mxu0 0.0
        %6889 = vmatpush2.msra.mxu0 0.0
        %6890 = vmatprep.subr.mxu0 0.0
        %6891 = vmatpush2.msra.mxu0 0.0
        %6892 = vmatprep.subr.mxu0 0.0
        %6893 = vmatpush2.msra.mxu0 0.0
        %6894 = vmatprep.subr.mxu0 0.0
        %6895 = vmatpush2.msra.mxu0 0.0
        %6896 = vmatprep.subr.mxu0 0.0
        %6897 = vmatpush2.msra.mxu0 0.0
        %6898 = vmatprep.subr.mxu0 0.0
        %6899 = vmatpush2.msra.mxu0 0.0
        %6900 = vmatprep.subr.mxu0 0.0
        %6901 = vmatpush2.msra.mxu0 0.0
        %6902 = vmatprep.subr.mxu0 0.0
        %6903 = vmatpush2.msra.mxu0 0.0
        %6904 = vmatprep.subr.mxu0 0.0
        %6905 = vmatpush2.msra.mxu0 0.0
        %6906 = vmatprep.subr.mxu0 0.0
        %6907 = vmatpush2.msra.mxu0 0.0
        %6908 = vmatprep.subr.mxu0 0.0
        %6909 = vmatpush2.msra.mxu0 0.0
        %6910 = vmatprep.subr.mxu0 0.0
        %6911 = vmatpush2.msra.mxu0 0.0
        %6912 = vmatprep.subr.mxu0 0.0
        %6913 = vmatpush2.msra.mxu0 0.0
        %6914 = vmatprep.subr.mxu0 0.0
        %6915 = vmatpush2.msra.mxu0 0.0
        %6916 = vmatprep.subr.mxu0 0.0
        %6917 = vmatpush2.msra.mxu0 0.0
        %6918 = vmatprep.subr.mxu0 0.0
        %6919 = vmatpush2.msra.mxu0 0.0
        %6920 = vmatprep.mubr.f32.mxu0 0.0
        %6921 = vmatmul.mubr.f32.gmra.mxu0 %v6854
        %v6922 = vpop.f32.mrf.mxu0
        %v6923 = vadd.f32 0.0, %v6922
        %v6924 = vpop.f32.mrf.mxu0
        %6925 = vdwg.mxu0
        %v6926 = vmax.f32 %v6848, %v6923
        %s6927 = scalar_lea.vmem %s12, 2
        %v6928 = vld [vmem:[%s6927] sm:$0x1]
        %v6930 = vsel %vm439, %v6928, 0
        %6932 = vmatprep.subr.mxu0 0.0
        %6933 = vmatpush1.msra.mxu0 0.0
        %6934 = vmatprep.subr.mxu0 0.0
        %6935 = vmatpush1.msra.mxu0 0.0
        %6936 = vmatprep.subr.mxu0 0.0
        %6937 = vmatpush1.msra.mxu0 0.0
        %6938 = vmatprep.subr.mxu0 0.0
        %6939 = vmatpush1.msra.mxu0 0.0
        %6940 = vmatprep.subr.mxu0 0.0
        %6941 = vmatpush1.msra.mxu0 0.0
        %6942 = vmatprep.subr.mxu0 0.0
        %6943 = vmatpush1.msra.mxu0 0.0
        %6944 = vmatprep.subr.mxu0 0.0
        %6945 = vmatpush1.msra.mxu0 0.0
        %6946 = vmatprep.subr.mxu0 0.0
        %6947 = vmatpush1.msra.mxu0 0.0
        %6948 = vmatprep.subr.mxu0 0.0
        %6949 = vmatpush1.msra.mxu0 0.0
        %6950 = vmatprep.subr.mxu0 0.0
        %6951 = vmatpush1.msra.mxu0 0.0
        %6952 = vmatprep.subr.mxu0 0.0
        %6953 = vmatpush1.msra.mxu0 0.0
        %6954 = vmatprep.subr.mxu0 0.0
        %6955 = vmatpush1.msra.mxu0 0.0
        %6956 = vmatprep.subr.mxu0 0.0
        %6957 = vmatpush1.msra.mxu0 0.0
        %6958 = vmatprep.subr.mxu0 0.0
        %6959 = vmatpush1.msra.mxu0 0.0
        %6960 = vmatprep.subr.mxu0 0.0
        %6961 = vmatpush1.msra.mxu0 0.0
        %6962 = vmatprep.subr.mxu0 0.0
        %6963 = vmatpush1.msra.mxu0 %v6779
        %6964 = vmatprep.subr.mxu0 0.0
        %6965 = vmatpush2.msra.mxu0 0.0
        %6966 = vmatprep.subr.mxu0 0.0
        %6967 = vmatpush2.msra.mxu0 0.0
        %6968 = vmatprep.subr.mxu0 0.0
        %6969 = vmatpush2.msra.mxu0 0.0
        %6970 = vmatprep.subr.mxu0 0.0
        %6971 = vmatpush2.msra.mxu0 0.0
        %6972 = vmatprep.subr.mxu0 0.0
        %6973 = vmatpush2.msra.mxu0 0.0
        %6974 = vmatprep.subr.mxu0 0.0
        %6975 = vmatpush2.msra.mxu0 0.0
        %6976 = vmatprep.subr.mxu0 0.0
        %6977 = vmatpush2.msra.mxu0 0.0
        %6978 = vmatprep.subr.mxu0 0.0
        %6979 = vmatpush2.msra.mxu0 0.0
        %6980 = vmatprep.subr.mxu0 0.0
        %6981 = vmatpush2.msra.mxu0 0.0
        %6982 = vmatprep.subr.mxu0 0.0
        %6983 = vmatpush2.msra.mxu0 0.0
        %6984 = vmatprep.subr.mxu0 0.0
        %6985 = vmatpush2.msra.mxu0 0.0
        %6986 = vmatprep.subr.mxu0 0.0
        %6987 = vmatpush2.msra.mxu0 0.0
        %6988 = vmatprep.subr.mxu0 0.0
        %6989 = vmatpush2.msra.mxu0 0.0
        %6990 = vmatprep.subr.mxu0 0.0
        %6991 = vmatpush2.msra.mxu0 0.0
        %6992 = vmatprep.subr.mxu0 0.0
        %6993 = vmatpush2.msra.mxu0 0.0
        %6994 = vmatprep.subr.mxu0 0.0
        %6995 = vmatpush2.msra.mxu0 0.0
        %6996 = vmatprep.mubr.f32.mxu0 0.0
        %6997 = vmatmul.mubr.f32.gmra.mxu0 %v6930
        %v6998 = vpop.f32.mrf.mxu0
        %v6999 = vadd.f32 0.0, %v6998
        %v7000 = vpop.f32.mrf.mxu0
        %7001 = vdwg.mxu0
        %v7002 = vmax.f32 %v6926, %v6999
        %s7003 = scalar_lea.vmem %s12, 3
        %v7004 = vld [vmem:[%s7003] sm:$0x1]
        %v7006 = vsel %vm439, %v7004, 0
        %7008 = vmatprep.subr.mxu0 0.0
        %7009 = vmatpush1.msra.mxu0 0.0
        %7010 = vmatprep.subr.mxu0 0.0
        %7011 = vmatpush1.msra.mxu0 0.0
        %7012 = vmatprep.subr.mxu0 0.0
        %7013 = vmatpush1.msra.mxu0 0.0
        %7014 = vmatprep.subr.mxu0 0.0
        %7015 = vmatpush1.msra.mxu0 0.0
        %7016 = vmatprep.subr.mxu0 0.0
        %7017 = vmatpush1.msra.mxu0 0.0
        %7018 = vmatprep.subr.mxu0 0.0
        %7019 = vmatpush1.msra.mxu0 0.0
        %7020 = vmatprep.subr.mxu0 0.0
        %7021 = vmatpush1.msra.mxu0 0.0
        %7022 = vmatprep.subr.mxu0 0.0
        %7023 = vmatpush1.msra.mxu0 0.0
        %7024 = vmatprep.subr.mxu0 0.0
        %7025 = vmatpush1.msra.mxu0 0.0
        %7026 = vmatprep.subr.mxu0 0.0
        %7027 = vmatpush1.msra.mxu0 0.0
        %7028 = vmatprep.subr.mxu0 0.0
        %7029 = vmatpush1.msra.mxu0 0.0
        %7030 = vmatprep.subr.mxu0 0.0
        %7031 = vmatpush1.msra.mxu0 0.0
        %7032 = vmatprep.subr.mxu0 0.0
        %7033 = vmatpush1.msra.mxu0 0.0
        %7034 = vmatprep.subr.mxu0 0.0
        %7035 = vmatpush1.msra.mxu0 0.0
        %7036 = vmatprep.subr.mxu0 0.0
        %7037 = vmatpush1.msra.mxu0 0.0
        %7038 = vmatprep.subr.mxu0 0.0
        %7039 = vmatpush1.msra.mxu0 %v6779
        %7040 = vmatprep.subr.mxu0 0.0
        %7041 = vmatpush2.msra.mxu0 0.0
        %7042 = vmatprep.subr.mxu0 0.0
        %7043 = vmatpush2.msra.mxu0 0.0
        %7044 = vmatprep.subr.mxu0 0.0
        %7045 = vmatpush2.msra.mxu0 0.0
        %7046 = vmatprep.subr.mxu0 0.0
        %7047 = vmatpush2.msra.mxu0 0.0
        %7048 = vmatprep.subr.mxu0 0.0
        %7049 = vmatpush2.msra.mxu0 0.0
        %7050 = vmatprep.subr.mxu0 0.0
        %7051 = vmatpush2.msra.mxu0 0.0
        %7052 = vmatprep.subr.mxu0 0.0
        %7053 = vmatpush2.msra.mxu0 0.0
        %7054 = vmatprep.subr.mxu0 0.0
        %7055 = vmatpush2.msra.mxu0 0.0
        %7056 = vmatprep.subr.mxu0 0.0
        %7057 = vmatpush2.msra.mxu0 0.0
        %7058 = vmatprep.subr.mxu0 0.0
        %7059 = vmatpush2.msra.mxu0 0.0
        %7060 = vmatprep.subr.mxu0 0.0
        %7061 = vmatpush2.msra.mxu0 0.0
        %7062 = vmatprep.subr.mxu0 0.0
        %7063 = vmatpush2.msra.mxu0 0.0
        %7064 = vmatprep.subr.mxu0 0.0
        %7065 = vmatpush2.msra.mxu0 0.0
        %7066 = vmatprep.subr.mxu0 0.0
        %7067 = vmatpush2.msra.mxu0 0.0
        %7068 = vmatprep.subr.mxu0 0.0
        %7069 = vmatpush2.msra.mxu0 0.0
        %7070 = vmatprep.subr.mxu0 0.0
        %7071 = vmatpush2.msra.mxu0 0.0
        %7072 = vmatprep.mubr.f32.mxu0 0.0
        %7073 = vmatmul.mubr.f32.gmra.mxu0 %v7006
        %v7074 = vpop.f32.mrf.mxu0
        %v7075 = vadd.f32 0.0, %v7074
        %v7076 = vpop.f32.mrf.mxu0
        %7077 = vdwg.mxu0
        %v7078 = vmax.f32 %v7002, %v7075
        %v7079 = vld [vmem:[%s11] sm:$0x1]
        %v7080 = vadd.f32 %v7078, %v7079
        %v7081 = vmax.f32 %v7080, 0.0
        %vm7082 = vcmask 253952
        %7083 = vst.msk [vmem:[%s432] sm:$0x1] %vm7082, %v7081
        %s7084 = sand.u32 %s313, 1
        %s7085 = scalar_lea.sflag [#allocation7], %s7084
        %s7086 = sand.u32 %s313, 1
        %s7087 = scalar_lea.vmem [#allocation6], %s7086
        // Predicated region
        $region73: #{protonet_forward.1} parent=71 // pred_check
          %p7088 = pneg %p323
        $region74: #{protonet_forward.1} parent=71 // pred_check_branch
          %7090 = sbr.rel (%p7088) target = $region76
        $region75: #{protonet_forward.1} parent=71 // pred_region
          %s7092 = ssub.s32 16, 16
          %7093 = vsyncadd %s7085, %s7092
          %s7094 = smul.addr %s27, 16
          %s7095 = scalar_lea.hbm %s13, %s7094
          %s7097 = sshll.u32 %s7087, 4
          %s7098 = int_to_ptr.vmem [resolvable:$true] %s7097
          %7100 = dma.vmem_to_hbm [thread:$0]  %s7098, 16, %s7095, %s7085
        $region76: #{protonet_forward.1} parent=71 // pred_fallthru
          _
      $region72: #{protonet_forward.1} parent=5 // pred_fallthru
        _
      %p7101 = scmp.le.s32.totalorder 2, %s22
      // Predicated region
      $region77: #{protonet_forward.1} parent=5 // pred_check
        %p7102 = pneg %p7101
      $region78: #{protonet_forward.1} parent=5 // pred_check_branch
        %7104 = sbr.rel (%p7102) target = $region80
      $region79: #{protonet_forward.1} parent=5 // pred_region
        %s7105 = ssub.s32 %s22, 2
        // Predicated region
        $region81: #{protonet_forward.1} parent=79 // pred_check
          %p7106 = pneg %p329
        $region82: #{protonet_forward.1} parent=79 // pred_check_branch
          %7108 = sbr.rel (%p7106) target = $region84
        $region83: #{protonet_forward.1} parent=79 // pred_region
          %s7109 = sand.u32 %s314, 1
          %s7110 = scalar_lea.sflag [#allocation7], %s7109
          %s7111 = sand.u32 %s314, 1
          %s7112 = scalar_lea.vmem [#allocation6], %s7111
          %7113 = dma.done %s7110, 16
        $region84: #{protonet_forward.1} parent=79 // pred_fallthru
          _
      $region80: #{protonet_forward.1} parent=5 // pred_fallthru
        _
    $region6: #{protonet_forward.1} parent=1 // loop_footer
      %s26 = sadd.s32 1, %s22
    $region7: #{protonet_forward.1} parent=1 // loop_footer_branch
      %21 = sbr.rel target = $region3
    $region8: #{protonet_forward.1} parent=1 // loop_exit
      _
    %7114 = vsyncpa [#allocation7], 1
    %s7115 = scalar_lea.sflag [#allocation7], 1
    %7116 = vsyncpa %s7115, 1

</llo_original>
